<compile_context>
chip_gen: v6e
topology: v6e:2x2x1
jax: 0.10.0
libtpu: 0.0.40
codegen_flags: <defaults>
</compile_context>

<pallas_src>
import functools

import jax
import jax.numpy as jnp
import numpy as np
from jax import lax
from jax.experimental import pallas as pl
from jax.experimental.pallas import tpu as pltpu


# -----------------------------------------------------------------------------
# Kernel 1: Conv3d (stride 2, zero pad, Cin=1) as banded MXU matmuls
#           + single-pass per-sample BN statistics (sum, sum of squares).
# -----------------------------------------------------------------------------
def _conv_stats_kernel(xph_ref, wb_ref, conv_ref, stats_ref, *, Do, Ho):
    Kd, Kh, Wp, NC = wb_ref.shape            # NC = Wo * Cout (lane-dense width)
    acc = jnp.zeros((Do * Ho, NC), jnp.float32)
    for kd in range(Kd):
        for kh in range(Kh):
            p = (kd % 2) * 2 + (kh % 2)      # phase of the space-to-depth input
            dd, hh = kd // 2, kh // 2
            a = xph_ref[0, p, dd:dd + Do, hh:hh + Ho, :]         # (Do, Ho, Wp) f32
            a = a.reshape(Do * Ho, Wp).astype(jnp.bfloat16)      # bf16 MXU input
            acc += jnp.dot(a, wb_ref[kd, kh],
                           preferred_element_type=jnp.float32)   # f32 accumulation
    conv_ref[0] = acc                                            # lane-dense store
    s = jnp.sum(acc, axis=0, keepdims=True)                      # (1, NC)
    s2 = jnp.sum(acc * acc, axis=0, keepdims=True)               # (1, NC)
    stats_ref[0] = jnp.concatenate([s, s2], axis=0)              # (2, NC)


# -----------------------------------------------------------------------------
# Kernel 2: BN scale/shift + LeakyReLU + MaxPool3d(3, stride=2, pad=1).
# Max pool is built from contiguous lane-block / row slices only.
# -----------------------------------------------------------------------------
def _pool_lanes(m, L, C):
    # 3/2/1 max pool along a length-L axis packed in lane blocks of width C.
    Lp = L // 2
    p1 = jnp.maximum(m[:, :(L - 1) * C], m[:, C:])   # block i = max(block i, block i+1)
    outs = [p1[:, 0:C]]
    for p in range(1, Lp):
        lo = (2 * p - 1) * C
        if 2 * p + 1 < L:
            outs.append(jnp.maximum(p1[:, lo:lo + C], p1[:, lo + C:lo + 2 * C]))
        else:
            outs.append(p1[:, lo:lo + C])
    return jnp.concatenate(outs, axis=1)             # (rows, Lp*C)


def _pool_rows(blk, L):
    # 3/2/1 max pool along the (contiguous) row axis of an (L, W) block.
    Lp = L // 2
    p1 = jnp.maximum(blk[:L - 1, :], blk[1:, :])
    rows = [p1[0:1, :]]
    for p in range(1, Lp):
        lo = 2 * p - 1
        if 2 * p + 1 < L:
            rows.append(jnp.maximum(p1[lo:lo + 1, :], p1[lo + 1:lo + 2, :]))
        else:
            rows.append(p1[lo:lo + 1, :])
    return jnp.concatenate(rows, axis=0)             # (Lp, W)


def _bn_act_pool_kernel(x_ref, scale_ref, shift_ref, o_ref, *, Do, Ho, Wo, C,
                        neg_slope):
    x = x_ref[0]                                     # (Do*Ho, Wo*C) f32, lane dense
    y = x * scale_ref[...] + shift_ref[...]          # BN affine (pre-tiled to lanes)
    y = jnp.where(y > 0, y, neg_slope * y)           # LeakyReLU
    yw = _pool_lanes(y, Wo, C)                       # W-pooled: (Do*Ho, Wpo*C)
    hpool = [_pool_rows(yw[d * Ho:(d + 1) * Ho, :], Ho) for d in range(Do)]
    Po = Do // 2
    outs = []
    for pd in range(Po):                             # D-pool over python list, no slicing
        window = [hpool[d] for d in range(max(0, 2 * pd - 1), min(Do, 2 * pd + 2))]
        outs.append(functools.reduce(jnp.maximum, window))      # (Hpo, Wpo*C)
    o_ref[0] = jnp.concatenate(outs, axis=1)         # (Hpo, Po*Wpo*C), lane dense


# -----------------------------------------------------------------------------
# Wrapper
# -----------------------------------------------------------------------------
def input_block_forward(x_ncdhw, weight_oidhw, gamma, beta, *,
                        kernel_size=7, padding=3, eps=1e-3, neg_slope=0.01):
    N, Cin, D, H, W = x_ncdhw.shape
    assert Cin == 1, "InputBlock uses Conv3d(in_channels=1, ...)"
    Cout = weight_oidhw.shape[0]
    K, stride = kernel_size, 2
    Do = (D + 2 * padding - K) // stride + 1
    Ho = (H + 2 * padding - K) // stride + 1
    Wo = (W + 2 * padding - K) // stride + 1
    Dp, Hp, Wp = D + 2 * padding, H + 2 * padding, W + 2 * padding
    assert Dp % 2 == 0 and Hp % 2 == 0, "phase split needs even padded extents"
    assert Do % 2 == 0 and Ho % 2 == 0 and Wo % 2 == 0, "pool expects even conv output"
    NC = Wo * Cout

    # --- layout plumbing: zero-pad + stride-2 phase (space-to-depth) split --------
    xp = jnp.pad(x_ncdhw[:, 0],
                 ((0, 0), (padding, padding), (padding, padding), (padding, padding)))
    xph = xp.reshape(N, Dp // 2, 2, Hp // 2, 2, Wp).transpose(0, 2, 4, 1, 3, 5)
    xph = xph.reshape(N, 4, Dp // 2, Hp // 2, Wp).astype(jnp.float32)

    # --- banded weight: folds the kw loop into one K=Wp contraction per (kd,kh) ---
    w = jnp.transpose(weight_oidhw[:, 0], (1, 2, 3, 0))          # (K, K, K, Cout)
    wb = jnp.zeros((K, K, Wp, NC), jnp.float32)
    for wo in range(Wo):
        wb = wb.at[:, :, 2 * wo:2 * wo + K, wo * Cout:(wo + 1) * Cout].set(w)
    wb = wb.astype(jnp.bfloat16)

    conv_packed, stats = pl.pallas_call(
        functools.partial(_conv_stats_kernel, Do=Do, Ho=Ho),
        grid=(N,),
        in_specs=[
            pl.BlockSpec((1, 4, Dp // 2, Hp // 2, Wp), lambda n: (n, 0, 0, 0, 0)),
            pl.BlockSpec((K, K, Wp, NC), lambda n: (0, 0, 0, 0)),
        ],
        out_specs=[
            pl.BlockSpec((1, Do * Ho, NC), lambda n: (n, 0, 0)),
            pl.BlockSpec((1, 2, NC), lambda n: (n, 0, 0)),
        ],
        out_shape=[
            jax.ShapeDtypeStruct((N, Do * Ho, NC), jnp.float32),
            jax.ShapeDtypeStruct((N, 2, NC), jnp.float32),
        ],
        compiler_params=pltpu.CompilerParams(
            dimension_semantics=("parallel",),
            vmem_limit_bytes=32 * 1024 * 1024),
    )(xph, wb)

    # --- tiny BN finalize on (Cout,) vectors: keeps stats globally correct --------
    cnt = float(N * Do * Ho * Wo)
    s = stats[:, 0, :].sum(axis=0).reshape(Wo, Cout).sum(axis=0)
    s2 = stats[:, 1, :].sum(axis=0).reshape(Wo, Cout).sum(axis=0)
    mean = s / cnt
    var = s2 / cnt - mean * mean             # biased variance (BN training-mode norm)
    scale = gamma.astype(jnp.float32) * lax.rsqrt(var + eps)
    shift = beta.astype(jnp.float32) - mean * scale
    scale_t = jnp.tile(scale, Wo).reshape(1, NC)   # tiled to lane width once, outside
    shift_t = jnp.tile(shift, Wo).reshape(1, NC)

    Po, Hpo, Wpo = Do // 2, Ho // 2, Wo // 2
    pooled_packed = pl.pallas_call(
        functools.partial(_bn_act_pool_kernel, Do=Do, Ho=Ho, Wo=Wo, C=Cout,
                          neg_slope=neg_slope),
        grid=(N,),
        in_specs=[
            pl.BlockSpec((1, Do * Ho, NC), lambda n: (n, 0, 0)),
            pl.BlockSpec((1, NC), lambda n: (0, 0)),
            pl.BlockSpec((1, NC), lambda n: (0, 0)),
        ],
        out_specs=pl.BlockSpec((1, Hpo, Po * Wpo * Cout), lambda n: (n, 0, 0)),
        out_shape=jax.ShapeDtypeStruct((N, Hpo, Po * Wpo * Cout), jnp.float32),
        compiler_params=pltpu.CompilerParams(
            dimension_semantics=("parallel",),
            vmem_limit_bytes=32 * 1024 * 1024),
    )(conv_packed, scale_t, shift_t)

    # unpack lane-dense slab -> NCDHW (layout plumbing in the wrapper)
    pooled = pooled_packed.reshape(N, Hpo, Po, Wpo, Cout)
    return jnp.transpose(pooled, (0, 4, 2, 1, 3))


# -----------------------------------------------------------------------------
# Pure-JAX reference (PyTorch semantics, NCDHW)
# -----------------------------------------------------------------------------
def _reference_ncdhw(x, weight, gamma, beta, *, stride=2, padding=3,
                     eps=1e-3, neg_slope=0.01):
    conv = lax.conv_general_dilated(
        x, weight, window_strides=(stride,) * 3,
        padding=[(padding, padding)] * 3,
        dimension_numbers=("NCDHW", "OIDHW", "NCDHW"))
    mean = jnp.mean(conv, axis=(0, 2, 3, 4), keepdims=True)
    var = jnp.mean((conv - mean) ** 2, axis=(0, 2, 3, 4), keepdims=True)
    y = (conv - mean) * lax.rsqrt(var + eps)
    y = y * gamma.reshape(1, -1, 1, 1, 1) + beta.reshape(1, -1, 1, 1, 1)
    y = jnp.where(y > 0, y, neg_slope * y)
    return lax.reduce_window(
        y, -jnp.inf, lax.max,
        window_dimensions=(1, 1, 3, 3, 3),
        window_strides=(1, 1, 2, 2, 2),
        padding=[(0, 0), (0, 0), (1, 1), (1, 1), (1, 1)])


if __name__ == "__main__":
    # InputBlock(num_init_features=16, kernel_size=7, padding=3)
    N, Cin, D, H, W = 2, 1, 16, 16, 16
    num_init_features, K, padding = 16, 7, 3

    key = jax.random.PRNGKey(0)
    kx, kw, kg, kb = jax.random.split(key, 4)
    x = jax.random.normal(kx, (N, Cin, D, H, W), dtype=jnp.float32)
    weight = 0.1 * jax.random.normal(kw, (num_init_features, Cin, K, K, K),
                                     dtype=jnp.float32)
    gamma = jax.random.uniform(kg, (num_init_features,), minval=0.5, maxval=1.5,
                               dtype=jnp.float32)
    beta = 0.1 * jax.random.normal(kb, (num_init_features,), dtype=jnp.float32)

    out = input_block_forward(x, weight, gamma, beta,
                              kernel_size=K, padding=padding)
    out = jax.block_until_ready(out)

    ref = _reference_ncdhw(x, weight, gamma, beta, stride=2, padding=padding)
    np.testing.assert_allclose(np.asarray(out), np.asarray(ref),
                               atol=5e-2, rtol=5e-2)
    print("KERNEL_OK")
</pallas_src>

<mosaic_0001>
module attributes {stable_mosaic.version = 11 : i64} {
  func.func @_conv_stats_kernel(%arg0: i32, %arg1: memref<1x4x11x11x22xf32, #tpu.memory_space<vmem>>, %arg2: memref<7x7x22x128xbf16, #tpu.memory_space<vmem>>, %arg3: memref<1x64x128xf32, #tpu.memory_space<vmem>>, %arg4: memref<1x2x128xf32, #tpu.memory_space<vmem>>) attributes {dimension_semantics = [#tpu.dimension_semantics<parallel>], iteration_bounds = array<i64: 2>, scalar_prefetch = 0 : i64, scratch_operands = 0 : i64, tpu.core_type = #tpu.core_type<tc>, window_params = [{transform_indices = @transform_0, window_bounds = array<i64: 1, 4, 11, 11, 22>}, {pipeline_mode = #tpu.pipeline_mode<synchronous>, transform_indices = @transform_1, window_bounds = array<i64: 7, 7, 22, 128>}, {transform_indices = @transform_2, window_bounds = array<i64: 1, 64, 128>}, {transform_indices = @transform_3, window_bounds = array<i64: 1, 2, 128>}]} {
    %cst = arith.constant 0.000000e+00 : f32
    %0 = vector.broadcast %cst : f32 to vector<64x128xf32>
    %c0 = arith.constant 0 : index
    %c0_0 = arith.constant 0 : index
    %c0_1 = arith.constant 0 : index
    %c0_2 = arith.constant 0 : index
    %c0_3 = arith.constant 0 : index
    %1 = vector.load %arg1[%c0, %c0_0, %c0_1, %c0_2, %c0_3] : memref<1x4x11x11x22xf32, #tpu.memory_space<vmem>>, vector<1x1x8x8x22xf32>
    %2 = vector.shape_cast %1 : vector<1x1x8x8x22xf32> to vector<8x8x22xf32>
    %3 = vector.shape_cast %2 : vector<8x8x22xf32> to vector<64x22xf32>
    %4 = arith.truncf %3 : vector<64x22xf32> to vector<64x22xbf16>
    %c0_4 = arith.constant 0 : index
    %c0_5 = arith.constant 0 : index
    %c0_6 = arith.constant 0 : index
    %c0_7 = arith.constant 0 : index
    %5 = vector.load %arg2[%c0_4, %c0_5, %c0_6, %c0_7] : memref<7x7x22x128xbf16, #tpu.memory_space<vmem>>, vector<1x1x22x128xbf16>
    %6 = vector.shape_cast %5 : vector<1x1x22x128xbf16> to vector<22x128xbf16>
    %cst_8 = arith.constant dense<0.000000e+00> : vector<64x128xf32>
    %7 = tpu.matmul %4, %6, %cst_8 {dimension_numbers = #tpu.dot_dimension_numbers<[1], [0], [0], [1], [0, 0, 1, 1], [], []>} : vector<64x22xbf16>, vector<22x128xbf16>, vector<64x128xf32> -> vector<64x128xf32>
    %8 = arith.addf %0, %7 : vector<64x128xf32>
    %c0_9 = arith.constant 0 : index
    %c1 = arith.constant 1 : index
    %c0_10 = arith.constant 0 : index
    %c0_11 = arith.constant 0 : index
    %c0_12 = arith.constant 0 : index
    %9 = vector.load %arg1[%c0_9, %c1, %c0_10, %c0_11, %c0_12] : memref<1x4x11x11x22xf32, #tpu.memory_space<vmem>>, vector<1x1x8x8x22xf32>
    %10 = vector.shape_cast %9 : vector<1x1x8x8x22xf32> to vector<8x8x22xf32>
    %11 = vector.shape_cast %10 : vector<8x8x22xf32> to vector<64x22xf32>
    %12 = arith.truncf %11 : vector<64x22xf32> to vector<64x22xbf16>
    %c0_13 = arith.constant 0 : index
    %c1_14 = arith.constant 1 : index
    %c0_15 = arith.constant 0 : index
    %c0_16 = arith.constant 0 : index
    %13 = vector.load %arg2[%c0_13, %c1_14, %c0_15, %c0_16] : memref<7x7x22x128xbf16, #tpu.memory_space<vmem>>, vector<1x1x22x128xbf16>
    %14 = vector.shape_cast %13 : vector<1x1x22x128xbf16> to vector<22x128xbf16>
    %cst_17 = arith.constant dense<0.000000e+00> : vector<64x128xf32>
    %15 = tpu.matmul %12, %14, %cst_17 {dimension_numbers = #tpu.dot_dimension_numbers<[1], [0], [0], [1], [0, 0, 1, 1], [], []>} : vector<64x22xbf16>, vector<22x128xbf16>, vector<64x128xf32> -> vector<64x128xf32>
    %16 = arith.addf %8, %15 : vector<64x128xf32>
    %c0_18 = arith.constant 0 : index
    %c0_19 = arith.constant 0 : index
    %c0_20 = arith.constant 0 : index
    %c1_21 = arith.constant 1 : index
    %c0_22 = arith.constant 0 : index
    %17 = vector.load %arg1[%c0_18, %c0_19, %c0_20, %c1_21, %c0_22] : memref<1x4x11x11x22xf32, #tpu.memory_space<vmem>>, vector<1x1x8x8x22xf32>
    %18 = vector.shape_cast %17 : vector<1x1x8x8x22xf32> to vector<8x8x22xf32>
    %19 = vector.shape_cast %18 : vector<8x8x22xf32> to vector<64x22xf32>
    %20 = arith.truncf %19 : vector<64x22xf32> to vector<64x22xbf16>
    %c0_23 = arith.constant 0 : index
    %c2 = arith.constant 2 : index
    %c0_24 = arith.constant 0 : index
    %c0_25 = arith.constant 0 : index
    %21 = vector.load %arg2[%c0_23, %c2, %c0_24, %c0_25] : memref<7x7x22x128xbf16, #tpu.memory_space<vmem>>, vector<1x1x22x128xbf16>
    %22 = vector.shape_cast %21 : vector<1x1x22x128xbf16> to vector<22x128xbf16>
    %cst_26 = arith.constant dense<0.000000e+00> : vector<64x128xf32>
    %23 = tpu.matmul %20, %22, %cst_26 {dimension_numbers = #tpu.dot_dimension_numbers<[1], [0], [0], [1], [0, 0, 1, 1], [], []>} : vector<64x22xbf16>, vector<22x128xbf16>, vector<64x128xf32> -> vector<64x128xf32>
    %24 = arith.addf %16, %23 : vector<64x128xf32>
    %c0_27 = arith.constant 0 : index
    %c1_28 = arith.constant 1 : index
    %c0_29 = arith.constant 0 : index
    %c1_30 = arith.constant 1 : index
    %c0_31 = arith.constant 0 : index
    %25 = vector.load %arg1[%c0_27, %c1_28, %c0_29, %c1_30, %c0_31] : memref<1x4x11x11x22xf32, #tpu.memory_space<vmem>>, vector<1x1x8x8x22xf32>
    %26 = vector.shape_cast %25 : vector<1x1x8x8x22xf32> to vector<8x8x22xf32>
    %27 = vector.shape_cast %26 : vector<8x8x22xf32> to vector<64x22xf32>
    %28 = arith.truncf %27 : vector<64x22xf32> to vector<64x22xbf16>
    %c0_32 = arith.constant 0 : index
    %c3 = arith.constant 3 : index
    %c0_33 = arith.constant 0 : index
    %c0_34 = arith.constant 0 : index
    %29 = vector.load %arg2[%c0_32, %c3, %c0_33, %c0_34] : memref<7x7x22x128xbf16, #tpu.memory_space<vmem>>, vector<1x1x22x128xbf16>
    %30 = vector.shape_cast %29 : vector<1x1x22x128xbf16> to vector<22x128xbf16>
    %cst_35 = arith.constant dense<0.000000e+00> : vector<64x128xf32>
    %31 = tpu.matmul %28, %30, %cst_35 {dimension_numbers = #tpu.dot_dimension_numbers<[1], [0], [0], [1], [0, 0, 1, 1], [], []>} : vector<64x22xbf16>, vector<22x128xbf16>, vector<64x128xf32> -> vector<64x128xf32>
    %32 = arith.addf %24, %31 : vector<64x128xf32>
    %c0_36 = arith.constant 0 : index
    %c0_37 = arith.constant 0 : index
    %c0_38 = arith.constant 0 : index
    %c2_39 = arith.constant 2 : index
    %c0_40 = arith.constant 0 : index
    %33 = vector.load %arg1[%c0_36, %c0_37, %c0_38, %c2_39, %c0_40] : memref<1x4x11x11x22xf32, #tpu.memory_space<vmem>>, vector<1x1x8x8x22xf32>
    %34 = vector.shape_cast %33 : vector<1x1x8x8x22xf32> to vector<8x8x22xf32>
    %35 = vector.shape_cast %34 : vector<8x8x22xf32> to vector<64x22xf32>
    %36 = arith.truncf %35 : vector<64x22xf32> to vector<64x22xbf16>
    %c0_41 = arith.constant 0 : index
    %c4 = arith.constant 4 : index
    %c0_42 = arith.constant 0 : index
    %c0_43 = arith.constant 0 : index
    %37 = vector.load %arg2[%c0_41, %c4, %c0_42, %c0_43] : memref<7x7x22x128xbf16, #tpu.memory_space<vmem>>, vector<1x1x22x128xbf16>
    %38 = vector.shape_cast %37 : vector<1x1x22x128xbf16> to vector<22x128xbf16>
    %cst_44 = arith.constant dense<0.000000e+00> : vector<64x128xf32>
    %39 = tpu.matmul %36, %38, %cst_44 {dimension_numbers = #tpu.dot_dimension_numbers<[1], [0], [0], [1], [0, 0, 1, 1], [], []>} : vector<64x22xbf16>, vector<22x128xbf16>, vector<64x128xf32> -> vector<64x128xf32>
    %40 = arith.addf %32, %39 : vector<64x128xf32>
    %c0_45 = arith.constant 0 : index
    %c1_46 = arith.constant 1 : index
    %c0_47 = arith.constant 0 : index
    %c2_48 = arith.constant 2 : index
    %c0_49 = arith.constant 0 : index
    %41 = vector.load %arg1[%c0_45, %c1_46, %c0_47, %c2_48, %c0_49] : memref<1x4x11x11x22xf32, #tpu.memory_space<vmem>>, vector<1x1x8x8x22xf32>
    %42 = vector.shape_cast %41 : vector<1x1x8x8x22xf32> to vector<8x8x22xf32>
    %43 = vector.shape_cast %42 : vector<8x8x22xf32> to vector<64x22xf32>
    %44 = arith.truncf %43 : vector<64x22xf32> to vector<64x22xbf16>
    %c0_50 = arith.constant 0 : index
    %c5 = arith.constant 5 : index
    %c0_51 = arith.constant 0 : index
    %c0_52 = arith.constant 0 : index
    %45 = vector.load %arg2[%c0_50, %c5, %c0_51, %c0_52] : memref<7x7x22x128xbf16, #tpu.memory_space<vmem>>, vector<1x1x22x128xbf16>
    %46 = vector.shape_cast %45 : vector<1x1x22x128xbf16> to vector<22x128xbf16>
    %cst_53 = arith.constant dense<0.000000e+00> : vector<64x128xf32>
    %47 = tpu.matmul %44, %46, %cst_53 {dimension_numbers = #tpu.dot_dimension_numbers<[1], [0], [0], [1], [0, 0, 1, 1], [], []>} : vector<64x22xbf16>, vector<22x128xbf16>, vector<64x128xf32> -> vector<64x128xf32>
    %48 = arith.addf %40, %47 : vector<64x128xf32>
    %c0_54 = arith.constant 0 : index
    %c0_55 = arith.constant 0 : index
    %c0_56 = arith.constant 0 : index
    %c3_57 = arith.constant 3 : index
    %c0_58 = arith.constant 0 : index
    %49 = vector.load %arg1[%c0_54, %c0_55, %c0_56, %c3_57, %c0_58] : memref<1x4x11x11x22xf32, #tpu.memory_space<vmem>>, vector<1x1x8x8x22xf32>
    %50 = vector.shape_cast %49 : vector<1x1x8x8x22xf32> to vector<8x8x22xf32>
    %51 = vector.shape_cast %50 : vector<8x8x22xf32> to vector<64x22xf32>
    %52 = arith.truncf %51 : vector<64x22xf32> to vector<64x22xbf16>
    %c0_59 = arith.constant 0 : index
    %c6 = arith.constant 6 : index
    %c0_60 = arith.constant 0 : index
    %c0_61 = arith.constant 0 : index
    %53 = vector.load %arg2[%c0_59, %c6, %c0_60, %c0_61] : memref<7x7x22x128xbf16, #tpu.memory_space<vmem>>, vector<1x1x22x128xbf16>
    %54 = vector.shape_cast %53 : vector<1x1x22x128xbf16> to vector<22x128xbf16>
    %cst_62 = arith.constant dense<0.000000e+00> : vector<64x128xf32>
    %55 = tpu.matmul %52, %54, %cst_62 {dimension_numbers = #tpu.dot_dimension_numbers<[1], [0], [0], [1], [0, 0, 1, 1], [], []>} : vector<64x22xbf16>, vector<22x128xbf16>, vector<64x128xf32> -> vector<64x128xf32>
    %56 = arith.addf %48, %55 : vector<64x128xf32>
    %c0_63 = arith.constant 0 : index
    %c2_64 = arith.constant 2 : index
    %c0_65 = arith.constant 0 : index
    %c0_66 = arith.constant 0 : index
    %c0_67 = arith.constant 0 : index
    %57 = vector.load %arg1[%c0_63, %c2_64, %c0_65, %c0_66, %c0_67] : memref<1x4x11x11x22xf32, #tpu.memory_space<vmem>>, vector<1x1x8x8x22xf32>
    %58 = vector.shape_cast %57 : vector<1x1x8x8x22xf32> to vector<8x8x22xf32>
    %59 = vector.shape_cast %58 : vector<8x8x22xf32> to vector<64x22xf32>
    %60 = arith.truncf %59 : vector<64x22xf32> to vector<64x22xbf16>
    %c1_68 = arith.constant 1 : index
    %c0_69 = arith.constant 0 : index
    %c0_70 = arith.constant 0 : index
    %c0_71 = arith.constant 0 : index
    %61 = vector.load %arg2[%c1_68, %c0_69, %c0_70, %c0_71] : memref<7x7x22x128xbf16, #tpu.memory_space<vmem>>, vector<1x1x22x128xbf16>
    %62 = vector.shape_cast %61 : vector<1x1x22x128xbf16> to vector<22x128xbf16>
    %cst_72 = arith.constant dense<0.000000e+00> : vector<64x128xf32>
    %63 = tpu.matmul %60, %62, %cst_72 {dimension_numbers = #tpu.dot_dimension_numbers<[1], [0], [0], [1], [0, 0, 1, 1], [], []>} : vector<64x22xbf16>, vector<22x128xbf16>, vector<64x128xf32> -> vector<64x128xf32>
    %64 = arith.addf %56, %63 : vector<64x128xf32>
    %c0_73 = arith.constant 0 : index
    %c3_74 = arith.constant 3 : index
    %c0_75 = arith.constant 0 : index
    %c0_76 = arith.constant 0 : index
    %c0_77 = arith.constant 0 : index
    %65 = vector.load %arg1[%c0_73, %c3_74, %c0_75, %c0_76, %c0_77] : memref<1x4x11x11x22xf32, #tpu.memory_space<vmem>>, vector<1x1x8x8x22xf32>
    %66 = vector.shape_cast %65 : vector<1x1x8x8x22xf32> to vector<8x8x22xf32>
    %67 = vector.shape_cast %66 : vector<8x8x22xf32> to vector<64x22xf32>
    %68 = arith.truncf %67 : vector<64x22xf32> to vector<64x22xbf16>
    %c1_78 = arith.constant 1 : index
    %c1_79 = arith.constant 1 : index
    %c0_80 = arith.constant 0 : index
    %c0_81 = arith.constant 0 : index
    %69 = vector.load %arg2[%c1_78, %c1_79, %c0_80, %c0_81] : memref<7x7x22x128xbf16, #tpu.memory_space<vmem>>, vector<1x1x22x128xbf16>
    %70 = vector.shape_cast %69 : vector<1x1x22x128xbf16> to vector<22x128xbf16>
    %cst_82 = arith.constant dense<0.000000e+00> : vector<64x128xf32>
    %71 = tpu.matmul %68, %70, %cst_82 {dimension_numbers = #tpu.dot_dimension_numbers<[1], [0], [0], [1], [0, 0, 1, 1], [], []>} : vector<64x22xbf16>, vector<22x128xbf16>, vector<64x128xf32> -> vector<64x128xf32>
    %72 = arith.addf %64, %71 : vector<64x128xf32>
    %c0_83 = arith.constant 0 : index
    %c2_84 = arith.constant 2 : index
    %c0_85 = arith.constant 0 : index
    %c1_86 = arith.constant 1 : index
    %c0_87 = arith.constant 0 : index
    %73 = vector.load %arg1[%c0_83, %c2_84, %c0_85, %c1_86, %c0_87] : memref<1x4x11x11x22xf32, #tpu.memory_space<vmem>>, vector<1x1x8x8x22xf32>
    %74 = vector.shape_cast %73 : vector<1x1x8x8x22xf32> to vector<8x8x22xf32>
    %75 = vector.shape_cast %74 : vector<8x8x22xf32> to vector<64x22xf32>
    %76 = arith.truncf %75 : vector<64x22xf32> to vector<64x22xbf16>
    %c1_88 = arith.constant 1 : index
    %c2_89 = arith.constant 2 : index
    %c0_90 = arith.constant 0 : index
    %c0_91 = arith.constant 0 : index
    %77 = vector.load %arg2[%c1_88, %c2_89, %c0_90, %c0_91] : memref<7x7x22x128xbf16, #tpu.memory_space<vmem>>, vector<1x1x22x128xbf16>
    %78 = vector.shape_cast %77 : vector<1x1x22x128xbf16> to vector<22x128xbf16>
    %cst_92 = arith.constant dense<0.000000e+00> : vector<64x128xf32>
    %79 = tpu.matmul %76, %78, %cst_92 {dimension_numbers = #tpu.dot_dimension_numbers<[1], [0], [0], [1], [0, 0, 1, 1], [], []>} : vector<64x22xbf16>, vector<22x128xbf16>, vector<64x128xf32> -> vector<64x128xf32>
    %80 = arith.addf %72, %79 : vector<64x128xf32>
    %c0_93 = arith.constant 0 : index
    %c3_94 = arith.constant 3 : index
    %c0_95 = arith.constant 0 : index
    %c1_96 = arith.constant 1 : index
    %c0_97 = arith.constant 0 : index
    %81 = vector.load %arg1[%c0_93, %c3_94, %c0_95, %c1_96, %c0_97] : memref<1x4x11x11x22xf32, #tpu.memory_space<vmem>>, vector<1x1x8x8x22xf32>
    %82 = vector.shape_cast %81 : vector<1x1x8x8x22xf32> to vector<8x8x22xf32>
    %83 = vector.shape_cast %82 : vector<8x8x22xf32> to vector<64x22xf32>
    %84 = arith.truncf %83 : vector<64x22xf32> to vector<64x22xbf16>
    %c1_98 = arith.constant 1 : index
    %c3_99 = arith.constant 3 : index
    %c0_100 = arith.constant 0 : index
    %c0_101 = arith.constant 0 : index
    %85 = vector.load %arg2[%c1_98, %c3_99, %c0_100, %c0_101] : memref<7x7x22x128xbf16, #tpu.memory_space<vmem>>, vector<1x1x22x128xbf16>
    %86 = vector.shape_cast %85 : vector<1x1x22x128xbf16> to vector<22x128xbf16>
    %cst_102 = arith.constant dense<0.000000e+00> : vector<64x128xf32>
    %87 = tpu.matmul %84, %86, %cst_102 {dimension_numbers = #tpu.dot_dimension_numbers<[1], [0], [0], [1], [0, 0, 1, 1], [], []>} : vector<64x22xbf16>, vector<22x128xbf16>, vector<64x128xf32> -> vector<64x128xf32>
    %88 = arith.addf %80, %87 : vector<64x128xf32>
    %c0_103 = arith.constant 0 : index
    %c2_104 = arith.constant 2 : index
    %c0_105 = arith.constant 0 : index
    %c2_106 = arith.constant 2 : index
    %c0_107 = arith.constant 0 : index
    %89 = vector.load %arg1[%c0_103, %c2_104, %c0_105, %c2_106, %c0_107] : memref<1x4x11x11x22xf32, #tpu.memory_space<vmem>>, vector<1x1x8x8x22xf32>
    %90 = vector.shape_cast %89 : vector<1x1x8x8x22xf32> to vector<8x8x22xf32>
    %91 = vector.shape_cast %90 : vector<8x8x22xf32> to vector<64x22xf32>
    %92 = arith.truncf %91 : vector<64x22xf32> to vector<64x22xbf16>
    %c1_108 = arith.constant 1 : index
    %c4_109 = arith.constant 4 : index
    %c0_110 = arith.constant 0 : index
    %c0_111 = arith.constant 0 : index
    %93 = vector.load %arg2[%c1_108, %c4_109, %c0_110, %c0_111] : memref<7x7x22x128xbf16, #tpu.memory_space<vmem>>, vector<1x1x22x128xbf16>
    %94 = vector.shape_cast %93 : vector<1x1x22x128xbf16> to vector<22x128xbf16>
    %cst_112 = arith.constant dense<0.000000e+00> : vector<64x128xf32>
    %95 = tpu.matmul %92, %94, %cst_112 {dimension_numbers = #tpu.dot_dimension_numbers<[1], [0], [0], [1], [0, 0, 1, 1], [], []>} : vector<64x22xbf16>, vector<22x128xbf16>, vector<64x128xf32> -> vector<64x128xf32>
    %96 = arith.addf %88, %95 : vector<64x128xf32>
    %c0_113 = arith.constant 0 : index
    %c3_114 = arith.constant 3 : index
    %c0_115 = arith.constant 0 : index
    %c2_116 = arith.constant 2 : index
    %c0_117 = arith.constant 0 : index
    %97 = vector.load %arg1[%c0_113, %c3_114, %c0_115, %c2_116, %c0_117] : memref<1x4x11x11x22xf32, #tpu.memory_space<vmem>>, vector<1x1x8x8x22xf32>
    %98 = vector.shape_cast %97 : vector<1x1x8x8x22xf32> to vector<8x8x22xf32>
    %99 = vector.shape_cast %98 : vector<8x8x22xf32> to vector<64x22xf32>
    %100 = arith.truncf %99 : vector<64x22xf32> to vector<64x22xbf16>
    %c1_118 = arith.constant 1 : index
    %c5_119 = arith.constant 5 : index
    %c0_120 = arith.constant 0 : index
    %c0_121 = arith.constant 0 : index
    %101 = vector.load %arg2[%c1_118, %c5_119, %c0_120, %c0_121] : memref<7x7x22x128xbf16, #tpu.memory_space<vmem>>, vector<1x1x22x128xbf16>
    %102 = vector.shape_cast %101 : vector<1x1x22x128xbf16> to vector<22x128xbf16>
    %cst_122 = arith.constant dense<0.000000e+00> : vector<64x128xf32>
    %103 = tpu.matmul %100, %102, %cst_122 {dimension_numbers = #tpu.dot_dimension_numbers<[1], [0], [0], [1], [0, 0, 1, 1], [], []>} : vector<64x22xbf16>, vector<22x128xbf16>, vector<64x128xf32> -> vector<64x128xf32>
    %104 = arith.addf %96, %103 : vector<64x128xf32>
    %c0_123 = arith.constant 0 : index
    %c2_124 = arith.constant 2 : index
    %c0_125 = arith.constant 0 : index
    %c3_126 = arith.constant 3 : index
    %c0_127 = arith.constant 0 : index
    %105 = vector.load %arg1[%c0_123, %c2_124, %c0_125, %c3_126, %c0_127] : memref<1x4x11x11x22xf32, #tpu.memory_space<vmem>>, vector<1x1x8x8x22xf32>
    %106 = vector.shape_cast %105 : vector<1x1x8x8x22xf32> to vector<8x8x22xf32>
    %107 = vector.shape_cast %106 : vector<8x8x22xf32> to vector<64x22xf32>
    %108 = arith.truncf %107 : vector<64x22xf32> to vector<64x22xbf16>
    %c1_128 = arith.constant 1 : index
    %c6_129 = arith.constant 6 : index
    %c0_130 = arith.constant 0 : index
    %c0_131 = arith.constant 0 : index
    %109 = vector.load %arg2[%c1_128, %c6_129, %c0_130, %c0_131] : memref<7x7x22x128xbf16, #tpu.memory_space<vmem>>, vector<1x1x22x128xbf16>
    %110 = vector.shape_cast %109 : vector<1x1x22x128xbf16> to vector<22x128xbf16>
    %cst_132 = arith.constant dense<0.000000e+00> : vector<64x128xf32>
    %111 = tpu.matmul %108, %110, %cst_132 {dimension_numbers = #tpu.dot_dimension_numbers<[1], [0], [0], [1], [0, 0, 1, 1], [], []>} : vector<64x22xbf16>, vector<22x128xbf16>, vector<64x128xf32> -> vector<64x128xf32>
    %112 = arith.addf %104, %111 : vector<64x128xf32>
    %c0_133 = arith.constant 0 : index
    %c0_134 = arith.constant 0 : index
    %c1_135 = arith.constant 1 : index
    %c0_136 = arith.constant 0 : index
    %c0_137 = arith.constant 0 : index
    %113 = vector.load %arg1[%c0_133, %c0_134, %c1_135, %c0_136, %c0_137] : memref<1x4x11x11x22xf32, #tpu.memory_space<vmem>>, vector<1x1x8x8x22xf32>
    %114 = vector.shape_cast %113 : vector<1x1x8x8x22xf32> to vector<8x8x22xf32>
    %115 = vector.shape_cast %114 : vector<8x8x22xf32> to vector<64x22xf32>
    %116 = arith.truncf %115 : vector<64x22xf32> to vector<64x22xbf16>
    %c2_138 = arith.constant 2 : index
    %c0_139 = arith.constant 0 : index
    %c0_140 = arith.constant 0 : index
    %c0_141 = arith.constant 0 : index
    %117 = vector.load %arg2[%c2_138, %c0_139, %c0_140, %c0_141] : memref<7x7x22x128xbf16, #tpu.memory_space<vmem>>, vector<1x1x22x128xbf16>
    %118 = vector.shape_cast %117 : vector<1x1x22x128xbf16> to vector<22x128xbf16>
    %cst_142 = arith.constant dense<0.000000e+00> : vector<64x128xf32>
    %119 = tpu.matmul %116, %118, %cst_142 {dimension_numbers = #tpu.dot_dimension_numbers<[1], [0], [0], [1], [0, 0, 1, 1], [], []>} : vector<64x22xbf16>, vector<22x128xbf16>, vector<64x128xf32> -> vector<64x128xf32>
    %120 = arith.addf %112, %119 : vector<64x128xf32>
    %c0_143 = arith.constant 0 : index
    %c1_144 = arith.constant 1 : index
    %c1_145 = arith.constant 1 : index
    %c0_146 = arith.constant 0 : index
    %c0_147 = arith.constant 0 : index
    %121 = vector.load %arg1[%c0_143, %c1_144, %c1_145, %c0_146, %c0_147] : memref<1x4x11x11x22xf32, #tpu.memory_space<vmem>>, vector<1x1x8x8x22xf32>
    %122 = vector.shape_cast %121 : vector<1x1x8x8x22xf32> to vector<8x8x22xf32>
    %123 = vector.shape_cast %122 : vector<8x8x22xf32> to vector<64x22xf32>
    %124 = arith.truncf %123 : vector<64x22xf32> to vector<64x22xbf16>
    %c2_148 = arith.constant 2 : index
    %c1_149 = arith.constant 1 : index
    %c0_150 = arith.constant 0 : index
    %c0_151 = arith.constant 0 : index
    %125 = vector.load %arg2[%c2_148, %c1_149, %c0_150, %c0_151] : memref<7x7x22x128xbf16, #tpu.memory_space<vmem>>, vector<1x1x22x128xbf16>
    %126 = vector.shape_cast %125 : vector<1x1x22x128xbf16> to vector<22x128xbf16>
    %cst_152 = arith.constant dense<0.000000e+00> : vector<64x128xf32>
    %127 = tpu.matmul %124, %126, %cst_152 {dimension_numbers = #tpu.dot_dimension_numbers<[1], [0], [0], [1], [0, 0, 1, 1], [], []>} : vector<64x22xbf16>, vector<22x128xbf16>, vector<64x128xf32> -> vector<64x128xf32>
    %128 = arith.addf %120, %127 : vector<64x128xf32>
    %c0_153 = arith.constant 0 : index
    %c0_154 = arith.constant 0 : index
    %c1_155 = arith.constant 1 : index
    %c1_156 = arith.constant 1 : index
    %c0_157 = arith.constant 0 : index
    %129 = vector.load %arg1[%c0_153, %c0_154, %c1_155, %c1_156, %c0_157] : memref<1x4x11x11x22xf32, #tpu.memory_space<vmem>>, vector<1x1x8x8x22xf32>
    %130 = vector.shape_cast %129 : vector<1x1x8x8x22xf32> to vector<8x8x22xf32>
    %131 = vector.shape_cast %130 : vector<8x8x22xf32> to vector<64x22xf32>
    %132 = arith.truncf %131 : vector<64x22xf32> to vector<64x22xbf16>
    %c2_158 = arith.constant 2 : index
    %c2_159 = arith.constant 2 : index
    %c0_160 = arith.constant 0 : index
    %c0_161 = arith.constant 0 : index
    %133 = vector.load %arg2[%c2_158, %c2_159, %c0_160, %c0_161] : memref<7x7x22x128xbf16, #tpu.memory_space<vmem>>, vector<1x1x22x128xbf16>
    %134 = vector.shape_cast %133 : vector<1x1x22x128xbf16> to vector<22x128xbf16>
    %cst_162 = arith.constant dense<0.000000e+00> : vector<64x128xf32>
    %135 = tpu.matmul %132, %134, %cst_162 {dimension_numbers = #tpu.dot_dimension_numbers<[1], [0], [0], [1], [0, 0, 1, 1], [], []>} : vector<64x22xbf16>, vector<22x128xbf16>, vector<64x128xf32> -> vector<64x128xf32>
    %136 = arith.addf %128, %135 : vector<64x128xf32>
    %c0_163 = arith.constant 0 : index
    %c1_164 = arith.constant 1 : index
    %c1_165 = arith.constant 1 : index
    %c1_166 = arith.constant 1 : index
    %c0_167 = arith.constant 0 : index
    %137 = vector.load %arg1[%c0_163, %c1_164, %c1_165, %c1_166, %c0_167] : memref<1x4x11x11x22xf32, #tpu.memory_space<vmem>>, vector<1x1x8x8x22xf32>
    %138 = vector.shape_cast %137 : vector<1x1x8x8x22xf32> to vector<8x8x22xf32>
    %139 = vector.shape_cast %138 : vector<8x8x22xf32> to vector<64x22xf32>
    %140 = arith.truncf %139 : vector<64x22xf32> to vector<64x22xbf16>
    %c2_168 = arith.constant 2 : index
    %c3_169 = arith.constant 3 : index
    %c0_170 = arith.constant 0 : index
    %c0_171 = arith.constant 0 : index
    %141 = vector.load %arg2[%c2_168, %c3_169, %c0_170, %c0_171] : memref<7x7x22x128xbf16, #tpu.memory_space<vmem>>, vector<1x1x22x128xbf16>
    %142 = vector.shape_cast %141 : vector<1x1x22x128xbf16> to vector<22x128xbf16>
    %cst_172 = arith.constant dense<0.000000e+00> : vector<64x128xf32>
    %143 = tpu.matmul %140, %142, %cst_172 {dimension_numbers = #tpu.dot_dimension_numbers<[1], [0], [0], [1], [0, 0, 1, 1], [], []>} : vector<64x22xbf16>, vector<22x128xbf16>, vector<64x128xf32> -> vector<64x128xf32>
    %144 = arith.addf %136, %143 : vector<64x128xf32>
    %c0_173 = arith.constant 0 : index
    %c0_174 = arith.constant 0 : index
    %c1_175 = arith.constant 1 : index
    %c2_176 = arith.constant 2 : index
    %c0_177 = arith.constant 0 : index
    %145 = vector.load %arg1[%c0_173, %c0_174, %c1_175, %c2_176, %c0_177] : memref<1x4x11x11x22xf32, #tpu.memory_space<vmem>>, vector<1x1x8x8x22xf32>
    %146 = vector.shape_cast %145 : vector<1x1x8x8x22xf32> to vector<8x8x22xf32>
    %147 = vector.shape_cast %146 : vector<8x8x22xf32> to vector<64x22xf32>
    %148 = arith.truncf %147 : vector<64x22xf32> to vector<64x22xbf16>
    %c2_178 = arith.constant 2 : index
    %c4_179 = arith.constant 4 : index
    %c0_180 = arith.constant 0 : index
    %c0_181 = arith.constant 0 : index
    %149 = vector.load %arg2[%c2_178, %c4_179, %c0_180, %c0_181] : memref<7x7x22x128xbf16, #tpu.memory_space<vmem>>, vector<1x1x22x128xbf16>
    %150 = vector.shape_cast %149 : vector<1x1x22x128xbf16> to vector<22x128xbf16>
    %cst_182 = arith.constant dense<0.000000e+00> : vector<64x128xf32>
    %151 = tpu.matmul %148, %150, %cst_182 {dimension_numbers = #tpu.dot_dimension_numbers<[1], [0], [0], [1], [0, 0, 1, 1], [], []>} : vector<64x22xbf16>, vector<22x128xbf16>, vector<64x128xf32> -> vector<64x128xf32>
    %152 = arith.addf %144, %151 : vector<64x128xf32>
    %c0_183 = arith.constant 0 : index
    %c1_184 = arith.constant 1 : index
    %c1_185 = arith.constant 1 : index
    %c2_186 = arith.constant 2 : index
    %c0_187 = arith.constant 0 : index
    %153 = vector.load %arg1[%c0_183, %c1_184, %c1_185, %c2_186, %c0_187] : memref<1x4x11x11x22xf32, #tpu.memory_space<vmem>>, vector<1x1x8x8x22xf32>
    %154 = vector.shape_cast %153 : vector<1x1x8x8x22xf32> to vector<8x8x22xf32>
    %155 = vector.shape_cast %154 : vector<8x8x22xf32> to vector<64x22xf32>
    %156 = arith.truncf %155 : vector<64x22xf32> to vector<64x22xbf16>
    %c2_188 = arith.constant 2 : index
    %c5_189 = arith.constant 5 : index
    %c0_190 = arith.constant 0 : index
    %c0_191 = arith.constant 0 : index
    %157 = vector.load %arg2[%c2_188, %c5_189, %c0_190, %c0_191] : memref<7x7x22x128xbf16, #tpu.memory_space<vmem>>, vector<1x1x22x128xbf16>
    %158 = vector.shape_cast %157 : vector<1x1x22x128xbf16> to vector<22x128xbf16>
    %cst_192 = arith.constant dense<0.000000e+00> : vector<64x128xf32>
    %159 = tpu.matmul %156, %158, %cst_192 {dimension_numbers = #tpu.dot_dimension_numbers<[1], [0], [0], [1], [0, 0, 1, 1], [], []>} : vector<64x22xbf16>, vector<22x128xbf16>, vector<64x128xf32> -> vector<64x128xf32>
    %160 = arith.addf %152, %159 : vector<64x128xf32>
    %c0_193 = arith.constant 0 : index
    %c0_194 = arith.constant 0 : index
    %c1_195 = arith.constant 1 : index
    %c3_196 = arith.constant 3 : index
    %c0_197 = arith.constant 0 : index
    %161 = vector.load %arg1[%c0_193, %c0_194, %c1_195, %c3_196, %c0_197] : memref<1x4x11x11x22xf32, #tpu.memory_space<vmem>>, vector<1x1x8x8x22xf32>
    %162 = vector.shape_cast %161 : vector<1x1x8x8x22xf32> to vector<8x8x22xf32>
    %163 = vector.shape_cast %162 : vector<8x8x22xf32> to vector<64x22xf32>
    %164 = arith.truncf %163 : vector<64x22xf32> to vector<64x22xbf16>
    %c2_198 = arith.constant 2 : index
    %c6_199 = arith.constant 6 : index
    %c0_200 = arith.constant 0 : index
    %c0_201 = arith.constant 0 : index
    %165 = vector.load %arg2[%c2_198, %c6_199, %c0_200, %c0_201] : memref<7x7x22x128xbf16, #tpu.memory_space<vmem>>, vector<1x1x22x128xbf16>
    %166 = vector.shape_cast %165 : vector<1x1x22x128xbf16> to vector<22x128xbf16>
    %cst_202 = arith.constant dense<0.000000e+00> : vector<64x128xf32>
    %167 = tpu.matmul %164, %166, %cst_202 {dimension_numbers = #tpu.dot_dimension_numbers<[1], [0], [0], [1], [0, 0, 1, 1], [], []>} : vector<64x22xbf16>, vector<22x128xbf16>, vector<64x128xf32> -> vector<64x128xf32>
    %168 = arith.addf %160, %167 : vector<64x128xf32>
    %c0_203 = arith.constant 0 : index
    %c2_204 = arith.constant 2 : index
    %c1_205 = arith.constant 1 : index
    %c0_206 = arith.constant 0 : index
    %c0_207 = arith.constant 0 : index
    %169 = vector.load %arg1[%c0_203, %c2_204, %c1_205, %c0_206, %c0_207] : memref<1x4x11x11x22xf32, #tpu.memory_space<vmem>>, vector<1x1x8x8x22xf32>
    %170 = vector.shape_cast %169 : vector<1x1x8x8x22xf32> to vector<8x8x22xf32>
    %171 = vector.shape_cast %170 : vector<8x8x22xf32> to vector<64x22xf32>
    %172 = arith.truncf %171 : vector<64x22xf32> to vector<64x22xbf16>
    %c3_208 = arith.constant 3 : index
    %c0_209 = arith.constant 0 : index
    %c0_210 = arith.constant 0 : index
    %c0_211 = arith.constant 0 : index
    %173 = vector.load %arg2[%c3_208, %c0_209, %c0_210, %c0_211] : memref<7x7x22x128xbf16, #tpu.memory_space<vmem>>, vector<1x1x22x128xbf16>
    %174 = vector.shape_cast %173 : vector<1x1x22x128xbf16> to vector<22x128xbf16>
    %cst_212 = arith.constant dense<0.000000e+00> : vector<64x128xf32>
    %175 = tpu.matmul %172, %174, %cst_212 {dimension_numbers = #tpu.dot_dimension_numbers<[1], [0], [0], [1], [0, 0, 1, 1], [], []>} : vector<64x22xbf16>, vector<22x128xbf16>, vector<64x128xf32> -> vector<64x128xf32>
    %176 = arith.addf %168, %175 : vector<64x128xf32>
    %c0_213 = arith.constant 0 : index
    %c3_214 = arith.constant 3 : index
    %c1_215 = arith.constant 1 : index
    %c0_216 = arith.constant 0 : index
    %c0_217 = arith.constant 0 : index
    %177 = vector.load %arg1[%c0_213, %c3_214, %c1_215, %c0_216, %c0_217] : memref<1x4x11x11x22xf32, #tpu.memory_space<vmem>>, vector<1x1x8x8x22xf32>
    %178 = vector.shape_cast %177 : vector<1x1x8x8x22xf32> to vector<8x8x22xf32>
    %179 = vector.shape_cast %178 : vector<8x8x22xf32> to vector<64x22xf32>
    %180 = arith.truncf %179 : vector<64x22xf32> to vector<64x22xbf16>
    %c3_218 = arith.constant 3 : index
    %c1_219 = arith.constant 1 : index
    %c0_220 = arith.constant 0 : index
    %c0_221 = arith.constant 0 : index
    %181 = vector.load %arg2[%c3_218, %c1_219, %c0_220, %c0_221] : memref<7x7x22x128xbf16, #tpu.memory_space<vmem>>, vector<1x1x22x128xbf16>
    %182 = vector.shape_cast %181 : vector<1x1x22x128xbf16> to vector<22x128xbf16>
    %cst_222 = arith.constant dense<0.000000e+00> : vector<64x128xf32>
    %183 = tpu.matmul %180, %182, %cst_222 {dimension_numbers = #tpu.dot_dimension_numbers<[1], [0], [0], [1], [0, 0, 1, 1], [], []>} : vector<64x22xbf16>, vector<22x128xbf16>, vector<64x128xf32> -> vector<64x128xf32>
    %184 = arith.addf %176, %183 : vector<64x128xf32>
    %c0_223 = arith.constant 0 : index
    %c2_224 = arith.constant 2 : index
    %c1_225 = arith.constant 1 : index
    %c1_226 = arith.constant 1 : index
    %c0_227 = arith.constant 0 : index
    %185 = vector.load %arg1[%c0_223, %c2_224, %c1_225, %c1_226, %c0_227] : memref<1x4x11x11x22xf32, #tpu.memory_space<vmem>>, vector<1x1x8x8x22xf32>
    %186 = vector.shape_cast %185 : vector<1x1x8x8x22xf32> to vector<8x8x22xf32>
    %187 = vector.shape_cast %186 : vector<8x8x22xf32> to vector<64x22xf32>
    %188 = arith.truncf %187 : vector<64x22xf32> to vector<64x22xbf16>
    %c3_228 = arith.constant 3 : index
    %c2_229 = arith.constant 2 : index
    %c0_230 = arith.constant 0 : index
    %c0_231 = arith.constant 0 : index
    %189 = vector.load %arg2[%c3_228, %c2_229, %c0_230, %c0_231] : memref<7x7x22x128xbf16, #tpu.memory_space<vmem>>, vector<1x1x22x128xbf16>
    %190 = vector.shape_cast %189 : vector<1x1x22x128xbf16> to vector<22x128xbf16>
    %cst_232 = arith.constant dense<0.000000e+00> : vector<64x128xf32>
    %191 = tpu.matmul %188, %190, %cst_232 {dimension_numbers = #tpu.dot_dimension_numbers<[1], [0], [0], [1], [0, 0, 1, 1], [], []>} : vector<64x22xbf16>, vector<22x128xbf16>, vector<64x128xf32> -> vector<64x128xf32>
    %192 = arith.addf %184, %191 : vector<64x128xf32>
    %c0_233 = arith.constant 0 : index
    %c3_234 = arith.constant 3 : index
    %c1_235 = arith.constant 1 : index
    %c1_236 = arith.constant 1 : index
    %c0_237 = arith.constant 0 : index
    %193 = vector.load %arg1[%c0_233, %c3_234, %c1_235, %c1_236, %c0_237] : memref<1x4x11x11x22xf32, #tpu.memory_space<vmem>>, vector<1x1x8x8x22xf32>
    %194 = vector.shape_cast %193 : vector<1x1x8x8x22xf32> to vector<8x8x22xf32>
    %195 = vector.shape_cast %194 : vector<8x8x22xf32> to vector<64x22xf32>
    %196 = arith.truncf %195 : vector<64x22xf32> to vector<64x22xbf16>
    %c3_238 = arith.constant 3 : index
    %c3_239 = arith.constant 3 : index
    %c0_240 = arith.constant 0 : index
    %c0_241 = arith.constant 0 : index
    %197 = vector.load %arg2[%c3_238, %c3_239, %c0_240, %c0_241] : memref<7x7x22x128xbf16, #tpu.memory_space<vmem>>, vector<1x1x22x128xbf16>
    %198 = vector.shape_cast %197 : vector<1x1x22x128xbf16> to vector<22x128xbf16>
    %cst_242 = arith.constant dense<0.000000e+00> : vector<64x128xf32>
    %199 = tpu.matmul %196, %198, %cst_242 {dimension_numbers = #tpu.dot_dimension_numbers<[1], [0], [0], [1], [0, 0, 1, 1], [], []>} : vector<64x22xbf16>, vector<22x128xbf16>, vector<64x128xf32> -> vector<64x128xf32>
    %200 = arith.addf %192, %199 : vector<64x128xf32>
    %c0_243 = arith.constant 0 : index
    %c2_244 = arith.constant 2 : index
    %c1_245 = arith.constant 1 : index
    %c2_246 = arith.constant 2 : index
    %c0_247 = arith.constant 0 : index
    %201 = vector.load %arg1[%c0_243, %c2_244, %c1_245, %c2_246, %c0_247] : memref<1x4x11x11x22xf32, #tpu.memory_space<vmem>>, vector<1x1x8x8x22xf32>
    %202 = vector.shape_cast %201 : vector<1x1x8x8x22xf32> to vector<8x8x22xf32>
    %203 = vector.shape_cast %202 : vector<8x8x22xf32> to vector<64x22xf32>
    %204 = arith.truncf %203 : vector<64x22xf32> to vector<64x22xbf16>
    %c3_248 = arith.constant 3 : index
    %c4_249 = arith.constant 4 : index
    %c0_250 = arith.constant 0 : index
    %c0_251 = arith.constant 0 : index
    %205 = vector.load %arg2[%c3_248, %c4_249, %c0_250, %c0_251] : memref<7x7x22x128xbf16, #tpu.memory_space<vmem>>, vector<1x1x22x128xbf16>
    %206 = vector.shape_cast %205 : vector<1x1x22x128xbf16> to vector<22x128xbf16>
    %cst_252 = arith.constant dense<0.000000e+00> : vector<64x128xf32>
    %207 = tpu.matmul %204, %206, %cst_252 {dimension_numbers = #tpu.dot_dimension_numbers<[1], [0], [0], [1], [0, 0, 1, 1], [], []>} : vector<64x22xbf16>, vector<22x128xbf16>, vector<64x128xf32> -> vector<64x128xf32>
    %208 = arith.addf %200, %207 : vector<64x128xf32>
    %c0_253 = arith.constant 0 : index
    %c3_254 = arith.constant 3 : index
    %c1_255 = arith.constant 1 : index
    %c2_256 = arith.constant 2 : index
    %c0_257 = arith.constant 0 : index
    %209 = vector.load %arg1[%c0_253, %c3_254, %c1_255, %c2_256, %c0_257] : memref<1x4x11x11x22xf32, #tpu.memory_space<vmem>>, vector<1x1x8x8x22xf32>
    %210 = vector.shape_cast %209 : vector<1x1x8x8x22xf32> to vector<8x8x22xf32>
    %211 = vector.shape_cast %210 : vector<8x8x22xf32> to vector<64x22xf32>
    %212 = arith.truncf %211 : vector<64x22xf32> to vector<64x22xbf16>
    %c3_258 = arith.constant 3 : index
    %c5_259 = arith.constant 5 : index
    %c0_260 = arith.constant 0 : index
    %c0_261 = arith.constant 0 : index
    %213 = vector.load %arg2[%c3_258, %c5_259, %c0_260, %c0_261] : memref<7x7x22x128xbf16, #tpu.memory_space<vmem>>, vector<1x1x22x128xbf16>
    %214 = vector.shape_cast %213 : vector<1x1x22x128xbf16> to vector<22x128xbf16>
    %cst_262 = arith.constant dense<0.000000e+00> : vector<64x128xf32>
    %215 = tpu.matmul %212, %214, %cst_262 {dimension_numbers = #tpu.dot_dimension_numbers<[1], [0], [0], [1], [0, 0, 1, 1], [], []>} : vector<64x22xbf16>, vector<22x128xbf16>, vector<64x128xf32> -> vector<64x128xf32>
    %216 = arith.addf %208, %215 : vector<64x128xf32>
    %c0_263 = arith.constant 0 : index
    %c2_264 = arith.constant 2 : index
    %c1_265 = arith.constant 1 : index
    %c3_266 = arith.constant 3 : index
    %c0_267 = arith.constant 0 : index
    %217 = vector.load %arg1[%c0_263, %c2_264, %c1_265, %c3_266, %c0_267] : memref<1x4x11x11x22xf32, #tpu.memory_space<vmem>>, vector<1x1x8x8x22xf32>
    %218 = vector.shape_cast %217 : vector<1x1x8x8x22xf32> to vector<8x8x22xf32>
    %219 = vector.shape_cast %218 : vector<8x8x22xf32> to vector<64x22xf32>
    %220 = arith.truncf %219 : vector<64x22xf32> to vector<64x22xbf16>
    %c3_268 = arith.constant 3 : index
    %c6_269 = arith.constant 6 : index
    %c0_270 = arith.constant 0 : index
    %c0_271 = arith.constant 0 : index
    %221 = vector.load %arg2[%c3_268, %c6_269, %c0_270, %c0_271] : memref<7x7x22x128xbf16, #tpu.memory_space<vmem>>, vector<1x1x22x128xbf16>
    %222 = vector.shape_cast %221 : vector<1x1x22x128xbf16> to vector<22x128xbf16>
    %cst_272 = arith.constant dense<0.000000e+00> : vector<64x128xf32>
    %223 = tpu.matmul %220, %222, %cst_272 {dimension_numbers = #tpu.dot_dimension_numbers<[1], [0], [0], [1], [0, 0, 1, 1], [], []>} : vector<64x22xbf16>, vector<22x128xbf16>, vector<64x128xf32> -> vector<64x128xf32>
    %224 = arith.addf %216, %223 : vector<64x128xf32>
    %c0_273 = arith.constant 0 : index
    %c0_274 = arith.constant 0 : index
    %c2_275 = arith.constant 2 : index
    %c0_276 = arith.constant 0 : index
    %c0_277 = arith.constant 0 : index
    %225 = vector.load %arg1[%c0_273, %c0_274, %c2_275, %c0_276, %c0_277] : memref<1x4x11x11x22xf32, #tpu.memory_space<vmem>>, vector<1x1x8x8x22xf32>
    %226 = vector.shape_cast %225 : vector<1x1x8x8x22xf32> to vector<8x8x22xf32>
    %227 = vector.shape_cast %226 : vector<8x8x22xf32> to vector<64x22xf32>
    %228 = arith.truncf %227 : vector<64x22xf32> to vector<64x22xbf16>
    %c4_278 = arith.constant 4 : index
    %c0_279 = arith.constant 0 : index
    %c0_280 = arith.constant 0 : index
    %c0_281 = arith.constant 0 : index
    %229 = vector.load %arg2[%c4_278, %c0_279, %c0_280, %c0_281] : memref<7x7x22x128xbf16, #tpu.memory_space<vmem>>, vector<1x1x22x128xbf16>
    %230 = vector.shape_cast %229 : vector<1x1x22x128xbf16> to vector<22x128xbf16>
    %cst_282 = arith.constant dense<0.000000e+00> : vector<64x128xf32>
    %231 = tpu.matmul %228, %230, %cst_282 {dimension_numbers = #tpu.dot_dimension_numbers<[1], [0], [0], [1], [0, 0, 1, 1], [], []>} : vector<64x22xbf16>, vector<22x128xbf16>, vector<64x128xf32> -> vector<64x128xf32>
    %232 = arith.addf %224, %231 : vector<64x128xf32>
    %c0_283 = arith.constant 0 : index
    %c1_284 = arith.constant 1 : index
    %c2_285 = arith.constant 2 : index
    %c0_286 = arith.constant 0 : index
    %c0_287 = arith.constant 0 : index
    %233 = vector.load %arg1[%c0_283, %c1_284, %c2_285, %c0_286, %c0_287] : memref<1x4x11x11x22xf32, #tpu.memory_space<vmem>>, vector<1x1x8x8x22xf32>
    %234 = vector.shape_cast %233 : vector<1x1x8x8x22xf32> to vector<8x8x22xf32>
    %235 = vector.shape_cast %234 : vector<8x8x22xf32> to vector<64x22xf32>
    %236 = arith.truncf %235 : vector<64x22xf32> to vector<64x22xbf16>
    %c4_288 = arith.constant 4 : index
    %c1_289 = arith.constant 1 : index
    %c0_290 = arith.constant 0 : index
    %c0_291 = arith.constant 0 : index
    %237 = vector.load %arg2[%c4_288, %c1_289, %c0_290, %c0_291] : memref<7x7x22x128xbf16, #tpu.memory_space<vmem>>, vector<1x1x22x128xbf16>
    %238 = vector.shape_cast %237 : vector<1x1x22x128xbf16> to vector<22x128xbf16>
    %cst_292 = arith.constant dense<0.000000e+00> : vector<64x128xf32>
    %239 = tpu.matmul %236, %238, %cst_292 {dimension_numbers = #tpu.dot_dimension_numbers<[1], [0], [0], [1], [0, 0, 1, 1], [], []>} : vector<64x22xbf16>, vector<22x128xbf16>, vector<64x128xf32> -> vector<64x128xf32>
    %240 = arith.addf %232, %239 : vector<64x128xf32>
    %c0_293 = arith.constant 0 : index
    %c0_294 = arith.constant 0 : index
    %c2_295 = arith.constant 2 : index
    %c1_296 = arith.constant 1 : index
    %c0_297 = arith.constant 0 : index
    %241 = vector.load %arg1[%c0_293, %c0_294, %c2_295, %c1_296, %c0_297] : memref<1x4x11x11x22xf32, #tpu.memory_space<vmem>>, vector<1x1x8x8x22xf32>
    %242 = vector.shape_cast %241 : vector<1x1x8x8x22xf32> to vector<8x8x22xf32>
    %243 = vector.shape_cast %242 : vector<8x8x22xf32> to vector<64x22xf32>
    %244 = arith.truncf %243 : vector<64x22xf32> to vector<64x22xbf16>
    %c4_298 = arith.constant 4 : index
    %c2_299 = arith.constant 2 : index
    %c0_300 = arith.constant 0 : index
    %c0_301 = arith.constant 0 : index
    %245 = vector.load %arg2[%c4_298, %c2_299, %c0_300, %c0_301] : memref<7x7x22x128xbf16, #tpu.memory_space<vmem>>, vector<1x1x22x128xbf16>
    %246 = vector.shape_cast %245 : vector<1x1x22x128xbf16> to vector<22x128xbf16>
    %cst_302 = arith.constant dense<0.000000e+00> : vector<64x128xf32>
    %247 = tpu.matmul %244, %246, %cst_302 {dimension_numbers = #tpu.dot_dimension_numbers<[1], [0], [0], [1], [0, 0, 1, 1], [], []>} : vector<64x22xbf16>, vector<22x128xbf16>, vector<64x128xf32> -> vector<64x128xf32>
    %248 = arith.addf %240, %247 : vector<64x128xf32>
    %c0_303 = arith.constant 0 : index
    %c1_304 = arith.constant 1 : index
    %c2_305 = arith.constant 2 : index
    %c1_306 = arith.constant 1 : index
    %c0_307 = arith.constant 0 : index
    %249 = vector.load %arg1[%c0_303, %c1_304, %c2_305, %c1_306, %c0_307] : memref<1x4x11x11x22xf32, #tpu.memory_space<vmem>>, vector<1x1x8x8x22xf32>
    %250 = vector.shape_cast %249 : vector<1x1x8x8x22xf32> to vector<8x8x22xf32>
    %251 = vector.shape_cast %250 : vector<8x8x22xf32> to vector<64x22xf32>
    %252 = arith.truncf %251 : vector<64x22xf32> to vector<64x22xbf16>
    %c4_308 = arith.constant 4 : index
    %c3_309 = arith.constant 3 : index
    %c0_310 = arith.constant 0 : index
    %c0_311 = arith.constant 0 : index
    %253 = vector.load %arg2[%c4_308, %c3_309, %c0_310, %c0_311] : memref<7x7x22x128xbf16, #tpu.memory_space<vmem>>, vector<1x1x22x128xbf16>
    %254 = vector.shape_cast %253 : vector<1x1x22x128xbf16> to vector<22x128xbf16>
    %cst_312 = arith.constant dense<0.000000e+00> : vector<64x128xf32>
    %255 = tpu.matmul %252, %254, %cst_312 {dimension_numbers = #tpu.dot_dimension_numbers<[1], [0], [0], [1], [0, 0, 1, 1], [], []>} : vector<64x22xbf16>, vector<22x128xbf16>, vector<64x128xf32> -> vector<64x128xf32>
    %256 = arith.addf %248, %255 : vector<64x128xf32>
    %c0_313 = arith.constant 0 : index
    %c0_314 = arith.constant 0 : index
    %c2_315 = arith.constant 2 : index
    %c2_316 = arith.constant 2 : index
    %c0_317 = arith.constant 0 : index
    %257 = vector.load %arg1[%c0_313, %c0_314, %c2_315, %c2_316, %c0_317] : memref<1x4x11x11x22xf32, #tpu.memory_space<vmem>>, vector<1x1x8x8x22xf32>
    %258 = vector.shape_cast %257 : vector<1x1x8x8x22xf32> to vector<8x8x22xf32>
    %259 = vector.shape_cast %258 : vector<8x8x22xf32> to vector<64x22xf32>
    %260 = arith.truncf %259 : vector<64x22xf32> to vector<64x22xbf16>
    %c4_318 = arith.constant 4 : index
    %c4_319 = arith.constant 4 : index
    %c0_320 = arith.constant 0 : index
    %c0_321 = arith.constant 0 : index
    %261 = vector.load %arg2[%c4_318, %c4_319, %c0_320, %c0_321] : memref<7x7x22x128xbf16, #tpu.memory_space<vmem>>, vector<1x1x22x128xbf16>
    %262 = vector.shape_cast %261 : vector<1x1x22x128xbf16> to vector<22x128xbf16>
    %cst_322 = arith.constant dense<0.000000e+00> : vector<64x128xf32>
    %263 = tpu.matmul %260, %262, %cst_322 {dimension_numbers = #tpu.dot_dimension_numbers<[1], [0], [0], [1], [0, 0, 1, 1], [], []>} : vector<64x22xbf16>, vector<22x128xbf16>, vector<64x128xf32> -> vector<64x128xf32>
    %264 = arith.addf %256, %263 : vector<64x128xf32>
    %c0_323 = arith.constant 0 : index
    %c1_324 = arith.constant 1 : index
    %c2_325 = arith.constant 2 : index
    %c2_326 = arith.constant 2 : index
    %c0_327 = arith.constant 0 : index
    %265 = vector.load %arg1[%c0_323, %c1_324, %c2_325, %c2_326, %c0_327] : memref<1x4x11x11x22xf32, #tpu.memory_space<vmem>>, vector<1x1x8x8x22xf32>
    %266 = vector.shape_cast %265 : vector<1x1x8x8x22xf32> to vector<8x8x22xf32>
    %267 = vector.shape_cast %266 : vector<8x8x22xf32> to vector<64x22xf32>
    %268 = arith.truncf %267 : vector<64x22xf32> to vector<64x22xbf16>
    %c4_328 = arith.constant 4 : index
    %c5_329 = arith.constant 5 : index
    %c0_330 = arith.constant 0 : index
    %c0_331 = arith.constant 0 : index
    %269 = vector.load %arg2[%c4_328, %c5_329, %c0_330, %c0_331] : memref<7x7x22x128xbf16, #tpu.memory_space<vmem>>, vector<1x1x22x128xbf16>
    %270 = vector.shape_cast %269 : vector<1x1x22x128xbf16> to vector<22x128xbf16>
    %cst_332 = arith.constant dense<0.000000e+00> : vector<64x128xf32>
    %271 = tpu.matmul %268, %270, %cst_332 {dimension_numbers = #tpu.dot_dimension_numbers<[1], [0], [0], [1], [0, 0, 1, 1], [], []>} : vector<64x22xbf16>, vector<22x128xbf16>, vector<64x128xf32> -> vector<64x128xf32>
    %272 = arith.addf %264, %271 : vector<64x128xf32>
    %c0_333 = arith.constant 0 : index
    %c0_334 = arith.constant 0 : index
    %c2_335 = arith.constant 2 : index
    %c3_336 = arith.constant 3 : index
    %c0_337 = arith.constant 0 : index
    %273 = vector.load %arg1[%c0_333, %c0_334, %c2_335, %c3_336, %c0_337] : memref<1x4x11x11x22xf32, #tpu.memory_space<vmem>>, vector<1x1x8x8x22xf32>
    %274 = vector.shape_cast %273 : vector<1x1x8x8x22xf32> to vector<8x8x22xf32>
    %275 = vector.shape_cast %274 : vector<8x8x22xf32> to vector<64x22xf32>
    %276 = arith.truncf %275 : vector<64x22xf32> to vector<64x22xbf16>
    %c4_338 = arith.constant 4 : index
    %c6_339 = arith.constant 6 : index
    %c0_340 = arith.constant 0 : index
    %c0_341 = arith.constant 0 : index
    %277 = vector.load %arg2[%c4_338, %c6_339, %c0_340, %c0_341] : memref<7x7x22x128xbf16, #tpu.memory_space<vmem>>, vector<1x1x22x128xbf16>
    %278 = vector.shape_cast %277 : vector<1x1x22x128xbf16> to vector<22x128xbf16>
    %cst_342 = arith.constant dense<0.000000e+00> : vector<64x128xf32>
    %279 = tpu.matmul %276, %278, %cst_342 {dimension_numbers = #tpu.dot_dimension_numbers<[1], [0], [0], [1], [0, 0, 1, 1], [], []>} : vector<64x22xbf16>, vector<22x128xbf16>, vector<64x128xf32> -> vector<64x128xf32>
    %280 = arith.addf %272, %279 : vector<64x128xf32>
    %c0_343 = arith.constant 0 : index
    %c2_344 = arith.constant 2 : index
    %c2_345 = arith.constant 2 : index
    %c0_346 = arith.constant 0 : index
    %c0_347 = arith.constant 0 : index
    %281 = vector.load %arg1[%c0_343, %c2_344, %c2_345, %c0_346, %c0_347] : memref<1x4x11x11x22xf32, #tpu.memory_space<vmem>>, vector<1x1x8x8x22xf32>
    %282 = vector.shape_cast %281 : vector<1x1x8x8x22xf32> to vector<8x8x22xf32>
    %283 = vector.shape_cast %282 : vector<8x8x22xf32> to vector<64x22xf32>
    %284 = arith.truncf %283 : vector<64x22xf32> to vector<64x22xbf16>
    %c5_348 = arith.constant 5 : index
    %c0_349 = arith.constant 0 : index
    %c0_350 = arith.constant 0 : index
    %c0_351 = arith.constant 0 : index
    %285 = vector.load %arg2[%c5_348, %c0_349, %c0_350, %c0_351] : memref<7x7x22x128xbf16, #tpu.memory_space<vmem>>, vector<1x1x22x128xbf16>
    %286 = vector.shape_cast %285 : vector<1x1x22x128xbf16> to vector<22x128xbf16>
    %cst_352 = arith.constant dense<0.000000e+00> : vector<64x128xf32>
    %287 = tpu.matmul %284, %286, %cst_352 {dimension_numbers = #tpu.dot_dimension_numbers<[1], [0], [0], [1], [0, 0, 1, 1], [], []>} : vector<64x22xbf16>, vector<22x128xbf16>, vector<64x128xf32> -> vector<64x128xf32>
    %288 = arith.addf %280, %287 : vector<64x128xf32>
    %c0_353 = arith.constant 0 : index
    %c3_354 = arith.constant 3 : index
    %c2_355 = arith.constant 2 : index
    %c0_356 = arith.constant 0 : index
    %c0_357 = arith.constant 0 : index
    %289 = vector.load %arg1[%c0_353, %c3_354, %c2_355, %c0_356, %c0_357] : memref<1x4x11x11x22xf32, #tpu.memory_space<vmem>>, vector<1x1x8x8x22xf32>
    %290 = vector.shape_cast %289 : vector<1x1x8x8x22xf32> to vector<8x8x22xf32>
    %291 = vector.shape_cast %290 : vector<8x8x22xf32> to vector<64x22xf32>
    %292 = arith.truncf %291 : vector<64x22xf32> to vector<64x22xbf16>
    %c5_358 = arith.constant 5 : index
    %c1_359 = arith.constant 1 : index
    %c0_360 = arith.constant 0 : index
    %c0_361 = arith.constant 0 : index
    %293 = vector.load %arg2[%c5_358, %c1_359, %c0_360, %c0_361] : memref<7x7x22x128xbf16, #tpu.memory_space<vmem>>, vector<1x1x22x128xbf16>
    %294 = vector.shape_cast %293 : vector<1x1x22x128xbf16> to vector<22x128xbf16>
    %cst_362 = arith.constant dense<0.000000e+00> : vector<64x128xf32>
    %295 = tpu.matmul %292, %294, %cst_362 {dimension_numbers = #tpu.dot_dimension_numbers<[1], [0], [0], [1], [0, 0, 1, 1], [], []>} : vector<64x22xbf16>, vector<22x128xbf16>, vector<64x128xf32> -> vector<64x128xf32>
    %296 = arith.addf %288, %295 : vector<64x128xf32>
    %c0_363 = arith.constant 0 : index
    %c2_364 = arith.constant 2 : index
    %c2_365 = arith.constant 2 : index
    %c1_366 = arith.constant 1 : index
    %c0_367 = arith.constant 0 : index
    %297 = vector.load %arg1[%c0_363, %c2_364, %c2_365, %c1_366, %c0_367] : memref<1x4x11x11x22xf32, #tpu.memory_space<vmem>>, vector<1x1x8x8x22xf32>
    %298 = vector.shape_cast %297 : vector<1x1x8x8x22xf32> to vector<8x8x22xf32>
    %299 = vector.shape_cast %298 : vector<8x8x22xf32> to vector<64x22xf32>
    %300 = arith.truncf %299 : vector<64x22xf32> to vector<64x22xbf16>
    %c5_368 = arith.constant 5 : index
    %c2_369 = arith.constant 2 : index
    %c0_370 = arith.constant 0 : index
    %c0_371 = arith.constant 0 : index
    %301 = vector.load %arg2[%c5_368, %c2_369, %c0_370, %c0_371] : memref<7x7x22x128xbf16, #tpu.memory_space<vmem>>, vector<1x1x22x128xbf16>
    %302 = vector.shape_cast %301 : vector<1x1x22x128xbf16> to vector<22x128xbf16>
    %cst_372 = arith.constant dense<0.000000e+00> : vector<64x128xf32>
    %303 = tpu.matmul %300, %302, %cst_372 {dimension_numbers = #tpu.dot_dimension_numbers<[1], [0], [0], [1], [0, 0, 1, 1], [], []>} : vector<64x22xbf16>, vector<22x128xbf16>, vector<64x128xf32> -> vector<64x128xf32>
    %304 = arith.addf %296, %303 : vector<64x128xf32>
    %c0_373 = arith.constant 0 : index
    %c3_374 = arith.constant 3 : index
    %c2_375 = arith.constant 2 : index
    %c1_376 = arith.constant 1 : index
    %c0_377 = arith.constant 0 : index
    %305 = vector.load %arg1[%c0_373, %c3_374, %c2_375, %c1_376, %c0_377] : memref<1x4x11x11x22xf32, #tpu.memory_space<vmem>>, vector<1x1x8x8x22xf32>
    %306 = vector.shape_cast %305 : vector<1x1x8x8x22xf32> to vector<8x8x22xf32>
    %307 = vector.shape_cast %306 : vector<8x8x22xf32> to vector<64x22xf32>
    %308 = arith.truncf %307 : vector<64x22xf32> to vector<64x22xbf16>
    %c5_378 = arith.constant 5 : index
    %c3_379 = arith.constant 3 : index
    %c0_380 = arith.constant 0 : index
    %c0_381 = arith.constant 0 : index
    %309 = vector.load %arg2[%c5_378, %c3_379, %c0_380, %c0_381] : memref<7x7x22x128xbf16, #tpu.memory_space<vmem>>, vector<1x1x22x128xbf16>
    %310 = vector.shape_cast %309 : vector<1x1x22x128xbf16> to vector<22x128xbf16>
    %cst_382 = arith.constant dense<0.000000e+00> : vector<64x128xf32>
    %311 = tpu.matmul %308, %310, %cst_382 {dimension_numbers = #tpu.dot_dimension_numbers<[1], [0], [0], [1], [0, 0, 1, 1], [], []>} : vector<64x22xbf16>, vector<22x128xbf16>, vector<64x128xf32> -> vector<64x128xf32>
    %312 = arith.addf %304, %311 : vector<64x128xf32>
    %c0_383 = arith.constant 0 : index
    %c2_384 = arith.constant 2 : index
    %c2_385 = arith.constant 2 : index
    %c2_386 = arith.constant 2 : index
    %c0_387 = arith.constant 0 : index
    %313 = vector.load %arg1[%c0_383, %c2_384, %c2_385, %c2_386, %c0_387] : memref<1x4x11x11x22xf32, #tpu.memory_space<vmem>>, vector<1x1x8x8x22xf32>
    %314 = vector.shape_cast %313 : vector<1x1x8x8x22xf32> to vector<8x8x22xf32>
    %315 = vector.shape_cast %314 : vector<8x8x22xf32> to vector<64x22xf32>
    %316 = arith.truncf %315 : vector<64x22xf32> to vector<64x22xbf16>
    %c5_388 = arith.constant 5 : index
    %c4_389 = arith.constant 4 : index
    %c0_390 = arith.constant 0 : index
    %c0_391 = arith.constant 0 : index
    %317 = vector.load %arg2[%c5_388, %c4_389, %c0_390, %c0_391] : memref<7x7x22x128xbf16, #tpu.memory_space<vmem>>, vector<1x1x22x128xbf16>
    %318 = vector.shape_cast %317 : vector<1x1x22x128xbf16> to vector<22x128xbf16>
    %cst_392 = arith.constant dense<0.000000e+00> : vector<64x128xf32>
    %319 = tpu.matmul %316, %318, %cst_392 {dimension_numbers = #tpu.dot_dimension_numbers<[1], [0], [0], [1], [0, 0, 1, 1], [], []>} : vector<64x22xbf16>, vector<22x128xbf16>, vector<64x128xf32> -> vector<64x128xf32>
    %320 = arith.addf %312, %319 : vector<64x128xf32>
    %c0_393 = arith.constant 0 : index
    %c3_394 = arith.constant 3 : index
    %c2_395 = arith.constant 2 : index
    %c2_396 = arith.constant 2 : index
    %c0_397 = arith.constant 0 : index
    %321 = vector.load %arg1[%c0_393, %c3_394, %c2_395, %c2_396, %c0_397] : memref<1x4x11x11x22xf32, #tpu.memory_space<vmem>>, vector<1x1x8x8x22xf32>
    %322 = vector.shape_cast %321 : vector<1x1x8x8x22xf32> to vector<8x8x22xf32>
    %323 = vector.shape_cast %322 : vector<8x8x22xf32> to vector<64x22xf32>
    %324 = arith.truncf %323 : vector<64x22xf32> to vector<64x22xbf16>
    %c5_398 = arith.constant 5 : index
    %c5_399 = arith.constant 5 : index
    %c0_400 = arith.constant 0 : index
    %c0_401 = arith.constant 0 : index
    %325 = vector.load %arg2[%c5_398, %c5_399, %c0_400, %c0_401] : memref<7x7x22x128xbf16, #tpu.memory_space<vmem>>, vector<1x1x22x128xbf16>
    %326 = vector.shape_cast %325 : vector<1x1x22x128xbf16> to vector<22x128xbf16>
    %cst_402 = arith.constant dense<0.000000e+00> : vector<64x128xf32>
    %327 = tpu.matmul %324, %326, %cst_402 {dimension_numbers = #tpu.dot_dimension_numbers<[1], [0], [0], [1], [0, 0, 1, 1], [], []>} : vector<64x22xbf16>, vector<22x128xbf16>, vector<64x128xf32> -> vector<64x128xf32>
    %328 = arith.addf %320, %327 : vector<64x128xf32>
    %c0_403 = arith.constant 0 : index
    %c2_404 = arith.constant 2 : index
    %c2_405 = arith.constant 2 : index
    %c3_406 = arith.constant 3 : index
    %c0_407 = arith.constant 0 : index
    %329 = vector.load %arg1[%c0_403, %c2_404, %c2_405, %c3_406, %c0_407] : memref<1x4x11x11x22xf32, #tpu.memory_space<vmem>>, vector<1x1x8x8x22xf32>
    %330 = vector.shape_cast %329 : vector<1x1x8x8x22xf32> to vector<8x8x22xf32>
    %331 = vector.shape_cast %330 : vector<8x8x22xf32> to vector<64x22xf32>
    %332 = arith.truncf %331 : vector<64x22xf32> to vector<64x22xbf16>
    %c5_408 = arith.constant 5 : index
    %c6_409 = arith.constant 6 : index
    %c0_410 = arith.constant 0 : index
    %c0_411 = arith.constant 0 : index
    %333 = vector.load %arg2[%c5_408, %c6_409, %c0_410, %c0_411] : memref<7x7x22x128xbf16, #tpu.memory_space<vmem>>, vector<1x1x22x128xbf16>
    %334 = vector.shape_cast %333 : vector<1x1x22x128xbf16> to vector<22x128xbf16>
    %cst_412 = arith.constant dense<0.000000e+00> : vector<64x128xf32>
    %335 = tpu.matmul %332, %334, %cst_412 {dimension_numbers = #tpu.dot_dimension_numbers<[1], [0], [0], [1], [0, 0, 1, 1], [], []>} : vector<64x22xbf16>, vector<22x128xbf16>, vector<64x128xf32> -> vector<64x128xf32>
    %336 = arith.addf %328, %335 : vector<64x128xf32>
    %c0_413 = arith.constant 0 : index
    %c0_414 = arith.constant 0 : index
    %c3_415 = arith.constant 3 : index
    %c0_416 = arith.constant 0 : index
    %c0_417 = arith.constant 0 : index
    %337 = vector.load %arg1[%c0_413, %c0_414, %c3_415, %c0_416, %c0_417] : memref<1x4x11x11x22xf32, #tpu.memory_space<vmem>>, vector<1x1x8x8x22xf32>
    %338 = vector.shape_cast %337 : vector<1x1x8x8x22xf32> to vector<8x8x22xf32>
    %339 = vector.shape_cast %338 : vector<8x8x22xf32> to vector<64x22xf32>
    %340 = arith.truncf %339 : vector<64x22xf32> to vector<64x22xbf16>
    %c6_418 = arith.constant 6 : index
    %c0_419 = arith.constant 0 : index
    %c0_420 = arith.constant 0 : index
    %c0_421 = arith.constant 0 : index
    %341 = vector.load %arg2[%c6_418, %c0_419, %c0_420, %c0_421] : memref<7x7x22x128xbf16, #tpu.memory_space<vmem>>, vector<1x1x22x128xbf16>
    %342 = vector.shape_cast %341 : vector<1x1x22x128xbf16> to vector<22x128xbf16>
    %cst_422 = arith.constant dense<0.000000e+00> : vector<64x128xf32>
    %343 = tpu.matmul %340, %342, %cst_422 {dimension_numbers = #tpu.dot_dimension_numbers<[1], [0], [0], [1], [0, 0, 1, 1], [], []>} : vector<64x22xbf16>, vector<22x128xbf16>, vector<64x128xf32> -> vector<64x128xf32>
    %344 = arith.addf %336, %343 : vector<64x128xf32>
    %c0_423 = arith.constant 0 : index
    %c1_424 = arith.constant 1 : index
    %c3_425 = arith.constant 3 : index
    %c0_426 = arith.constant 0 : index
    %c0_427 = arith.constant 0 : index
    %345 = vector.load %arg1[%c0_423, %c1_424, %c3_425, %c0_426, %c0_427] : memref<1x4x11x11x22xf32, #tpu.memory_space<vmem>>, vector<1x1x8x8x22xf32>
    %346 = vector.shape_cast %345 : vector<1x1x8x8x22xf32> to vector<8x8x22xf32>
    %347 = vector.shape_cast %346 : vector<8x8x22xf32> to vector<64x22xf32>
    %348 = arith.truncf %347 : vector<64x22xf32> to vector<64x22xbf16>
    %c6_428 = arith.constant 6 : index
    %c1_429 = arith.constant 1 : index
    %c0_430 = arith.constant 0 : index
    %c0_431 = arith.constant 0 : index
    %349 = vector.load %arg2[%c6_428, %c1_429, %c0_430, %c0_431] : memref<7x7x22x128xbf16, #tpu.memory_space<vmem>>, vector<1x1x22x128xbf16>
    %350 = vector.shape_cast %349 : vector<1x1x22x128xbf16> to vector<22x128xbf16>
    %cst_432 = arith.constant dense<0.000000e+00> : vector<64x128xf32>
    %351 = tpu.matmul %348, %350, %cst_432 {dimension_numbers = #tpu.dot_dimension_numbers<[1], [0], [0], [1], [0, 0, 1, 1], [], []>} : vector<64x22xbf16>, vector<22x128xbf16>, vector<64x128xf32> -> vector<64x128xf32>
    %352 = arith.addf %344, %351 : vector<64x128xf32>
    %c0_433 = arith.constant 0 : index
    %c0_434 = arith.constant 0 : index
    %c3_435 = arith.constant 3 : index
    %c1_436 = arith.constant 1 : index
    %c0_437 = arith.constant 0 : index
    %353 = vector.load %arg1[%c0_433, %c0_434, %c3_435, %c1_436, %c0_437] : memref<1x4x11x11x22xf32, #tpu.memory_space<vmem>>, vector<1x1x8x8x22xf32>
    %354 = vector.shape_cast %353 : vector<1x1x8x8x22xf32> to vector<8x8x22xf32>
    %355 = vector.shape_cast %354 : vector<8x8x22xf32> to vector<64x22xf32>
    %356 = arith.truncf %355 : vector<64x22xf32> to vector<64x22xbf16>
    %c6_438 = arith.constant 6 : index
    %c2_439 = arith.constant 2 : index
    %c0_440 = arith.constant 0 : index
    %c0_441 = arith.constant 0 : index
    %357 = vector.load %arg2[%c6_438, %c2_439, %c0_440, %c0_441] : memref<7x7x22x128xbf16, #tpu.memory_space<vmem>>, vector<1x1x22x128xbf16>
    %358 = vector.shape_cast %357 : vector<1x1x22x128xbf16> to vector<22x128xbf16>
    %cst_442 = arith.constant dense<0.000000e+00> : vector<64x128xf32>
    %359 = tpu.matmul %356, %358, %cst_442 {dimension_numbers = #tpu.dot_dimension_numbers<[1], [0], [0], [1], [0, 0, 1, 1], [], []>} : vector<64x22xbf16>, vector<22x128xbf16>, vector<64x128xf32> -> vector<64x128xf32>
    %360 = arith.addf %352, %359 : vector<64x128xf32>
    %c0_443 = arith.constant 0 : index
    %c1_444 = arith.constant 1 : index
    %c3_445 = arith.constant 3 : index
    %c1_446 = arith.constant 1 : index
    %c0_447 = arith.constant 0 : index
    %361 = vector.load %arg1[%c0_443, %c1_444, %c3_445, %c1_446, %c0_447] : memref<1x4x11x11x22xf32, #tpu.memory_space<vmem>>, vector<1x1x8x8x22xf32>
    %362 = vector.shape_cast %361 : vector<1x1x8x8x22xf32> to vector<8x8x22xf32>
    %363 = vector.shape_cast %362 : vector<8x8x22xf32> to vector<64x22xf32>
    %364 = arith.truncf %363 : vector<64x22xf32> to vector<64x22xbf16>
    %c6_448 = arith.constant 6 : index
    %c3_449 = arith.constant 3 : index
    %c0_450 = arith.constant 0 : index
    %c0_451 = arith.constant 0 : index
    %365 = vector.load %arg2[%c6_448, %c3_449, %c0_450, %c0_451] : memref<7x7x22x128xbf16, #tpu.memory_space<vmem>>, vector<1x1x22x128xbf16>
    %366 = vector.shape_cast %365 : vector<1x1x22x128xbf16> to vector<22x128xbf16>
    %cst_452 = arith.constant dense<0.000000e+00> : vector<64x128xf32>
    %367 = tpu.matmul %364, %366, %cst_452 {dimension_numbers = #tpu.dot_dimension_numbers<[1], [0], [0], [1], [0, 0, 1, 1], [], []>} : vector<64x22xbf16>, vector<22x128xbf16>, vector<64x128xf32> -> vector<64x128xf32>
    %368 = arith.addf %360, %367 : vector<64x128xf32>
    %c0_453 = arith.constant 0 : index
    %c0_454 = arith.constant 0 : index
    %c3_455 = arith.constant 3 : index
    %c2_456 = arith.constant 2 : index
    %c0_457 = arith.constant 0 : index
    %369 = vector.load %arg1[%c0_453, %c0_454, %c3_455, %c2_456, %c0_457] : memref<1x4x11x11x22xf32, #tpu.memory_space<vmem>>, vector<1x1x8x8x22xf32>
    %370 = vector.shape_cast %369 : vector<1x1x8x8x22xf32> to vector<8x8x22xf32>
    %371 = vector.shape_cast %370 : vector<8x8x22xf32> to vector<64x22xf32>
    %372 = arith.truncf %371 : vector<64x22xf32> to vector<64x22xbf16>
    %c6_458 = arith.constant 6 : index
    %c4_459 = arith.constant 4 : index
    %c0_460 = arith.constant 0 : index
    %c0_461 = arith.constant 0 : index
    %373 = vector.load %arg2[%c6_458, %c4_459, %c0_460, %c0_461] : memref<7x7x22x128xbf16, #tpu.memory_space<vmem>>, vector<1x1x22x128xbf16>
    %374 = vector.shape_cast %373 : vector<1x1x22x128xbf16> to vector<22x128xbf16>
    %cst_462 = arith.constant dense<0.000000e+00> : vector<64x128xf32>
    %375 = tpu.matmul %372, %374, %cst_462 {dimension_numbers = #tpu.dot_dimension_numbers<[1], [0], [0], [1], [0, 0, 1, 1], [], []>} : vector<64x22xbf16>, vector<22x128xbf16>, vector<64x128xf32> -> vector<64x128xf32>
    %376 = arith.addf %368, %375 : vector<64x128xf32>
    %c0_463 = arith.constant 0 : index
    %c1_464 = arith.constant 1 : index
    %c3_465 = arith.constant 3 : index
    %c2_466 = arith.constant 2 : index
    %c0_467 = arith.constant 0 : index
    %377 = vector.load %arg1[%c0_463, %c1_464, %c3_465, %c2_466, %c0_467] : memref<1x4x11x11x22xf32, #tpu.memory_space<vmem>>, vector<1x1x8x8x22xf32>
    %378 = vector.shape_cast %377 : vector<1x1x8x8x22xf32> to vector<8x8x22xf32>
    %379 = vector.shape_cast %378 : vector<8x8x22xf32> to vector<64x22xf32>
    %380 = arith.truncf %379 : vector<64x22xf32> to vector<64x22xbf16>
    %c6_468 = arith.constant 6 : index
    %c5_469 = arith.constant 5 : index
    %c0_470 = arith.constant 0 : index
    %c0_471 = arith.constant 0 : index
    %381 = vector.load %arg2[%c6_468, %c5_469, %c0_470, %c0_471] : memref<7x7x22x128xbf16, #tpu.memory_space<vmem>>, vector<1x1x22x128xbf16>
    %382 = vector.shape_cast %381 : vector<1x1x22x128xbf16> to vector<22x128xbf16>
    %cst_472 = arith.constant dense<0.000000e+00> : vector<64x128xf32>
    %383 = tpu.matmul %380, %382, %cst_472 {dimension_numbers = #tpu.dot_dimension_numbers<[1], [0], [0], [1], [0, 0, 1, 1], [], []>} : vector<64x22xbf16>, vector<22x128xbf16>, vector<64x128xf32> -> vector<64x128xf32>
    %384 = arith.addf %376, %383 : vector<64x128xf32>
    %c0_473 = arith.constant 0 : index
    %c0_474 = arith.constant 0 : index
    %c3_475 = arith.constant 3 : index
    %c3_476 = arith.constant 3 : index
    %c0_477 = arith.constant 0 : index
    %385 = vector.load %arg1[%c0_473, %c0_474, %c3_475, %c3_476, %c0_477] : memref<1x4x11x11x22xf32, #tpu.memory_space<vmem>>, vector<1x1x8x8x22xf32>
    %386 = vector.shape_cast %385 : vector<1x1x8x8x22xf32> to vector<8x8x22xf32>
    %387 = vector.shape_cast %386 : vector<8x8x22xf32> to vector<64x22xf32>
    %388 = arith.truncf %387 : vector<64x22xf32> to vector<64x22xbf16>
    %c6_478 = arith.constant 6 : index
    %c6_479 = arith.constant 6 : index
    %c0_480 = arith.constant 0 : index
    %c0_481 = arith.constant 0 : index
    %389 = vector.load %arg2[%c6_478, %c6_479, %c0_480, %c0_481] : memref<7x7x22x128xbf16, #tpu.memory_space<vmem>>, vector<1x1x22x128xbf16>
    %390 = vector.shape_cast %389 : vector<1x1x22x128xbf16> to vector<22x128xbf16>
    %cst_482 = arith.constant dense<0.000000e+00> : vector<64x128xf32>
    %391 = tpu.matmul %388, %390, %cst_482 {dimension_numbers = #tpu.dot_dimension_numbers<[1], [0], [0], [1], [0, 0, 1, 1], [], []>} : vector<64x22xbf16>, vector<22x128xbf16>, vector<64x128xf32> -> vector<64x128xf32>
    %392 = arith.addf %384, %391 : vector<64x128xf32>
    %c0_483 = arith.constant 0 : index
    %c0_484 = arith.constant 0 : index
    %c0_485 = arith.constant 0 : index
    %393 = vector.load %arg3[%c0_483, %c0_484, %c0_485] : memref<1x64x128xf32, #tpu.memory_space<vmem>>, vector<1x64x128xf32>
    %394 = vector.shape_cast %393 : vector<1x64x128xf32> to vector<64x128xf32>
    %395 = vector.shape_cast %392 : vector<64x128xf32> to vector<1x64x128xf32>
    tpu.vector_store %arg3[%c0_483, %c0_484, %c0_485], %395 {strides = array<i32>} : memref<1x64x128xf32, #tpu.memory_space<vmem>>, vector<1x64x128xf32>,
    %cst_486 = arith.constant dense<0.000000e+00> : vector<128xf32>
    %396 = vector.multi_reduction <add>, %392, %cst_486 [0] : vector<64x128xf32> to vector<128xf32>
    %397 = vector.shape_cast %396 : vector<128xf32> to vector<1x128xf32>
    %398 = arith.mulf %392, %392 : vector<64x128xf32>
    %cst_487 = arith.constant dense<0.000000e+00> : vector<128xf32>
    %399 = vector.multi_reduction <add>, %398, %cst_487 [0] : vector<64x128xf32> to vector<128xf32>
    %400 = vector.shape_cast %399 : vector<128xf32> to vector<1x128xf32>
    %401 = tpu.concatenate %397, %400 in 0 : vector<1x128xf32>, vector<1x128xf32> -> vector<2x128xf32>
    %c0_488 = arith.constant 0 : index
    %c0_489 = arith.constant 0 : index
    %c0_490 = arith.constant 0 : index
    %402 = vector.load %arg4[%c0_488, %c0_489, %c0_490] : memref<1x2x128xf32, #tpu.memory_space<vmem>>, vector<1x2x128xf32>
    %403 = vector.shape_cast %402 : vector<1x2x128xf32> to vector<2x128xf32>
    %404 = vector.shape_cast %401 : vector<2x128xf32> to vector<1x2x128xf32>
    tpu.vector_store %arg4[%c0_488, %c0_489, %c0_490], %404 {strides = array<i32>} : memref<1x2x128xf32, #tpu.memory_space<vmem>>, vector<1x2x128xf32>,
    return
  }
  func.func @transform_0(%arg0: i32) -> (i32, i32, i32, i32, i32) {
    %c0_i32 = arith.constant 0 : i32
    %c0_i32_0 = arith.constant 0 : i32
    %c0_i32_1 = arith.constant 0 : i32
    %c0_i32_2 = arith.constant 0 : i32
    %c0_i32_3 = arith.constant 0 : i32
    return %arg0, %c0_i32, %c0_i32_0, %c0_i32_1, %c0_i32_2 : i32, i32, i32, i32, i32
  }
  func.func @transform_1(%arg0: i32) -> (i32, i32, i32, i32) {
    %c0_i32 = arith.constant 0 : i32
    %c0_i32_0 = arith.constant 0 : i32
    %c0_i32_1 = arith.constant 0 : i32
    %c0_i32_2 = arith.constant 0 : i32
    %c0_i32_3 = arith.constant 0 : i32
    return %c0_i32, %c0_i32_0, %c0_i32_1, %c0_i32_2 : i32, i32, i32, i32
  }
  func.func @transform_2(%arg0: i32) -> (i32, i32, i32) {
    %c0_i32 = arith.constant 0 : i32
    %c0_i32_0 = arith.constant 0 : i32
    %c0_i32_1 = arith.constant 0 : i32
    return %arg0, %c0_i32, %c0_i32_0 : i32, i32, i32
  }
  func.func @transform_3(%arg0: i32) -> (i32, i32, i32) {
    %c0_i32 = arith.constant 0 : i32
    %c0_i32_0 = arith.constant 0 : i32
    %c0_i32_1 = arith.constant 0 : i32
    return %arg0, %c0_i32, %c0_i32_0 : i32, i32, i32
  }
}

</mosaic_0001>

<llo_original>
// kernel: tpu_custom_call.1
$region0: #{tpu_custom_call.1}
  #allocation0 [shape = 'u32[]', space=smem, size = 0x4, offset = 0x4, fixed_abs, tag = 'smem constant byte address 0x4 - core index']
  #allocation1 [shape = 'u32[144,128]{1,0:T(1,128)}', space=vmem, size = 0x12000, scoped, tag = 'internal scratch']
  %s0 = inlined_call_operand.vmem [shape: f32[2,4,11,11,22], index: 0, kind: input, shape index: {}]
  %s1 = inlined_call_operand.vmem [shape: bf16[7,7,22,128], index: 1, kind: input, shape index: {}]
  %s2 = inlined_call_operand.hbm [shape: f32[2,64,128], index: 2, kind: output, shape index: {0}]
  %s3 = inlined_call_operand.hbm [shape: f32[2,2,128], index: 3, kind: output, shape index: {1}]
  %4 = xla_tuple %s2, %s3
  %s5 = sld [smem:[#allocation0]]
  $region49: #{tpu_custom_call.1} parent=0
    _
  %s7 = ssub.s32 1, %s5
  %s8 = scalar_select 0, %s7, %s5
  $region1: #{tpu_custom_call.1} parent=0
    #allocation2 [shape = 'u8[65536]{0}', space=vmem, size = 0x10000, scoped, tag = 'output window, operand 0']
    #allocation3 [shape = 's32[2]{0}', space=sflag, size = 0x8, scoped, tag = 'scoped memory for tpu_custom_call.1']
    #allocation4 [shape = 'u8[2048]{0}', space=vmem, size = 0x800, scoped, tag = 'output window, operand 1']
    #allocation5 [shape = 's32[2]{0}', space=sflag, size = 0x8, scoped, tag = 'scoped memory for tpu_custom_call.1']
    %9 = vsyncpa [#allocation3], 0
    %s10 = scalar_lea.sflag [#allocation3], 1
    %11 = vsyncpa %s10, 0
    %12 = vsyncpa [#allocation5], 0
    %s13 = scalar_lea.sflag [#allocation5], 1
    %14 = vsyncpa %s13, 0
    loop: start=0, step=1, limit=4
    $region2: #{tpu_custom_call.1} parent=1 // loop_pre_header
      _
    $region3: #{tpu_custom_call.1} parent=1 // loop_header
      %s16 = sphi 0, %s20
      %p17 = scmp.ge.s32.totalorder %s16, 4
      %s26 = sphi 0, %s28
      %s29 = sphi 0, %s26
      %s30 = sphi 0, %s29
      %s46 = sphi 0, %s30
      %s50 = sphi 0, %s50
      %s52 = sphi 0, %s50
      %s53 = sphi 0, %s52
      %s67 = sphi 0, %s53
      %s73 = sphi 0, %s75
      %s76 = sphi 0, %s73
      %s77 = sphi 0, %s76
      %s93 = sphi 0, %s77
      %s99 = sphi 0, %s101
      %s102 = sphi 0, %s99
      %s103 = sphi 0, %s102
      %s119 = sphi 0, %s103
    $region4: #{tpu_custom_call.1} parent=1 // loop_header_branch
      %19 = sbr.rel (%p17) target = $region8
    $region5: #{tpu_custom_call.1} parent=1 // loop_body
      %s21 = ssub.s32 %s16, 1
      %s22 = ssub.s32 %s16, 2
      %s23 = sadd.s32 %s16, 1
      %s24 = ssub.s32 %s16, %s23
      %p25 = scmp.eq.s32.totalorder %s24, 0
      %s27 = sadd.s32 %s26, 1
      %s28 = scalar_select %p25, %s26, %s27
      %p31 = pneg %p25
      %p32 = scmp.eq.s32.totalorder %s16, 1
      %p33 = por %p31, %p32
      %p34 = scmp.ne.s32.totalorder %s26, %s29
      %p35 = scmp.eq.s32.totalorder %s16, 0
      %p36 = por %p34, %p35
      %p37 = scmp.ne.s32.totalorder %s26, %s29
      %p38 = scmp.eq.s32.totalorder %s21, 1
      %p39 = por %p37, %p38
      %p40 = scmp.ne.s32.totalorder %s29, %s30
      %p41 = scmp.eq.s32.totalorder %s21, 0
      %p42 = por %p40, %p41
      %p43 = scmp.ne.s32.totalorder %s29, %s30
      %p44 = scmp.eq.s32.totalorder %s22, 1
      %p45 = por %p43, %p44
      %p47 = scmp.ne.s32.totalorder %s30, %s46
      %p48 = scmp.eq.s32.totalorder %s22, 0
      %p49 = por %p47, %p48
      %s51 = sadd.s32 %s50, 1
      %p54 = scmp.eq.s32.totalorder %s16, 1
      %p55 = scmp.ne.s32.totalorder %s50, %s52
      %p56 = scmp.eq.s32.totalorder %s16, 0
      %p57 = por %p55, %p56
      %p58 = scmp.ne.s32.totalorder %s50, %s52
      %p59 = scmp.eq.s32.totalorder %s21, 1
      %p60 = por %p58, %p59
      %p61 = scmp.ne.s32.totalorder %s52, %s53
      %p62 = scmp.eq.s32.totalorder %s21, 0
      %p63 = por %p61, %p62
      %p64 = scmp.ne.s32.totalorder %s52, %s53
      %p65 = scmp.eq.s32.totalorder %s22, 1
      %p66 = por %p64, %p65
      %p68 = scmp.ne.s32.totalorder %s53, %s67
      %p69 = scmp.eq.s32.totalorder %s22, 0
      %p70 = por %p68, %p69
      %s71 = ssub.s32 %s16, %s23
      %p72 = scmp.eq.s32.totalorder %s71, 0
      %s74 = sadd.s32 %s73, 1
      %s75 = scalar_select %p72, %s73, %s74
      %p78 = pneg %p72
      %p79 = scmp.eq.s32.totalorder %s16, 1
      %p80 = por %p78, %p79
      %p81 = scmp.ne.s32.totalorder %s73, %s76
      %p82 = scmp.eq.s32.totalorder %s16, 0
      %p83 = por %p81, %p82
      %p84 = scmp.ne.s32.totalorder %s73, %s76
      %p85 = scmp.eq.s32.totalorder %s21, 1
      %p86 = por %p84, %p85
      %p87 = scmp.ne.s32.totalorder %s76, %s77
      %p88 = scmp.eq.s32.totalorder %s21, 0
      %p89 = por %p87, %p88
      %p90 = scmp.ne.s32.totalorder %s76, %s77
      %p91 = scmp.eq.s32.totalorder %s22, 1
      %p92 = por %p90, %p91
      %p94 = scmp.ne.s32.totalorder %s77, %s93
      %p95 = scmp.eq.s32.totalorder %s22, 0
      %p96 = por %p94, %p95
      %s97 = ssub.s32 %s16, %s23
      %p98 = scmp.eq.s32.totalorder %s97, 0
      %s100 = sadd.s32 %s99, 1
      %s101 = scalar_select %p98, %s99, %s100
      %p104 = pneg %p98
      %p105 = scmp.eq.s32.totalorder %s16, 1
      %p106 = por %p104, %p105
      %p107 = scmp.ne.s32.totalorder %s99, %s102
      %p108 = scmp.eq.s32.totalorder %s16, 0
      %p109 = por %p107, %p108
      %p110 = scmp.ne.s32.totalorder %s99, %s102
      %p111 = scmp.eq.s32.totalorder %s21, 1
      %p112 = por %p110, %p111
      %p113 = scmp.ne.s32.totalorder %s102, %s103
      %p114 = scmp.eq.s32.totalorder %s21, 0
      %p115 = por %p113, %p114
      %p116 = scmp.ne.s32.totalorder %s102, %s103
      %p117 = scmp.eq.s32.totalorder %s22, 1
      %p118 = por %p116, %p117
      %p120 = scmp.ne.s32.totalorder %s103, %s119
      %p121 = scmp.eq.s32.totalorder %s22, 0
      %p122 = por %p120, %p121
      %p123 = scmp.le.s32.totalorder 1, %s16
      %p124 = scmp.lt.s32.totalorder %s16, 3
      %p125 = pnand %p123, %p124
      %p126 = pneg %p125
      // Predicated region
      $region9: #{tpu_custom_call.1} parent=5 // pred_check
        _
      $region10: #{tpu_custom_call.1} parent=5 // pred_check_branch
        %128 = sbr.rel (%p125) target = $region12
      $region11: #{tpu_custom_call.1} parent=5 // pred_region
        %s129 = ssub.s32 %s16, 1
        // Predicated region
        $region13: #{tpu_custom_call.1} parent=11 // pred_check
          %p130 = pneg %p63
        $region14: #{tpu_custom_call.1} parent=11 // pred_check_branch
          %132 = sbr.rel (%p130) target = $region16
        $region15: #{tpu_custom_call.1} parent=11 // pred_region
          _
        $region16: #{tpu_custom_call.1} parent=11 // pred_fallthru
          _
      $region12: #{tpu_custom_call.1} parent=5 // pred_fallthru
        _
      %p133 = scmp.lt.s32.totalorder %s16, 2
      // Predicated region
      $region17: #{tpu_custom_call.1} parent=5 // pred_check
        %p134 = pneg %p133
      $region18: #{tpu_custom_call.1} parent=5 // pred_check_branch
        %136 = sbr.rel (%p134) target = $region20
      $region19: #{tpu_custom_call.1} parent=5 // pred_region
        // Predicated region
        $region21: #{tpu_custom_call.1} parent=19 // pred_check
          %p137 = pneg %p36
        $region22: #{tpu_custom_call.1} parent=19 // pred_check_branch
          %139 = sbr.rel (%p137) target = $region24
        $region23: #{tpu_custom_call.1} parent=19 // pred_region
          %p140 = scmp.lt.s32.totalorder %s16, 1
          %s141 = scalar_select %p140, %s16, 1
          %s142 = smul.addr %s141, 88
          %s143 = smul.addr %s142, 8
          %s144 = scalar_lea.vmem %s0, %s143
        $region24: #{tpu_custom_call.1} parent=19 // pred_fallthru
          _
      $region20: #{tpu_custom_call.1} parent=5 // pred_fallthru
        _
      %p145 = scmp.le.s32.totalorder 1, %s16
      %p146 = scmp.lt.s32.totalorder %s16, 3
      %p147 = pnand %p145, %p146
      %p148 = pneg %p147
      // Predicated region
      $region25: #{tpu_custom_call.1} parent=5 // pred_check
        _
      $region26: #{tpu_custom_call.1} parent=5 // pred_check_branch
        %150 = sbr.rel (%p147) target = $region28
      $region27: #{tpu_custom_call.1} parent=5 // pred_region
        %s151 = ssub.s32 %s16, 1
        %p152 = scmp.lt.s32.totalorder %s21, 1
        %s153 = scalar_select %p152, %s21, 1
        %s154 = smul.addr %s153, 88
        %s155 = smul.addr %s154, 8
        %s156 = scalar_lea.vmem %s0, %s155
        %p157 = pneg %p42
        %p158 = pneg %p39
        %p159 = pneg %p63
        %p160 = pneg %p60
        %p161 = pneg %p89
        %p162 = pneg %p86
        %s163 = sand.u32 %s76, 1
        %s164 = scalar_lea.sflag [#allocation3], %s163
        %s165 = sand.u32 %s76, 1
        %s166 = smul.addr %s165, 64
        %s167 = scalar_lea.vmem [#allocation2], %s166
        %p168 = pneg %p115
        %p169 = pneg %p112
        %s170 = sand.u32 %s102, 1
        %s171 = scalar_lea.sflag [#allocation5], %s170
        %s172 = sand.u32 %s102, 1
        %s173 = smul.addr %s172, 2
        %s174 = scalar_lea.vmem [#allocation4], %s173
        %p175 = scmp.lt.s32.totalorder %s21, 1
        %s176 = scalar_select %p175, %s21, 1
        %s177 = smul.addr %s176, 88
        %s178 = smul.addr %s177, 8
        %s179 = scalar_lea.vmem %s0, %s178
        %v181 = vld [vmem:[%s179] sm:$0xff]
        %v182 = vld [vmem:[%s179 + $0x10] sm:$0xff]
        %v183 = vld [vmem:[%s179 + $0x20] sm:$0xff]
        %v184 = vld [vmem:[%s179 + $0x30] sm:$0xff]
        %v185 = vld [vmem:[%s179 + $0x40] sm:$0xff]
        %v186 = vld [vmem:[%s179 + $0x50] sm:$0xff]
        %v187 = vld [vmem:[%s179 + $0x60] sm:$0xff]
        %v188 = vld [vmem:[%s179 + $0x70] sm:$0xff]
        %v189 = vpack.c.bf16 %v182, %v181
        %v190 = vpack.c.bf16 %v184, %v183
        %v191 = vpack.c.bf16 %v186, %v185
        %v192 = vpack.c.bf16 %v188, %v187
        %v193 = vld [vmem:[%s1] sm:$0xf]
        %v194 = vld [vmem:[%s1 + $0x4] sm:$0xf]
        %v195 = vld [vmem:[%s1 + $0x8] sm:$0x7]
        %s196 = scalar_lea.vmem %s179, 176
        %v197 = vld [vmem:[%s196] sm:$0xff]
        %v198 = vld [vmem:[%s196 + $0x10] sm:$0xff]
        %v199 = vld [vmem:[%s196 + $0x20] sm:$0xff]
        %v200 = vld [vmem:[%s196 + $0x30] sm:$0xff]
        %v201 = vld [vmem:[%s196 + $0x40] sm:$0xff]
        %v202 = vld [vmem:[%s196 + $0x50] sm:$0xff]
        %v203 = vld [vmem:[%s196 + $0x60] sm:$0xff]
        %v204 = vld [vmem:[%s196 + $0x70] sm:$0xff]
        %v205 = vpack.c.bf16 %v198, %v197
        %v206 = vpack.c.bf16 %v200, %v199
        %v207 = vpack.c.bf16 %v202, %v201
        %v208 = vpack.c.bf16 %v204, %v203
        %s209 = scalar_lea.vmem %s1, 12
        %v210 = vld [vmem:[%s209] sm:$0xf]
        %v211 = vld [vmem:[%s209 + $0x4] sm:$0xf]
        %v212 = vld [vmem:[%s209 + $0x8] sm:$0x7]
        %v216 = vunpack.c.l.b16 %v210
        %v217 = vunpack.c.l.b16 %v211
        %v218 = vunpack.c.l.b16 %v212
        %v219 = vpack.c.b16 %v217, %v216
        %v220 = vpack.c.b16 %v218, %v218
        %vm222 = vcmask 179200
        %v224 = vsel %vm222, %v205, 0
        %v227 = vsel %vm222, %v206, 0
        %v230 = vsel %vm222, %v207, 0
        %v233 = vsel %vm222, %v208, 0
        %vm235 = vcmask 1042432
        %v237 = vsel %vm235, %v220, 0
        %239 = vmatprep.subr.bf16.mxu0 0
        %240 = vmatpush1.bf16.msra.mxu0 0
        %241 = vmatprep.subr.bf16.mxu0 0
        %242 = vmatpush1.bf16.msra.mxu0 0
        %243 = vmatprep.subr.bf16.mxu0 0
        %244 = vmatpush1.bf16.msra.mxu0 0
        %245 = vmatprep.subr.bf16.mxu0 0
        %246 = vmatpush1.bf16.msra.mxu0 0
        %247 = vmatprep.subr.bf16.mxu0 0
        %248 = vmatpush1.bf16.msra.mxu0 0
        %249 = vmatprep.subr.bf16.mxu0 0
        %250 = vmatpush1.bf16.msra.mxu0 0
        %251 = vmatprep.subr.bf16.mxu0 0
        %252 = vmatpush1.bf16.msra.mxu0 %v237
        %253 = vmatprep.subr.bf16.mxu0 0
        %254 = vmatpush1.bf16.msra.mxu0 %v219
        %255 = vmatprep.subr.bf16.mxu0 0
        %256 = vmatpush2.bf16.msra.mxu0 0
        %257 = vmatprep.subr.bf16.mxu0 0
        %258 = vmatpush2.bf16.msra.mxu0 0
        %259 = vmatprep.subr.bf16.mxu0 0
        %260 = vmatpush2.bf16.msra.mxu0 0
        %261 = vmatprep.subr.bf16.mxu0 0
        %262 = vmatpush2.bf16.msra.mxu0 0
        %263 = vmatprep.subr.bf16.mxu0 0
        %264 = vmatpush2.bf16.msra.mxu0 0
        %265 = vmatprep.subr.bf16.mxu0 0
        %266 = vmatpush2.bf16.msra.mxu0 0
        %267 = vmatprep.subr.bf16.mxu0 0
        %268 = vmatpush2.bf16.msra.mxu0 0
        %269 = vmatprep.subr.bf16.mxu0 0
        %270 = vmatpush2.bf16.msra.mxu0 0
        %271 = vmatprep.mubr.bf16.mxu0 0
        %272 = vmatmul.mubr.bf16.gmra.mxu0 %v224
        %v273 = vpop.f32.mrf.mxu0
        %v274 = vadd.f32 0.0, %v273
        %v275 = vpop.f32.mrf.mxu0
        %v276 = vpop.f32.mrf.mxu0
        %v277 = vadd.f32 0.0, %v276
        %v278 = vpop.f32.mrf.mxu0
        %279 = vmatprep.mubr.bf16.mxu0 0
        %280 = vmatmul.mubr.bf16.gmra.mxu0 %v227
        %v281 = vpop.f32.mrf.mxu0
        %v282 = vadd.f32 0.0, %v281
        %v283 = vpop.f32.mrf.mxu0
        %v284 = vpop.f32.mrf.mxu0
        %v285 = vadd.f32 0.0, %v284
        %v286 = vpop.f32.mrf.mxu0
        %287 = vmatprep.mubr.bf16.mxu0 0
        %288 = vmatmul.mubr.bf16.gmra.mxu0 %v230
        %v289 = vpop.f32.mrf.mxu0
        %v290 = vadd.f32 0.0, %v289
        %v291 = vpop.f32.mrf.mxu0
        %v292 = vpop.f32.mrf.mxu0
        %v293 = vadd.f32 0.0, %v292
        %v294 = vpop.f32.mrf.mxu0
        %295 = vmatprep.mubr.bf16.mxu0 0
        %296 = vmatmul.mubr.bf16.gmra.mxu0 %v233
        %v297 = vpop.f32.mrf.mxu0
        %v298 = vadd.f32 0.0, %v297
        %v299 = vpop.f32.mrf.mxu0
        %v300 = vpop.f32.mrf.mxu0
        %v301 = vadd.f32 0.0, %v300
        %v302 = vpop.f32.mrf.mxu0
        %303 = vdwg.mxu0
        %v307 = vunpack.c.l.b16 %v193
        %v308 = vunpack.c.l.b16 %v194
        %v309 = vunpack.c.l.b16 %v195
        %v310 = vpack.c.b16 %v308, %v307
        %v311 = vpack.c.b16 %v309, %v309
        %v314 = vsel %vm222, %v189, 0
        %v317 = vsel %vm222, %v190, 0
        %v320 = vsel %vm222, %v191, 0
        %v323 = vsel %vm222, %v192, 0
        %v326 = vsel %vm235, %v311, 0
        %328 = vmatprep.subr.bf16.mxu0 0
        %329 = vmatpush1.bf16.msra.mxu0 0
        %330 = vmatprep.subr.bf16.mxu0 0
        %331 = vmatpush1.bf16.msra.mxu0 0
        %332 = vmatprep.subr.bf16.mxu0 0
        %333 = vmatpush1.bf16.msra.mxu0 0
        %334 = vmatprep.subr.bf16.mxu0 0
        %335 = vmatpush1.bf16.msra.mxu0 0
        %336 = vmatprep.subr.bf16.mxu0 0
        %337 = vmatpush1.bf16.msra.mxu0 0
        %338 = vmatprep.subr.bf16.mxu0 0
        %339 = vmatpush1.bf16.msra.mxu0 0
        %340 = vmatprep.subr.bf16.mxu0 0
        %341 = vmatpush1.bf16.msra.mxu0 %v326
        %342 = vmatprep.subr.bf16.mxu0 0
        %343 = vmatpush1.bf16.msra.mxu0 %v310
        %344 = vmatprep.subr.bf16.mxu0 0
        %345 = vmatpush2.bf16.msra.mxu0 0
        %346 = vmatprep.subr.bf16.mxu0 0
        %347 = vmatpush2.bf16.msra.mxu0 0
        %348 = vmatprep.subr.bf16.mxu0 0
        %349 = vmatpush2.bf16.msra.mxu0 0
        %350 = vmatprep.subr.bf16.mxu0 0
        %351 = vmatpush2.bf16.msra.mxu0 0
        %352 = vmatprep.subr.bf16.mxu0 0
        %353 = vmatpush2.bf16.msra.mxu0 0
        %354 = vmatprep.subr.bf16.mxu0 0
        %355 = vmatpush2.bf16.msra.mxu0 0
        %356 = vmatprep.subr.bf16.mxu0 0
        %357 = vmatpush2.bf16.msra.mxu0 0
        %358 = vmatprep.subr.bf16.mxu0 0
        %359 = vmatpush2.bf16.msra.mxu0 0
        %360 = vmatprep.mubr.bf16.mxu0 0
        %361 = vmatmul.mubr.bf16.gmra.mxu0 %v314
        %v362 = vpop.f32.mrf.mxu0
        %v363 = vadd.f32 %v274, %v362
        %v364 = vpop.f32.mrf.mxu0
        %v365 = vpop.f32.mrf.mxu0
        %v366 = vadd.f32 %v277, %v365
        %v367 = vpop.f32.mrf.mxu0
        %368 = vmatprep.mubr.bf16.mxu0 0
        %369 = vmatmul.mubr.bf16.gmra.mxu0 %v317
        %v370 = vpop.f32.mrf.mxu0
        %v371 = vadd.f32 %v282, %v370
        %v372 = vpop.f32.mrf.mxu0
        %v373 = vpop.f32.mrf.mxu0
        %v374 = vadd.f32 %v285, %v373
        %v375 = vpop.f32.mrf.mxu0
        %376 = vmatprep.mubr.bf16.mxu0 0
        %377 = vmatmul.mubr.bf16.gmra.mxu0 %v320
        %v378 = vpop.f32.mrf.mxu0
        %v379 = vadd.f32 %v290, %v378
        %v380 = vpop.f32.mrf.mxu0
        %v381 = vpop.f32.mrf.mxu0
        %v382 = vadd.f32 %v293, %v381
        %v383 = vpop.f32.mrf.mxu0
        %384 = vmatprep.mubr.bf16.mxu0 0
        %385 = vmatmul.mubr.bf16.gmra.mxu0 %v323
        %v386 = vpop.f32.mrf.mxu0
        %v387 = vadd.f32 %v298, %v386
        %v388 = vpop.f32.mrf.mxu0
        %v389 = vpop.f32.mrf.mxu0
        %v390 = vadd.f32 %v301, %v389
        %v391 = vpop.f32.mrf.mxu0
        %392 = vdwg.mxu0
        %v393 = vld [vmem:[%s179 + $0x1] sm:$0xff]
        %v394 = vld [vmem:[%s179 + $0x11] sm:$0xff]
        %v395 = vld [vmem:[%s179 + $0x21] sm:$0xff]
        %v396 = vld [vmem:[%s179 + $0x31] sm:$0xff]
        %v397 = vld [vmem:[%s179 + $0x41] sm:$0xff]
        %v398 = vld [vmem:[%s179 + $0x51] sm:$0xff]
        %v399 = vld [vmem:[%s179 + $0x61] sm:$0xff]
        %v400 = vld [vmem:[%s179 + $0x71] sm:$0xff]
        %v401 = vpack.c.bf16 %v394, %v393
        %v402 = vpack.c.bf16 %v396, %v395
        %v403 = vpack.c.bf16 %v398, %v397
        %v404 = vpack.c.bf16 %v400, %v399
        %s405 = scalar_lea.vmem %s1, 24
        %v406 = vld [vmem:[%s405] sm:$0xf]
        %v407 = vld [vmem:[%s405 + $0x4] sm:$0xf]
        %v408 = vld [vmem:[%s405 + $0x8] sm:$0x7]
        %v412 = vunpack.c.l.b16 %v406
        %v413 = vunpack.c.l.b16 %v407
        %v414 = vunpack.c.l.b16 %v408
        %v415 = vpack.c.b16 %v413, %v412
        %v416 = vpack.c.b16 %v414, %v414
        %v419 = vsel %vm222, %v401, 0
        %v422 = vsel %vm222, %v402, 0
        %v425 = vsel %vm222, %v403, 0
        %v428 = vsel %vm222, %v404, 0
        %v431 = vsel %vm235, %v416, 0
        %433 = vmatprep.subr.bf16.mxu0 0
        %434 = vmatpush1.bf16.msra.mxu0 0
        %435 = vmatprep.subr.bf16.mxu0 0
        %436 = vmatpush1.bf16.msra.mxu0 0
        %437 = vmatprep.subr.bf16.mxu0 0
        %438 = vmatpush1.bf16.msra.mxu0 0
        %439 = vmatprep.subr.bf16.mxu0 0
        %440 = vmatpush1.bf16.msra.mxu0 0
        %441 = vmatprep.subr.bf16.mxu0 0
        %442 = vmatpush1.bf16.msra.mxu0 0
        %443 = vmatprep.subr.bf16.mxu0 0
        %444 = vmatpush1.bf16.msra.mxu0 0
        %445 = vmatprep.subr.bf16.mxu0 0
        %446 = vmatpush1.bf16.msra.mxu0 %v431
        %447 = vmatprep.subr.bf16.mxu0 0
        %448 = vmatpush1.bf16.msra.mxu0 %v415
        %449 = vmatprep.subr.bf16.mxu0 0
        %450 = vmatpush2.bf16.msra.mxu0 0
        %451 = vmatprep.subr.bf16.mxu0 0
        %452 = vmatpush2.bf16.msra.mxu0 0
        %453 = vmatprep.subr.bf16.mxu0 0
        %454 = vmatpush2.bf16.msra.mxu0 0
        %455 = vmatprep.subr.bf16.mxu0 0
        %456 = vmatpush2.bf16.msra.mxu0 0
        %457 = vmatprep.subr.bf16.mxu0 0
        %458 = vmatpush2.bf16.msra.mxu0 0
        %459 = vmatprep.subr.bf16.mxu0 0
        %460 = vmatpush2.bf16.msra.mxu0 0
        %461 = vmatprep.subr.bf16.mxu0 0
        %462 = vmatpush2.bf16.msra.mxu0 0
        %463 = vmatprep.subr.bf16.mxu0 0
        %464 = vmatpush2.bf16.msra.mxu0 0
        %465 = vmatprep.mubr.bf16.mxu0 0
        %466 = vmatmul.mubr.bf16.gmra.mxu0 %v419
        %v467 = vpop.f32.mrf.mxu0
        %v468 = vadd.f32 0.0, %v467
        %v469 = vpop.f32.mrf.mxu0
        %v470 = vpop.f32.mrf.mxu0
        %v471 = vadd.f32 0.0, %v470
        %v472 = vpop.f32.mrf.mxu0
        %473 = vmatprep.mubr.bf16.mxu0 0
        %474 = vmatmul.mubr.bf16.gmra.mxu0 %v422
        %v475 = vpop.f32.mrf.mxu0
        %v476 = vadd.f32 0.0, %v475
        %v477 = vpop.f32.mrf.mxu0
        %v478 = vpop.f32.mrf.mxu0
        %v479 = vadd.f32 0.0, %v478
        %v480 = vpop.f32.mrf.mxu0
        %481 = vmatprep.mubr.bf16.mxu0 0
        %482 = vmatmul.mubr.bf16.gmra.mxu0 %v425
        %v483 = vpop.f32.mrf.mxu0
        %v484 = vadd.f32 0.0, %v483
        %v485 = vpop.f32.mrf.mxu0
        %v486 = vpop.f32.mrf.mxu0
        %v487 = vadd.f32 0.0, %v486
        %v488 = vpop.f32.mrf.mxu0
        %489 = vmatprep.mubr.bf16.mxu0 0
        %490 = vmatmul.mubr.bf16.gmra.mxu0 %v428
        %v491 = vpop.f32.mrf.mxu0
        %v492 = vadd.f32 0.0, %v491
        %v493 = vpop.f32.mrf.mxu0
        %v494 = vpop.f32.mrf.mxu0
        %v495 = vadd.f32 0.0, %v494
        %v496 = vpop.f32.mrf.mxu0
        %497 = vdwg.mxu0
        %v498 = vadd.f32 %v363, %v468
        %v499 = vadd.f32 %v366, %v471
        %v500 = vadd.f32 %v371, %v476
        %v501 = vadd.f32 %v374, %v479
        %v502 = vadd.f32 %v379, %v484
        %v503 = vadd.f32 %v382, %v487
        %v504 = vadd.f32 %v387, %v492
        %v505 = vadd.f32 %v390, %v495
        %v506 = vld [vmem:[%s196 + $0x1] sm:$0xff]
        %v507 = vld [vmem:[%s196 + $0x11] sm:$0xff]
        %v508 = vld [vmem:[%s196 + $0x21] sm:$0xff]
        %v509 = vld [vmem:[%s196 + $0x31] sm:$0xff]
        %v510 = vld [vmem:[%s196 + $0x41] sm:$0xff]
        %v511 = vld [vmem:[%s196 + $0x51] sm:$0xff]
        %v512 = vld [vmem:[%s196 + $0x61] sm:$0xff]
        %v513 = vld [vmem:[%s196 + $0x71] sm:$0xff]
        %v514 = vpack.c.bf16 %v507, %v506
        %v515 = vpack.c.bf16 %v509, %v508
        %v516 = vpack.c.bf16 %v511, %v510
        %v517 = vpack.c.bf16 %v513, %v512
        %s518 = scalar_lea.vmem %s1, 36
        %v519 = vld [vmem:[%s518] sm:$0xf]
        %v520 = vld [vmem:[%s518 + $0x4] sm:$0xf]
        %v521 = vld [vmem:[%s518 + $0x8] sm:$0x7]
        %v525 = vunpack.c.l.b16 %v519
        %v526 = vunpack.c.l.b16 %v520
        %v527 = vunpack.c.l.b16 %v521
        %v528 = vpack.c.b16 %v526, %v525
        %v529 = vpack.c.b16 %v527, %v527
        %v532 = vsel %vm222, %v514, 0
        %v535 = vsel %vm222, %v515, 0
        %v538 = vsel %vm222, %v516, 0
        %v541 = vsel %vm222, %v517, 0
        %v544 = vsel %vm235, %v529, 0
        %546 = vmatprep.subr.bf16.mxu0 0
        %547 = vmatpush1.bf16.msra.mxu0 0
        %548 = vmatprep.subr.bf16.mxu0 0
        %549 = vmatpush1.bf16.msra.mxu0 0
        %550 = vmatprep.subr.bf16.mxu0 0
        %551 = vmatpush1.bf16.msra.mxu0 0
        %552 = vmatprep.subr.bf16.mxu0 0
        %553 = vmatpush1.bf16.msra.mxu0 0
        %554 = vmatprep.subr.bf16.mxu0 0
        %555 = vmatpush1.bf16.msra.mxu0 0
        %556 = vmatprep.subr.bf16.mxu0 0
        %557 = vmatpush1.bf16.msra.mxu0 0
        %558 = vmatprep.subr.bf16.mxu0 0
        %559 = vmatpush1.bf16.msra.mxu0 %v544
        %560 = vmatprep.subr.bf16.mxu0 0
        %561 = vmatpush1.bf16.msra.mxu0 %v528
        %562 = vmatprep.subr.bf16.mxu0 0
        %563 = vmatpush2.bf16.msra.mxu0 0
        %564 = vmatprep.subr.bf16.mxu0 0
        %565 = vmatpush2.bf16.msra.mxu0 0
        %566 = vmatprep.subr.bf16.mxu0 0
        %567 = vmatpush2.bf16.msra.mxu0 0
        %568 = vmatprep.subr.bf16.mxu0 0
        %569 = vmatpush2.bf16.msra.mxu0 0
        %570 = vmatprep.subr.bf16.mxu0 0
        %571 = vmatpush2.bf16.msra.mxu0 0
        %572 = vmatprep.subr.bf16.mxu0 0
        %573 = vmatpush2.bf16.msra.mxu0 0
        %574 = vmatprep.subr.bf16.mxu0 0
        %575 = vmatpush2.bf16.msra.mxu0 0
        %576 = vmatprep.subr.bf16.mxu0 0
        %577 = vmatpush2.bf16.msra.mxu0 0
        %578 = vmatprep.mubr.bf16.mxu0 0
        %579 = vmatmul.mubr.bf16.gmra.mxu0 %v532
        %v580 = vpop.f32.mrf.mxu0
        %v581 = vadd.f32 0.0, %v580
        %v582 = vpop.f32.mrf.mxu0
        %v583 = vpop.f32.mrf.mxu0
        %v584 = vadd.f32 0.0, %v583
        %v585 = vpop.f32.mrf.mxu0
        %586 = vmatprep.mubr.bf16.mxu0 0
        %587 = vmatmul.mubr.bf16.gmra.mxu0 %v535
        %v588 = vpop.f32.mrf.mxu0
        %v589 = vadd.f32 0.0, %v588
        %v590 = vpop.f32.mrf.mxu0
        %v591 = vpop.f32.mrf.mxu0
        %v592 = vadd.f32 0.0, %v591
        %v593 = vpop.f32.mrf.mxu0
        %594 = vmatprep.mubr.bf16.mxu0 0
        %595 = vmatmul.mubr.bf16.gmra.mxu0 %v538
        %v596 = vpop.f32.mrf.mxu0
        %v597 = vadd.f32 0.0, %v596
        %v598 = vpop.f32.mrf.mxu0
        %v599 = vpop.f32.mrf.mxu0
        %v600 = vadd.f32 0.0, %v599
        %v601 = vpop.f32.mrf.mxu0
        %602 = vmatprep.mubr.bf16.mxu0 0
        %603 = vmatmul.mubr.bf16.gmra.mxu0 %v541
        %v604 = vpop.f32.mrf.mxu0
        %v605 = vadd.f32 0.0, %v604
        %v606 = vpop.f32.mrf.mxu0
        %v607 = vpop.f32.mrf.mxu0
        %v608 = vadd.f32 0.0, %v607
        %v609 = vpop.f32.mrf.mxu0
        %610 = vdwg.mxu0
        %v611 = vadd.f32 %v498, %v581
        %v612 = vadd.f32 %v499, %v584
        %v613 = vadd.f32 %v500, %v589
        %v614 = vadd.f32 %v501, %v592
        %v615 = vadd.f32 %v502, %v597
        %v616 = vadd.f32 %v503, %v600
        %v617 = vadd.f32 %v504, %v605
        %v618 = vadd.f32 %v505, %v608
        %v619 = vld [vmem:[%s179 + $0x2] sm:$0xff]
        %v620 = vld [vmem:[%s179 + $0x12] sm:$0xff]
        %v621 = vld [vmem:[%s179 + $0x22] sm:$0xff]
        %v622 = vld [vmem:[%s179 + $0x32] sm:$0xff]
        %v623 = vld [vmem:[%s179 + $0x42] sm:$0xff]
        %v624 = vld [vmem:[%s179 + $0x52] sm:$0xff]
        %v625 = vld [vmem:[%s179 + $0x62] sm:$0xff]
        %v626 = vld [vmem:[%s179 + $0x72] sm:$0xff]
        %v627 = vpack.c.bf16 %v620, %v619
        %v628 = vpack.c.bf16 %v622, %v621
        %v629 = vpack.c.bf16 %v624, %v623
        %v630 = vpack.c.bf16 %v626, %v625
        %s631 = scalar_lea.vmem %s1, 48
        %v632 = vld [vmem:[%s631] sm:$0xf]
        %v633 = vld [vmem:[%s631 + $0x4] sm:$0xf]
        %v634 = vld [vmem:[%s631 + $0x8] sm:$0x7]
        %v638 = vunpack.c.l.b16 %v632
        %v639 = vunpack.c.l.b16 %v633
        %v640 = vunpack.c.l.b16 %v634
        %v641 = vpack.c.b16 %v639, %v638
        %v642 = vpack.c.b16 %v640, %v640
        %v645 = vsel %vm222, %v627, 0
        %v648 = vsel %vm222, %v628, 0
        %v651 = vsel %vm222, %v629, 0
        %v654 = vsel %vm222, %v630, 0
        %v657 = vsel %vm235, %v642, 0
        %659 = vmatprep.subr.bf16.mxu0 0
        %660 = vmatpush1.bf16.msra.mxu0 0
        %661 = vmatprep.subr.bf16.mxu0 0
        %662 = vmatpush1.bf16.msra.mxu0 0
        %663 = vmatprep.subr.bf16.mxu0 0
        %664 = vmatpush1.bf16.msra.mxu0 0
        %665 = vmatprep.subr.bf16.mxu0 0
        %666 = vmatpush1.bf16.msra.mxu0 0
        %667 = vmatprep.subr.bf16.mxu0 0
        %668 = vmatpush1.bf16.msra.mxu0 0
        %669 = vmatprep.subr.bf16.mxu0 0
        %670 = vmatpush1.bf16.msra.mxu0 0
        %671 = vmatprep.subr.bf16.mxu0 0
        %672 = vmatpush1.bf16.msra.mxu0 %v657
        %673 = vmatprep.subr.bf16.mxu0 0
        %674 = vmatpush1.bf16.msra.mxu0 %v641
        %675 = vmatprep.subr.bf16.mxu0 0
        %676 = vmatpush2.bf16.msra.mxu0 0
        %677 = vmatprep.subr.bf16.mxu0 0
        %678 = vmatpush2.bf16.msra.mxu0 0
        %679 = vmatprep.subr.bf16.mxu0 0
        %680 = vmatpush2.bf16.msra.mxu0 0
        %681 = vmatprep.subr.bf16.mxu0 0
        %682 = vmatpush2.bf16.msra.mxu0 0
        %683 = vmatprep.subr.bf16.mxu0 0
        %684 = vmatpush2.bf16.msra.mxu0 0
        %685 = vmatprep.subr.bf16.mxu0 0
        %686 = vmatpush2.bf16.msra.mxu0 0
        %687 = vmatprep.subr.bf16.mxu0 0
        %688 = vmatpush2.bf16.msra.mxu0 0
        %689 = vmatprep.subr.bf16.mxu0 0
        %690 = vmatpush2.bf16.msra.mxu0 0
        %691 = vmatprep.mubr.bf16.mxu0 0
        %692 = vmatmul.mubr.bf16.gmra.mxu0 %v645
        %v693 = vpop.f32.mrf.mxu0
        %v694 = vadd.f32 0.0, %v693
        %v695 = vpop.f32.mrf.mxu0
        %v696 = vpop.f32.mrf.mxu0
        %v697 = vadd.f32 0.0, %v696
        %v698 = vpop.f32.mrf.mxu0
        %699 = vmatprep.mubr.bf16.mxu0 0
        %700 = vmatmul.mubr.bf16.gmra.mxu0 %v648
        %v701 = vpop.f32.mrf.mxu0
        %v702 = vadd.f32 0.0, %v701
        %v703 = vpop.f32.mrf.mxu0
        %v704 = vpop.f32.mrf.mxu0
        %v705 = vadd.f32 0.0, %v704
        %v706 = vpop.f32.mrf.mxu0
        %707 = vmatprep.mubr.bf16.mxu0 0
        %708 = vmatmul.mubr.bf16.gmra.mxu0 %v651
        %v709 = vpop.f32.mrf.mxu0
        %v710 = vadd.f32 0.0, %v709
        %v711 = vpop.f32.mrf.mxu0
        %v712 = vpop.f32.mrf.mxu0
        %v713 = vadd.f32 0.0, %v712
        %v714 = vpop.f32.mrf.mxu0
        %715 = vmatprep.mubr.bf16.mxu0 0
        %716 = vmatmul.mubr.bf16.gmra.mxu0 %v654
        %v717 = vpop.f32.mrf.mxu0
        %v718 = vadd.f32 0.0, %v717
        %v719 = vpop.f32.mrf.mxu0
        %v720 = vpop.f32.mrf.mxu0
        %v721 = vadd.f32 0.0, %v720
        %v722 = vpop.f32.mrf.mxu0
        %723 = vdwg.mxu0
        %v724 = vadd.f32 %v611, %v694
        %v725 = vadd.f32 %v612, %v697
        %v726 = vadd.f32 %v613, %v702
        %v727 = vadd.f32 %v614, %v705
        %v728 = vadd.f32 %v615, %v710
        %v729 = vadd.f32 %v616, %v713
        %v730 = vadd.f32 %v617, %v718
        %v731 = vadd.f32 %v618, %v721
        %v732 = vld [vmem:[%s196 + $0x2] sm:$0xff]
        %v733 = vld [vmem:[%s196 + $0x12] sm:$0xff]
        %v734 = vld [vmem:[%s196 + $0x22] sm:$0xff]
        %v735 = vld [vmem:[%s196 + $0x32] sm:$0xff]
        %v736 = vld [vmem:[%s196 + $0x42] sm:$0xff]
        %v737 = vld [vmem:[%s196 + $0x52] sm:$0xff]
        %v738 = vld [vmem:[%s196 + $0x62] sm:$0xff]
        %v739 = vld [vmem:[%s196 + $0x72] sm:$0xff]
        %v740 = vpack.c.bf16 %v733, %v732
        %v741 = vpack.c.bf16 %v735, %v734
        %v742 = vpack.c.bf16 %v737, %v736
        %v743 = vpack.c.bf16 %v739, %v738
        %s744 = scalar_lea.vmem %s1, 60
        %v745 = vld [vmem:[%s744] sm:$0xf]
        %v746 = vld [vmem:[%s744 + $0x4] sm:$0xf]
        %v747 = vld [vmem:[%s744 + $0x8] sm:$0x7]
        %v751 = vunpack.c.l.b16 %v745
        %v752 = vunpack.c.l.b16 %v746
        %v753 = vunpack.c.l.b16 %v747
        %v754 = vpack.c.b16 %v752, %v751
        %v755 = vpack.c.b16 %v753, %v753
        %v758 = vsel %vm222, %v740, 0
        %v761 = vsel %vm222, %v741, 0
        %v764 = vsel %vm222, %v742, 0
        %v767 = vsel %vm222, %v743, 0
        %v770 = vsel %vm235, %v755, 0
        %772 = vmatprep.subr.bf16.mxu0 0
        %773 = vmatpush1.bf16.msra.mxu0 0
        %774 = vmatprep.subr.bf16.mxu0 0
        %775 = vmatpush1.bf16.msra.mxu0 0
        %776 = vmatprep.subr.bf16.mxu0 0
        %777 = vmatpush1.bf16.msra.mxu0 0
        %778 = vmatprep.subr.bf16.mxu0 0
        %779 = vmatpush1.bf16.msra.mxu0 0
        %780 = vmatprep.subr.bf16.mxu0 0
        %781 = vmatpush1.bf16.msra.mxu0 0
        %782 = vmatprep.subr.bf16.mxu0 0
        %783 = vmatpush1.bf16.msra.mxu0 0
        %784 = vmatprep.subr.bf16.mxu0 0
        %785 = vmatpush1.bf16.msra.mxu0 %v770
        %786 = vmatprep.subr.bf16.mxu0 0
        %787 = vmatpush1.bf16.msra.mxu0 %v754
        %788 = vmatprep.subr.bf16.mxu0 0
        %789 = vmatpush2.bf16.msra.mxu0 0
        %790 = vmatprep.subr.bf16.mxu0 0
        %791 = vmatpush2.bf16.msra.mxu0 0
        %792 = vmatprep.subr.bf16.mxu0 0
        %793 = vmatpush2.bf16.msra.mxu0 0
        %794 = vmatprep.subr.bf16.mxu0 0
        %795 = vmatpush2.bf16.msra.mxu0 0
        %796 = vmatprep.subr.bf16.mxu0 0
        %797 = vmatpush2.bf16.msra.mxu0 0
        %798 = vmatprep.subr.bf16.mxu0 0
        %799 = vmatpush2.bf16.msra.mxu0 0
        %800 = vmatprep.subr.bf16.mxu0 0
        %801 = vmatpush2.bf16.msra.mxu0 0
        %802 = vmatprep.subr.bf16.mxu0 0
        %803 = vmatpush2.bf16.msra.mxu0 0
        %804 = vmatprep.mubr.bf16.mxu0 0
        %805 = vmatmul.mubr.bf16.gmra.mxu0 %v758
        %v806 = vpop.f32.mrf.mxu0
        %v807 = vadd.f32 0.0, %v806
        %v808 = vpop.f32.mrf.mxu0
        %v809 = vpop.f32.mrf.mxu0
        %v810 = vadd.f32 0.0, %v809
        %v811 = vpop.f32.mrf.mxu0
        %812 = vmatprep.mubr.bf16.mxu0 0
        %813 = vmatmul.mubr.bf16.gmra.mxu0 %v761
        %v814 = vpop.f32.mrf.mxu0
        %v815 = vadd.f32 0.0, %v814
        %v816 = vpop.f32.mrf.mxu0
        %v817 = vpop.f32.mrf.mxu0
        %v818 = vadd.f32 0.0, %v817
        %v819 = vpop.f32.mrf.mxu0
        %820 = vmatprep.mubr.bf16.mxu0 0
        %821 = vmatmul.mubr.bf16.gmra.mxu0 %v764
        %v822 = vpop.f32.mrf.mxu0
        %v823 = vadd.f32 0.0, %v822
        %v824 = vpop.f32.mrf.mxu0
        %v825 = vpop.f32.mrf.mxu0
        %v826 = vadd.f32 0.0, %v825
        %v827 = vpop.f32.mrf.mxu0
        %828 = vmatprep.mubr.bf16.mxu0 0
        %829 = vmatmul.mubr.bf16.gmra.mxu0 %v767
        %v830 = vpop.f32.mrf.mxu0
        %v831 = vadd.f32 0.0, %v830
        %v832 = vpop.f32.mrf.mxu0
        %v833 = vpop.f32.mrf.mxu0
        %v834 = vadd.f32 0.0, %v833
        %v835 = vpop.f32.mrf.mxu0
        %836 = vdwg.mxu0
        %v837 = vadd.f32 %v724, %v807
        %v838 = vadd.f32 %v725, %v810
        %v839 = vadd.f32 %v726, %v815
        %v840 = vadd.f32 %v727, %v818
        %v841 = vadd.f32 %v728, %v823
        %v842 = vadd.f32 %v729, %v826
        %v843 = vadd.f32 %v730, %v831
        %v844 = vadd.f32 %v731, %v834
        %v845 = vld [vmem:[%s179 + $0x3] sm:$0xff]
        %v846 = vld [vmem:[%s179 + $0x13] sm:$0xff]
        %v847 = vld [vmem:[%s179 + $0x23] sm:$0xff]
        %v848 = vld [vmem:[%s179 + $0x33] sm:$0xff]
        %v849 = vld [vmem:[%s179 + $0x43] sm:$0xff]
        %v850 = vld [vmem:[%s179 + $0x53] sm:$0xff]
        %v851 = vld [vmem:[%s179 + $0x63] sm:$0xff]
        %v852 = vld [vmem:[%s179 + $0x73] sm:$0xff]
        %v853 = vpack.c.bf16 %v846, %v845
        %v854 = vpack.c.bf16 %v848, %v847
        %v855 = vpack.c.bf16 %v850, %v849
        %v856 = vpack.c.bf16 %v852, %v851
        %s857 = scalar_lea.vmem %s1, 72
        %v858 = vld [vmem:[%s857] sm:$0xf]
        %v859 = vld [vmem:[%s857 + $0x4] sm:$0xf]
        %v860 = vld [vmem:[%s857 + $0x8] sm:$0x7]
        %v864 = vunpack.c.l.b16 %v858
        %v865 = vunpack.c.l.b16 %v859
        %v866 = vunpack.c.l.b16 %v860
        %v867 = vpack.c.b16 %v865, %v864
        %v868 = vpack.c.b16 %v866, %v866
        %v871 = vsel %vm222, %v853, 0
        %v874 = vsel %vm222, %v854, 0
        %v877 = vsel %vm222, %v855, 0
        %v880 = vsel %vm222, %v856, 0
        %v883 = vsel %vm235, %v868, 0
        %885 = vmatprep.subr.bf16.mxu0 0
        %886 = vmatpush1.bf16.msra.mxu0 0
        %887 = vmatprep.subr.bf16.mxu0 0
        %888 = vmatpush1.bf16.msra.mxu0 0
        %889 = vmatprep.subr.bf16.mxu0 0
        %890 = vmatpush1.bf16.msra.mxu0 0
        %891 = vmatprep.subr.bf16.mxu0 0
        %892 = vmatpush1.bf16.msra.mxu0 0
        %893 = vmatprep.subr.bf16.mxu0 0
        %894 = vmatpush1.bf16.msra.mxu0 0
        %895 = vmatprep.subr.bf16.mxu0 0
        %896 = vmatpush1.bf16.msra.mxu0 0
        %897 = vmatprep.subr.bf16.mxu0 0
        %898 = vmatpush1.bf16.msra.mxu0 %v883
        %899 = vmatprep.subr.bf16.mxu0 0
        %900 = vmatpush1.bf16.msra.mxu0 %v867
        %901 = vmatprep.subr.bf16.mxu0 0
        %902 = vmatpush2.bf16.msra.mxu0 0
        %903 = vmatprep.subr.bf16.mxu0 0
        %904 = vmatpush2.bf16.msra.mxu0 0
        %905 = vmatprep.subr.bf16.mxu0 0
        %906 = vmatpush2.bf16.msra.mxu0 0
        %907 = vmatprep.subr.bf16.mxu0 0
        %908 = vmatpush2.bf16.msra.mxu0 0
        %909 = vmatprep.subr.bf16.mxu0 0
        %910 = vmatpush2.bf16.msra.mxu0 0
        %911 = vmatprep.subr.bf16.mxu0 0
        %912 = vmatpush2.bf16.msra.mxu0 0
        %913 = vmatprep.subr.bf16.mxu0 0
        %914 = vmatpush2.bf16.msra.mxu0 0
        %915 = vmatprep.subr.bf16.mxu0 0
        %916 = vmatpush2.bf16.msra.mxu0 0
        %917 = vmatprep.mubr.bf16.mxu0 0
        %918 = vmatmul.mubr.bf16.gmra.mxu0 %v871
        %v919 = vpop.f32.mrf.mxu0
        %v920 = vadd.f32 0.0, %v919
        %v921 = vpop.f32.mrf.mxu0
        %v922 = vpop.f32.mrf.mxu0
        %v923 = vadd.f32 0.0, %v922
        %v924 = vpop.f32.mrf.mxu0
        %925 = vmatprep.mubr.bf16.mxu0 0
        %926 = vmatmul.mubr.bf16.gmra.mxu0 %v874
        %v927 = vpop.f32.mrf.mxu0
        %v928 = vadd.f32 0.0, %v927
        %v929 = vpop.f32.mrf.mxu0
        %v930 = vpop.f32.mrf.mxu0
        %v931 = vadd.f32 0.0, %v930
        %v932 = vpop.f32.mrf.mxu0
        %933 = vmatprep.mubr.bf16.mxu0 0
        %934 = vmatmul.mubr.bf16.gmra.mxu0 %v877
        %v935 = vpop.f32.mrf.mxu0
        %v936 = vadd.f32 0.0, %v935
        %v937 = vpop.f32.mrf.mxu0
        %v938 = vpop.f32.mrf.mxu0
        %v939 = vadd.f32 0.0, %v938
        %v940 = vpop.f32.mrf.mxu0
        %941 = vmatprep.mubr.bf16.mxu0 0
        %942 = vmatmul.mubr.bf16.gmra.mxu0 %v880
        %v943 = vpop.f32.mrf.mxu0
        %v944 = vadd.f32 0.0, %v943
        %v945 = vpop.f32.mrf.mxu0
        %v946 = vpop.f32.mrf.mxu0
        %v947 = vadd.f32 0.0, %v946
        %v948 = vpop.f32.mrf.mxu0
        %949 = vdwg.mxu0
        %v950 = vadd.f32 %v837, %v920
        %v951 = vadd.f32 %v838, %v923
        %v952 = vadd.f32 %v839, %v928
        %v953 = vadd.f32 %v840, %v931
        %v954 = vadd.f32 %v841, %v936
        %v955 = vadd.f32 %v842, %v939
        %v956 = vadd.f32 %v843, %v944
        %v957 = vadd.f32 %v844, %v947
        %s958 = scalar_lea.vmem %s179, 352
        %v959 = vld [vmem:[%s958] sm:$0xff]
        %v960 = vld [vmem:[%s958 + $0x10] sm:$0xff]
        %v961 = vld [vmem:[%s958 + $0x20] sm:$0xff]
        %v962 = vld [vmem:[%s958 + $0x30] sm:$0xff]
        %v963 = vld [vmem:[%s958 + $0x40] sm:$0xff]
        %v964 = vld [vmem:[%s958 + $0x50] sm:$0xff]
        %v965 = vld [vmem:[%s958 + $0x60] sm:$0xff]
        %v966 = vld [vmem:[%s958 + $0x70] sm:$0xff]
        %v967 = vpack.c.bf16 %v960, %v959
        %v968 = vpack.c.bf16 %v962, %v961
        %v969 = vpack.c.bf16 %v964, %v963
        %v970 = vpack.c.bf16 %v966, %v965
        %s971 = scalar_lea.vmem %s1, 84
        %v972 = vld [vmem:[%s971] sm:$0xf]
        %v973 = vld [vmem:[%s971 + $0x4] sm:$0xf]
        %v974 = vld [vmem:[%s971 + $0x8] sm:$0x7]
        %v978 = vunpack.c.l.b16 %v972
        %v979 = vunpack.c.l.b16 %v973
        %v980 = vunpack.c.l.b16 %v974
        %v981 = vpack.c.b16 %v979, %v978
        %v982 = vpack.c.b16 %v980, %v980
        %v985 = vsel %vm222, %v967, 0
        %v988 = vsel %vm222, %v968, 0
        %v991 = vsel %vm222, %v969, 0
        %v994 = vsel %vm222, %v970, 0
        %v997 = vsel %vm235, %v982, 0
        %999 = vmatprep.subr.bf16.mxu0 0
        %1000 = vmatpush1.bf16.msra.mxu0 0
        %1001 = vmatprep.subr.bf16.mxu0 0
        %1002 = vmatpush1.bf16.msra.mxu0 0
        %1003 = vmatprep.subr.bf16.mxu0 0
        %1004 = vmatpush1.bf16.msra.mxu0 0
        %1005 = vmatprep.subr.bf16.mxu0 0
        %1006 = vmatpush1.bf16.msra.mxu0 0
        %1007 = vmatprep.subr.bf16.mxu0 0
        %1008 = vmatpush1.bf16.msra.mxu0 0
        %1009 = vmatprep.subr.bf16.mxu0 0
        %1010 = vmatpush1.bf16.msra.mxu0 0
        %1011 = vmatprep.subr.bf16.mxu0 0
        %1012 = vmatpush1.bf16.msra.mxu0 %v997
        %1013 = vmatprep.subr.bf16.mxu0 0
        %1014 = vmatpush1.bf16.msra.mxu0 %v981
        %1015 = vmatprep.subr.bf16.mxu0 0
        %1016 = vmatpush2.bf16.msra.mxu0 0
        %1017 = vmatprep.subr.bf16.mxu0 0
        %1018 = vmatpush2.bf16.msra.mxu0 0
        %1019 = vmatprep.subr.bf16.mxu0 0
        %1020 = vmatpush2.bf16.msra.mxu0 0
        %1021 = vmatprep.subr.bf16.mxu0 0
        %1022 = vmatpush2.bf16.msra.mxu0 0
        %1023 = vmatprep.subr.bf16.mxu0 0
        %1024 = vmatpush2.bf16.msra.mxu0 0
        %1025 = vmatprep.subr.bf16.mxu0 0
        %1026 = vmatpush2.bf16.msra.mxu0 0
        %1027 = vmatprep.subr.bf16.mxu0 0
        %1028 = vmatpush2.bf16.msra.mxu0 0
        %1029 = vmatprep.subr.bf16.mxu0 0
        %1030 = vmatpush2.bf16.msra.mxu0 0
        %1031 = vmatprep.mubr.bf16.mxu0 0
        %1032 = vmatmul.mubr.bf16.gmra.mxu0 %v985
        %v1033 = vpop.f32.mrf.mxu0
        %v1034 = vadd.f32 0.0, %v1033
        %v1035 = vpop.f32.mrf.mxu0
        %v1036 = vpop.f32.mrf.mxu0
        %v1037 = vadd.f32 0.0, %v1036
        %v1038 = vpop.f32.mrf.mxu0
        %1039 = vmatprep.mubr.bf16.mxu0 0
        %1040 = vmatmul.mubr.bf16.gmra.mxu0 %v988
        %v1041 = vpop.f32.mrf.mxu0
        %v1042 = vadd.f32 0.0, %v1041
        %v1043 = vpop.f32.mrf.mxu0
        %v1044 = vpop.f32.mrf.mxu0
        %v1045 = vadd.f32 0.0, %v1044
        %v1046 = vpop.f32.mrf.mxu0
        %1047 = vmatprep.mubr.bf16.mxu0 0
        %1048 = vmatmul.mubr.bf16.gmra.mxu0 %v991
        %v1049 = vpop.f32.mrf.mxu0
        %v1050 = vadd.f32 0.0, %v1049
        %v1051 = vpop.f32.mrf.mxu0
        %v1052 = vpop.f32.mrf.mxu0
        %v1053 = vadd.f32 0.0, %v1052
        %v1054 = vpop.f32.mrf.mxu0
        %1055 = vmatprep.mubr.bf16.mxu0 0
        %1056 = vmatmul.mubr.bf16.gmra.mxu0 %v994
        %v1057 = vpop.f32.mrf.mxu0
        %v1058 = vadd.f32 0.0, %v1057
        %v1059 = vpop.f32.mrf.mxu0
        %v1060 = vpop.f32.mrf.mxu0
        %v1061 = vadd.f32 0.0, %v1060
        %v1062 = vpop.f32.mrf.mxu0
        %1063 = vdwg.mxu0
        %v1064 = vadd.f32 %v950, %v1034
        %v1065 = vadd.f32 %v951, %v1037
        %v1066 = vadd.f32 %v952, %v1042
        %v1067 = vadd.f32 %v953, %v1045
        %v1068 = vadd.f32 %v954, %v1050
        %v1069 = vadd.f32 %v955, %v1053
        %v1070 = vadd.f32 %v956, %v1058
        %v1071 = vadd.f32 %v957, %v1061
        %s1072 = scalar_lea.vmem %s179, 528
        %v1073 = vld [vmem:[%s1072] sm:$0xff]
        %v1074 = vld [vmem:[%s1072 + $0x10] sm:$0xff]
        %v1075 = vld [vmem:[%s1072 + $0x20] sm:$0xff]
        %v1076 = vld [vmem:[%s1072 + $0x30] sm:$0xff]
        %v1077 = vld [vmem:[%s1072 + $0x40] sm:$0xff]
        %v1078 = vld [vmem:[%s1072 + $0x50] sm:$0xff]
        %v1079 = vld [vmem:[%s1072 + $0x60] sm:$0xff]
        %v1080 = vld [vmem:[%s1072 + $0x70] sm:$0xff]
        %v1081 = vpack.c.bf16 %v1074, %v1073
        %v1082 = vpack.c.bf16 %v1076, %v1075
        %v1083 = vpack.c.bf16 %v1078, %v1077
        %v1084 = vpack.c.bf16 %v1080, %v1079
        %s1085 = scalar_lea.vmem %s1, 96
        %v1086 = vld [vmem:[%s1085] sm:$0xf]
        %v1087 = vld [vmem:[%s1085 + $0x4] sm:$0xf]
        %v1088 = vld [vmem:[%s1085 + $0x8] sm:$0x7]
        %v1092 = vunpack.c.l.b16 %v1086
        %v1093 = vunpack.c.l.b16 %v1087
        %v1094 = vunpack.c.l.b16 %v1088
        %v1095 = vpack.c.b16 %v1093, %v1092
        %v1096 = vpack.c.b16 %v1094, %v1094
        %v1099 = vsel %vm222, %v1081, 0
        %v1102 = vsel %vm222, %v1082, 0
        %v1105 = vsel %vm222, %v1083, 0
        %v1108 = vsel %vm222, %v1084, 0
        %v1111 = vsel %vm235, %v1096, 0
        %1113 = vmatprep.subr.bf16.mxu0 0
        %1114 = vmatpush1.bf16.msra.mxu0 0
        %1115 = vmatprep.subr.bf16.mxu0 0
        %1116 = vmatpush1.bf16.msra.mxu0 0
        %1117 = vmatprep.subr.bf16.mxu0 0
        %1118 = vmatpush1.bf16.msra.mxu0 0
        %1119 = vmatprep.subr.bf16.mxu0 0
        %1120 = vmatpush1.bf16.msra.mxu0 0
        %1121 = vmatprep.subr.bf16.mxu0 0
        %1122 = vmatpush1.bf16.msra.mxu0 0
        %1123 = vmatprep.subr.bf16.mxu0 0
        %1124 = vmatpush1.bf16.msra.mxu0 0
        %1125 = vmatprep.subr.bf16.mxu0 0
        %1126 = vmatpush1.bf16.msra.mxu0 %v1111
        %1127 = vmatprep.subr.bf16.mxu0 0
        %1128 = vmatpush1.bf16.msra.mxu0 %v1095
        %1129 = vmatprep.subr.bf16.mxu0 0
        %1130 = vmatpush2.bf16.msra.mxu0 0
        %1131 = vmatprep.subr.bf16.mxu0 0
        %1132 = vmatpush2.bf16.msra.mxu0 0
        %1133 = vmatprep.subr.bf16.mxu0 0
        %1134 = vmatpush2.bf16.msra.mxu0 0
        %1135 = vmatprep.subr.bf16.mxu0 0
        %1136 = vmatpush2.bf16.msra.mxu0 0
        %1137 = vmatprep.subr.bf16.mxu0 0
        %1138 = vmatpush2.bf16.msra.mxu0 0
        %1139 = vmatprep.subr.bf16.mxu0 0
        %1140 = vmatpush2.bf16.msra.mxu0 0
        %1141 = vmatprep.subr.bf16.mxu0 0
        %1142 = vmatpush2.bf16.msra.mxu0 0
        %1143 = vmatprep.subr.bf16.mxu0 0
        %1144 = vmatpush2.bf16.msra.mxu0 0
        %1145 = vmatprep.mubr.bf16.mxu0 0
        %1146 = vmatmul.mubr.bf16.gmra.mxu0 %v1099
        %v1147 = vpop.f32.mrf.mxu0
        %v1148 = vadd.f32 0.0, %v1147
        %v1149 = vpop.f32.mrf.mxu0
        %v1150 = vpop.f32.mrf.mxu0
        %v1151 = vadd.f32 0.0, %v1150
        %v1152 = vpop.f32.mrf.mxu0
        %1153 = vmatprep.mubr.bf16.mxu0 0
        %1154 = vmatmul.mubr.bf16.gmra.mxu0 %v1102
        %v1155 = vpop.f32.mrf.mxu0
        %v1156 = vadd.f32 0.0, %v1155
        %v1157 = vpop.f32.mrf.mxu0
        %v1158 = vpop.f32.mrf.mxu0
        %v1159 = vadd.f32 0.0, %v1158
        %v1160 = vpop.f32.mrf.mxu0
        %1161 = vmatprep.mubr.bf16.mxu0 0
        %1162 = vmatmul.mubr.bf16.gmra.mxu0 %v1105
        %v1163 = vpop.f32.mrf.mxu0
        %v1164 = vadd.f32 0.0, %v1163
        %v1165 = vpop.f32.mrf.mxu0
        %v1166 = vpop.f32.mrf.mxu0
        %v1167 = vadd.f32 0.0, %v1166
        %v1168 = vpop.f32.mrf.mxu0
        %1169 = vmatprep.mubr.bf16.mxu0 0
        %1170 = vmatmul.mubr.bf16.gmra.mxu0 %v1108
        %v1171 = vpop.f32.mrf.mxu0
        %v1172 = vadd.f32 0.0, %v1171
        %v1173 = vpop.f32.mrf.mxu0
        %v1174 = vpop.f32.mrf.mxu0
        %v1175 = vadd.f32 0.0, %v1174
        %v1176 = vpop.f32.mrf.mxu0
        %1177 = vdwg.mxu0
        %v1178 = vadd.f32 %v1064, %v1148
        %v1179 = vadd.f32 %v1065, %v1151
        %v1180 = vadd.f32 %v1066, %v1156
        %v1181 = vadd.f32 %v1067, %v1159
        %v1182 = vadd.f32 %v1068, %v1164
        %v1183 = vadd.f32 %v1069, %v1167
        %v1184 = vadd.f32 %v1070, %v1172
        %v1185 = vadd.f32 %v1071, %v1175
        %v1186 = vld [vmem:[%s958 + $0x1] sm:$0xff]
        %v1187 = vld [vmem:[%s958 + $0x11] sm:$0xff]
        %v1188 = vld [vmem:[%s958 + $0x21] sm:$0xff]
        %v1189 = vld [vmem:[%s958 + $0x31] sm:$0xff]
        %v1190 = vld [vmem:[%s958 + $0x41] sm:$0xff]
        %v1191 = vld [vmem:[%s958 + $0x51] sm:$0xff]
        %v1192 = vld [vmem:[%s958 + $0x61] sm:$0xff]
        %v1193 = vld [vmem:[%s958 + $0x71] sm:$0xff]
        %v1194 = vpack.c.bf16 %v1187, %v1186
        %v1195 = vpack.c.bf16 %v1189, %v1188
        %v1196 = vpack.c.bf16 %v1191, %v1190
        %v1197 = vpack.c.bf16 %v1193, %v1192
        %s1198 = scalar_lea.vmem %s1, 108
        %v1199 = vld [vmem:[%s1198] sm:$0xf]
        %v1200 = vld [vmem:[%s1198 + $0x4] sm:$0xf]
        %v1201 = vld [vmem:[%s1198 + $0x8] sm:$0x7]
        %v1205 = vunpack.c.l.b16 %v1199
        %v1206 = vunpack.c.l.b16 %v1200
        %v1207 = vunpack.c.l.b16 %v1201
        %v1208 = vpack.c.b16 %v1206, %v1205
        %v1209 = vpack.c.b16 %v1207, %v1207
        %v1212 = vsel %vm222, %v1194, 0
        %v1215 = vsel %vm222, %v1195, 0
        %v1218 = vsel %vm222, %v1196, 0
        %v1221 = vsel %vm222, %v1197, 0
        %v1224 = vsel %vm235, %v1209, 0
        %1226 = vmatprep.subr.bf16.mxu0 0
        %1227 = vmatpush1.bf16.msra.mxu0 0
        %1228 = vmatprep.subr.bf16.mxu0 0
        %1229 = vmatpush1.bf16.msra.mxu0 0
        %1230 = vmatprep.subr.bf16.mxu0 0
        %1231 = vmatpush1.bf16.msra.mxu0 0
        %1232 = vmatprep.subr.bf16.mxu0 0
        %1233 = vmatpush1.bf16.msra.mxu0 0
        %1234 = vmatprep.subr.bf16.mxu0 0
        %1235 = vmatpush1.bf16.msra.mxu0 0
        %1236 = vmatprep.subr.bf16.mxu0 0
        %1237 = vmatpush1.bf16.msra.mxu0 0
        %1238 = vmatprep.subr.bf16.mxu0 0
        %1239 = vmatpush1.bf16.msra.mxu0 %v1224
        %1240 = vmatprep.subr.bf16.mxu0 0
        %1241 = vmatpush1.bf16.msra.mxu0 %v1208
        %1242 = vmatprep.subr.bf16.mxu0 0
        %1243 = vmatpush2.bf16.msra.mxu0 0
        %1244 = vmatprep.subr.bf16.mxu0 0
        %1245 = vmatpush2.bf16.msra.mxu0 0
        %1246 = vmatprep.subr.bf16.mxu0 0
        %1247 = vmatpush2.bf16.msra.mxu0 0
        %1248 = vmatprep.subr.bf16.mxu0 0
        %1249 = vmatpush2.bf16.msra.mxu0 0
        %1250 = vmatprep.subr.bf16.mxu0 0
        %1251 = vmatpush2.bf16.msra.mxu0 0
        %1252 = vmatprep.subr.bf16.mxu0 0
        %1253 = vmatpush2.bf16.msra.mxu0 0
        %1254 = vmatprep.subr.bf16.mxu0 0
        %1255 = vmatpush2.bf16.msra.mxu0 0
        %1256 = vmatprep.subr.bf16.mxu0 0
        %1257 = vmatpush2.bf16.msra.mxu0 0
        %1258 = vmatprep.mubr.bf16.mxu0 0
        %1259 = vmatmul.mubr.bf16.gmra.mxu0 %v1212
        %v1260 = vpop.f32.mrf.mxu0
        %v1261 = vadd.f32 0.0, %v1260
        %v1262 = vpop.f32.mrf.mxu0
        %v1263 = vpop.f32.mrf.mxu0
        %v1264 = vadd.f32 0.0, %v1263
        %v1265 = vpop.f32.mrf.mxu0
        %1266 = vmatprep.mubr.bf16.mxu0 0
        %1267 = vmatmul.mubr.bf16.gmra.mxu0 %v1215
        %v1268 = vpop.f32.mrf.mxu0
        %v1269 = vadd.f32 0.0, %v1268
        %v1270 = vpop.f32.mrf.mxu0
        %v1271 = vpop.f32.mrf.mxu0
        %v1272 = vadd.f32 0.0, %v1271
        %v1273 = vpop.f32.mrf.mxu0
        %1274 = vmatprep.mubr.bf16.mxu0 0
        %1275 = vmatmul.mubr.bf16.gmra.mxu0 %v1218
        %v1276 = vpop.f32.mrf.mxu0
        %v1277 = vadd.f32 0.0, %v1276
        %v1278 = vpop.f32.mrf.mxu0
        %v1279 = vpop.f32.mrf.mxu0
        %v1280 = vadd.f32 0.0, %v1279
        %v1281 = vpop.f32.mrf.mxu0
        %1282 = vmatprep.mubr.bf16.mxu0 0
        %1283 = vmatmul.mubr.bf16.gmra.mxu0 %v1221
        %v1284 = vpop.f32.mrf.mxu0
        %v1285 = vadd.f32 0.0, %v1284
        %v1286 = vpop.f32.mrf.mxu0
        %v1287 = vpop.f32.mrf.mxu0
        %v1288 = vadd.f32 0.0, %v1287
        %v1289 = vpop.f32.mrf.mxu0
        %1290 = vdwg.mxu0
        %v1291 = vadd.f32 %v1178, %v1261
        %v1292 = vadd.f32 %v1179, %v1264
        %v1293 = vadd.f32 %v1180, %v1269
        %v1294 = vadd.f32 %v1181, %v1272
        %v1295 = vadd.f32 %v1182, %v1277
        %v1296 = vadd.f32 %v1183, %v1280
        %v1297 = vadd.f32 %v1184, %v1285
        %v1298 = vadd.f32 %v1185, %v1288
        %v1299 = vld [vmem:[%s1072 + $0x1] sm:$0xff]
        %v1300 = vld [vmem:[%s1072 + $0x11] sm:$0xff]
        %v1301 = vld [vmem:[%s1072 + $0x21] sm:$0xff]
        %v1302 = vld [vmem:[%s1072 + $0x31] sm:$0xff]
        %v1303 = vld [vmem:[%s1072 + $0x41] sm:$0xff]
        %v1304 = vld [vmem:[%s1072 + $0x51] sm:$0xff]
        %v1305 = vld [vmem:[%s1072 + $0x61] sm:$0xff]
        %v1306 = vld [vmem:[%s1072 + $0x71] sm:$0xff]
        %v1307 = vpack.c.bf16 %v1300, %v1299
        %v1308 = vpack.c.bf16 %v1302, %v1301
        %v1309 = vpack.c.bf16 %v1304, %v1303
        %v1310 = vpack.c.bf16 %v1306, %v1305
        %s1311 = scalar_lea.vmem %s1, 120
        %v1312 = vld [vmem:[%s1311] sm:$0xf]
        %v1313 = vld [vmem:[%s1311 + $0x4] sm:$0xf]
        %v1314 = vld [vmem:[%s1311 + $0x8] sm:$0x7]
        %v1318 = vunpack.c.l.b16 %v1312
        %v1319 = vunpack.c.l.b16 %v1313
        %v1320 = vunpack.c.l.b16 %v1314
        %v1321 = vpack.c.b16 %v1319, %v1318
        %v1322 = vpack.c.b16 %v1320, %v1320
        %v1325 = vsel %vm222, %v1307, 0
        %v1328 = vsel %vm222, %v1308, 0
        %v1331 = vsel %vm222, %v1309, 0
        %v1334 = vsel %vm222, %v1310, 0
        %v1337 = vsel %vm235, %v1322, 0
        %1339 = vmatprep.subr.bf16.mxu0 0
        %1340 = vmatpush1.bf16.msra.mxu0 0
        %1341 = vmatprep.subr.bf16.mxu0 0
        %1342 = vmatpush1.bf16.msra.mxu0 0
        %1343 = vmatprep.subr.bf16.mxu0 0
        %1344 = vmatpush1.bf16.msra.mxu0 0
        %1345 = vmatprep.subr.bf16.mxu0 0
        %1346 = vmatpush1.bf16.msra.mxu0 0
        %1347 = vmatprep.subr.bf16.mxu0 0
        %1348 = vmatpush1.bf16.msra.mxu0 0
        %1349 = vmatprep.subr.bf16.mxu0 0
        %1350 = vmatpush1.bf16.msra.mxu0 0
        %1351 = vmatprep.subr.bf16.mxu0 0
        %1352 = vmatpush1.bf16.msra.mxu0 %v1337
        %1353 = vmatprep.subr.bf16.mxu0 0
        %1354 = vmatpush1.bf16.msra.mxu0 %v1321
        %1355 = vmatprep.subr.bf16.mxu0 0
        %1356 = vmatpush2.bf16.msra.mxu0 0
        %1357 = vmatprep.subr.bf16.mxu0 0
        %1358 = vmatpush2.bf16.msra.mxu0 0
        %1359 = vmatprep.subr.bf16.mxu0 0
        %1360 = vmatpush2.bf16.msra.mxu0 0
        %1361 = vmatprep.subr.bf16.mxu0 0
        %1362 = vmatpush2.bf16.msra.mxu0 0
        %1363 = vmatprep.subr.bf16.mxu0 0
        %1364 = vmatpush2.bf16.msra.mxu0 0
        %1365 = vmatprep.subr.bf16.mxu0 0
        %1366 = vmatpush2.bf16.msra.mxu0 0
        %1367 = vmatprep.subr.bf16.mxu0 0
        %1368 = vmatpush2.bf16.msra.mxu0 0
        %1369 = vmatprep.subr.bf16.mxu0 0
        %1370 = vmatpush2.bf16.msra.mxu0 0
        %1371 = vmatprep.mubr.bf16.mxu0 0
        %1372 = vmatmul.mubr.bf16.gmra.mxu0 %v1325
        %v1373 = vpop.f32.mrf.mxu0
        %v1374 = vadd.f32 0.0, %v1373
        %v1375 = vpop.f32.mrf.mxu0
        %v1376 = vpop.f32.mrf.mxu0
        %v1377 = vadd.f32 0.0, %v1376
        %v1378 = vpop.f32.mrf.mxu0
        %1379 = vmatprep.mubr.bf16.mxu0 0
        %1380 = vmatmul.mubr.bf16.gmra.mxu0 %v1328
        %v1381 = vpop.f32.mrf.mxu0
        %v1382 = vadd.f32 0.0, %v1381
        %v1383 = vpop.f32.mrf.mxu0
        %v1384 = vpop.f32.mrf.mxu0
        %v1385 = vadd.f32 0.0, %v1384
        %v1386 = vpop.f32.mrf.mxu0
        %1387 = vmatprep.mubr.bf16.mxu0 0
        %1388 = vmatmul.mubr.bf16.gmra.mxu0 %v1331
        %v1389 = vpop.f32.mrf.mxu0
        %v1390 = vadd.f32 0.0, %v1389
        %v1391 = vpop.f32.mrf.mxu0
        %v1392 = vpop.f32.mrf.mxu0
        %v1393 = vadd.f32 0.0, %v1392
        %v1394 = vpop.f32.mrf.mxu0
        %1395 = vmatprep.mubr.bf16.mxu0 0
        %1396 = vmatmul.mubr.bf16.gmra.mxu0 %v1334
        %v1397 = vpop.f32.mrf.mxu0
        %v1398 = vadd.f32 0.0, %v1397
        %v1399 = vpop.f32.mrf.mxu0
        %v1400 = vpop.f32.mrf.mxu0
        %v1401 = vadd.f32 0.0, %v1400
        %v1402 = vpop.f32.mrf.mxu0
        %1403 = vdwg.mxu0
        %v1404 = vadd.f32 %v1291, %v1374
        %v1405 = vadd.f32 %v1292, %v1377
        %v1406 = vadd.f32 %v1293, %v1382
        %v1407 = vadd.f32 %v1294, %v1385
        %v1408 = vadd.f32 %v1295, %v1390
        %v1409 = vadd.f32 %v1296, %v1393
        %v1410 = vadd.f32 %v1297, %v1398
        %v1411 = vadd.f32 %v1298, %v1401
        %v1412 = vld [vmem:[%s958 + $0x2] sm:$0xff]
        %v1413 = vld [vmem:[%s958 + $0x12] sm:$0xff]
        %v1414 = vld [vmem:[%s958 + $0x22] sm:$0xff]
        %v1415 = vld [vmem:[%s958 + $0x32] sm:$0xff]
        %v1416 = vld [vmem:[%s958 + $0x42] sm:$0xff]
        %v1417 = vld [vmem:[%s958 + $0x52] sm:$0xff]
        %v1418 = vld [vmem:[%s958 + $0x62] sm:$0xff]
        %v1419 = vld [vmem:[%s958 + $0x72] sm:$0xff]
        %v1420 = vpack.c.bf16 %v1413, %v1412
        %v1421 = vpack.c.bf16 %v1415, %v1414
        %v1422 = vpack.c.bf16 %v1417, %v1416
        %v1423 = vpack.c.bf16 %v1419, %v1418
        %s1424 = scalar_lea.vmem %s1, 132
        %v1425 = vld [vmem:[%s1424] sm:$0xf]
        %v1426 = vld [vmem:[%s1424 + $0x4] sm:$0xf]
        %v1427 = vld [vmem:[%s1424 + $0x8] sm:$0x7]
        %v1431 = vunpack.c.l.b16 %v1425
        %v1432 = vunpack.c.l.b16 %v1426
        %v1433 = vunpack.c.l.b16 %v1427
        %v1434 = vpack.c.b16 %v1432, %v1431
        %v1435 = vpack.c.b16 %v1433, %v1433
        %v1438 = vsel %vm222, %v1420, 0
        %v1441 = vsel %vm222, %v1421, 0
        %v1444 = vsel %vm222, %v1422, 0
        %v1447 = vsel %vm222, %v1423, 0
        %v1450 = vsel %vm235, %v1435, 0
        %1452 = vmatprep.subr.bf16.mxu0 0
        %1453 = vmatpush1.bf16.msra.mxu0 0
        %1454 = vmatprep.subr.bf16.mxu0 0
        %1455 = vmatpush1.bf16.msra.mxu0 0
        %1456 = vmatprep.subr.bf16.mxu0 0
        %1457 = vmatpush1.bf16.msra.mxu0 0
        %1458 = vmatprep.subr.bf16.mxu0 0
        %1459 = vmatpush1.bf16.msra.mxu0 0
        %1460 = vmatprep.subr.bf16.mxu0 0
        %1461 = vmatpush1.bf16.msra.mxu0 0
        %1462 = vmatprep.subr.bf16.mxu0 0
        %1463 = vmatpush1.bf16.msra.mxu0 0
        %1464 = vmatprep.subr.bf16.mxu0 0
        %1465 = vmatpush1.bf16.msra.mxu0 %v1450
        %1466 = vmatprep.subr.bf16.mxu0 0
        %1467 = vmatpush1.bf16.msra.mxu0 %v1434
        %1468 = vmatprep.subr.bf16.mxu0 0
        %1469 = vmatpush2.bf16.msra.mxu0 0
        %1470 = vmatprep.subr.bf16.mxu0 0
        %1471 = vmatpush2.bf16.msra.mxu0 0
        %1472 = vmatprep.subr.bf16.mxu0 0
        %1473 = vmatpush2.bf16.msra.mxu0 0
        %1474 = vmatprep.subr.bf16.mxu0 0
        %1475 = vmatpush2.bf16.msra.mxu0 0
        %1476 = vmatprep.subr.bf16.mxu0 0
        %1477 = vmatpush2.bf16.msra.mxu0 0
        %1478 = vmatprep.subr.bf16.mxu0 0
        %1479 = vmatpush2.bf16.msra.mxu0 0
        %1480 = vmatprep.subr.bf16.mxu0 0
        %1481 = vmatpush2.bf16.msra.mxu0 0
        %1482 = vmatprep.subr.bf16.mxu0 0
        %1483 = vmatpush2.bf16.msra.mxu0 0
        %1484 = vmatprep.mubr.bf16.mxu0 0
        %1485 = vmatmul.mubr.bf16.gmra.mxu0 %v1438
        %v1486 = vpop.f32.mrf.mxu0
        %v1487 = vadd.f32 0.0, %v1486
        %v1488 = vpop.f32.mrf.mxu0
        %v1489 = vpop.f32.mrf.mxu0
        %v1490 = vadd.f32 0.0, %v1489
        %v1491 = vpop.f32.mrf.mxu0
        %1492 = vmatprep.mubr.bf16.mxu0 0
        %1493 = vmatmul.mubr.bf16.gmra.mxu0 %v1441
        %v1494 = vpop.f32.mrf.mxu0
        %v1495 = vadd.f32 0.0, %v1494
        %v1496 = vpop.f32.mrf.mxu0
        %v1497 = vpop.f32.mrf.mxu0
        %v1498 = vadd.f32 0.0, %v1497
        %v1499 = vpop.f32.mrf.mxu0
        %1500 = vmatprep.mubr.bf16.mxu0 0
        %1501 = vmatmul.mubr.bf16.gmra.mxu0 %v1444
        %v1502 = vpop.f32.mrf.mxu0
        %v1503 = vadd.f32 0.0, %v1502
        %v1504 = vpop.f32.mrf.mxu0
        %v1505 = vpop.f32.mrf.mxu0
        %v1506 = vadd.f32 0.0, %v1505
        %v1507 = vpop.f32.mrf.mxu0
        %1508 = vmatprep.mubr.bf16.mxu0 0
        %1509 = vmatmul.mubr.bf16.gmra.mxu0 %v1447
        %v1510 = vpop.f32.mrf.mxu0
        %v1511 = vadd.f32 0.0, %v1510
        %v1512 = vpop.f32.mrf.mxu0
        %v1513 = vpop.f32.mrf.mxu0
        %v1514 = vadd.f32 0.0, %v1513
        %v1515 = vpop.f32.mrf.mxu0
        %1516 = vdwg.mxu0
        %v1517 = vadd.f32 %v1404, %v1487
        %v1518 = vadd.f32 %v1405, %v1490
        %v1519 = vadd.f32 %v1406, %v1495
        %v1520 = vadd.f32 %v1407, %v1498
        %v1521 = vadd.f32 %v1408, %v1503
        %v1522 = vadd.f32 %v1409, %v1506
        %v1523 = vadd.f32 %v1410, %v1511
        %v1524 = vadd.f32 %v1411, %v1514
        %v1525 = vld [vmem:[%s1072 + $0x2] sm:$0xff]
        %v1526 = vld [vmem:[%s1072 + $0x12] sm:$0xff]
        %v1527 = vld [vmem:[%s1072 + $0x22] sm:$0xff]
        %v1528 = vld [vmem:[%s1072 + $0x32] sm:$0xff]
        %v1529 = vld [vmem:[%s1072 + $0x42] sm:$0xff]
        %v1530 = vld [vmem:[%s1072 + $0x52] sm:$0xff]
        %v1531 = vld [vmem:[%s1072 + $0x62] sm:$0xff]
        %v1532 = vld [vmem:[%s1072 + $0x72] sm:$0xff]
        %v1533 = vpack.c.bf16 %v1526, %v1525
        %v1534 = vpack.c.bf16 %v1528, %v1527
        %v1535 = vpack.c.bf16 %v1530, %v1529
        %v1536 = vpack.c.bf16 %v1532, %v1531
        %s1537 = scalar_lea.vmem %s1, 144
        %v1538 = vld [vmem:[%s1537] sm:$0xf]
        %v1539 = vld [vmem:[%s1537 + $0x4] sm:$0xf]
        %v1540 = vld [vmem:[%s1537 + $0x8] sm:$0x7]
        %v1544 = vunpack.c.l.b16 %v1538
        %v1545 = vunpack.c.l.b16 %v1539
        %v1546 = vunpack.c.l.b16 %v1540
        %v1547 = vpack.c.b16 %v1545, %v1544
        %v1548 = vpack.c.b16 %v1546, %v1546
        %v1551 = vsel %vm222, %v1533, 0
        %v1554 = vsel %vm222, %v1534, 0
        %v1557 = vsel %vm222, %v1535, 0
        %v1560 = vsel %vm222, %v1536, 0
        %v1563 = vsel %vm235, %v1548, 0
        %1565 = vmatprep.subr.bf16.mxu0 0
        %1566 = vmatpush1.bf16.msra.mxu0 0
        %1567 = vmatprep.subr.bf16.mxu0 0
        %1568 = vmatpush1.bf16.msra.mxu0 0
        %1569 = vmatprep.subr.bf16.mxu0 0
        %1570 = vmatpush1.bf16.msra.mxu0 0
        %1571 = vmatprep.subr.bf16.mxu0 0
        %1572 = vmatpush1.bf16.msra.mxu0 0
        %1573 = vmatprep.subr.bf16.mxu0 0
        %1574 = vmatpush1.bf16.msra.mxu0 0
        %1575 = vmatprep.subr.bf16.mxu0 0
        %1576 = vmatpush1.bf16.msra.mxu0 0
        %1577 = vmatprep.subr.bf16.mxu0 0
        %1578 = vmatpush1.bf16.msra.mxu0 %v1563
        %1579 = vmatprep.subr.bf16.mxu0 0
        %1580 = vmatpush1.bf16.msra.mxu0 %v1547
        %1581 = vmatprep.subr.bf16.mxu0 0
        %1582 = vmatpush2.bf16.msra.mxu0 0
        %1583 = vmatprep.subr.bf16.mxu0 0
        %1584 = vmatpush2.bf16.msra.mxu0 0
        %1585 = vmatprep.subr.bf16.mxu0 0
        %1586 = vmatpush2.bf16.msra.mxu0 0
        %1587 = vmatprep.subr.bf16.mxu0 0
        %1588 = vmatpush2.bf16.msra.mxu0 0
        %1589 = vmatprep.subr.bf16.mxu0 0
        %1590 = vmatpush2.bf16.msra.mxu0 0
        %1591 = vmatprep.subr.bf16.mxu0 0
        %1592 = vmatpush2.bf16.msra.mxu0 0
        %1593 = vmatprep.subr.bf16.mxu0 0
        %1594 = vmatpush2.bf16.msra.mxu0 0
        %1595 = vmatprep.subr.bf16.mxu0 0
        %1596 = vmatpush2.bf16.msra.mxu0 0
        %1597 = vmatprep.mubr.bf16.mxu0 0
        %1598 = vmatmul.mubr.bf16.gmra.mxu0 %v1551
        %v1599 = vpop.f32.mrf.mxu0
        %v1600 = vadd.f32 0.0, %v1599
        %v1601 = vpop.f32.mrf.mxu0
        %v1602 = vpop.f32.mrf.mxu0
        %v1603 = vadd.f32 0.0, %v1602
        %v1604 = vpop.f32.mrf.mxu0
        %1605 = vmatprep.mubr.bf16.mxu0 0
        %1606 = vmatmul.mubr.bf16.gmra.mxu0 %v1554
        %v1607 = vpop.f32.mrf.mxu0
        %v1608 = vadd.f32 0.0, %v1607
        %v1609 = vpop.f32.mrf.mxu0
        %v1610 = vpop.f32.mrf.mxu0
        %v1611 = vadd.f32 0.0, %v1610
        %v1612 = vpop.f32.mrf.mxu0
        %1613 = vmatprep.mubr.bf16.mxu0 0
        %1614 = vmatmul.mubr.bf16.gmra.mxu0 %v1557
        %v1615 = vpop.f32.mrf.mxu0
        %v1616 = vadd.f32 0.0, %v1615
        %v1617 = vpop.f32.mrf.mxu0
        %v1618 = vpop.f32.mrf.mxu0
        %v1619 = vadd.f32 0.0, %v1618
        %v1620 = vpop.f32.mrf.mxu0
        %1621 = vmatprep.mubr.bf16.mxu0 0
        %1622 = vmatmul.mubr.bf16.gmra.mxu0 %v1560
        %v1623 = vpop.f32.mrf.mxu0
        %v1624 = vadd.f32 0.0, %v1623
        %v1625 = vpop.f32.mrf.mxu0
        %v1626 = vpop.f32.mrf.mxu0
        %v1627 = vadd.f32 0.0, %v1626
        %v1628 = vpop.f32.mrf.mxu0
        %1629 = vdwg.mxu0
        %v1630 = vadd.f32 %v1517, %v1600
        %v1631 = vadd.f32 %v1518, %v1603
        %v1632 = vadd.f32 %v1519, %v1608
        %v1633 = vadd.f32 %v1520, %v1611
        %v1634 = vadd.f32 %v1521, %v1616
        %v1635 = vadd.f32 %v1522, %v1619
        %v1636 = vadd.f32 %v1523, %v1624
        %v1637 = vadd.f32 %v1524, %v1627
        %v1638 = vld [vmem:[%s958 + $0x3] sm:$0xff]
        %v1639 = vld [vmem:[%s958 + $0x13] sm:$0xff]
        %v1640 = vld [vmem:[%s958 + $0x23] sm:$0xff]
        %v1641 = vld [vmem:[%s958 + $0x33] sm:$0xff]
        %v1642 = vld [vmem:[%s958 + $0x43] sm:$0xff]
        %v1643 = vld [vmem:[%s958 + $0x53] sm:$0xff]
        %v1644 = vld [vmem:[%s958 + $0x63] sm:$0xff]
        %v1645 = vld [vmem:[%s958 + $0x73] sm:$0xff]
        %v1646 = vpack.c.bf16 %v1639, %v1638
        %v1647 = vpack.c.bf16 %v1641, %v1640
        %v1648 = vpack.c.bf16 %v1643, %v1642
        %v1649 = vpack.c.bf16 %v1645, %v1644
        %s1650 = scalar_lea.vmem %s1, 156
        %v1651 = vld [vmem:[%s1650] sm:$0xf]
        %v1652 = vld [vmem:[%s1650 + $0x4] sm:$0xf]
        %v1653 = vld [vmem:[%s1650 + $0x8] sm:$0x7]
        %v1657 = vunpack.c.l.b16 %v1651
        %v1658 = vunpack.c.l.b16 %v1652
        %v1659 = vunpack.c.l.b16 %v1653
        %v1660 = vpack.c.b16 %v1658, %v1657
        %v1661 = vpack.c.b16 %v1659, %v1659
        %v1664 = vsel %vm222, %v1646, 0
        %v1667 = vsel %vm222, %v1647, 0
        %v1670 = vsel %vm222, %v1648, 0
        %v1673 = vsel %vm222, %v1649, 0
        %v1676 = vsel %vm235, %v1661, 0
        %1678 = vmatprep.subr.bf16.mxu0 0
        %1679 = vmatpush1.bf16.msra.mxu0 0
        %1680 = vmatprep.subr.bf16.mxu0 0
        %1681 = vmatpush1.bf16.msra.mxu0 0
        %1682 = vmatprep.subr.bf16.mxu0 0
        %1683 = vmatpush1.bf16.msra.mxu0 0
        %1684 = vmatprep.subr.bf16.mxu0 0
        %1685 = vmatpush1.bf16.msra.mxu0 0
        %1686 = vmatprep.subr.bf16.mxu0 0
        %1687 = vmatpush1.bf16.msra.mxu0 0
        %1688 = vmatprep.subr.bf16.mxu0 0
        %1689 = vmatpush1.bf16.msra.mxu0 0
        %1690 = vmatprep.subr.bf16.mxu0 0
        %1691 = vmatpush1.bf16.msra.mxu0 %v1676
        %1692 = vmatprep.subr.bf16.mxu0 0
        %1693 = vmatpush1.bf16.msra.mxu0 %v1660
        %1694 = vmatprep.subr.bf16.mxu0 0
        %1695 = vmatpush2.bf16.msra.mxu0 0
        %1696 = vmatprep.subr.bf16.mxu0 0
        %1697 = vmatpush2.bf16.msra.mxu0 0
        %1698 = vmatprep.subr.bf16.mxu0 0
        %1699 = vmatpush2.bf16.msra.mxu0 0
        %1700 = vmatprep.subr.bf16.mxu0 0
        %1701 = vmatpush2.bf16.msra.mxu0 0
        %1702 = vmatprep.subr.bf16.mxu0 0
        %1703 = vmatpush2.bf16.msra.mxu0 0
        %1704 = vmatprep.subr.bf16.mxu0 0
        %1705 = vmatpush2.bf16.msra.mxu0 0
        %1706 = vmatprep.subr.bf16.mxu0 0
        %1707 = vmatpush2.bf16.msra.mxu0 0
        %1708 = vmatprep.subr.bf16.mxu0 0
        %1709 = vmatpush2.bf16.msra.mxu0 0
        %1710 = vmatprep.mubr.bf16.mxu0 0
        %1711 = vmatmul.mubr.bf16.gmra.mxu0 %v1664
        %v1712 = vpop.f32.mrf.mxu0
        %v1713 = vadd.f32 0.0, %v1712
        %v1714 = vpop.f32.mrf.mxu0
        %v1715 = vpop.f32.mrf.mxu0
        %v1716 = vadd.f32 0.0, %v1715
        %v1717 = vpop.f32.mrf.mxu0
        %1718 = vmatprep.mubr.bf16.mxu0 0
        %1719 = vmatmul.mubr.bf16.gmra.mxu0 %v1667
        %v1720 = vpop.f32.mrf.mxu0
        %v1721 = vadd.f32 0.0, %v1720
        %v1722 = vpop.f32.mrf.mxu0
        %v1723 = vpop.f32.mrf.mxu0
        %v1724 = vadd.f32 0.0, %v1723
        %v1725 = vpop.f32.mrf.mxu0
        %1726 = vmatprep.mubr.bf16.mxu0 0
        %1727 = vmatmul.mubr.bf16.gmra.mxu0 %v1670
        %v1728 = vpop.f32.mrf.mxu0
        %v1729 = vadd.f32 0.0, %v1728
        %v1730 = vpop.f32.mrf.mxu0
        %v1731 = vpop.f32.mrf.mxu0
        %v1732 = vadd.f32 0.0, %v1731
        %v1733 = vpop.f32.mrf.mxu0
        %1734 = vmatprep.mubr.bf16.mxu0 0
        %1735 = vmatmul.mubr.bf16.gmra.mxu0 %v1673
        %v1736 = vpop.f32.mrf.mxu0
        %v1737 = vadd.f32 0.0, %v1736
        %v1738 = vpop.f32.mrf.mxu0
        %v1739 = vpop.f32.mrf.mxu0
        %v1740 = vadd.f32 0.0, %v1739
        %v1741 = vpop.f32.mrf.mxu0
        %1742 = vdwg.mxu0
        %v1743 = vadd.f32 %v1630, %v1713
        %v1744 = vadd.f32 %v1631, %v1716
        %v1745 = vadd.f32 %v1632, %v1721
        %v1746 = vadd.f32 %v1633, %v1724
        %v1747 = vadd.f32 %v1634, %v1729
        %v1748 = vadd.f32 %v1635, %v1732
        %v1749 = vadd.f32 %v1636, %v1737
        %v1750 = vadd.f32 %v1637, %v1740
        %s1751 = scalar_lea.vmem %s179, 16
        %v1752 = vld [vmem:[%s1751] sm:$0xff]
        %v1753 = vld [vmem:[%s1751 + $0x10] sm:$0xff]
        %v1754 = vld [vmem:[%s1751 + $0x20] sm:$0xff]
        %v1755 = vld [vmem:[%s1751 + $0x30] sm:$0xff]
        %v1756 = vld [vmem:[%s1751 + $0x40] sm:$0xff]
        %v1757 = vld [vmem:[%s1751 + $0x50] sm:$0xff]
        %v1758 = vld [vmem:[%s1751 + $0x60] sm:$0xff]
        %v1759 = vld [vmem:[%s1751 + $0x70] sm:$0xff]
        %v1760 = vpack.c.bf16 %v1753, %v1752
        %v1761 = vpack.c.bf16 %v1755, %v1754
        %v1762 = vpack.c.bf16 %v1757, %v1756
        %v1763 = vpack.c.bf16 %v1759, %v1758
        %s1764 = scalar_lea.vmem %s1, 168
        %v1765 = vld [vmem:[%s1764] sm:$0xf]
        %v1766 = vld [vmem:[%s1764 + $0x4] sm:$0xf]
        %v1767 = vld [vmem:[%s1764 + $0x8] sm:$0x7]
        %v1771 = vunpack.c.l.b16 %v1765
        %v1772 = vunpack.c.l.b16 %v1766
        %v1773 = vunpack.c.l.b16 %v1767
        %v1774 = vpack.c.b16 %v1772, %v1771
        %v1775 = vpack.c.b16 %v1773, %v1773
        %v1778 = vsel %vm222, %v1760, 0
        %v1781 = vsel %vm222, %v1761, 0
        %v1784 = vsel %vm222, %v1762, 0
        %v1787 = vsel %vm222, %v1763, 0
        %v1790 = vsel %vm235, %v1775, 0
        %1792 = vmatprep.subr.bf16.mxu0 0
        %1793 = vmatpush1.bf16.msra.mxu0 0
        %1794 = vmatprep.subr.bf16.mxu0 0
        %1795 = vmatpush1.bf16.msra.mxu0 0
        %1796 = vmatprep.subr.bf16.mxu0 0
        %1797 = vmatpush1.bf16.msra.mxu0 0
        %1798 = vmatprep.subr.bf16.mxu0 0
        %1799 = vmatpush1.bf16.msra.mxu0 0
        %1800 = vmatprep.subr.bf16.mxu0 0
        %1801 = vmatpush1.bf16.msra.mxu0 0
        %1802 = vmatprep.subr.bf16.mxu0 0
        %1803 = vmatpush1.bf16.msra.mxu0 0
        %1804 = vmatprep.subr.bf16.mxu0 0
        %1805 = vmatpush1.bf16.msra.mxu0 %v1790
        %1806 = vmatprep.subr.bf16.mxu0 0
        %1807 = vmatpush1.bf16.msra.mxu0 %v1774
        %1808 = vmatprep.subr.bf16.mxu0 0
        %1809 = vmatpush2.bf16.msra.mxu0 0
        %1810 = vmatprep.subr.bf16.mxu0 0
        %1811 = vmatpush2.bf16.msra.mxu0 0
        %1812 = vmatprep.subr.bf16.mxu0 0
        %1813 = vmatpush2.bf16.msra.mxu0 0
        %1814 = vmatprep.subr.bf16.mxu0 0
        %1815 = vmatpush2.bf16.msra.mxu0 0
        %1816 = vmatprep.subr.bf16.mxu0 0
        %1817 = vmatpush2.bf16.msra.mxu0 0
        %1818 = vmatprep.subr.bf16.mxu0 0
        %1819 = vmatpush2.bf16.msra.mxu0 0
        %1820 = vmatprep.subr.bf16.mxu0 0
        %1821 = vmatpush2.bf16.msra.mxu0 0
        %1822 = vmatprep.subr.bf16.mxu0 0
        %1823 = vmatpush2.bf16.msra.mxu0 0
        %1824 = vmatprep.mubr.bf16.mxu0 0
        %1825 = vmatmul.mubr.bf16.gmra.mxu0 %v1778
        %v1826 = vpop.f32.mrf.mxu0
        %v1827 = vadd.f32 0.0, %v1826
        %v1828 = vpop.f32.mrf.mxu0
        %v1829 = vpop.f32.mrf.mxu0
        %v1830 = vadd.f32 0.0, %v1829
        %v1831 = vpop.f32.mrf.mxu0
        %1832 = vmatprep.mubr.bf16.mxu0 0
        %1833 = vmatmul.mubr.bf16.gmra.mxu0 %v1781
        %v1834 = vpop.f32.mrf.mxu0
        %v1835 = vadd.f32 0.0, %v1834
        %v1836 = vpop.f32.mrf.mxu0
        %v1837 = vpop.f32.mrf.mxu0
        %v1838 = vadd.f32 0.0, %v1837
        %v1839 = vpop.f32.mrf.mxu0
        %1840 = vmatprep.mubr.bf16.mxu0 0
        %1841 = vmatmul.mubr.bf16.gmra.mxu0 %v1784
        %v1842 = vpop.f32.mrf.mxu0
        %v1843 = vadd.f32 0.0, %v1842
        %v1844 = vpop.f32.mrf.mxu0
        %v1845 = vpop.f32.mrf.mxu0
        %v1846 = vadd.f32 0.0, %v1845
        %v1847 = vpop.f32.mrf.mxu0
        %1848 = vmatprep.mubr.bf16.mxu0 0
        %1849 = vmatmul.mubr.bf16.gmra.mxu0 %v1787
        %v1850 = vpop.f32.mrf.mxu0
        %v1851 = vadd.f32 0.0, %v1850
        %v1852 = vpop.f32.mrf.mxu0
        %v1853 = vpop.f32.mrf.mxu0
        %v1854 = vadd.f32 0.0, %v1853
        %v1855 = vpop.f32.mrf.mxu0
        %1856 = vdwg.mxu0
        %v1857 = vadd.f32 %v1743, %v1827
        %v1858 = vadd.f32 %v1744, %v1830
        %v1859 = vadd.f32 %v1745, %v1835
        %v1860 = vadd.f32 %v1746, %v1838
        %v1861 = vadd.f32 %v1747, %v1843
        %v1862 = vadd.f32 %v1748, %v1846
        %v1863 = vadd.f32 %v1749, %v1851
        %v1864 = vadd.f32 %v1750, %v1854
        %s1865 = scalar_lea.vmem %s179, 192
        %v1866 = vld [vmem:[%s1865] sm:$0xff]
        %v1867 = vld [vmem:[%s1865 + $0x10] sm:$0xff]
        %v1868 = vld [vmem:[%s1865 + $0x20] sm:$0xff]
        %v1869 = vld [vmem:[%s1865 + $0x30] sm:$0xff]
        %v1870 = vld [vmem:[%s1865 + $0x40] sm:$0xff]
        %v1871 = vld [vmem:[%s1865 + $0x50] sm:$0xff]
        %v1872 = vld [vmem:[%s1865 + $0x60] sm:$0xff]
        %v1873 = vld [vmem:[%s1865 + $0x70] sm:$0xff]
        %v1874 = vpack.c.bf16 %v1867, %v1866
        %v1875 = vpack.c.bf16 %v1869, %v1868
        %v1876 = vpack.c.bf16 %v1871, %v1870
        %v1877 = vpack.c.bf16 %v1873, %v1872
        %s1878 = scalar_lea.vmem %s1, 180
        %v1879 = vld [vmem:[%s1878] sm:$0xf]
        %v1880 = vld [vmem:[%s1878 + $0x4] sm:$0xf]
        %v1881 = vld [vmem:[%s1878 + $0x8] sm:$0x7]
        %v1885 = vunpack.c.l.b16 %v1879
        %v1886 = vunpack.c.l.b16 %v1880
        %v1887 = vunpack.c.l.b16 %v1881
        %v1888 = vpack.c.b16 %v1886, %v1885
        %v1889 = vpack.c.b16 %v1887, %v1887
        %v1892 = vsel %vm222, %v1874, 0
        %v1895 = vsel %vm222, %v1875, 0
        %v1898 = vsel %vm222, %v1876, 0
        %v1901 = vsel %vm222, %v1877, 0
        %v1904 = vsel %vm235, %v1889, 0
        %1906 = vmatprep.subr.bf16.mxu0 0
        %1907 = vmatpush1.bf16.msra.mxu0 0
        %1908 = vmatprep.subr.bf16.mxu0 0
        %1909 = vmatpush1.bf16.msra.mxu0 0
        %1910 = vmatprep.subr.bf16.mxu0 0
        %1911 = vmatpush1.bf16.msra.mxu0 0
        %1912 = vmatprep.subr.bf16.mxu0 0
        %1913 = vmatpush1.bf16.msra.mxu0 0
        %1914 = vmatprep.subr.bf16.mxu0 0
        %1915 = vmatpush1.bf16.msra.mxu0 0
        %1916 = vmatprep.subr.bf16.mxu0 0
        %1917 = vmatpush1.bf16.msra.mxu0 0
        %1918 = vmatprep.subr.bf16.mxu0 0
        %1919 = vmatpush1.bf16.msra.mxu0 %v1904
        %1920 = vmatprep.subr.bf16.mxu0 0
        %1921 = vmatpush1.bf16.msra.mxu0 %v1888
        %1922 = vmatprep.subr.bf16.mxu0 0
        %1923 = vmatpush2.bf16.msra.mxu0 0
        %1924 = vmatprep.subr.bf16.mxu0 0
        %1925 = vmatpush2.bf16.msra.mxu0 0
        %1926 = vmatprep.subr.bf16.mxu0 0
        %1927 = vmatpush2.bf16.msra.mxu0 0
        %1928 = vmatprep.subr.bf16.mxu0 0
        %1929 = vmatpush2.bf16.msra.mxu0 0
        %1930 = vmatprep.subr.bf16.mxu0 0
        %1931 = vmatpush2.bf16.msra.mxu0 0
        %1932 = vmatprep.subr.bf16.mxu0 0
        %1933 = vmatpush2.bf16.msra.mxu0 0
        %1934 = vmatprep.subr.bf16.mxu0 0
        %1935 = vmatpush2.bf16.msra.mxu0 0
        %1936 = vmatprep.subr.bf16.mxu0 0
        %1937 = vmatpush2.bf16.msra.mxu0 0
        %1938 = vmatprep.mubr.bf16.mxu0 0
        %1939 = vmatmul.mubr.bf16.gmra.mxu0 %v1892
        %v1940 = vpop.f32.mrf.mxu0
        %v1941 = vadd.f32 0.0, %v1940
        %v1942 = vpop.f32.mrf.mxu0
        %v1943 = vpop.f32.mrf.mxu0
        %v1944 = vadd.f32 0.0, %v1943
        %v1945 = vpop.f32.mrf.mxu0
        %1946 = vmatprep.mubr.bf16.mxu0 0
        %1947 = vmatmul.mubr.bf16.gmra.mxu0 %v1895
        %v1948 = vpop.f32.mrf.mxu0
        %v1949 = vadd.f32 0.0, %v1948
        %v1950 = vpop.f32.mrf.mxu0
        %v1951 = vpop.f32.mrf.mxu0
        %v1952 = vadd.f32 0.0, %v1951
        %v1953 = vpop.f32.mrf.mxu0
        %1954 = vmatprep.mubr.bf16.mxu0 0
        %1955 = vmatmul.mubr.bf16.gmra.mxu0 %v1898
        %v1956 = vpop.f32.mrf.mxu0
        %v1957 = vadd.f32 0.0, %v1956
        %v1958 = vpop.f32.mrf.mxu0
        %v1959 = vpop.f32.mrf.mxu0
        %v1960 = vadd.f32 0.0, %v1959
        %v1961 = vpop.f32.mrf.mxu0
        %1962 = vmatprep.mubr.bf16.mxu0 0
        %1963 = vmatmul.mubr.bf16.gmra.mxu0 %v1901
        %v1964 = vpop.f32.mrf.mxu0
        %v1965 = vadd.f32 0.0, %v1964
        %v1966 = vpop.f32.mrf.mxu0
        %v1967 = vpop.f32.mrf.mxu0
        %v1968 = vadd.f32 0.0, %v1967
        %v1969 = vpop.f32.mrf.mxu0
        %1970 = vdwg.mxu0
        %v1971 = vadd.f32 %v1857, %v1941
        %v1972 = vadd.f32 %v1858, %v1944
        %v1973 = vadd.f32 %v1859, %v1949
        %v1974 = vadd.f32 %v1860, %v1952
        %v1975 = vadd.f32 %v1861, %v1957
        %v1976 = vadd.f32 %v1862, %v1960
        %v1977 = vadd.f32 %v1863, %v1965
        %v1978 = vadd.f32 %v1864, %v1968
        %v1979 = vld [vmem:[%s1751 + $0x1] sm:$0xff]
        %v1980 = vld [vmem:[%s1751 + $0x11] sm:$0xff]
        %v1981 = vld [vmem:[%s1751 + $0x21] sm:$0xff]
        %v1982 = vld [vmem:[%s1751 + $0x31] sm:$0xff]
        %v1983 = vld [vmem:[%s1751 + $0x41] sm:$0xff]
        %v1984 = vld [vmem:[%s1751 + $0x51] sm:$0xff]
        %v1985 = vld [vmem:[%s1751 + $0x61] sm:$0xff]
        %v1986 = vld [vmem:[%s1751 + $0x71] sm:$0xff]
        %v1987 = vpack.c.bf16 %v1980, %v1979
        %v1988 = vpack.c.bf16 %v1982, %v1981
        %v1989 = vpack.c.bf16 %v1984, %v1983
        %v1990 = vpack.c.bf16 %v1986, %v1985
        %s1991 = scalar_lea.vmem %s1, 192
        %v1992 = vld [vmem:[%s1991] sm:$0xf]
        %v1993 = vld [vmem:[%s1991 + $0x4] sm:$0xf]
        %v1994 = vld [vmem:[%s1991 + $0x8] sm:$0x7]
        %v1998 = vunpack.c.l.b16 %v1992
        %v1999 = vunpack.c.l.b16 %v1993
        %v2000 = vunpack.c.l.b16 %v1994
        %v2001 = vpack.c.b16 %v1999, %v1998
        %v2002 = vpack.c.b16 %v2000, %v2000
        %v2005 = vsel %vm222, %v1987, 0
        %v2008 = vsel %vm222, %v1988, 0
        %v2011 = vsel %vm222, %v1989, 0
        %v2014 = vsel %vm222, %v1990, 0
        %v2017 = vsel %vm235, %v2002, 0
        %2019 = vmatprep.subr.bf16.mxu0 0
        %2020 = vmatpush1.bf16.msra.mxu0 0
        %2021 = vmatprep.subr.bf16.mxu0 0
        %2022 = vmatpush1.bf16.msra.mxu0 0
        %2023 = vmatprep.subr.bf16.mxu0 0
        %2024 = vmatpush1.bf16.msra.mxu0 0
        %2025 = vmatprep.subr.bf16.mxu0 0
        %2026 = vmatpush1.bf16.msra.mxu0 0
        %2027 = vmatprep.subr.bf16.mxu0 0
        %2028 = vmatpush1.bf16.msra.mxu0 0
        %2029 = vmatprep.subr.bf16.mxu0 0
        %2030 = vmatpush1.bf16.msra.mxu0 0
        %2031 = vmatprep.subr.bf16.mxu0 0
        %2032 = vmatpush1.bf16.msra.mxu0 %v2017
        %2033 = vmatprep.subr.bf16.mxu0 0
        %2034 = vmatpush1.bf16.msra.mxu0 %v2001
        %2035 = vmatprep.subr.bf16.mxu0 0
        %2036 = vmatpush2.bf16.msra.mxu0 0
        %2037 = vmatprep.subr.bf16.mxu0 0
        %2038 = vmatpush2.bf16.msra.mxu0 0
        %2039 = vmatprep.subr.bf16.mxu0 0
        %2040 = vmatpush2.bf16.msra.mxu0 0
        %2041 = vmatprep.subr.bf16.mxu0 0
        %2042 = vmatpush2.bf16.msra.mxu0 0
        %2043 = vmatprep.subr.bf16.mxu0 0
        %2044 = vmatpush2.bf16.msra.mxu0 0
        %2045 = vmatprep.subr.bf16.mxu0 0
        %2046 = vmatpush2.bf16.msra.mxu0 0
        %2047 = vmatprep.subr.bf16.mxu0 0
        %2048 = vmatpush2.bf16.msra.mxu0 0
        %2049 = vmatprep.subr.bf16.mxu0 0
        %2050 = vmatpush2.bf16.msra.mxu0 0
        %2051 = vmatprep.mubr.bf16.mxu0 0
        %2052 = vmatmul.mubr.bf16.gmra.mxu0 %v2005
        %v2053 = vpop.f32.mrf.mxu0
        %v2054 = vadd.f32 0.0, %v2053
        %v2055 = vpop.f32.mrf.mxu0
        %v2056 = vpop.f32.mrf.mxu0
        %v2057 = vadd.f32 0.0, %v2056
        %v2058 = vpop.f32.mrf.mxu0
        %2059 = vmatprep.mubr.bf16.mxu0 0
        %2060 = vmatmul.mubr.bf16.gmra.mxu0 %v2008
        %v2061 = vpop.f32.mrf.mxu0
        %v2062 = vadd.f32 0.0, %v2061
        %v2063 = vpop.f32.mrf.mxu0
        %v2064 = vpop.f32.mrf.mxu0
        %v2065 = vadd.f32 0.0, %v2064
        %v2066 = vpop.f32.mrf.mxu0
        %2067 = vmatprep.mubr.bf16.mxu0 0
        %2068 = vmatmul.mubr.bf16.gmra.mxu0 %v2011
        %v2069 = vpop.f32.mrf.mxu0
        %v2070 = vadd.f32 0.0, %v2069
        %v2071 = vpop.f32.mrf.mxu0
        %v2072 = vpop.f32.mrf.mxu0
        %v2073 = vadd.f32 0.0, %v2072
        %v2074 = vpop.f32.mrf.mxu0
        %2075 = vmatprep.mubr.bf16.mxu0 0
        %2076 = vmatmul.mubr.bf16.gmra.mxu0 %v2014
        %v2077 = vpop.f32.mrf.mxu0
        %v2078 = vadd.f32 0.0, %v2077
        %v2079 = vpop.f32.mrf.mxu0
        %v2080 = vpop.f32.mrf.mxu0
        %v2081 = vadd.f32 0.0, %v2080
        %v2082 = vpop.f32.mrf.mxu0
        %2083 = vdwg.mxu0
        %v2084 = vadd.f32 %v1971, %v2054
        %v2085 = vadd.f32 %v1972, %v2057
        %v2086 = vadd.f32 %v1973, %v2062
        %v2087 = vadd.f32 %v1974, %v2065
        %v2088 = vadd.f32 %v1975, %v2070
        %v2089 = vadd.f32 %v1976, %v2073
        %v2090 = vadd.f32 %v1977, %v2078
        %v2091 = vadd.f32 %v1978, %v2081
        %v2092 = vld [vmem:[%s1865 + $0x1] sm:$0xff]
        %v2093 = vld [vmem:[%s1865 + $0x11] sm:$0xff]
        %v2094 = vld [vmem:[%s1865 + $0x21] sm:$0xff]
        %v2095 = vld [vmem:[%s1865 + $0x31] sm:$0xff]
        %v2096 = vld [vmem:[%s1865 + $0x41] sm:$0xff]
        %v2097 = vld [vmem:[%s1865 + $0x51] sm:$0xff]
        %v2098 = vld [vmem:[%s1865 + $0x61] sm:$0xff]
        %v2099 = vld [vmem:[%s1865 + $0x71] sm:$0xff]
        %v2100 = vpack.c.bf16 %v2093, %v2092
        %v2101 = vpack.c.bf16 %v2095, %v2094
        %v2102 = vpack.c.bf16 %v2097, %v2096
        %v2103 = vpack.c.bf16 %v2099, %v2098
        %s2104 = scalar_lea.vmem %s1, 204
        %v2105 = vld [vmem:[%s2104] sm:$0xf]
        %v2106 = vld [vmem:[%s2104 + $0x4] sm:$0xf]
        %v2107 = vld [vmem:[%s2104 + $0x8] sm:$0x7]
        %v2111 = vunpack.c.l.b16 %v2105
        %v2112 = vunpack.c.l.b16 %v2106
        %v2113 = vunpack.c.l.b16 %v2107
        %v2114 = vpack.c.b16 %v2112, %v2111
        %v2115 = vpack.c.b16 %v2113, %v2113
        %v2118 = vsel %vm222, %v2100, 0
        %v2121 = vsel %vm222, %v2101, 0
        %v2124 = vsel %vm222, %v2102, 0
        %v2127 = vsel %vm222, %v2103, 0
        %v2130 = vsel %vm235, %v2115, 0
        %2132 = vmatprep.subr.bf16.mxu0 0
        %2133 = vmatpush1.bf16.msra.mxu0 0
        %2134 = vmatprep.subr.bf16.mxu0 0
        %2135 = vmatpush1.bf16.msra.mxu0 0
        %2136 = vmatprep.subr.bf16.mxu0 0
        %2137 = vmatpush1.bf16.msra.mxu0 0
        %2138 = vmatprep.subr.bf16.mxu0 0
        %2139 = vmatpush1.bf16.msra.mxu0 0
        %2140 = vmatprep.subr.bf16.mxu0 0
        %2141 = vmatpush1.bf16.msra.mxu0 0
        %2142 = vmatprep.subr.bf16.mxu0 0
        %2143 = vmatpush1.bf16.msra.mxu0 0
        %2144 = vmatprep.subr.bf16.mxu0 0
        %2145 = vmatpush1.bf16.msra.mxu0 %v2130
        %2146 = vmatprep.subr.bf16.mxu0 0
        %2147 = vmatpush1.bf16.msra.mxu0 %v2114
        %2148 = vmatprep.subr.bf16.mxu0 0
        %2149 = vmatpush2.bf16.msra.mxu0 0
        %2150 = vmatprep.subr.bf16.mxu0 0
        %2151 = vmatpush2.bf16.msra.mxu0 0
        %2152 = vmatprep.subr.bf16.mxu0 0
        %2153 = vmatpush2.bf16.msra.mxu0 0
        %2154 = vmatprep.subr.bf16.mxu0 0
        %2155 = vmatpush2.bf16.msra.mxu0 0
        %2156 = vmatprep.subr.bf16.mxu0 0
        %2157 = vmatpush2.bf16.msra.mxu0 0
        %2158 = vmatprep.subr.bf16.mxu0 0
        %2159 = vmatpush2.bf16.msra.mxu0 0
        %2160 = vmatprep.subr.bf16.mxu0 0
        %2161 = vmatpush2.bf16.msra.mxu0 0
        %2162 = vmatprep.subr.bf16.mxu0 0
        %2163 = vmatpush2.bf16.msra.mxu0 0
        %2164 = vmatprep.mubr.bf16.mxu0 0
        %2165 = vmatmul.mubr.bf16.gmra.mxu0 %v2118
        %v2166 = vpop.f32.mrf.mxu0
        %v2167 = vadd.f32 0.0, %v2166
        %v2168 = vpop.f32.mrf.mxu0
        %v2169 = vpop.f32.mrf.mxu0
        %v2170 = vadd.f32 0.0, %v2169
        %v2171 = vpop.f32.mrf.mxu0
        %2172 = vmatprep.mubr.bf16.mxu0 0
        %2173 = vmatmul.mubr.bf16.gmra.mxu0 %v2121
        %v2174 = vpop.f32.mrf.mxu0
        %v2175 = vadd.f32 0.0, %v2174
        %v2176 = vpop.f32.mrf.mxu0
        %v2177 = vpop.f32.mrf.mxu0
        %v2178 = vadd.f32 0.0, %v2177
        %v2179 = vpop.f32.mrf.mxu0
        %2180 = vmatprep.mubr.bf16.mxu0 0
        %2181 = vmatmul.mubr.bf16.gmra.mxu0 %v2124
        %v2182 = vpop.f32.mrf.mxu0
        %v2183 = vadd.f32 0.0, %v2182
        %v2184 = vpop.f32.mrf.mxu0
        %v2185 = vpop.f32.mrf.mxu0
        %v2186 = vadd.f32 0.0, %v2185
        %v2187 = vpop.f32.mrf.mxu0
        %2188 = vmatprep.mubr.bf16.mxu0 0
        %2189 = vmatmul.mubr.bf16.gmra.mxu0 %v2127
        %v2190 = vpop.f32.mrf.mxu0
        %v2191 = vadd.f32 0.0, %v2190
        %v2192 = vpop.f32.mrf.mxu0
        %v2193 = vpop.f32.mrf.mxu0
        %v2194 = vadd.f32 0.0, %v2193
        %v2195 = vpop.f32.mrf.mxu0
        %2196 = vdwg.mxu0
        %v2197 = vadd.f32 %v2084, %v2167
        %v2198 = vadd.f32 %v2085, %v2170
        %v2199 = vadd.f32 %v2086, %v2175
        %v2200 = vadd.f32 %v2087, %v2178
        %v2201 = vadd.f32 %v2088, %v2183
        %v2202 = vadd.f32 %v2089, %v2186
        %v2203 = vadd.f32 %v2090, %v2191
        %v2204 = vadd.f32 %v2091, %v2194
        %v2205 = vld [vmem:[%s1751 + $0x2] sm:$0xff]
        %v2206 = vld [vmem:[%s1751 + $0x12] sm:$0xff]
        %v2207 = vld [vmem:[%s1751 + $0x22] sm:$0xff]
        %v2208 = vld [vmem:[%s1751 + $0x32] sm:$0xff]
        %v2209 = vld [vmem:[%s1751 + $0x42] sm:$0xff]
        %v2210 = vld [vmem:[%s1751 + $0x52] sm:$0xff]
        %v2211 = vld [vmem:[%s1751 + $0x62] sm:$0xff]
        %v2212 = vld [vmem:[%s1751 + $0x72] sm:$0xff]
        %v2213 = vpack.c.bf16 %v2206, %v2205
        %v2214 = vpack.c.bf16 %v2208, %v2207
        %v2215 = vpack.c.bf16 %v2210, %v2209
        %v2216 = vpack.c.bf16 %v2212, %v2211
        %s2217 = scalar_lea.vmem %s1, 216
        %v2218 = vld [vmem:[%s2217] sm:$0xf]
        %v2219 = vld [vmem:[%s2217 + $0x4] sm:$0xf]
        %v2220 = vld [vmem:[%s2217 + $0x8] sm:$0x7]
        %v2224 = vunpack.c.l.b16 %v2218
        %v2225 = vunpack.c.l.b16 %v2219
        %v2226 = vunpack.c.l.b16 %v2220
        %v2227 = vpack.c.b16 %v2225, %v2224
        %v2228 = vpack.c.b16 %v2226, %v2226
        %v2231 = vsel %vm222, %v2213, 0
        %v2234 = vsel %vm222, %v2214, 0
        %v2237 = vsel %vm222, %v2215, 0
        %v2240 = vsel %vm222, %v2216, 0
        %v2243 = vsel %vm235, %v2228, 0
        %2245 = vmatprep.subr.bf16.mxu0 0
        %2246 = vmatpush1.bf16.msra.mxu0 0
        %2247 = vmatprep.subr.bf16.mxu0 0
        %2248 = vmatpush1.bf16.msra.mxu0 0
        %2249 = vmatprep.subr.bf16.mxu0 0
        %2250 = vmatpush1.bf16.msra.mxu0 0
        %2251 = vmatprep.subr.bf16.mxu0 0
        %2252 = vmatpush1.bf16.msra.mxu0 0
        %2253 = vmatprep.subr.bf16.mxu0 0
        %2254 = vmatpush1.bf16.msra.mxu0 0
        %2255 = vmatprep.subr.bf16.mxu0 0
        %2256 = vmatpush1.bf16.msra.mxu0 0
        %2257 = vmatprep.subr.bf16.mxu0 0
        %2258 = vmatpush1.bf16.msra.mxu0 %v2243
        %2259 = vmatprep.subr.bf16.mxu0 0
        %2260 = vmatpush1.bf16.msra.mxu0 %v2227
        %2261 = vmatprep.subr.bf16.mxu0 0
        %2262 = vmatpush2.bf16.msra.mxu0 0
        %2263 = vmatprep.subr.bf16.mxu0 0
        %2264 = vmatpush2.bf16.msra.mxu0 0
        %2265 = vmatprep.subr.bf16.mxu0 0
        %2266 = vmatpush2.bf16.msra.mxu0 0
        %2267 = vmatprep.subr.bf16.mxu0 0
        %2268 = vmatpush2.bf16.msra.mxu0 0
        %2269 = vmatprep.subr.bf16.mxu0 0
        %2270 = vmatpush2.bf16.msra.mxu0 0
        %2271 = vmatprep.subr.bf16.mxu0 0
        %2272 = vmatpush2.bf16.msra.mxu0 0
        %2273 = vmatprep.subr.bf16.mxu0 0
        %2274 = vmatpush2.bf16.msra.mxu0 0
        %2275 = vmatprep.subr.bf16.mxu0 0
        %2276 = vmatpush2.bf16.msra.mxu0 0
        %2277 = vmatprep.mubr.bf16.mxu0 0
        %2278 = vmatmul.mubr.bf16.gmra.mxu0 %v2231
        %v2279 = vpop.f32.mrf.mxu0
        %v2280 = vadd.f32 0.0, %v2279
        %v2281 = vpop.f32.mrf.mxu0
        %v2282 = vpop.f32.mrf.mxu0
        %v2283 = vadd.f32 0.0, %v2282
        %v2284 = vpop.f32.mrf.mxu0
        %2285 = vmatprep.mubr.bf16.mxu0 0
        %2286 = vmatmul.mubr.bf16.gmra.mxu0 %v2234
        %v2287 = vpop.f32.mrf.mxu0
        %v2288 = vadd.f32 0.0, %v2287
        %v2289 = vpop.f32.mrf.mxu0
        %v2290 = vpop.f32.mrf.mxu0
        %v2291 = vadd.f32 0.0, %v2290
        %v2292 = vpop.f32.mrf.mxu0
        %2293 = vmatprep.mubr.bf16.mxu0 0
        %2294 = vmatmul.mubr.bf16.gmra.mxu0 %v2237
        %v2295 = vpop.f32.mrf.mxu0
        %v2296 = vadd.f32 0.0, %v2295
        %v2297 = vpop.f32.mrf.mxu0
        %v2298 = vpop.f32.mrf.mxu0
        %v2299 = vadd.f32 0.0, %v2298
        %v2300 = vpop.f32.mrf.mxu0
        %2301 = vmatprep.mubr.bf16.mxu0 0
        %2302 = vmatmul.mubr.bf16.gmra.mxu0 %v2240
        %v2303 = vpop.f32.mrf.mxu0
        %v2304 = vadd.f32 0.0, %v2303
        %v2305 = vpop.f32.mrf.mxu0
        %v2306 = vpop.f32.mrf.mxu0
        %v2307 = vadd.f32 0.0, %v2306
        %v2308 = vpop.f32.mrf.mxu0
        %2309 = vdwg.mxu0
        %v2310 = vadd.f32 %v2197, %v2280
        %v2311 = vadd.f32 %v2198, %v2283
        %v2312 = vadd.f32 %v2199, %v2288
        %v2313 = vadd.f32 %v2200, %v2291
        %v2314 = vadd.f32 %v2201, %v2296
        %v2315 = vadd.f32 %v2202, %v2299
        %v2316 = vadd.f32 %v2203, %v2304
        %v2317 = vadd.f32 %v2204, %v2307
        %v2318 = vld [vmem:[%s1865 + $0x2] sm:$0xff]
        %v2319 = vld [vmem:[%s1865 + $0x12] sm:$0xff]
        %v2320 = vld [vmem:[%s1865 + $0x22] sm:$0xff]
        %v2321 = vld [vmem:[%s1865 + $0x32] sm:$0xff]
        %v2322 = vld [vmem:[%s1865 + $0x42] sm:$0xff]
        %v2323 = vld [vmem:[%s1865 + $0x52] sm:$0xff]
        %v2324 = vld [vmem:[%s1865 + $0x62] sm:$0xff]
        %v2325 = vld [vmem:[%s1865 + $0x72] sm:$0xff]
        %v2326 = vpack.c.bf16 %v2319, %v2318
        %v2327 = vpack.c.bf16 %v2321, %v2320
        %v2328 = vpack.c.bf16 %v2323, %v2322
        %v2329 = vpack.c.bf16 %v2325, %v2324
        %s2330 = scalar_lea.vmem %s1, 228
        %v2331 = vld [vmem:[%s2330] sm:$0xf]
        %v2332 = vld [vmem:[%s2330 + $0x4] sm:$0xf]
        %v2333 = vld [vmem:[%s2330 + $0x8] sm:$0x7]
        %v2337 = vunpack.c.l.b16 %v2331
        %v2338 = vunpack.c.l.b16 %v2332
        %v2339 = vunpack.c.l.b16 %v2333
        %v2340 = vpack.c.b16 %v2338, %v2337
        %v2341 = vpack.c.b16 %v2339, %v2339
        %v2344 = vsel %vm222, %v2326, 0
        %v2347 = vsel %vm222, %v2327, 0
        %v2350 = vsel %vm222, %v2328, 0
        %v2353 = vsel %vm222, %v2329, 0
        %v2356 = vsel %vm235, %v2341, 0
        %2358 = vmatprep.subr.bf16.mxu0 0
        %2359 = vmatpush1.bf16.msra.mxu0 0
        %2360 = vmatprep.subr.bf16.mxu0 0
        %2361 = vmatpush1.bf16.msra.mxu0 0
        %2362 = vmatprep.subr.bf16.mxu0 0
        %2363 = vmatpush1.bf16.msra.mxu0 0
        %2364 = vmatprep.subr.bf16.mxu0 0
        %2365 = vmatpush1.bf16.msra.mxu0 0
        %2366 = vmatprep.subr.bf16.mxu0 0
        %2367 = vmatpush1.bf16.msra.mxu0 0
        %2368 = vmatprep.subr.bf16.mxu0 0
        %2369 = vmatpush1.bf16.msra.mxu0 0
        %2370 = vmatprep.subr.bf16.mxu0 0
        %2371 = vmatpush1.bf16.msra.mxu0 %v2356
        %2372 = vmatprep.subr.bf16.mxu0 0
        %2373 = vmatpush1.bf16.msra.mxu0 %v2340
        %2374 = vmatprep.subr.bf16.mxu0 0
        %2375 = vmatpush2.bf16.msra.mxu0 0
        %2376 = vmatprep.subr.bf16.mxu0 0
        %2377 = vmatpush2.bf16.msra.mxu0 0
        %2378 = vmatprep.subr.bf16.mxu0 0
        %2379 = vmatpush2.bf16.msra.mxu0 0
        %2380 = vmatprep.subr.bf16.mxu0 0
        %2381 = vmatpush2.bf16.msra.mxu0 0
        %2382 = vmatprep.subr.bf16.mxu0 0
        %2383 = vmatpush2.bf16.msra.mxu0 0
        %2384 = vmatprep.subr.bf16.mxu0 0
        %2385 = vmatpush2.bf16.msra.mxu0 0
        %2386 = vmatprep.subr.bf16.mxu0 0
        %2387 = vmatpush2.bf16.msra.mxu0 0
        %2388 = vmatprep.subr.bf16.mxu0 0
        %2389 = vmatpush2.bf16.msra.mxu0 0
        %2390 = vmatprep.mubr.bf16.mxu0 0
        %2391 = vmatmul.mubr.bf16.gmra.mxu0 %v2344
        %v2392 = vpop.f32.mrf.mxu0
        %v2393 = vadd.f32 0.0, %v2392
        %v2394 = vpop.f32.mrf.mxu0
        %v2395 = vpop.f32.mrf.mxu0
        %v2396 = vadd.f32 0.0, %v2395
        %v2397 = vpop.f32.mrf.mxu0
        %2398 = vmatprep.mubr.bf16.mxu0 0
        %2399 = vmatmul.mubr.bf16.gmra.mxu0 %v2347
        %v2400 = vpop.f32.mrf.mxu0
        %v2401 = vadd.f32 0.0, %v2400
        %v2402 = vpop.f32.mrf.mxu0
        %v2403 = vpop.f32.mrf.mxu0
        %v2404 = vadd.f32 0.0, %v2403
        %v2405 = vpop.f32.mrf.mxu0
        %2406 = vmatprep.mubr.bf16.mxu0 0
        %2407 = vmatmul.mubr.bf16.gmra.mxu0 %v2350
        %v2408 = vpop.f32.mrf.mxu0
        %v2409 = vadd.f32 0.0, %v2408
        %v2410 = vpop.f32.mrf.mxu0
        %v2411 = vpop.f32.mrf.mxu0
        %v2412 = vadd.f32 0.0, %v2411
        %v2413 = vpop.f32.mrf.mxu0
        %2414 = vmatprep.mubr.bf16.mxu0 0
        %2415 = vmatmul.mubr.bf16.gmra.mxu0 %v2353
        %v2416 = vpop.f32.mrf.mxu0
        %v2417 = vadd.f32 0.0, %v2416
        %v2418 = vpop.f32.mrf.mxu0
        %v2419 = vpop.f32.mrf.mxu0
        %v2420 = vadd.f32 0.0, %v2419
        %v2421 = vpop.f32.mrf.mxu0
        %2422 = vdwg.mxu0
        %v2423 = vadd.f32 %v2310, %v2393
        %v2424 = vadd.f32 %v2311, %v2396
        %v2425 = vadd.f32 %v2312, %v2401
        %v2426 = vadd.f32 %v2313, %v2404
        %v2427 = vadd.f32 %v2314, %v2409
        %v2428 = vadd.f32 %v2315, %v2412
        %v2429 = vadd.f32 %v2316, %v2417
        %v2430 = vadd.f32 %v2317, %v2420
        %v2431 = vld [vmem:[%s1751 + $0x3] sm:$0xff]
        %v2432 = vld [vmem:[%s1751 + $0x13] sm:$0xff]
        %v2433 = vld [vmem:[%s1751 + $0x23] sm:$0xff]
        %v2434 = vld [vmem:[%s1751 + $0x33] sm:$0xff]
        %v2435 = vld [vmem:[%s1751 + $0x43] sm:$0xff]
        %v2436 = vld [vmem:[%s1751 + $0x53] sm:$0xff]
        %v2437 = vld [vmem:[%s1751 + $0x63] sm:$0xff]
        %v2438 = vld [vmem:[%s1751 + $0x73] sm:$0xff]
        %v2439 = vpack.c.bf16 %v2432, %v2431
        %v2440 = vpack.c.bf16 %v2434, %v2433
        %v2441 = vpack.c.bf16 %v2436, %v2435
        %v2442 = vpack.c.bf16 %v2438, %v2437
        %s2443 = scalar_lea.vmem %s1, 240
        %v2444 = vld [vmem:[%s2443] sm:$0xf]
        %v2445 = vld [vmem:[%s2443 + $0x4] sm:$0xf]
        %v2446 = vld [vmem:[%s2443 + $0x8] sm:$0x7]
        %v2450 = vunpack.c.l.b16 %v2444
        %v2451 = vunpack.c.l.b16 %v2445
        %v2452 = vunpack.c.l.b16 %v2446
        %v2453 = vpack.c.b16 %v2451, %v2450
        %v2454 = vpack.c.b16 %v2452, %v2452
        %v2457 = vsel %vm222, %v2439, 0
        %v2460 = vsel %vm222, %v2440, 0
        %v2463 = vsel %vm222, %v2441, 0
        %v2466 = vsel %vm222, %v2442, 0
        %v2469 = vsel %vm235, %v2454, 0
        %2471 = vmatprep.subr.bf16.mxu0 0
        %2472 = vmatpush1.bf16.msra.mxu0 0
        %2473 = vmatprep.subr.bf16.mxu0 0
        %2474 = vmatpush1.bf16.msra.mxu0 0
        %2475 = vmatprep.subr.bf16.mxu0 0
        %2476 = vmatpush1.bf16.msra.mxu0 0
        %2477 = vmatprep.subr.bf16.mxu0 0
        %2478 = vmatpush1.bf16.msra.mxu0 0
        %2479 = vmatprep.subr.bf16.mxu0 0
        %2480 = vmatpush1.bf16.msra.mxu0 0
        %2481 = vmatprep.subr.bf16.mxu0 0
        %2482 = vmatpush1.bf16.msra.mxu0 0
        %2483 = vmatprep.subr.bf16.mxu0 0
        %2484 = vmatpush1.bf16.msra.mxu0 %v2469
        %2485 = vmatprep.subr.bf16.mxu0 0
        %2486 = vmatpush1.bf16.msra.mxu0 %v2453
        %2487 = vmatprep.subr.bf16.mxu0 0
        %2488 = vmatpush2.bf16.msra.mxu0 0
        %2489 = vmatprep.subr.bf16.mxu0 0
        %2490 = vmatpush2.bf16.msra.mxu0 0
        %2491 = vmatprep.subr.bf16.mxu0 0
        %2492 = vmatpush2.bf16.msra.mxu0 0
        %2493 = vmatprep.subr.bf16.mxu0 0
        %2494 = vmatpush2.bf16.msra.mxu0 0
        %2495 = vmatprep.subr.bf16.mxu0 0
        %2496 = vmatpush2.bf16.msra.mxu0 0
        %2497 = vmatprep.subr.bf16.mxu0 0
        %2498 = vmatpush2.bf16.msra.mxu0 0
        %2499 = vmatprep.subr.bf16.mxu0 0
        %2500 = vmatpush2.bf16.msra.mxu0 0
        %2501 = vmatprep.subr.bf16.mxu0 0
        %2502 = vmatpush2.bf16.msra.mxu0 0
        %2503 = vmatprep.mubr.bf16.mxu0 0
        %2504 = vmatmul.mubr.bf16.gmra.mxu0 %v2457
        %v2505 = vpop.f32.mrf.mxu0
        %v2506 = vadd.f32 0.0, %v2505
        %v2507 = vpop.f32.mrf.mxu0
        %v2508 = vpop.f32.mrf.mxu0
        %v2509 = vadd.f32 0.0, %v2508
        %v2510 = vpop.f32.mrf.mxu0
        %2511 = vmatprep.mubr.bf16.mxu0 0
        %2512 = vmatmul.mubr.bf16.gmra.mxu0 %v2460
        %v2513 = vpop.f32.mrf.mxu0
        %v2514 = vadd.f32 0.0, %v2513
        %v2515 = vpop.f32.mrf.mxu0
        %v2516 = vpop.f32.mrf.mxu0
        %v2517 = vadd.f32 0.0, %v2516
        %v2518 = vpop.f32.mrf.mxu0
        %2519 = vmatprep.mubr.bf16.mxu0 0
        %2520 = vmatmul.mubr.bf16.gmra.mxu0 %v2463
        %v2521 = vpop.f32.mrf.mxu0
        %v2522 = vadd.f32 0.0, %v2521
        %v2523 = vpop.f32.mrf.mxu0
        %v2524 = vpop.f32.mrf.mxu0
        %v2525 = vadd.f32 0.0, %v2524
        %v2526 = vpop.f32.mrf.mxu0
        %2527 = vmatprep.mubr.bf16.mxu0 0
        %2528 = vmatmul.mubr.bf16.gmra.mxu0 %v2466
        %v2529 = vpop.f32.mrf.mxu0
        %v2530 = vadd.f32 0.0, %v2529
        %v2531 = vpop.f32.mrf.mxu0
        %v2532 = vpop.f32.mrf.mxu0
        %v2533 = vadd.f32 0.0, %v2532
        %v2534 = vpop.f32.mrf.mxu0
        %2535 = vdwg.mxu0
        %v2536 = vadd.f32 %v2423, %v2506
        %v2537 = vadd.f32 %v2424, %v2509
        %v2538 = vadd.f32 %v2425, %v2514
        %v2539 = vadd.f32 %v2426, %v2517
        %v2540 = vadd.f32 %v2427, %v2522
        %v2541 = vadd.f32 %v2428, %v2525
        %v2542 = vadd.f32 %v2429, %v2530
        %v2543 = vadd.f32 %v2430, %v2533
        %s2544 = scalar_lea.vmem %s179, 368
        %v2545 = vld [vmem:[%s2544] sm:$0xff]
        %v2546 = vld [vmem:[%s2544 + $0x10] sm:$0xff]
        %v2547 = vld [vmem:[%s2544 + $0x20] sm:$0xff]
        %v2548 = vld [vmem:[%s2544 + $0x30] sm:$0xff]
        %v2549 = vld [vmem:[%s2544 + $0x40] sm:$0xff]
        %v2550 = vld [vmem:[%s2544 + $0x50] sm:$0xff]
        %v2551 = vld [vmem:[%s2544 + $0x60] sm:$0xff]
        %v2552 = vld [vmem:[%s2544 + $0x70] sm:$0xff]
        %v2553 = vpack.c.bf16 %v2546, %v2545
        %v2554 = vpack.c.bf16 %v2548, %v2547
        %v2555 = vpack.c.bf16 %v2550, %v2549
        %v2556 = vpack.c.bf16 %v2552, %v2551
        %s2557 = scalar_lea.vmem %s1, 252
        %v2558 = vld [vmem:[%s2557] sm:$0xf]
        %v2559 = vld [vmem:[%s2557 + $0x4] sm:$0xf]
        %v2560 = vld [vmem:[%s2557 + $0x8] sm:$0x7]
        %v2564 = vunpack.c.l.b16 %v2558
        %v2565 = vunpack.c.l.b16 %v2559
        %v2566 = vunpack.c.l.b16 %v2560
        %v2567 = vpack.c.b16 %v2565, %v2564
        %v2568 = vpack.c.b16 %v2566, %v2566
        %v2571 = vsel %vm222, %v2553, 0
        %v2574 = vsel %vm222, %v2554, 0
        %v2577 = vsel %vm222, %v2555, 0
        %v2580 = vsel %vm222, %v2556, 0
        %v2583 = vsel %vm235, %v2568, 0
        %2585 = vmatprep.subr.bf16.mxu0 0
        %2586 = vmatpush1.bf16.msra.mxu0 0
        %2587 = vmatprep.subr.bf16.mxu0 0
        %2588 = vmatpush1.bf16.msra.mxu0 0
        %2589 = vmatprep.subr.bf16.mxu0 0
        %2590 = vmatpush1.bf16.msra.mxu0 0
        %2591 = vmatprep.subr.bf16.mxu0 0
        %2592 = vmatpush1.bf16.msra.mxu0 0
        %2593 = vmatprep.subr.bf16.mxu0 0
        %2594 = vmatpush1.bf16.msra.mxu0 0
        %2595 = vmatprep.subr.bf16.mxu0 0
        %2596 = vmatpush1.bf16.msra.mxu0 0
        %2597 = vmatprep.subr.bf16.mxu0 0
        %2598 = vmatpush1.bf16.msra.mxu0 %v2583
        %2599 = vmatprep.subr.bf16.mxu0 0
        %2600 = vmatpush1.bf16.msra.mxu0 %v2567
        %2601 = vmatprep.subr.bf16.mxu0 0
        %2602 = vmatpush2.bf16.msra.mxu0 0
        %2603 = vmatprep.subr.bf16.mxu0 0
        %2604 = vmatpush2.bf16.msra.mxu0 0
        %2605 = vmatprep.subr.bf16.mxu0 0
        %2606 = vmatpush2.bf16.msra.mxu0 0
        %2607 = vmatprep.subr.bf16.mxu0 0
        %2608 = vmatpush2.bf16.msra.mxu0 0
        %2609 = vmatprep.subr.bf16.mxu0 0
        %2610 = vmatpush2.bf16.msra.mxu0 0
        %2611 = vmatprep.subr.bf16.mxu0 0
        %2612 = vmatpush2.bf16.msra.mxu0 0
        %2613 = vmatprep.subr.bf16.mxu0 0
        %2614 = vmatpush2.bf16.msra.mxu0 0
        %2615 = vmatprep.subr.bf16.mxu0 0
        %2616 = vmatpush2.bf16.msra.mxu0 0
        %2617 = vmatprep.mubr.bf16.mxu0 0
        %2618 = vmatmul.mubr.bf16.gmra.mxu0 %v2571
        %v2619 = vpop.f32.mrf.mxu0
        %v2620 = vadd.f32 0.0, %v2619
        %v2621 = vpop.f32.mrf.mxu0
        %v2622 = vpop.f32.mrf.mxu0
        %v2623 = vadd.f32 0.0, %v2622
        %v2624 = vpop.f32.mrf.mxu0
        %2625 = vmatprep.mubr.bf16.mxu0 0
        %2626 = vmatmul.mubr.bf16.gmra.mxu0 %v2574
        %v2627 = vpop.f32.mrf.mxu0
        %v2628 = vadd.f32 0.0, %v2627
        %v2629 = vpop.f32.mrf.mxu0
        %v2630 = vpop.f32.mrf.mxu0
        %v2631 = vadd.f32 0.0, %v2630
        %v2632 = vpop.f32.mrf.mxu0
        %2633 = vmatprep.mubr.bf16.mxu0 0
        %2634 = vmatmul.mubr.bf16.gmra.mxu0 %v2577
        %v2635 = vpop.f32.mrf.mxu0
        %v2636 = vadd.f32 0.0, %v2635
        %v2637 = vpop.f32.mrf.mxu0
        %v2638 = vpop.f32.mrf.mxu0
        %v2639 = vadd.f32 0.0, %v2638
        %v2640 = vpop.f32.mrf.mxu0
        %2641 = vmatprep.mubr.bf16.mxu0 0
        %2642 = vmatmul.mubr.bf16.gmra.mxu0 %v2580
        %v2643 = vpop.f32.mrf.mxu0
        %v2644 = vadd.f32 0.0, %v2643
        %v2645 = vpop.f32.mrf.mxu0
        %v2646 = vpop.f32.mrf.mxu0
        %v2647 = vadd.f32 0.0, %v2646
        %v2648 = vpop.f32.mrf.mxu0
        %2649 = vdwg.mxu0
        %v2650 = vadd.f32 %v2536, %v2620
        %v2651 = vadd.f32 %v2537, %v2623
        %v2652 = vadd.f32 %v2538, %v2628
        %v2653 = vadd.f32 %v2539, %v2631
        %v2654 = vadd.f32 %v2540, %v2636
        %v2655 = vadd.f32 %v2541, %v2639
        %v2656 = vadd.f32 %v2542, %v2644
        %v2657 = vadd.f32 %v2543, %v2647
        %s2658 = scalar_lea.vmem %s179, 544
        %v2659 = vld [vmem:[%s2658] sm:$0xff]
        %v2660 = vld [vmem:[%s2658 + $0x10] sm:$0xff]
        %v2661 = vld [vmem:[%s2658 + $0x20] sm:$0xff]
        %v2662 = vld [vmem:[%s2658 + $0x30] sm:$0xff]
        %v2663 = vld [vmem:[%s2658 + $0x40] sm:$0xff]
        %v2664 = vld [vmem:[%s2658 + $0x50] sm:$0xff]
        %v2665 = vld [vmem:[%s2658 + $0x60] sm:$0xff]
        %v2666 = vld [vmem:[%s2658 + $0x70] sm:$0xff]
        %v2667 = vpack.c.bf16 %v2660, %v2659
        %v2668 = vpack.c.bf16 %v2662, %v2661
        %v2669 = vpack.c.bf16 %v2664, %v2663
        %v2670 = vpack.c.bf16 %v2666, %v2665
        %s2671 = scalar_lea.vmem %s1, 264
        %v2672 = vld [vmem:[%s2671] sm:$0xf]
        %v2673 = vld [vmem:[%s2671 + $0x4] sm:$0xf]
        %v2674 = vld [vmem:[%s2671 + $0x8] sm:$0x7]
        %v2678 = vunpack.c.l.b16 %v2672
        %v2679 = vunpack.c.l.b16 %v2673
        %v2680 = vunpack.c.l.b16 %v2674
        %v2681 = vpack.c.b16 %v2679, %v2678
        %v2682 = vpack.c.b16 %v2680, %v2680
        %v2685 = vsel %vm222, %v2667, 0
        %v2688 = vsel %vm222, %v2668, 0
        %v2691 = vsel %vm222, %v2669, 0
        %v2694 = vsel %vm222, %v2670, 0
        %v2697 = vsel %vm235, %v2682, 0
        %2699 = vmatprep.subr.bf16.mxu0 0
        %2700 = vmatpush1.bf16.msra.mxu0 0
        %2701 = vmatprep.subr.bf16.mxu0 0
        %2702 = vmatpush1.bf16.msra.mxu0 0
        %2703 = vmatprep.subr.bf16.mxu0 0
        %2704 = vmatpush1.bf16.msra.mxu0 0
        %2705 = vmatprep.subr.bf16.mxu0 0
        %2706 = vmatpush1.bf16.msra.mxu0 0
        %2707 = vmatprep.subr.bf16.mxu0 0
        %2708 = vmatpush1.bf16.msra.mxu0 0
        %2709 = vmatprep.subr.bf16.mxu0 0
        %2710 = vmatpush1.bf16.msra.mxu0 0
        %2711 = vmatprep.subr.bf16.mxu0 0
        %2712 = vmatpush1.bf16.msra.mxu0 %v2697
        %2713 = vmatprep.subr.bf16.mxu0 0
        %2714 = vmatpush1.bf16.msra.mxu0 %v2681
        %2715 = vmatprep.subr.bf16.mxu0 0
        %2716 = vmatpush2.bf16.msra.mxu0 0
        %2717 = vmatprep.subr.bf16.mxu0 0
        %2718 = vmatpush2.bf16.msra.mxu0 0
        %2719 = vmatprep.subr.bf16.mxu0 0
        %2720 = vmatpush2.bf16.msra.mxu0 0
        %2721 = vmatprep.subr.bf16.mxu0 0
        %2722 = vmatpush2.bf16.msra.mxu0 0
        %2723 = vmatprep.subr.bf16.mxu0 0
        %2724 = vmatpush2.bf16.msra.mxu0 0
        %2725 = vmatprep.subr.bf16.mxu0 0
        %2726 = vmatpush2.bf16.msra.mxu0 0
        %2727 = vmatprep.subr.bf16.mxu0 0
        %2728 = vmatpush2.bf16.msra.mxu0 0
        %2729 = vmatprep.subr.bf16.mxu0 0
        %2730 = vmatpush2.bf16.msra.mxu0 0
        %2731 = vmatprep.mubr.bf16.mxu0 0
        %2732 = vmatmul.mubr.bf16.gmra.mxu0 %v2685
        %v2733 = vpop.f32.mrf.mxu0
        %v2734 = vadd.f32 0.0, %v2733
        %v2735 = vpop.f32.mrf.mxu0
        %v2736 = vpop.f32.mrf.mxu0
        %v2737 = vadd.f32 0.0, %v2736
        %v2738 = vpop.f32.mrf.mxu0
        %2739 = vmatprep.mubr.bf16.mxu0 0
        %2740 = vmatmul.mubr.bf16.gmra.mxu0 %v2688
        %v2741 = vpop.f32.mrf.mxu0
        %v2742 = vadd.f32 0.0, %v2741
        %v2743 = vpop.f32.mrf.mxu0
        %v2744 = vpop.f32.mrf.mxu0
        %v2745 = vadd.f32 0.0, %v2744
        %v2746 = vpop.f32.mrf.mxu0
        %2747 = vmatprep.mubr.bf16.mxu0 0
        %2748 = vmatmul.mubr.bf16.gmra.mxu0 %v2691
        %v2749 = vpop.f32.mrf.mxu0
        %v2750 = vadd.f32 0.0, %v2749
        %v2751 = vpop.f32.mrf.mxu0
        %v2752 = vpop.f32.mrf.mxu0
        %v2753 = vadd.f32 0.0, %v2752
        %v2754 = vpop.f32.mrf.mxu0
        %2755 = vmatprep.mubr.bf16.mxu0 0
        %2756 = vmatmul.mubr.bf16.gmra.mxu0 %v2694
        %v2757 = vpop.f32.mrf.mxu0
        %v2758 = vadd.f32 0.0, %v2757
        %v2759 = vpop.f32.mrf.mxu0
        %v2760 = vpop.f32.mrf.mxu0
        %v2761 = vadd.f32 0.0, %v2760
        %v2762 = vpop.f32.mrf.mxu0
        %2763 = vdwg.mxu0
        %v2764 = vadd.f32 %v2650, %v2734
        %v2765 = vadd.f32 %v2651, %v2737
        %v2766 = vadd.f32 %v2652, %v2742
        %v2767 = vadd.f32 %v2653, %v2745
        %v2768 = vadd.f32 %v2654, %v2750
        %v2769 = vadd.f32 %v2655, %v2753
        %v2770 = vadd.f32 %v2656, %v2758
        %v2771 = vadd.f32 %v2657, %v2761
        %v2772 = vld [vmem:[%s2544 + $0x1] sm:$0xff]
        %v2773 = vld [vmem:[%s2544 + $0x11] sm:$0xff]
        %v2774 = vld [vmem:[%s2544 + $0x21] sm:$0xff]
        %v2775 = vld [vmem:[%s2544 + $0x31] sm:$0xff]
        %v2776 = vld [vmem:[%s2544 + $0x41] sm:$0xff]
        %v2777 = vld [vmem:[%s2544 + $0x51] sm:$0xff]
        %v2778 = vld [vmem:[%s2544 + $0x61] sm:$0xff]
        %v2779 = vld [vmem:[%s2544 + $0x71] sm:$0xff]
        %v2780 = vpack.c.bf16 %v2773, %v2772
        %v2781 = vpack.c.bf16 %v2775, %v2774
        %v2782 = vpack.c.bf16 %v2777, %v2776
        %v2783 = vpack.c.bf16 %v2779, %v2778
        %s2784 = scalar_lea.vmem %s1, 276
        %v2785 = vld [vmem:[%s2784] sm:$0xf]
        %v2786 = vld [vmem:[%s2784 + $0x4] sm:$0xf]
        %v2787 = vld [vmem:[%s2784 + $0x8] sm:$0x7]
        %v2791 = vunpack.c.l.b16 %v2785
        %v2792 = vunpack.c.l.b16 %v2786
        %v2793 = vunpack.c.l.b16 %v2787
        %v2794 = vpack.c.b16 %v2792, %v2791
        %v2795 = vpack.c.b16 %v2793, %v2793
        %v2798 = vsel %vm222, %v2780, 0
        %v2801 = vsel %vm222, %v2781, 0
        %v2804 = vsel %vm222, %v2782, 0
        %v2807 = vsel %vm222, %v2783, 0
        %v2810 = vsel %vm235, %v2795, 0
        %2812 = vmatprep.subr.bf16.mxu0 0
        %2813 = vmatpush1.bf16.msra.mxu0 0
        %2814 = vmatprep.subr.bf16.mxu0 0
        %2815 = vmatpush1.bf16.msra.mxu0 0
        %2816 = vmatprep.subr.bf16.mxu0 0
        %2817 = vmatpush1.bf16.msra.mxu0 0
        %2818 = vmatprep.subr.bf16.mxu0 0
        %2819 = vmatpush1.bf16.msra.mxu0 0
        %2820 = vmatprep.subr.bf16.mxu0 0
        %2821 = vmatpush1.bf16.msra.mxu0 0
        %2822 = vmatprep.subr.bf16.mxu0 0
        %2823 = vmatpush1.bf16.msra.mxu0 0
        %2824 = vmatprep.subr.bf16.mxu0 0
        %2825 = vmatpush1.bf16.msra.mxu0 %v2810
        %2826 = vmatprep.subr.bf16.mxu0 0
        %2827 = vmatpush1.bf16.msra.mxu0 %v2794
        %2828 = vmatprep.subr.bf16.mxu0 0
        %2829 = vmatpush2.bf16.msra.mxu0 0
        %2830 = vmatprep.subr.bf16.mxu0 0
        %2831 = vmatpush2.bf16.msra.mxu0 0
        %2832 = vmatprep.subr.bf16.mxu0 0
        %2833 = vmatpush2.bf16.msra.mxu0 0
        %2834 = vmatprep.subr.bf16.mxu0 0
        %2835 = vmatpush2.bf16.msra.mxu0 0
        %2836 = vmatprep.subr.bf16.mxu0 0
        %2837 = vmatpush2.bf16.msra.mxu0 0
        %2838 = vmatprep.subr.bf16.mxu0 0
        %2839 = vmatpush2.bf16.msra.mxu0 0
        %2840 = vmatprep.subr.bf16.mxu0 0
        %2841 = vmatpush2.bf16.msra.mxu0 0
        %2842 = vmatprep.subr.bf16.mxu0 0
        %2843 = vmatpush2.bf16.msra.mxu0 0
        %2844 = vmatprep.mubr.bf16.mxu0 0
        %2845 = vmatmul.mubr.bf16.gmra.mxu0 %v2798
        %v2846 = vpop.f32.mrf.mxu0
        %v2847 = vadd.f32 0.0, %v2846
        %v2848 = vpop.f32.mrf.mxu0
        %v2849 = vpop.f32.mrf.mxu0
        %v2850 = vadd.f32 0.0, %v2849
        %v2851 = vpop.f32.mrf.mxu0
        %2852 = vmatprep.mubr.bf16.mxu0 0
        %2853 = vmatmul.mubr.bf16.gmra.mxu0 %v2801
        %v2854 = vpop.f32.mrf.mxu0
        %v2855 = vadd.f32 0.0, %v2854
        %v2856 = vpop.f32.mrf.mxu0
        %v2857 = vpop.f32.mrf.mxu0
        %v2858 = vadd.f32 0.0, %v2857
        %v2859 = vpop.f32.mrf.mxu0
        %2860 = vmatprep.mubr.bf16.mxu0 0
        %2861 = vmatmul.mubr.bf16.gmra.mxu0 %v2804
        %v2862 = vpop.f32.mrf.mxu0
        %v2863 = vadd.f32 0.0, %v2862
        %v2864 = vpop.f32.mrf.mxu0
        %v2865 = vpop.f32.mrf.mxu0
        %v2866 = vadd.f32 0.0, %v2865
        %v2867 = vpop.f32.mrf.mxu0
        %2868 = vmatprep.mubr.bf16.mxu0 0
        %2869 = vmatmul.mubr.bf16.gmra.mxu0 %v2807
        %v2870 = vpop.f32.mrf.mxu0
        %v2871 = vadd.f32 0.0, %v2870
        %v2872 = vpop.f32.mrf.mxu0
        %v2873 = vpop.f32.mrf.mxu0
        %v2874 = vadd.f32 0.0, %v2873
        %v2875 = vpop.f32.mrf.mxu0
        %2876 = vdwg.mxu0
        %v2877 = vadd.f32 %v2764, %v2847
        %v2878 = vadd.f32 %v2765, %v2850
        %v2879 = vadd.f32 %v2766, %v2855
        %v2880 = vadd.f32 %v2767, %v2858
        %v2881 = vadd.f32 %v2768, %v2863
        %v2882 = vadd.f32 %v2769, %v2866
        %v2883 = vadd.f32 %v2770, %v2871
        %v2884 = vadd.f32 %v2771, %v2874
        %v2885 = vld [vmem:[%s2658 + $0x1] sm:$0xff]
        %v2886 = vld [vmem:[%s2658 + $0x11] sm:$0xff]
        %v2887 = vld [vmem:[%s2658 + $0x21] sm:$0xff]
        %v2888 = vld [vmem:[%s2658 + $0x31] sm:$0xff]
        %v2889 = vld [vmem:[%s2658 + $0x41] sm:$0xff]
        %v2890 = vld [vmem:[%s2658 + $0x51] sm:$0xff]
        %v2891 = vld [vmem:[%s2658 + $0x61] sm:$0xff]
        %v2892 = vld [vmem:[%s2658 + $0x71] sm:$0xff]
        %v2893 = vpack.c.bf16 %v2886, %v2885
        %v2894 = vpack.c.bf16 %v2888, %v2887
        %v2895 = vpack.c.bf16 %v2890, %v2889
        %v2896 = vpack.c.bf16 %v2892, %v2891
        %s2897 = scalar_lea.vmem %s1, 288
        %v2898 = vld [vmem:[%s2897] sm:$0xf]
        %v2899 = vld [vmem:[%s2897 + $0x4] sm:$0xf]
        %v2900 = vld [vmem:[%s2897 + $0x8] sm:$0x7]
        %v2904 = vunpack.c.l.b16 %v2898
        %v2905 = vunpack.c.l.b16 %v2899
        %v2906 = vunpack.c.l.b16 %v2900
        %v2907 = vpack.c.b16 %v2905, %v2904
        %v2908 = vpack.c.b16 %v2906, %v2906
        %v2911 = vsel %vm222, %v2893, 0
        %v2914 = vsel %vm222, %v2894, 0
        %v2917 = vsel %vm222, %v2895, 0
        %v2920 = vsel %vm222, %v2896, 0
        %v2923 = vsel %vm235, %v2908, 0
        %2925 = vmatprep.subr.bf16.mxu0 0
        %2926 = vmatpush1.bf16.msra.mxu0 0
        %2927 = vmatprep.subr.bf16.mxu0 0
        %2928 = vmatpush1.bf16.msra.mxu0 0
        %2929 = vmatprep.subr.bf16.mxu0 0
        %2930 = vmatpush1.bf16.msra.mxu0 0
        %2931 = vmatprep.subr.bf16.mxu0 0
        %2932 = vmatpush1.bf16.msra.mxu0 0
        %2933 = vmatprep.subr.bf16.mxu0 0
        %2934 = vmatpush1.bf16.msra.mxu0 0
        %2935 = vmatprep.subr.bf16.mxu0 0
        %2936 = vmatpush1.bf16.msra.mxu0 0
        %2937 = vmatprep.subr.bf16.mxu0 0
        %2938 = vmatpush1.bf16.msra.mxu0 %v2923
        %2939 = vmatprep.subr.bf16.mxu0 0
        %2940 = vmatpush1.bf16.msra.mxu0 %v2907
        %2941 = vmatprep.subr.bf16.mxu0 0
        %2942 = vmatpush2.bf16.msra.mxu0 0
        %2943 = vmatprep.subr.bf16.mxu0 0
        %2944 = vmatpush2.bf16.msra.mxu0 0
        %2945 = vmatprep.subr.bf16.mxu0 0
        %2946 = vmatpush2.bf16.msra.mxu0 0
        %2947 = vmatprep.subr.bf16.mxu0 0
        %2948 = vmatpush2.bf16.msra.mxu0 0
        %2949 = vmatprep.subr.bf16.mxu0 0
        %2950 = vmatpush2.bf16.msra.mxu0 0
        %2951 = vmatprep.subr.bf16.mxu0 0
        %2952 = vmatpush2.bf16.msra.mxu0 0
        %2953 = vmatprep.subr.bf16.mxu0 0
        %2954 = vmatpush2.bf16.msra.mxu0 0
        %2955 = vmatprep.subr.bf16.mxu0 0
        %2956 = vmatpush2.bf16.msra.mxu0 0
        %2957 = vmatprep.mubr.bf16.mxu0 0
        %2958 = vmatmul.mubr.bf16.gmra.mxu0 %v2911
        %v2959 = vpop.f32.mrf.mxu0
        %v2960 = vadd.f32 0.0, %v2959
        %v2961 = vpop.f32.mrf.mxu0
        %v2962 = vpop.f32.mrf.mxu0
        %v2963 = vadd.f32 0.0, %v2962
        %v2964 = vpop.f32.mrf.mxu0
        %2965 = vmatprep.mubr.bf16.mxu0 0
        %2966 = vmatmul.mubr.bf16.gmra.mxu0 %v2914
        %v2967 = vpop.f32.mrf.mxu0
        %v2968 = vadd.f32 0.0, %v2967
        %v2969 = vpop.f32.mrf.mxu0
        %v2970 = vpop.f32.mrf.mxu0
        %v2971 = vadd.f32 0.0, %v2970
        %v2972 = vpop.f32.mrf.mxu0
        %2973 = vmatprep.mubr.bf16.mxu0 0
        %2974 = vmatmul.mubr.bf16.gmra.mxu0 %v2917
        %v2975 = vpop.f32.mrf.mxu0
        %v2976 = vadd.f32 0.0, %v2975
        %v2977 = vpop.f32.mrf.mxu0
        %v2978 = vpop.f32.mrf.mxu0
        %v2979 = vadd.f32 0.0, %v2978
        %v2980 = vpop.f32.mrf.mxu0
        %2981 = vmatprep.mubr.bf16.mxu0 0
        %2982 = vmatmul.mubr.bf16.gmra.mxu0 %v2920
        %v2983 = vpop.f32.mrf.mxu0
        %v2984 = vadd.f32 0.0, %v2983
        %v2985 = vpop.f32.mrf.mxu0
        %v2986 = vpop.f32.mrf.mxu0
        %v2987 = vadd.f32 0.0, %v2986
        %v2988 = vpop.f32.mrf.mxu0
        %2989 = vdwg.mxu0
        %v2990 = vadd.f32 %v2877, %v2960
        %v2991 = vadd.f32 %v2878, %v2963
        %v2992 = vadd.f32 %v2879, %v2968
        %v2993 = vadd.f32 %v2880, %v2971
        %v2994 = vadd.f32 %v2881, %v2976
        %v2995 = vadd.f32 %v2882, %v2979
        %v2996 = vadd.f32 %v2883, %v2984
        %v2997 = vadd.f32 %v2884, %v2987
        %v2998 = vld [vmem:[%s2544 + $0x2] sm:$0xff]
        %v2999 = vld [vmem:[%s2544 + $0x12] sm:$0xff]
        %v3000 = vld [vmem:[%s2544 + $0x22] sm:$0xff]
        %v3001 = vld [vmem:[%s2544 + $0x32] sm:$0xff]
        %v3002 = vld [vmem:[%s2544 + $0x42] sm:$0xff]
        %v3003 = vld [vmem:[%s2544 + $0x52] sm:$0xff]
        %v3004 = vld [vmem:[%s2544 + $0x62] sm:$0xff]
        %v3005 = vld [vmem:[%s2544 + $0x72] sm:$0xff]
        %v3006 = vpack.c.bf16 %v2999, %v2998
        %v3007 = vpack.c.bf16 %v3001, %v3000
        %v3008 = vpack.c.bf16 %v3003, %v3002
        %v3009 = vpack.c.bf16 %v3005, %v3004
        %s3010 = scalar_lea.vmem %s1, 300
        %v3011 = vld [vmem:[%s3010] sm:$0xf]
        %v3012 = vld [vmem:[%s3010 + $0x4] sm:$0xf]
        %v3013 = vld [vmem:[%s3010 + $0x8] sm:$0x7]
        %v3017 = vunpack.c.l.b16 %v3011
        %v3018 = vunpack.c.l.b16 %v3012
        %v3019 = vunpack.c.l.b16 %v3013
        %v3020 = vpack.c.b16 %v3018, %v3017
        %v3021 = vpack.c.b16 %v3019, %v3019
        %v3024 = vsel %vm222, %v3006, 0
        %v3027 = vsel %vm222, %v3007, 0
        %v3030 = vsel %vm222, %v3008, 0
        %v3033 = vsel %vm222, %v3009, 0
        %v3036 = vsel %vm235, %v3021, 0
        %3038 = vmatprep.subr.bf16.mxu0 0
        %3039 = vmatpush1.bf16.msra.mxu0 0
        %3040 = vmatprep.subr.bf16.mxu0 0
        %3041 = vmatpush1.bf16.msra.mxu0 0
        %3042 = vmatprep.subr.bf16.mxu0 0
        %3043 = vmatpush1.bf16.msra.mxu0 0
        %3044 = vmatprep.subr.bf16.mxu0 0
        %3045 = vmatpush1.bf16.msra.mxu0 0
        %3046 = vmatprep.subr.bf16.mxu0 0
        %3047 = vmatpush1.bf16.msra.mxu0 0
        %3048 = vmatprep.subr.bf16.mxu0 0
        %3049 = vmatpush1.bf16.msra.mxu0 0
        %3050 = vmatprep.subr.bf16.mxu0 0
        %3051 = vmatpush1.bf16.msra.mxu0 %v3036
        %3052 = vmatprep.subr.bf16.mxu0 0
        %3053 = vmatpush1.bf16.msra.mxu0 %v3020
        %3054 = vmatprep.subr.bf16.mxu0 0
        %3055 = vmatpush2.bf16.msra.mxu0 0
        %3056 = vmatprep.subr.bf16.mxu0 0
        %3057 = vmatpush2.bf16.msra.mxu0 0
        %3058 = vmatprep.subr.bf16.mxu0 0
        %3059 = vmatpush2.bf16.msra.mxu0 0
        %3060 = vmatprep.subr.bf16.mxu0 0
        %3061 = vmatpush2.bf16.msra.mxu0 0
        %3062 = vmatprep.subr.bf16.mxu0 0
        %3063 = vmatpush2.bf16.msra.mxu0 0
        %3064 = vmatprep.subr.bf16.mxu0 0
        %3065 = vmatpush2.bf16.msra.mxu0 0
        %3066 = vmatprep.subr.bf16.mxu0 0
        %3067 = vmatpush2.bf16.msra.mxu0 0
        %3068 = vmatprep.subr.bf16.mxu0 0
        %3069 = vmatpush2.bf16.msra.mxu0 0
        %3070 = vmatprep.mubr.bf16.mxu0 0
        %3071 = vmatmul.mubr.bf16.gmra.mxu0 %v3024
        %v3072 = vpop.f32.mrf.mxu0
        %v3073 = vadd.f32 0.0, %v3072
        %v3074 = vpop.f32.mrf.mxu0
        %v3075 = vpop.f32.mrf.mxu0
        %v3076 = vadd.f32 0.0, %v3075
        %v3077 = vpop.f32.mrf.mxu0
        %3078 = vmatprep.mubr.bf16.mxu0 0
        %3079 = vmatmul.mubr.bf16.gmra.mxu0 %v3027
        %v3080 = vpop.f32.mrf.mxu0
        %v3081 = vadd.f32 0.0, %v3080
        %v3082 = vpop.f32.mrf.mxu0
        %v3083 = vpop.f32.mrf.mxu0
        %v3084 = vadd.f32 0.0, %v3083
        %v3085 = vpop.f32.mrf.mxu0
        %3086 = vmatprep.mubr.bf16.mxu0 0
        %3087 = vmatmul.mubr.bf16.gmra.mxu0 %v3030
        %v3088 = vpop.f32.mrf.mxu0
        %v3089 = vadd.f32 0.0, %v3088
        %v3090 = vpop.f32.mrf.mxu0
        %v3091 = vpop.f32.mrf.mxu0
        %v3092 = vadd.f32 0.0, %v3091
        %v3093 = vpop.f32.mrf.mxu0
        %3094 = vmatprep.mubr.bf16.mxu0 0
        %3095 = vmatmul.mubr.bf16.gmra.mxu0 %v3033
        %v3096 = vpop.f32.mrf.mxu0
        %v3097 = vadd.f32 0.0, %v3096
        %v3098 = vpop.f32.mrf.mxu0
        %v3099 = vpop.f32.mrf.mxu0
        %v3100 = vadd.f32 0.0, %v3099
        %v3101 = vpop.f32.mrf.mxu0
        %3102 = vdwg.mxu0
        %v3103 = vadd.f32 %v2990, %v3073
        %v3104 = vadd.f32 %v2991, %v3076
        %v3105 = vadd.f32 %v2992, %v3081
        %v3106 = vadd.f32 %v2993, %v3084
        %v3107 = vadd.f32 %v2994, %v3089
        %v3108 = vadd.f32 %v2995, %v3092
        %v3109 = vadd.f32 %v2996, %v3097
        %v3110 = vadd.f32 %v2997, %v3100
        %v3111 = vld [vmem:[%s2658 + $0x2] sm:$0xff]
        %v3112 = vld [vmem:[%s2658 + $0x12] sm:$0xff]
        %v3113 = vld [vmem:[%s2658 + $0x22] sm:$0xff]
        %v3114 = vld [vmem:[%s2658 + $0x32] sm:$0xff]
        %v3115 = vld [vmem:[%s2658 + $0x42] sm:$0xff]
        %v3116 = vld [vmem:[%s2658 + $0x52] sm:$0xff]
        %v3117 = vld [vmem:[%s2658 + $0x62] sm:$0xff]
        %v3118 = vld [vmem:[%s2658 + $0x72] sm:$0xff]
        %v3119 = vpack.c.bf16 %v3112, %v3111
        %v3120 = vpack.c.bf16 %v3114, %v3113
        %v3121 = vpack.c.bf16 %v3116, %v3115
        %v3122 = vpack.c.bf16 %v3118, %v3117
        %s3123 = scalar_lea.vmem %s1, 312
        %v3124 = vld [vmem:[%s3123] sm:$0xf]
        %v3125 = vld [vmem:[%s3123 + $0x4] sm:$0xf]
        %v3126 = vld [vmem:[%s3123 + $0x8] sm:$0x7]
        %v3130 = vunpack.c.l.b16 %v3124
        %v3131 = vunpack.c.l.b16 %v3125
        %v3132 = vunpack.c.l.b16 %v3126
        %v3133 = vpack.c.b16 %v3131, %v3130
        %v3134 = vpack.c.b16 %v3132, %v3132
        %v3137 = vsel %vm222, %v3119, 0
        %v3140 = vsel %vm222, %v3120, 0
        %v3143 = vsel %vm222, %v3121, 0
        %v3146 = vsel %vm222, %v3122, 0
        %v3149 = vsel %vm235, %v3134, 0
        %3151 = vmatprep.subr.bf16.mxu0 0
        %3152 = vmatpush1.bf16.msra.mxu0 0
        %3153 = vmatprep.subr.bf16.mxu0 0
        %3154 = vmatpush1.bf16.msra.mxu0 0
        %3155 = vmatprep.subr.bf16.mxu0 0
        %3156 = vmatpush1.bf16.msra.mxu0 0
        %3157 = vmatprep.subr.bf16.mxu0 0
        %3158 = vmatpush1.bf16.msra.mxu0 0
        %3159 = vmatprep.subr.bf16.mxu0 0
        %3160 = vmatpush1.bf16.msra.mxu0 0
        %3161 = vmatprep.subr.bf16.mxu0 0
        %3162 = vmatpush1.bf16.msra.mxu0 0
        %3163 = vmatprep.subr.bf16.mxu0 0
        %3164 = vmatpush1.bf16.msra.mxu0 %v3149
        %3165 = vmatprep.subr.bf16.mxu0 0
        %3166 = vmatpush1.bf16.msra.mxu0 %v3133
        %3167 = vmatprep.subr.bf16.mxu0 0
        %3168 = vmatpush2.bf16.msra.mxu0 0
        %3169 = vmatprep.subr.bf16.mxu0 0
        %3170 = vmatpush2.bf16.msra.mxu0 0
        %3171 = vmatprep.subr.bf16.mxu0 0
        %3172 = vmatpush2.bf16.msra.mxu0 0
        %3173 = vmatprep.subr.bf16.mxu0 0
        %3174 = vmatpush2.bf16.msra.mxu0 0
        %3175 = vmatprep.subr.bf16.mxu0 0
        %3176 = vmatpush2.bf16.msra.mxu0 0
        %3177 = vmatprep.subr.bf16.mxu0 0
        %3178 = vmatpush2.bf16.msra.mxu0 0
        %3179 = vmatprep.subr.bf16.mxu0 0
        %3180 = vmatpush2.bf16.msra.mxu0 0
        %3181 = vmatprep.subr.bf16.mxu0 0
        %3182 = vmatpush2.bf16.msra.mxu0 0
        %3183 = vmatprep.mubr.bf16.mxu0 0
        %3184 = vmatmul.mubr.bf16.gmra.mxu0 %v3137
        %v3185 = vpop.f32.mrf.mxu0
        %v3186 = vadd.f32 0.0, %v3185
        %v3187 = vpop.f32.mrf.mxu0
        %v3188 = vpop.f32.mrf.mxu0
        %v3189 = vadd.f32 0.0, %v3188
        %v3190 = vpop.f32.mrf.mxu0
        %3191 = vmatprep.mubr.bf16.mxu0 0
        %3192 = vmatmul.mubr.bf16.gmra.mxu0 %v3140
        %v3193 = vpop.f32.mrf.mxu0
        %v3194 = vadd.f32 0.0, %v3193
        %v3195 = vpop.f32.mrf.mxu0
        %v3196 = vpop.f32.mrf.mxu0
        %v3197 = vadd.f32 0.0, %v3196
        %v3198 = vpop.f32.mrf.mxu0
        %3199 = vmatprep.mubr.bf16.mxu0 0
        %3200 = vmatmul.mubr.bf16.gmra.mxu0 %v3143
        %v3201 = vpop.f32.mrf.mxu0
        %v3202 = vadd.f32 0.0, %v3201
        %v3203 = vpop.f32.mrf.mxu0
        %v3204 = vpop.f32.mrf.mxu0
        %v3205 = vadd.f32 0.0, %v3204
        %v3206 = vpop.f32.mrf.mxu0
        %3207 = vmatprep.mubr.bf16.mxu0 0
        %3208 = vmatmul.mubr.bf16.gmra.mxu0 %v3146
        %v3209 = vpop.f32.mrf.mxu0
        %v3210 = vadd.f32 0.0, %v3209
        %v3211 = vpop.f32.mrf.mxu0
        %v3212 = vpop.f32.mrf.mxu0
        %v3213 = vadd.f32 0.0, %v3212
        %v3214 = vpop.f32.mrf.mxu0
        %3215 = vdwg.mxu0
        %v3216 = vadd.f32 %v3103, %v3186
        %v3217 = vadd.f32 %v3104, %v3189
        %v3218 = vadd.f32 %v3105, %v3194
        %v3219 = vadd.f32 %v3106, %v3197
        %v3220 = vadd.f32 %v3107, %v3202
        %v3221 = vadd.f32 %v3108, %v3205
        %v3222 = vadd.f32 %v3109, %v3210
        %v3223 = vadd.f32 %v3110, %v3213
        %v3224 = vld [vmem:[%s2544 + $0x3] sm:$0xff]
        %v3225 = vld [vmem:[%s2544 + $0x13] sm:$0xff]
        %v3226 = vld [vmem:[%s2544 + $0x23] sm:$0xff]
        %v3227 = vld [vmem:[%s2544 + $0x33] sm:$0xff]
        %v3228 = vld [vmem:[%s2544 + $0x43] sm:$0xff]
        %v3229 = vld [vmem:[%s2544 + $0x53] sm:$0xff]
        %v3230 = vld [vmem:[%s2544 + $0x63] sm:$0xff]
        %v3231 = vld [vmem:[%s2544 + $0x73] sm:$0xff]
        %v3232 = vpack.c.bf16 %v3225, %v3224
        %v3233 = vpack.c.bf16 %v3227, %v3226
        %v3234 = vpack.c.bf16 %v3229, %v3228
        %v3235 = vpack.c.bf16 %v3231, %v3230
        %s3236 = scalar_lea.vmem %s1, 324
        %v3237 = vld [vmem:[%s3236] sm:$0xf]
        %v3238 = vld [vmem:[%s3236 + $0x4] sm:$0xf]
        %v3239 = vld [vmem:[%s3236 + $0x8] sm:$0x7]
        %v3243 = vunpack.c.l.b16 %v3237
        %v3244 = vunpack.c.l.b16 %v3238
        %v3245 = vunpack.c.l.b16 %v3239
        %v3246 = vpack.c.b16 %v3244, %v3243
        %v3247 = vpack.c.b16 %v3245, %v3245
        %v3250 = vsel %vm222, %v3232, 0
        %v3253 = vsel %vm222, %v3233, 0
        %v3256 = vsel %vm222, %v3234, 0
        %v3259 = vsel %vm222, %v3235, 0
        %v3262 = vsel %vm235, %v3247, 0
        %3264 = vmatprep.subr.bf16.mxu0 0
        %3265 = vmatpush1.bf16.msra.mxu0 0
        %3266 = vmatprep.subr.bf16.mxu0 0
        %3267 = vmatpush1.bf16.msra.mxu0 0
        %3268 = vmatprep.subr.bf16.mxu0 0
        %3269 = vmatpush1.bf16.msra.mxu0 0
        %3270 = vmatprep.subr.bf16.mxu0 0
        %3271 = vmatpush1.bf16.msra.mxu0 0
        %3272 = vmatprep.subr.bf16.mxu0 0
        %3273 = vmatpush1.bf16.msra.mxu0 0
        %3274 = vmatprep.subr.bf16.mxu0 0
        %3275 = vmatpush1.bf16.msra.mxu0 0
        %3276 = vmatprep.subr.bf16.mxu0 0
        %3277 = vmatpush1.bf16.msra.mxu0 %v3262
        %3278 = vmatprep.subr.bf16.mxu0 0
        %3279 = vmatpush1.bf16.msra.mxu0 %v3246
        %3280 = vmatprep.subr.bf16.mxu0 0
        %3281 = vmatpush2.bf16.msra.mxu0 0
        %3282 = vmatprep.subr.bf16.mxu0 0
        %3283 = vmatpush2.bf16.msra.mxu0 0
        %3284 = vmatprep.subr.bf16.mxu0 0
        %3285 = vmatpush2.bf16.msra.mxu0 0
        %3286 = vmatprep.subr.bf16.mxu0 0
        %3287 = vmatpush2.bf16.msra.mxu0 0
        %3288 = vmatprep.subr.bf16.mxu0 0
        %3289 = vmatpush2.bf16.msra.mxu0 0
        %3290 = vmatprep.subr.bf16.mxu0 0
        %3291 = vmatpush2.bf16.msra.mxu0 0
        %3292 = vmatprep.subr.bf16.mxu0 0
        %3293 = vmatpush2.bf16.msra.mxu0 0
        %3294 = vmatprep.subr.bf16.mxu0 0
        %3295 = vmatpush2.bf16.msra.mxu0 0
        %3296 = vmatprep.mubr.bf16.mxu0 0
        %3297 = vmatmul.mubr.bf16.gmra.mxu0 %v3250
        %v3298 = vpop.f32.mrf.mxu0
        %v3299 = vadd.f32 0.0, %v3298
        %v3300 = vpop.f32.mrf.mxu0
        %v3301 = vpop.f32.mrf.mxu0
        %v3302 = vadd.f32 0.0, %v3301
        %v3303 = vpop.f32.mrf.mxu0
        %3304 = vmatprep.mubr.bf16.mxu0 0
        %3305 = vmatmul.mubr.bf16.gmra.mxu0 %v3253
        %v3306 = vpop.f32.mrf.mxu0
        %v3307 = vadd.f32 0.0, %v3306
        %v3308 = vpop.f32.mrf.mxu0
        %v3309 = vpop.f32.mrf.mxu0
        %v3310 = vadd.f32 0.0, %v3309
        %v3311 = vpop.f32.mrf.mxu0
        %3312 = vmatprep.mubr.bf16.mxu0 0
        %3313 = vmatmul.mubr.bf16.gmra.mxu0 %v3256
        %v3314 = vpop.f32.mrf.mxu0
        %v3315 = vadd.f32 0.0, %v3314
        %v3316 = vpop.f32.mrf.mxu0
        %v3317 = vpop.f32.mrf.mxu0
        %v3318 = vadd.f32 0.0, %v3317
        %v3319 = vpop.f32.mrf.mxu0
        %3320 = vmatprep.mubr.bf16.mxu0 0
        %3321 = vmatmul.mubr.bf16.gmra.mxu0 %v3259
        %v3322 = vpop.f32.mrf.mxu0
        %v3323 = vadd.f32 0.0, %v3322
        %v3324 = vpop.f32.mrf.mxu0
        %v3325 = vpop.f32.mrf.mxu0
        %v3326 = vadd.f32 0.0, %v3325
        %v3327 = vpop.f32.mrf.mxu0
        %3328 = vdwg.mxu0
        %v3329 = vadd.f32 %v3216, %v3299
        %v3330 = vadd.f32 %v3217, %v3302
        %v3331 = vadd.f32 %v3218, %v3307
        %v3332 = vadd.f32 %v3219, %v3310
        %v3333 = vadd.f32 %v3220, %v3315
        %v3334 = vadd.f32 %v3221, %v3318
        %v3335 = vadd.f32 %v3222, %v3323
        %v3336 = vadd.f32 %v3223, %v3326
        %s3337 = scalar_lea.vmem %s179, 32
        %v3338 = vld [vmem:[%s3337] sm:$0xff]
        %v3339 = vld [vmem:[%s3337 + $0x10] sm:$0xff]
        %v3340 = vld [vmem:[%s3337 + $0x20] sm:$0xff]
        %v3341 = vld [vmem:[%s3337 + $0x30] sm:$0xff]
        %v3342 = vld [vmem:[%s3337 + $0x40] sm:$0xff]
        %v3343 = vld [vmem:[%s3337 + $0x50] sm:$0xff]
        %v3344 = vld [vmem:[%s3337 + $0x60] sm:$0xff]
        %v3345 = vld [vmem:[%s3337 + $0x70] sm:$0xff]
        %v3346 = vpack.c.bf16 %v3339, %v3338
        %v3347 = vpack.c.bf16 %v3341, %v3340
        %v3348 = vpack.c.bf16 %v3343, %v3342
        %v3349 = vpack.c.bf16 %v3345, %v3344
        %s3350 = scalar_lea.vmem %s1, 336
        %v3351 = vld [vmem:[%s3350] sm:$0xf]
        %v3352 = vld [vmem:[%s3350 + $0x4] sm:$0xf]
        %v3353 = vld [vmem:[%s3350 + $0x8] sm:$0x7]
        %v3357 = vunpack.c.l.b16 %v3351
        %v3358 = vunpack.c.l.b16 %v3352
        %v3359 = vunpack.c.l.b16 %v3353
        %v3360 = vpack.c.b16 %v3358, %v3357
        %v3361 = vpack.c.b16 %v3359, %v3359
        %v3364 = vsel %vm222, %v3346, 0
        %v3367 = vsel %vm222, %v3347, 0
        %v3370 = vsel %vm222, %v3348, 0
        %v3373 = vsel %vm222, %v3349, 0
        %v3376 = vsel %vm235, %v3361, 0
        %3378 = vmatprep.subr.bf16.mxu0 0
        %3379 = vmatpush1.bf16.msra.mxu0 0
        %3380 = vmatprep.subr.bf16.mxu0 0
        %3381 = vmatpush1.bf16.msra.mxu0 0
        %3382 = vmatprep.subr.bf16.mxu0 0
        %3383 = vmatpush1.bf16.msra.mxu0 0
        %3384 = vmatprep.subr.bf16.mxu0 0
        %3385 = vmatpush1.bf16.msra.mxu0 0
        %3386 = vmatprep.subr.bf16.mxu0 0
        %3387 = vmatpush1.bf16.msra.mxu0 0
        %3388 = vmatprep.subr.bf16.mxu0 0
        %3389 = vmatpush1.bf16.msra.mxu0 0
        %3390 = vmatprep.subr.bf16.mxu0 0
        %3391 = vmatpush1.bf16.msra.mxu0 %v3376
        %3392 = vmatprep.subr.bf16.mxu0 0
        %3393 = vmatpush1.bf16.msra.mxu0 %v3360
        %3394 = vmatprep.subr.bf16.mxu0 0
        %3395 = vmatpush2.bf16.msra.mxu0 0
        %3396 = vmatprep.subr.bf16.mxu0 0
        %3397 = vmatpush2.bf16.msra.mxu0 0
        %3398 = vmatprep.subr.bf16.mxu0 0
        %3399 = vmatpush2.bf16.msra.mxu0 0
        %3400 = vmatprep.subr.bf16.mxu0 0
        %3401 = vmatpush2.bf16.msra.mxu0 0
        %3402 = vmatprep.subr.bf16.mxu0 0
        %3403 = vmatpush2.bf16.msra.mxu0 0
        %3404 = vmatprep.subr.bf16.mxu0 0
        %3405 = vmatpush2.bf16.msra.mxu0 0
        %3406 = vmatprep.subr.bf16.mxu0 0
        %3407 = vmatpush2.bf16.msra.mxu0 0
        %3408 = vmatprep.subr.bf16.mxu0 0
        %3409 = vmatpush2.bf16.msra.mxu0 0
        %3410 = vmatprep.mubr.bf16.mxu0 0
        %3411 = vmatmul.mubr.bf16.gmra.mxu0 %v3364
        %v3412 = vpop.f32.mrf.mxu0
        %v3413 = vadd.f32 0.0, %v3412
        %v3414 = vpop.f32.mrf.mxu0
        %v3415 = vpop.f32.mrf.mxu0
        %v3416 = vadd.f32 0.0, %v3415
        %v3417 = vpop.f32.mrf.mxu0
        %3418 = vmatprep.mubr.bf16.mxu0 0
        %3419 = vmatmul.mubr.bf16.gmra.mxu0 %v3367
        %v3420 = vpop.f32.mrf.mxu0
        %v3421 = vadd.f32 0.0, %v3420
        %v3422 = vpop.f32.mrf.mxu0
        %v3423 = vpop.f32.mrf.mxu0
        %v3424 = vadd.f32 0.0, %v3423
        %v3425 = vpop.f32.mrf.mxu0
        %3426 = vmatprep.mubr.bf16.mxu0 0
        %3427 = vmatmul.mubr.bf16.gmra.mxu0 %v3370
        %v3428 = vpop.f32.mrf.mxu0
        %v3429 = vadd.f32 0.0, %v3428
        %v3430 = vpop.f32.mrf.mxu0
        %v3431 = vpop.f32.mrf.mxu0
        %v3432 = vadd.f32 0.0, %v3431
        %v3433 = vpop.f32.mrf.mxu0
        %3434 = vmatprep.mubr.bf16.mxu0 0
        %3435 = vmatmul.mubr.bf16.gmra.mxu0 %v3373
        %v3436 = vpop.f32.mrf.mxu0
        %v3437 = vadd.f32 0.0, %v3436
        %v3438 = vpop.f32.mrf.mxu0
        %v3439 = vpop.f32.mrf.mxu0
        %v3440 = vadd.f32 0.0, %v3439
        %v3441 = vpop.f32.mrf.mxu0
        %3442 = vdwg.mxu0
        %v3443 = vadd.f32 %v3329, %v3413
        %v3444 = vadd.f32 %v3330, %v3416
        %v3445 = vadd.f32 %v3331, %v3421
        %v3446 = vadd.f32 %v3332, %v3424
        %v3447 = vadd.f32 %v3333, %v3429
        %v3448 = vadd.f32 %v3334, %v3432
        %v3449 = vadd.f32 %v3335, %v3437
        %v3450 = vadd.f32 %v3336, %v3440
        %s3451 = scalar_lea.vmem %s179, 208
        %v3452 = vld [vmem:[%s3451] sm:$0xff]
        %v3453 = vld [vmem:[%s3451 + $0x10] sm:$0xff]
        %v3454 = vld [vmem:[%s3451 + $0x20] sm:$0xff]
        %v3455 = vld [vmem:[%s3451 + $0x30] sm:$0xff]
        %v3456 = vld [vmem:[%s3451 + $0x40] sm:$0xff]
        %v3457 = vld [vmem:[%s3451 + $0x50] sm:$0xff]
        %v3458 = vld [vmem:[%s3451 + $0x60] sm:$0xff]
        %v3459 = vld [vmem:[%s3451 + $0x70] sm:$0xff]
        %v3460 = vpack.c.bf16 %v3453, %v3452
        %v3461 = vpack.c.bf16 %v3455, %v3454
        %v3462 = vpack.c.bf16 %v3457, %v3456
        %v3463 = vpack.c.bf16 %v3459, %v3458
        %s3464 = scalar_lea.vmem %s1, 348
        %v3465 = vld [vmem:[%s3464] sm:$0xf]
        %v3466 = vld [vmem:[%s3464 + $0x4] sm:$0xf]
        %v3467 = vld [vmem:[%s3464 + $0x8] sm:$0x7]
        %v3471 = vunpack.c.l.b16 %v3465
        %v3472 = vunpack.c.l.b16 %v3466
        %v3473 = vunpack.c.l.b16 %v3467
        %v3474 = vpack.c.b16 %v3472, %v3471
        %v3475 = vpack.c.b16 %v3473, %v3473
        %v3478 = vsel %vm222, %v3460, 0
        %v3481 = vsel %vm222, %v3461, 0
        %v3484 = vsel %vm222, %v3462, 0
        %v3487 = vsel %vm222, %v3463, 0
        %v3490 = vsel %vm235, %v3475, 0
        %3492 = vmatprep.subr.bf16.mxu0 0
        %3493 = vmatpush1.bf16.msra.mxu0 0
        %3494 = vmatprep.subr.bf16.mxu0 0
        %3495 = vmatpush1.bf16.msra.mxu0 0
        %3496 = vmatprep.subr.bf16.mxu0 0
        %3497 = vmatpush1.bf16.msra.mxu0 0
        %3498 = vmatprep.subr.bf16.mxu0 0
        %3499 = vmatpush1.bf16.msra.mxu0 0
        %3500 = vmatprep.subr.bf16.mxu0 0
        %3501 = vmatpush1.bf16.msra.mxu0 0
        %3502 = vmatprep.subr.bf16.mxu0 0
        %3503 = vmatpush1.bf16.msra.mxu0 0
        %3504 = vmatprep.subr.bf16.mxu0 0
        %3505 = vmatpush1.bf16.msra.mxu0 %v3490
        %3506 = vmatprep.subr.bf16.mxu0 0
        %3507 = vmatpush1.bf16.msra.mxu0 %v3474
        %3508 = vmatprep.subr.bf16.mxu0 0
        %3509 = vmatpush2.bf16.msra.mxu0 0
        %3510 = vmatprep.subr.bf16.mxu0 0
        %3511 = vmatpush2.bf16.msra.mxu0 0
        %3512 = vmatprep.subr.bf16.mxu0 0
        %3513 = vmatpush2.bf16.msra.mxu0 0
        %3514 = vmatprep.subr.bf16.mxu0 0
        %3515 = vmatpush2.bf16.msra.mxu0 0
        %3516 = vmatprep.subr.bf16.mxu0 0
        %3517 = vmatpush2.bf16.msra.mxu0 0
        %3518 = vmatprep.subr.bf16.mxu0 0
        %3519 = vmatpush2.bf16.msra.mxu0 0
        %3520 = vmatprep.subr.bf16.mxu0 0
        %3521 = vmatpush2.bf16.msra.mxu0 0
        %3522 = vmatprep.subr.bf16.mxu0 0
        %3523 = vmatpush2.bf16.msra.mxu0 0
        %3524 = vmatprep.mubr.bf16.mxu0 0
        %3525 = vmatmul.mubr.bf16.gmra.mxu0 %v3478
        %v3526 = vpop.f32.mrf.mxu0
        %v3527 = vadd.f32 0.0, %v3526
        %v3528 = vpop.f32.mrf.mxu0
        %v3529 = vpop.f32.mrf.mxu0
        %v3530 = vadd.f32 0.0, %v3529
        %v3531 = vpop.f32.mrf.mxu0
        %3532 = vmatprep.mubr.bf16.mxu0 0
        %3533 = vmatmul.mubr.bf16.gmra.mxu0 %v3481
        %v3534 = vpop.f32.mrf.mxu0
        %v3535 = vadd.f32 0.0, %v3534
        %v3536 = vpop.f32.mrf.mxu0
        %v3537 = vpop.f32.mrf.mxu0
        %v3538 = vadd.f32 0.0, %v3537
        %v3539 = vpop.f32.mrf.mxu0
        %3540 = vmatprep.mubr.bf16.mxu0 0
        %3541 = vmatmul.mubr.bf16.gmra.mxu0 %v3484
        %v3542 = vpop.f32.mrf.mxu0
        %v3543 = vadd.f32 0.0, %v3542
        %v3544 = vpop.f32.mrf.mxu0
        %v3545 = vpop.f32.mrf.mxu0
        %v3546 = vadd.f32 0.0, %v3545
        %v3547 = vpop.f32.mrf.mxu0
        %3548 = vmatprep.mubr.bf16.mxu0 0
        %3549 = vmatmul.mubr.bf16.gmra.mxu0 %v3487
        %v3550 = vpop.f32.mrf.mxu0
        %v3551 = vadd.f32 0.0, %v3550
        %v3552 = vpop.f32.mrf.mxu0
        %v3553 = vpop.f32.mrf.mxu0
        %v3554 = vadd.f32 0.0, %v3553
        %v3555 = vpop.f32.mrf.mxu0
        %3556 = vdwg.mxu0
        %v3557 = vadd.f32 %v3443, %v3527
        %v3558 = vadd.f32 %v3444, %v3530
        %v3559 = vadd.f32 %v3445, %v3535
        %v3560 = vadd.f32 %v3446, %v3538
        %v3561 = vadd.f32 %v3447, %v3543
        %v3562 = vadd.f32 %v3448, %v3546
        %v3563 = vadd.f32 %v3449, %v3551
        %v3564 = vadd.f32 %v3450, %v3554
        %v3565 = vld [vmem:[%s3337 + $0x1] sm:$0xff]
        %v3566 = vld [vmem:[%s3337 + $0x11] sm:$0xff]
        %v3567 = vld [vmem:[%s3337 + $0x21] sm:$0xff]
        %v3568 = vld [vmem:[%s3337 + $0x31] sm:$0xff]
        %v3569 = vld [vmem:[%s3337 + $0x41] sm:$0xff]
        %v3570 = vld [vmem:[%s3337 + $0x51] sm:$0xff]
        %v3571 = vld [vmem:[%s3337 + $0x61] sm:$0xff]
        %v3572 = vld [vmem:[%s3337 + $0x71] sm:$0xff]
        %v3573 = vpack.c.bf16 %v3566, %v3565
        %v3574 = vpack.c.bf16 %v3568, %v3567
        %v3575 = vpack.c.bf16 %v3570, %v3569
        %v3576 = vpack.c.bf16 %v3572, %v3571
        %s3577 = scalar_lea.vmem %s1, 360
        %v3578 = vld [vmem:[%s3577] sm:$0xf]
        %v3579 = vld [vmem:[%s3577 + $0x4] sm:$0xf]
        %v3580 = vld [vmem:[%s3577 + $0x8] sm:$0x7]
        %v3584 = vunpack.c.l.b16 %v3578
        %v3585 = vunpack.c.l.b16 %v3579
        %v3586 = vunpack.c.l.b16 %v3580
        %v3587 = vpack.c.b16 %v3585, %v3584
        %v3588 = vpack.c.b16 %v3586, %v3586
        %v3591 = vsel %vm222, %v3573, 0
        %v3594 = vsel %vm222, %v3574, 0
        %v3597 = vsel %vm222, %v3575, 0
        %v3600 = vsel %vm222, %v3576, 0
        %v3603 = vsel %vm235, %v3588, 0
        %3605 = vmatprep.subr.bf16.mxu0 0
        %3606 = vmatpush1.bf16.msra.mxu0 0
        %3607 = vmatprep.subr.bf16.mxu0 0
        %3608 = vmatpush1.bf16.msra.mxu0 0
        %3609 = vmatprep.subr.bf16.mxu0 0
        %3610 = vmatpush1.bf16.msra.mxu0 0
        %3611 = vmatprep.subr.bf16.mxu0 0
        %3612 = vmatpush1.bf16.msra.mxu0 0
        %3613 = vmatprep.subr.bf16.mxu0 0
        %3614 = vmatpush1.bf16.msra.mxu0 0
        %3615 = vmatprep.subr.bf16.mxu0 0
        %3616 = vmatpush1.bf16.msra.mxu0 0
        %3617 = vmatprep.subr.bf16.mxu0 0
        %3618 = vmatpush1.bf16.msra.mxu0 %v3603
        %3619 = vmatprep.subr.bf16.mxu0 0
        %3620 = vmatpush1.bf16.msra.mxu0 %v3587
        %3621 = vmatprep.subr.bf16.mxu0 0
        %3622 = vmatpush2.bf16.msra.mxu0 0
        %3623 = vmatprep.subr.bf16.mxu0 0
        %3624 = vmatpush2.bf16.msra.mxu0 0
        %3625 = vmatprep.subr.bf16.mxu0 0
        %3626 = vmatpush2.bf16.msra.mxu0 0
        %3627 = vmatprep.subr.bf16.mxu0 0
        %3628 = vmatpush2.bf16.msra.mxu0 0
        %3629 = vmatprep.subr.bf16.mxu0 0
        %3630 = vmatpush2.bf16.msra.mxu0 0
        %3631 = vmatprep.subr.bf16.mxu0 0
        %3632 = vmatpush2.bf16.msra.mxu0 0
        %3633 = vmatprep.subr.bf16.mxu0 0
        %3634 = vmatpush2.bf16.msra.mxu0 0
        %3635 = vmatprep.subr.bf16.mxu0 0
        %3636 = vmatpush2.bf16.msra.mxu0 0
        %3637 = vmatprep.mubr.bf16.mxu0 0
        %3638 = vmatmul.mubr.bf16.gmra.mxu0 %v3591
        %v3639 = vpop.f32.mrf.mxu0
        %v3640 = vadd.f32 0.0, %v3639
        %v3641 = vpop.f32.mrf.mxu0
        %v3642 = vpop.f32.mrf.mxu0
        %v3643 = vadd.f32 0.0, %v3642
        %v3644 = vpop.f32.mrf.mxu0
        %3645 = vmatprep.mubr.bf16.mxu0 0
        %3646 = vmatmul.mubr.bf16.gmra.mxu0 %v3594
        %v3647 = vpop.f32.mrf.mxu0
        %v3648 = vadd.f32 0.0, %v3647
        %v3649 = vpop.f32.mrf.mxu0
        %v3650 = vpop.f32.mrf.mxu0
        %v3651 = vadd.f32 0.0, %v3650
        %v3652 = vpop.f32.mrf.mxu0
        %3653 = vmatprep.mubr.bf16.mxu0 0
        %3654 = vmatmul.mubr.bf16.gmra.mxu0 %v3597
        %v3655 = vpop.f32.mrf.mxu0
        %v3656 = vadd.f32 0.0, %v3655
        %v3657 = vpop.f32.mrf.mxu0
        %v3658 = vpop.f32.mrf.mxu0
        %v3659 = vadd.f32 0.0, %v3658
        %v3660 = vpop.f32.mrf.mxu0
        %3661 = vmatprep.mubr.bf16.mxu0 0
        %3662 = vmatmul.mubr.bf16.gmra.mxu0 %v3600
        %v3663 = vpop.f32.mrf.mxu0
        %v3664 = vadd.f32 0.0, %v3663
        %v3665 = vpop.f32.mrf.mxu0
        %v3666 = vpop.f32.mrf.mxu0
        %v3667 = vadd.f32 0.0, %v3666
        %v3668 = vpop.f32.mrf.mxu0
        %3669 = vdwg.mxu0
        %v3670 = vadd.f32 %v3557, %v3640
        %v3671 = vadd.f32 %v3558, %v3643
        %v3672 = vadd.f32 %v3559, %v3648
        %v3673 = vadd.f32 %v3560, %v3651
        %v3674 = vadd.f32 %v3561, %v3656
        %v3675 = vadd.f32 %v3562, %v3659
        %v3676 = vadd.f32 %v3563, %v3664
        %v3677 = vadd.f32 %v3564, %v3667
        %v3678 = vld [vmem:[%s3451 + $0x1] sm:$0xff]
        %v3679 = vld [vmem:[%s3451 + $0x11] sm:$0xff]
        %v3680 = vld [vmem:[%s3451 + $0x21] sm:$0xff]
        %v3681 = vld [vmem:[%s3451 + $0x31] sm:$0xff]
        %v3682 = vld [vmem:[%s3451 + $0x41] sm:$0xff]
        %v3683 = vld [vmem:[%s3451 + $0x51] sm:$0xff]
        %v3684 = vld [vmem:[%s3451 + $0x61] sm:$0xff]
        %v3685 = vld [vmem:[%s3451 + $0x71] sm:$0xff]
        %v3686 = vpack.c.bf16 %v3679, %v3678
        %v3687 = vpack.c.bf16 %v3681, %v3680
        %v3688 = vpack.c.bf16 %v3683, %v3682
        %v3689 = vpack.c.bf16 %v3685, %v3684
        %s3690 = scalar_lea.vmem %s1, 372
        %v3691 = vld [vmem:[%s3690] sm:$0xf]
        %v3692 = vld [vmem:[%s3690 + $0x4] sm:$0xf]
        %v3693 = vld [vmem:[%s3690 + $0x8] sm:$0x7]
        %v3697 = vunpack.c.l.b16 %v3691
        %v3698 = vunpack.c.l.b16 %v3692
        %v3699 = vunpack.c.l.b16 %v3693
        %v3700 = vpack.c.b16 %v3698, %v3697
        %v3701 = vpack.c.b16 %v3699, %v3699
        %v3704 = vsel %vm222, %v3686, 0
        %v3707 = vsel %vm222, %v3687, 0
        %v3710 = vsel %vm222, %v3688, 0
        %v3713 = vsel %vm222, %v3689, 0
        %v3716 = vsel %vm235, %v3701, 0
        %3718 = vmatprep.subr.bf16.mxu0 0
        %3719 = vmatpush1.bf16.msra.mxu0 0
        %3720 = vmatprep.subr.bf16.mxu0 0
        %3721 = vmatpush1.bf16.msra.mxu0 0
        %3722 = vmatprep.subr.bf16.mxu0 0
        %3723 = vmatpush1.bf16.msra.mxu0 0
        %3724 = vmatprep.subr.bf16.mxu0 0
        %3725 = vmatpush1.bf16.msra.mxu0 0
        %3726 = vmatprep.subr.bf16.mxu0 0
        %3727 = vmatpush1.bf16.msra.mxu0 0
        %3728 = vmatprep.subr.bf16.mxu0 0
        %3729 = vmatpush1.bf16.msra.mxu0 0
        %3730 = vmatprep.subr.bf16.mxu0 0
        %3731 = vmatpush1.bf16.msra.mxu0 %v3716
        %3732 = vmatprep.subr.bf16.mxu0 0
        %3733 = vmatpush1.bf16.msra.mxu0 %v3700
        %3734 = vmatprep.subr.bf16.mxu0 0
        %3735 = vmatpush2.bf16.msra.mxu0 0
        %3736 = vmatprep.subr.bf16.mxu0 0
        %3737 = vmatpush2.bf16.msra.mxu0 0
        %3738 = vmatprep.subr.bf16.mxu0 0
        %3739 = vmatpush2.bf16.msra.mxu0 0
        %3740 = vmatprep.subr.bf16.mxu0 0
        %3741 = vmatpush2.bf16.msra.mxu0 0
        %3742 = vmatprep.subr.bf16.mxu0 0
        %3743 = vmatpush2.bf16.msra.mxu0 0
        %3744 = vmatprep.subr.bf16.mxu0 0
        %3745 = vmatpush2.bf16.msra.mxu0 0
        %3746 = vmatprep.subr.bf16.mxu0 0
        %3747 = vmatpush2.bf16.msra.mxu0 0
        %3748 = vmatprep.subr.bf16.mxu0 0
        %3749 = vmatpush2.bf16.msra.mxu0 0
        %3750 = vmatprep.mubr.bf16.mxu0 0
        %3751 = vmatmul.mubr.bf16.gmra.mxu0 %v3704
        %v3752 = vpop.f32.mrf.mxu0
        %v3753 = vadd.f32 0.0, %v3752
        %v3754 = vpop.f32.mrf.mxu0
        %v3755 = vpop.f32.mrf.mxu0
        %v3756 = vadd.f32 0.0, %v3755
        %v3757 = vpop.f32.mrf.mxu0
        %3758 = vmatprep.mubr.bf16.mxu0 0
        %3759 = vmatmul.mubr.bf16.gmra.mxu0 %v3707
        %v3760 = vpop.f32.mrf.mxu0
        %v3761 = vadd.f32 0.0, %v3760
        %v3762 = vpop.f32.mrf.mxu0
        %v3763 = vpop.f32.mrf.mxu0
        %v3764 = vadd.f32 0.0, %v3763
        %v3765 = vpop.f32.mrf.mxu0
        %3766 = vmatprep.mubr.bf16.mxu0 0
        %3767 = vmatmul.mubr.bf16.gmra.mxu0 %v3710
        %v3768 = vpop.f32.mrf.mxu0
        %v3769 = vadd.f32 0.0, %v3768
        %v3770 = vpop.f32.mrf.mxu0
        %v3771 = vpop.f32.mrf.mxu0
        %v3772 = vadd.f32 0.0, %v3771
        %v3773 = vpop.f32.mrf.mxu0
        %3774 = vmatprep.mubr.bf16.mxu0 0
        %3775 = vmatmul.mubr.bf16.gmra.mxu0 %v3713
        %v3776 = vpop.f32.mrf.mxu0
        %v3777 = vadd.f32 0.0, %v3776
        %v3778 = vpop.f32.mrf.mxu0
        %v3779 = vpop.f32.mrf.mxu0
        %v3780 = vadd.f32 0.0, %v3779
        %v3781 = vpop.f32.mrf.mxu0
        %3782 = vdwg.mxu0
        %v3783 = vadd.f32 %v3670, %v3753
        %v3784 = vadd.f32 %v3671, %v3756
        %v3785 = vadd.f32 %v3672, %v3761
        %v3786 = vadd.f32 %v3673, %v3764
        %v3787 = vadd.f32 %v3674, %v3769
        %v3788 = vadd.f32 %v3675, %v3772
        %v3789 = vadd.f32 %v3676, %v3777
        %v3790 = vadd.f32 %v3677, %v3780
        %v3791 = vld [vmem:[%s3337 + $0x2] sm:$0xff]
        %v3792 = vld [vmem:[%s3337 + $0x12] sm:$0xff]
        %v3793 = vld [vmem:[%s3337 + $0x22] sm:$0xff]
        %v3794 = vld [vmem:[%s3337 + $0x32] sm:$0xff]
        %v3795 = vld [vmem:[%s3337 + $0x42] sm:$0xff]
        %v3796 = vld [vmem:[%s3337 + $0x52] sm:$0xff]
        %v3797 = vld [vmem:[%s3337 + $0x62] sm:$0xff]
        %v3798 = vld [vmem:[%s3337 + $0x72] sm:$0xff]
        %v3799 = vpack.c.bf16 %v3792, %v3791
        %v3800 = vpack.c.bf16 %v3794, %v3793
        %v3801 = vpack.c.bf16 %v3796, %v3795
        %v3802 = vpack.c.bf16 %v3798, %v3797
        %s3803 = scalar_lea.vmem %s1, 384
        %v3804 = vld [vmem:[%s3803] sm:$0xf]
        %v3805 = vld [vmem:[%s3803 + $0x4] sm:$0xf]
        %v3806 = vld [vmem:[%s3803 + $0x8] sm:$0x7]
        %v3810 = vunpack.c.l.b16 %v3804
        %v3811 = vunpack.c.l.b16 %v3805
        %v3812 = vunpack.c.l.b16 %v3806
        %v3813 = vpack.c.b16 %v3811, %v3810
        %v3814 = vpack.c.b16 %v3812, %v3812
        %v3817 = vsel %vm222, %v3799, 0
        %v3820 = vsel %vm222, %v3800, 0
        %v3823 = vsel %vm222, %v3801, 0
        %v3826 = vsel %vm222, %v3802, 0
        %v3829 = vsel %vm235, %v3814, 0
        %3831 = vmatprep.subr.bf16.mxu0 0
        %3832 = vmatpush1.bf16.msra.mxu0 0
        %3833 = vmatprep.subr.bf16.mxu0 0
        %3834 = vmatpush1.bf16.msra.mxu0 0
        %3835 = vmatprep.subr.bf16.mxu0 0
        %3836 = vmatpush1.bf16.msra.mxu0 0
        %3837 = vmatprep.subr.bf16.mxu0 0
        %3838 = vmatpush1.bf16.msra.mxu0 0
        %3839 = vmatprep.subr.bf16.mxu0 0
        %3840 = vmatpush1.bf16.msra.mxu0 0
        %3841 = vmatprep.subr.bf16.mxu0 0
        %3842 = vmatpush1.bf16.msra.mxu0 0
        %3843 = vmatprep.subr.bf16.mxu0 0
        %3844 = vmatpush1.bf16.msra.mxu0 %v3829
        %3845 = vmatprep.subr.bf16.mxu0 0
        %3846 = vmatpush1.bf16.msra.mxu0 %v3813
        %3847 = vmatprep.subr.bf16.mxu0 0
        %3848 = vmatpush2.bf16.msra.mxu0 0
        %3849 = vmatprep.subr.bf16.mxu0 0
        %3850 = vmatpush2.bf16.msra.mxu0 0
        %3851 = vmatprep.subr.bf16.mxu0 0
        %3852 = vmatpush2.bf16.msra.mxu0 0
        %3853 = vmatprep.subr.bf16.mxu0 0
        %3854 = vmatpush2.bf16.msra.mxu0 0
        %3855 = vmatprep.subr.bf16.mxu0 0
        %3856 = vmatpush2.bf16.msra.mxu0 0
        %3857 = vmatprep.subr.bf16.mxu0 0
        %3858 = vmatpush2.bf16.msra.mxu0 0
        %3859 = vmatprep.subr.bf16.mxu0 0
        %3860 = vmatpush2.bf16.msra.mxu0 0
        %3861 = vmatprep.subr.bf16.mxu0 0
        %3862 = vmatpush2.bf16.msra.mxu0 0
        %3863 = vmatprep.mubr.bf16.mxu0 0
        %3864 = vmatmul.mubr.bf16.gmra.mxu0 %v3817
        %v3865 = vpop.f32.mrf.mxu0
        %v3866 = vadd.f32 0.0, %v3865
        %v3867 = vpop.f32.mrf.mxu0
        %v3868 = vpop.f32.mrf.mxu0
        %v3869 = vadd.f32 0.0, %v3868
        %v3870 = vpop.f32.mrf.mxu0
        %3871 = vmatprep.mubr.bf16.mxu0 0
        %3872 = vmatmul.mubr.bf16.gmra.mxu0 %v3820
        %v3873 = vpop.f32.mrf.mxu0
        %v3874 = vadd.f32 0.0, %v3873
        %v3875 = vpop.f32.mrf.mxu0
        %v3876 = vpop.f32.mrf.mxu0
        %v3877 = vadd.f32 0.0, %v3876
        %v3878 = vpop.f32.mrf.mxu0
        %3879 = vmatprep.mubr.bf16.mxu0 0
        %3880 = vmatmul.mubr.bf16.gmra.mxu0 %v3823
        %v3881 = vpop.f32.mrf.mxu0
        %v3882 = vadd.f32 0.0, %v3881
        %v3883 = vpop.f32.mrf.mxu0
        %v3884 = vpop.f32.mrf.mxu0
        %v3885 = vadd.f32 0.0, %v3884
        %v3886 = vpop.f32.mrf.mxu0
        %3887 = vmatprep.mubr.bf16.mxu0 0
        %3888 = vmatmul.mubr.bf16.gmra.mxu0 %v3826
        %v3889 = vpop.f32.mrf.mxu0
        %v3890 = vadd.f32 0.0, %v3889
        %v3891 = vpop.f32.mrf.mxu0
        %v3892 = vpop.f32.mrf.mxu0
        %v3893 = vadd.f32 0.0, %v3892
        %v3894 = vpop.f32.mrf.mxu0
        %3895 = vdwg.mxu0
        %v3896 = vadd.f32 %v3783, %v3866
        %v3897 = vadd.f32 %v3784, %v3869
        %v3898 = vadd.f32 %v3785, %v3874
        %v3899 = vadd.f32 %v3786, %v3877
        %v3900 = vadd.f32 %v3787, %v3882
        %v3901 = vadd.f32 %v3788, %v3885
        %v3902 = vadd.f32 %v3789, %v3890
        %v3903 = vadd.f32 %v3790, %v3893
        %v3904 = vld [vmem:[%s3451 + $0x2] sm:$0xff]
        %v3905 = vld [vmem:[%s3451 + $0x12] sm:$0xff]
        %v3906 = vld [vmem:[%s3451 + $0x22] sm:$0xff]
        %v3907 = vld [vmem:[%s3451 + $0x32] sm:$0xff]
        %v3908 = vld [vmem:[%s3451 + $0x42] sm:$0xff]
        %v3909 = vld [vmem:[%s3451 + $0x52] sm:$0xff]
        %v3910 = vld [vmem:[%s3451 + $0x62] sm:$0xff]
        %v3911 = vld [vmem:[%s3451 + $0x72] sm:$0xff]
        %v3912 = vpack.c.bf16 %v3905, %v3904
        %v3913 = vpack.c.bf16 %v3907, %v3906
        %v3914 = vpack.c.bf16 %v3909, %v3908
        %v3915 = vpack.c.bf16 %v3911, %v3910
        %s3916 = scalar_lea.vmem %s1, 396
        %v3917 = vld [vmem:[%s3916] sm:$0xf]
        %v3918 = vld [vmem:[%s3916 + $0x4] sm:$0xf]
        %v3919 = vld [vmem:[%s3916 + $0x8] sm:$0x7]
        %v3923 = vunpack.c.l.b16 %v3917
        %v3924 = vunpack.c.l.b16 %v3918
        %v3925 = vunpack.c.l.b16 %v3919
        %v3926 = vpack.c.b16 %v3924, %v3923
        %v3927 = vpack.c.b16 %v3925, %v3925
        %v3930 = vsel %vm222, %v3912, 0
        %v3933 = vsel %vm222, %v3913, 0
        %v3936 = vsel %vm222, %v3914, 0
        %v3939 = vsel %vm222, %v3915, 0
        %v3942 = vsel %vm235, %v3927, 0
        %3944 = vmatprep.subr.bf16.mxu0 0
        %3945 = vmatpush1.bf16.msra.mxu0 0
        %3946 = vmatprep.subr.bf16.mxu0 0
        %3947 = vmatpush1.bf16.msra.mxu0 0
        %3948 = vmatprep.subr.bf16.mxu0 0
        %3949 = vmatpush1.bf16.msra.mxu0 0
        %3950 = vmatprep.subr.bf16.mxu0 0
        %3951 = vmatpush1.bf16.msra.mxu0 0
        %3952 = vmatprep.subr.bf16.mxu0 0
        %3953 = vmatpush1.bf16.msra.mxu0 0
        %3954 = vmatprep.subr.bf16.mxu0 0
        %3955 = vmatpush1.bf16.msra.mxu0 0
        %3956 = vmatprep.subr.bf16.mxu0 0
        %3957 = vmatpush1.bf16.msra.mxu0 %v3942
        %3958 = vmatprep.subr.bf16.mxu0 0
        %3959 = vmatpush1.bf16.msra.mxu0 %v3926
        %3960 = vmatprep.subr.bf16.mxu0 0
        %3961 = vmatpush2.bf16.msra.mxu0 0
        %3962 = vmatprep.subr.bf16.mxu0 0
        %3963 = vmatpush2.bf16.msra.mxu0 0
        %3964 = vmatprep.subr.bf16.mxu0 0
        %3965 = vmatpush2.bf16.msra.mxu0 0
        %3966 = vmatprep.subr.bf16.mxu0 0
        %3967 = vmatpush2.bf16.msra.mxu0 0
        %3968 = vmatprep.subr.bf16.mxu0 0
        %3969 = vmatpush2.bf16.msra.mxu0 0
        %3970 = vmatprep.subr.bf16.mxu0 0
        %3971 = vmatpush2.bf16.msra.mxu0 0
        %3972 = vmatprep.subr.bf16.mxu0 0
        %3973 = vmatpush2.bf16.msra.mxu0 0
        %3974 = vmatprep.subr.bf16.mxu0 0
        %3975 = vmatpush2.bf16.msra.mxu0 0
        %3976 = vmatprep.mubr.bf16.mxu0 0
        %3977 = vmatmul.mubr.bf16.gmra.mxu0 %v3930
        %v3978 = vpop.f32.mrf.mxu0
        %v3979 = vadd.f32 0.0, %v3978
        %v3980 = vpop.f32.mrf.mxu0
        %v3981 = vpop.f32.mrf.mxu0
        %v3982 = vadd.f32 0.0, %v3981
        %v3983 = vpop.f32.mrf.mxu0
        %3984 = vmatprep.mubr.bf16.mxu0 0
        %3985 = vmatmul.mubr.bf16.gmra.mxu0 %v3933
        %v3986 = vpop.f32.mrf.mxu0
        %v3987 = vadd.f32 0.0, %v3986
        %v3988 = vpop.f32.mrf.mxu0
        %v3989 = vpop.f32.mrf.mxu0
        %v3990 = vadd.f32 0.0, %v3989
        %v3991 = vpop.f32.mrf.mxu0
        %3992 = vmatprep.mubr.bf16.mxu0 0
        %3993 = vmatmul.mubr.bf16.gmra.mxu0 %v3936
        %v3994 = vpop.f32.mrf.mxu0
        %v3995 = vadd.f32 0.0, %v3994
        %v3996 = vpop.f32.mrf.mxu0
        %v3997 = vpop.f32.mrf.mxu0
        %v3998 = vadd.f32 0.0, %v3997
        %v3999 = vpop.f32.mrf.mxu0
        %4000 = vmatprep.mubr.bf16.mxu0 0
        %4001 = vmatmul.mubr.bf16.gmra.mxu0 %v3939
        %v4002 = vpop.f32.mrf.mxu0
        %v4003 = vadd.f32 0.0, %v4002
        %v4004 = vpop.f32.mrf.mxu0
        %v4005 = vpop.f32.mrf.mxu0
        %v4006 = vadd.f32 0.0, %v4005
        %v4007 = vpop.f32.mrf.mxu0
        %4008 = vdwg.mxu0
        %v4009 = vadd.f32 %v3896, %v3979
        %v4010 = vadd.f32 %v3897, %v3982
        %v4011 = vadd.f32 %v3898, %v3987
        %v4012 = vadd.f32 %v3899, %v3990
        %v4013 = vadd.f32 %v3900, %v3995
        %v4014 = vadd.f32 %v3901, %v3998
        %v4015 = vadd.f32 %v3902, %v4003
        %v4016 = vadd.f32 %v3903, %v4006
        %v4017 = vld [vmem:[%s3337 + $0x3] sm:$0xff]
        %v4018 = vld [vmem:[%s3337 + $0x13] sm:$0xff]
        %v4019 = vld [vmem:[%s3337 + $0x23] sm:$0xff]
        %v4020 = vld [vmem:[%s3337 + $0x33] sm:$0xff]
        %v4021 = vld [vmem:[%s3337 + $0x43] sm:$0xff]
        %v4022 = vld [vmem:[%s3337 + $0x53] sm:$0xff]
        %v4023 = vld [vmem:[%s3337 + $0x63] sm:$0xff]
        %v4024 = vld [vmem:[%s3337 + $0x73] sm:$0xff]
        %v4025 = vpack.c.bf16 %v4018, %v4017
        %v4026 = vpack.c.bf16 %v4020, %v4019
        %v4027 = vpack.c.bf16 %v4022, %v4021
        %v4028 = vpack.c.bf16 %v4024, %v4023
        %s4029 = scalar_lea.vmem %s1, 408
        %v4030 = vld [vmem:[%s4029] sm:$0xf]
        %v4031 = vld [vmem:[%s4029 + $0x4] sm:$0xf]
        %v4032 = vld [vmem:[%s4029 + $0x8] sm:$0x7]
        %v4036 = vunpack.c.l.b16 %v4030
        %v4037 = vunpack.c.l.b16 %v4031
        %v4038 = vunpack.c.l.b16 %v4032
        %v4039 = vpack.c.b16 %v4037, %v4036
        %v4040 = vpack.c.b16 %v4038, %v4038
        %v4043 = vsel %vm222, %v4025, 0
        %v4046 = vsel %vm222, %v4026, 0
        %v4049 = vsel %vm222, %v4027, 0
        %v4052 = vsel %vm222, %v4028, 0
        %v4055 = vsel %vm235, %v4040, 0
        %4057 = vmatprep.subr.bf16.mxu0 0
        %4058 = vmatpush1.bf16.msra.mxu0 0
        %4059 = vmatprep.subr.bf16.mxu0 0
        %4060 = vmatpush1.bf16.msra.mxu0 0
        %4061 = vmatprep.subr.bf16.mxu0 0
        %4062 = vmatpush1.bf16.msra.mxu0 0
        %4063 = vmatprep.subr.bf16.mxu0 0
        %4064 = vmatpush1.bf16.msra.mxu0 0
        %4065 = vmatprep.subr.bf16.mxu0 0
        %4066 = vmatpush1.bf16.msra.mxu0 0
        %4067 = vmatprep.subr.bf16.mxu0 0
        %4068 = vmatpush1.bf16.msra.mxu0 0
        %4069 = vmatprep.subr.bf16.mxu0 0
        %4070 = vmatpush1.bf16.msra.mxu0 %v4055
        %4071 = vmatprep.subr.bf16.mxu0 0
        %4072 = vmatpush1.bf16.msra.mxu0 %v4039
        %4073 = vmatprep.subr.bf16.mxu0 0
        %4074 = vmatpush2.bf16.msra.mxu0 0
        %4075 = vmatprep.subr.bf16.mxu0 0
        %4076 = vmatpush2.bf16.msra.mxu0 0
        %4077 = vmatprep.subr.bf16.mxu0 0
        %4078 = vmatpush2.bf16.msra.mxu0 0
        %4079 = vmatprep.subr.bf16.mxu0 0
        %4080 = vmatpush2.bf16.msra.mxu0 0
        %4081 = vmatprep.subr.bf16.mxu0 0
        %4082 = vmatpush2.bf16.msra.mxu0 0
        %4083 = vmatprep.subr.bf16.mxu0 0
        %4084 = vmatpush2.bf16.msra.mxu0 0
        %4085 = vmatprep.subr.bf16.mxu0 0
        %4086 = vmatpush2.bf16.msra.mxu0 0
        %4087 = vmatprep.subr.bf16.mxu0 0
        %4088 = vmatpush2.bf16.msra.mxu0 0
        %4089 = vmatprep.mubr.bf16.mxu0 0
        %4090 = vmatmul.mubr.bf16.gmra.mxu0 %v4043
        %v4091 = vpop.f32.mrf.mxu0
        %v4092 = vadd.f32 0.0, %v4091
        %v4093 = vpop.f32.mrf.mxu0
        %v4094 = vpop.f32.mrf.mxu0
        %v4095 = vadd.f32 0.0, %v4094
        %v4096 = vpop.f32.mrf.mxu0
        %4097 = vmatprep.mubr.bf16.mxu0 0
        %4098 = vmatmul.mubr.bf16.gmra.mxu0 %v4046
        %v4099 = vpop.f32.mrf.mxu0
        %v4100 = vadd.f32 0.0, %v4099
        %v4101 = vpop.f32.mrf.mxu0
        %v4102 = vpop.f32.mrf.mxu0
        %v4103 = vadd.f32 0.0, %v4102
        %v4104 = vpop.f32.mrf.mxu0
        %4105 = vmatprep.mubr.bf16.mxu0 0
        %4106 = vmatmul.mubr.bf16.gmra.mxu0 %v4049
        %v4107 = vpop.f32.mrf.mxu0
        %v4108 = vadd.f32 0.0, %v4107
        %v4109 = vpop.f32.mrf.mxu0
        %v4110 = vpop.f32.mrf.mxu0
        %v4111 = vadd.f32 0.0, %v4110
        %v4112 = vpop.f32.mrf.mxu0
        %4113 = vmatprep.mubr.bf16.mxu0 0
        %4114 = vmatmul.mubr.bf16.gmra.mxu0 %v4052
        %v4115 = vpop.f32.mrf.mxu0
        %v4116 = vadd.f32 0.0, %v4115
        %v4117 = vpop.f32.mrf.mxu0
        %v4118 = vpop.f32.mrf.mxu0
        %v4119 = vadd.f32 0.0, %v4118
        %v4120 = vpop.f32.mrf.mxu0
        %4121 = vdwg.mxu0
        %v4122 = vadd.f32 %v4009, %v4092
        %v4123 = vadd.f32 %v4010, %v4095
        %v4124 = vadd.f32 %v4011, %v4100
        %v4125 = vadd.f32 %v4012, %v4103
        %v4126 = vadd.f32 %v4013, %v4108
        %v4127 = vadd.f32 %v4014, %v4111
        %v4128 = vadd.f32 %v4015, %v4116
        %v4129 = vadd.f32 %v4016, %v4119
        %s4130 = scalar_lea.vmem %s179, 384
        %v4131 = vld [vmem:[%s4130] sm:$0xff]
        %v4132 = vld [vmem:[%s4130 + $0x10] sm:$0xff]
        %v4133 = vld [vmem:[%s4130 + $0x20] sm:$0xff]
        %v4134 = vld [vmem:[%s4130 + $0x30] sm:$0xff]
        %v4135 = vld [vmem:[%s4130 + $0x40] sm:$0xff]
        %v4136 = vld [vmem:[%s4130 + $0x50] sm:$0xff]
        %v4137 = vld [vmem:[%s4130 + $0x60] sm:$0xff]
        %v4138 = vld [vmem:[%s4130 + $0x70] sm:$0xff]
        %v4139 = vpack.c.bf16 %v4132, %v4131
        %v4140 = vpack.c.bf16 %v4134, %v4133
        %v4141 = vpack.c.bf16 %v4136, %v4135
        %v4142 = vpack.c.bf16 %v4138, %v4137
        %s4143 = scalar_lea.vmem %s1, 420
        %v4144 = vld [vmem:[%s4143] sm:$0xf]
        %v4145 = vld [vmem:[%s4143 + $0x4] sm:$0xf]
        %v4146 = vld [vmem:[%s4143 + $0x8] sm:$0x7]
        %v4150 = vunpack.c.l.b16 %v4144
        %v4151 = vunpack.c.l.b16 %v4145
        %v4152 = vunpack.c.l.b16 %v4146
        %v4153 = vpack.c.b16 %v4151, %v4150
        %v4154 = vpack.c.b16 %v4152, %v4152
        %v4157 = vsel %vm222, %v4139, 0
        %v4160 = vsel %vm222, %v4140, 0
        %v4163 = vsel %vm222, %v4141, 0
        %v4166 = vsel %vm222, %v4142, 0
        %v4169 = vsel %vm235, %v4154, 0
        %4171 = vmatprep.subr.bf16.mxu0 0
        %4172 = vmatpush1.bf16.msra.mxu0 0
        %4173 = vmatprep.subr.bf16.mxu0 0
        %4174 = vmatpush1.bf16.msra.mxu0 0
        %4175 = vmatprep.subr.bf16.mxu0 0
        %4176 = vmatpush1.bf16.msra.mxu0 0
        %4177 = vmatprep.subr.bf16.mxu0 0
        %4178 = vmatpush1.bf16.msra.mxu0 0
        %4179 = vmatprep.subr.bf16.mxu0 0
        %4180 = vmatpush1.bf16.msra.mxu0 0
        %4181 = vmatprep.subr.bf16.mxu0 0
        %4182 = vmatpush1.bf16.msra.mxu0 0
        %4183 = vmatprep.subr.bf16.mxu0 0
        %4184 = vmatpush1.bf16.msra.mxu0 %v4169
        %4185 = vmatprep.subr.bf16.mxu0 0
        %4186 = vmatpush1.bf16.msra.mxu0 %v4153
        %4187 = vmatprep.subr.bf16.mxu0 0
        %4188 = vmatpush2.bf16.msra.mxu0 0
        %4189 = vmatprep.subr.bf16.mxu0 0
        %4190 = vmatpush2.bf16.msra.mxu0 0
        %4191 = vmatprep.subr.bf16.mxu0 0
        %4192 = vmatpush2.bf16.msra.mxu0 0
        %4193 = vmatprep.subr.bf16.mxu0 0
        %4194 = vmatpush2.bf16.msra.mxu0 0
        %4195 = vmatprep.subr.bf16.mxu0 0
        %4196 = vmatpush2.bf16.msra.mxu0 0
        %4197 = vmatprep.subr.bf16.mxu0 0
        %4198 = vmatpush2.bf16.msra.mxu0 0
        %4199 = vmatprep.subr.bf16.mxu0 0
        %4200 = vmatpush2.bf16.msra.mxu0 0
        %4201 = vmatprep.subr.bf16.mxu0 0
        %4202 = vmatpush2.bf16.msra.mxu0 0
        %4203 = vmatprep.mubr.bf16.mxu0 0
        %4204 = vmatmul.mubr.bf16.gmra.mxu0 %v4157
        %v4205 = vpop.f32.mrf.mxu0
        %v4206 = vadd.f32 0.0, %v4205
        %v4207 = vpop.f32.mrf.mxu0
        %v4208 = vpop.f32.mrf.mxu0
        %v4209 = vadd.f32 0.0, %v4208
        %v4210 = vpop.f32.mrf.mxu0
        %4211 = vmatprep.mubr.bf16.mxu0 0
        %4212 = vmatmul.mubr.bf16.gmra.mxu0 %v4160
        %v4213 = vpop.f32.mrf.mxu0
        %v4214 = vadd.f32 0.0, %v4213
        %v4215 = vpop.f32.mrf.mxu0
        %v4216 = vpop.f32.mrf.mxu0
        %v4217 = vadd.f32 0.0, %v4216
        %v4218 = vpop.f32.mrf.mxu0
        %4219 = vmatprep.mubr.bf16.mxu0 0
        %4220 = vmatmul.mubr.bf16.gmra.mxu0 %v4163
        %v4221 = vpop.f32.mrf.mxu0
        %v4222 = vadd.f32 0.0, %v4221
        %v4223 = vpop.f32.mrf.mxu0
        %v4224 = vpop.f32.mrf.mxu0
        %v4225 = vadd.f32 0.0, %v4224
        %v4226 = vpop.f32.mrf.mxu0
        %4227 = vmatprep.mubr.bf16.mxu0 0
        %4228 = vmatmul.mubr.bf16.gmra.mxu0 %v4166
        %v4229 = vpop.f32.mrf.mxu0
        %v4230 = vadd.f32 0.0, %v4229
        %v4231 = vpop.f32.mrf.mxu0
        %v4232 = vpop.f32.mrf.mxu0
        %v4233 = vadd.f32 0.0, %v4232
        %v4234 = vpop.f32.mrf.mxu0
        %4235 = vdwg.mxu0
        %v4236 = vadd.f32 %v4122, %v4206
        %v4237 = vadd.f32 %v4123, %v4209
        %v4238 = vadd.f32 %v4124, %v4214
        %v4239 = vadd.f32 %v4125, %v4217
        %v4240 = vadd.f32 %v4126, %v4222
        %v4241 = vadd.f32 %v4127, %v4225
        %v4242 = vadd.f32 %v4128, %v4230
        %v4243 = vadd.f32 %v4129, %v4233
        %s4244 = scalar_lea.vmem %s179, 560
        %v4245 = vld [vmem:[%s4244] sm:$0xff]
        %v4246 = vld [vmem:[%s4244 + $0x10] sm:$0xff]
        %v4247 = vld [vmem:[%s4244 + $0x20] sm:$0xff]
        %v4248 = vld [vmem:[%s4244 + $0x30] sm:$0xff]
        %v4249 = vld [vmem:[%s4244 + $0x40] sm:$0xff]
        %v4250 = vld [vmem:[%s4244 + $0x50] sm:$0xff]
        %v4251 = vld [vmem:[%s4244 + $0x60] sm:$0xff]
        %v4252 = vld [vmem:[%s4244 + $0x70] sm:$0xff]
        %v4253 = vpack.c.bf16 %v4246, %v4245
        %v4254 = vpack.c.bf16 %v4248, %v4247
        %v4255 = vpack.c.bf16 %v4250, %v4249
        %v4256 = vpack.c.bf16 %v4252, %v4251
        %s4257 = scalar_lea.vmem %s1, 432
        %v4258 = vld [vmem:[%s4257] sm:$0xf]
        %v4259 = vld [vmem:[%s4257 + $0x4] sm:$0xf]
        %v4260 = vld [vmem:[%s4257 + $0x8] sm:$0x7]
        %v4264 = vunpack.c.l.b16 %v4258
        %v4265 = vunpack.c.l.b16 %v4259
        %v4266 = vunpack.c.l.b16 %v4260
        %v4267 = vpack.c.b16 %v4265, %v4264
        %v4268 = vpack.c.b16 %v4266, %v4266
        %v4271 = vsel %vm222, %v4253, 0
        %v4274 = vsel %vm222, %v4254, 0
        %v4277 = vsel %vm222, %v4255, 0
        %v4280 = vsel %vm222, %v4256, 0
        %v4283 = vsel %vm235, %v4268, 0
        %4285 = vmatprep.subr.bf16.mxu0 0
        %4286 = vmatpush1.bf16.msra.mxu0 0
        %4287 = vmatprep.subr.bf16.mxu0 0
        %4288 = vmatpush1.bf16.msra.mxu0 0
        %4289 = vmatprep.subr.bf16.mxu0 0
        %4290 = vmatpush1.bf16.msra.mxu0 0
        %4291 = vmatprep.subr.bf16.mxu0 0
        %4292 = vmatpush1.bf16.msra.mxu0 0
        %4293 = vmatprep.subr.bf16.mxu0 0
        %4294 = vmatpush1.bf16.msra.mxu0 0
        %4295 = vmatprep.subr.bf16.mxu0 0
        %4296 = vmatpush1.bf16.msra.mxu0 0
        %4297 = vmatprep.subr.bf16.mxu0 0
        %4298 = vmatpush1.bf16.msra.mxu0 %v4283
        %4299 = vmatprep.subr.bf16.mxu0 0
        %4300 = vmatpush1.bf16.msra.mxu0 %v4267
        %4301 = vmatprep.subr.bf16.mxu0 0
        %4302 = vmatpush2.bf16.msra.mxu0 0
        %4303 = vmatprep.subr.bf16.mxu0 0
        %4304 = vmatpush2.bf16.msra.mxu0 0
        %4305 = vmatprep.subr.bf16.mxu0 0
        %4306 = vmatpush2.bf16.msra.mxu0 0
        %4307 = vmatprep.subr.bf16.mxu0 0
        %4308 = vmatpush2.bf16.msra.mxu0 0
        %4309 = vmatprep.subr.bf16.mxu0 0
        %4310 = vmatpush2.bf16.msra.mxu0 0
        %4311 = vmatprep.subr.bf16.mxu0 0
        %4312 = vmatpush2.bf16.msra.mxu0 0
        %4313 = vmatprep.subr.bf16.mxu0 0
        %4314 = vmatpush2.bf16.msra.mxu0 0
        %4315 = vmatprep.subr.bf16.mxu0 0
        %4316 = vmatpush2.bf16.msra.mxu0 0
        %4317 = vmatprep.mubr.bf16.mxu0 0
        %4318 = vmatmul.mubr.bf16.gmra.mxu0 %v4271
        %v4319 = vpop.f32.mrf.mxu0
        %v4320 = vadd.f32 0.0, %v4319
        %v4321 = vpop.f32.mrf.mxu0
        %v4322 = vpop.f32.mrf.mxu0
        %v4323 = vadd.f32 0.0, %v4322
        %v4324 = vpop.f32.mrf.mxu0
        %4325 = vmatprep.mubr.bf16.mxu0 0
        %4326 = vmatmul.mubr.bf16.gmra.mxu0 %v4274
        %v4327 = vpop.f32.mrf.mxu0
        %v4328 = vadd.f32 0.0, %v4327
        %v4329 = vpop.f32.mrf.mxu0
        %v4330 = vpop.f32.mrf.mxu0
        %v4331 = vadd.f32 0.0, %v4330
        %v4332 = vpop.f32.mrf.mxu0
        %4333 = vmatprep.mubr.bf16.mxu0 0
        %4334 = vmatmul.mubr.bf16.gmra.mxu0 %v4277
        %v4335 = vpop.f32.mrf.mxu0
        %v4336 = vadd.f32 0.0, %v4335
        %v4337 = vpop.f32.mrf.mxu0
        %v4338 = vpop.f32.mrf.mxu0
        %v4339 = vadd.f32 0.0, %v4338
        %v4340 = vpop.f32.mrf.mxu0
        %4341 = vmatprep.mubr.bf16.mxu0 0
        %4342 = vmatmul.mubr.bf16.gmra.mxu0 %v4280
        %v4343 = vpop.f32.mrf.mxu0
        %v4344 = vadd.f32 0.0, %v4343
        %v4345 = vpop.f32.mrf.mxu0
        %v4346 = vpop.f32.mrf.mxu0
        %v4347 = vadd.f32 0.0, %v4346
        %v4348 = vpop.f32.mrf.mxu0
        %4349 = vdwg.mxu0
        %v4350 = vadd.f32 %v4236, %v4320
        %v4351 = vadd.f32 %v4237, %v4323
        %v4352 = vadd.f32 %v4238, %v4328
        %v4353 = vadd.f32 %v4239, %v4331
        %v4354 = vadd.f32 %v4240, %v4336
        %v4355 = vadd.f32 %v4241, %v4339
        %v4356 = vadd.f32 %v4242, %v4344
        %v4357 = vadd.f32 %v4243, %v4347
        %v4358 = vld [vmem:[%s4130 + $0x1] sm:$0xff]
        %v4359 = vld [vmem:[%s4130 + $0x11] sm:$0xff]
        %v4360 = vld [vmem:[%s4130 + $0x21] sm:$0xff]
        %v4361 = vld [vmem:[%s4130 + $0x31] sm:$0xff]
        %v4362 = vld [vmem:[%s4130 + $0x41] sm:$0xff]
        %v4363 = vld [vmem:[%s4130 + $0x51] sm:$0xff]
        %v4364 = vld [vmem:[%s4130 + $0x61] sm:$0xff]
        %v4365 = vld [vmem:[%s4130 + $0x71] sm:$0xff]
        %v4366 = vpack.c.bf16 %v4359, %v4358
        %v4367 = vpack.c.bf16 %v4361, %v4360
        %v4368 = vpack.c.bf16 %v4363, %v4362
        %v4369 = vpack.c.bf16 %v4365, %v4364
        %s4370 = scalar_lea.vmem %s1, 444
        %v4371 = vld [vmem:[%s4370] sm:$0xf]
        %v4372 = vld [vmem:[%s4370 + $0x4] sm:$0xf]
        %v4373 = vld [vmem:[%s4370 + $0x8] sm:$0x7]
        %v4377 = vunpack.c.l.b16 %v4371
        %v4378 = vunpack.c.l.b16 %v4372
        %v4379 = vunpack.c.l.b16 %v4373
        %v4380 = vpack.c.b16 %v4378, %v4377
        %v4381 = vpack.c.b16 %v4379, %v4379
        %v4384 = vsel %vm222, %v4366, 0
        %v4387 = vsel %vm222, %v4367, 0
        %v4390 = vsel %vm222, %v4368, 0
        %v4393 = vsel %vm222, %v4369, 0
        %v4396 = vsel %vm235, %v4381, 0
        %4398 = vmatprep.subr.bf16.mxu0 0
        %4399 = vmatpush1.bf16.msra.mxu0 0
        %4400 = vmatprep.subr.bf16.mxu0 0
        %4401 = vmatpush1.bf16.msra.mxu0 0
        %4402 = vmatprep.subr.bf16.mxu0 0
        %4403 = vmatpush1.bf16.msra.mxu0 0
        %4404 = vmatprep.subr.bf16.mxu0 0
        %4405 = vmatpush1.bf16.msra.mxu0 0
        %4406 = vmatprep.subr.bf16.mxu0 0
        %4407 = vmatpush1.bf16.msra.mxu0 0
        %4408 = vmatprep.subr.bf16.mxu0 0
        %4409 = vmatpush1.bf16.msra.mxu0 0
        %4410 = vmatprep.subr.bf16.mxu0 0
        %4411 = vmatpush1.bf16.msra.mxu0 %v4396
        %4412 = vmatprep.subr.bf16.mxu0 0
        %4413 = vmatpush1.bf16.msra.mxu0 %v4380
        %4414 = vmatprep.subr.bf16.mxu0 0
        %4415 = vmatpush2.bf16.msra.mxu0 0
        %4416 = vmatprep.subr.bf16.mxu0 0
        %4417 = vmatpush2.bf16.msra.mxu0 0
        %4418 = vmatprep.subr.bf16.mxu0 0
        %4419 = vmatpush2.bf16.msra.mxu0 0
        %4420 = vmatprep.subr.bf16.mxu0 0
        %4421 = vmatpush2.bf16.msra.mxu0 0
        %4422 = vmatprep.subr.bf16.mxu0 0
        %4423 = vmatpush2.bf16.msra.mxu0 0
        %4424 = vmatprep.subr.bf16.mxu0 0
        %4425 = vmatpush2.bf16.msra.mxu0 0
        %4426 = vmatprep.subr.bf16.mxu0 0
        %4427 = vmatpush2.bf16.msra.mxu0 0
        %4428 = vmatprep.subr.bf16.mxu0 0
        %4429 = vmatpush2.bf16.msra.mxu0 0
        %4430 = vmatprep.mubr.bf16.mxu0 0
        %4431 = vmatmul.mubr.bf16.gmra.mxu0 %v4384
        %v4432 = vpop.f32.mrf.mxu0
        %v4433 = vadd.f32 0.0, %v4432
        %v4434 = vpop.f32.mrf.mxu0
        %v4435 = vpop.f32.mrf.mxu0
        %v4436 = vadd.f32 0.0, %v4435
        %v4437 = vpop.f32.mrf.mxu0
        %4438 = vmatprep.mubr.bf16.mxu0 0
        %4439 = vmatmul.mubr.bf16.gmra.mxu0 %v4387
        %v4440 = vpop.f32.mrf.mxu0
        %v4441 = vadd.f32 0.0, %v4440
        %v4442 = vpop.f32.mrf.mxu0
        %v4443 = vpop.f32.mrf.mxu0
        %v4444 = vadd.f32 0.0, %v4443
        %v4445 = vpop.f32.mrf.mxu0
        %4446 = vmatprep.mubr.bf16.mxu0 0
        %4447 = vmatmul.mubr.bf16.gmra.mxu0 %v4390
        %v4448 = vpop.f32.mrf.mxu0
        %v4449 = vadd.f32 0.0, %v4448
        %v4450 = vpop.f32.mrf.mxu0
        %v4451 = vpop.f32.mrf.mxu0
        %v4452 = vadd.f32 0.0, %v4451
        %v4453 = vpop.f32.mrf.mxu0
        %4454 = vmatprep.mubr.bf16.mxu0 0
        %4455 = vmatmul.mubr.bf16.gmra.mxu0 %v4393
        %v4456 = vpop.f32.mrf.mxu0
        %v4457 = vadd.f32 0.0, %v4456
        %v4458 = vpop.f32.mrf.mxu0
        %v4459 = vpop.f32.mrf.mxu0
        %v4460 = vadd.f32 0.0, %v4459
        %v4461 = vpop.f32.mrf.mxu0
        %4462 = vdwg.mxu0
        %v4463 = vadd.f32 %v4350, %v4433
        %v4464 = vadd.f32 %v4351, %v4436
        %v4465 = vadd.f32 %v4352, %v4441
        %v4466 = vadd.f32 %v4353, %v4444
        %v4467 = vadd.f32 %v4354, %v4449
        %v4468 = vadd.f32 %v4355, %v4452
        %v4469 = vadd.f32 %v4356, %v4457
        %v4470 = vadd.f32 %v4357, %v4460
        %v4471 = vld [vmem:[%s4244 + $0x1] sm:$0xff]
        %v4472 = vld [vmem:[%s4244 + $0x11] sm:$0xff]
        %v4473 = vld [vmem:[%s4244 + $0x21] sm:$0xff]
        %v4474 = vld [vmem:[%s4244 + $0x31] sm:$0xff]
        %v4475 = vld [vmem:[%s4244 + $0x41] sm:$0xff]
        %v4476 = vld [vmem:[%s4244 + $0x51] sm:$0xff]
        %v4477 = vld [vmem:[%s4244 + $0x61] sm:$0xff]
        %v4478 = vld [vmem:[%s4244 + $0x71] sm:$0xff]
        %v4479 = vpack.c.bf16 %v4472, %v4471
        %v4480 = vpack.c.bf16 %v4474, %v4473
        %v4481 = vpack.c.bf16 %v4476, %v4475
        %v4482 = vpack.c.bf16 %v4478, %v4477
        %s4483 = scalar_lea.vmem %s1, 456
        %v4484 = vld [vmem:[%s4483] sm:$0xf]
        %v4485 = vld [vmem:[%s4483 + $0x4] sm:$0xf]
        %v4486 = vld [vmem:[%s4483 + $0x8] sm:$0x7]
        %v4490 = vunpack.c.l.b16 %v4484
        %v4491 = vunpack.c.l.b16 %v4485
        %v4492 = vunpack.c.l.b16 %v4486
        %v4493 = vpack.c.b16 %v4491, %v4490
        %v4494 = vpack.c.b16 %v4492, %v4492
        %v4497 = vsel %vm222, %v4479, 0
        %v4500 = vsel %vm222, %v4480, 0
        %v4503 = vsel %vm222, %v4481, 0
        %v4506 = vsel %vm222, %v4482, 0
        %v4509 = vsel %vm235, %v4494, 0
        %4511 = vmatprep.subr.bf16.mxu0 0
        %4512 = vmatpush1.bf16.msra.mxu0 0
        %4513 = vmatprep.subr.bf16.mxu0 0
        %4514 = vmatpush1.bf16.msra.mxu0 0
        %4515 = vmatprep.subr.bf16.mxu0 0
        %4516 = vmatpush1.bf16.msra.mxu0 0
        %4517 = vmatprep.subr.bf16.mxu0 0
        %4518 = vmatpush1.bf16.msra.mxu0 0
        %4519 = vmatprep.subr.bf16.mxu0 0
        %4520 = vmatpush1.bf16.msra.mxu0 0
        %4521 = vmatprep.subr.bf16.mxu0 0
        %4522 = vmatpush1.bf16.msra.mxu0 0
        %4523 = vmatprep.subr.bf16.mxu0 0
        %4524 = vmatpush1.bf16.msra.mxu0 %v4509
        %4525 = vmatprep.subr.bf16.mxu0 0
        %4526 = vmatpush1.bf16.msra.mxu0 %v4493
        %4527 = vmatprep.subr.bf16.mxu0 0
        %4528 = vmatpush2.bf16.msra.mxu0 0
        %4529 = vmatprep.subr.bf16.mxu0 0
        %4530 = vmatpush2.bf16.msra.mxu0 0
        %4531 = vmatprep.subr.bf16.mxu0 0
        %4532 = vmatpush2.bf16.msra.mxu0 0
        %4533 = vmatprep.subr.bf16.mxu0 0
        %4534 = vmatpush2.bf16.msra.mxu0 0
        %4535 = vmatprep.subr.bf16.mxu0 0
        %4536 = vmatpush2.bf16.msra.mxu0 0
        %4537 = vmatprep.subr.bf16.mxu0 0
        %4538 = vmatpush2.bf16.msra.mxu0 0
        %4539 = vmatprep.subr.bf16.mxu0 0
        %4540 = vmatpush2.bf16.msra.mxu0 0
        %4541 = vmatprep.subr.bf16.mxu0 0
        %4542 = vmatpush2.bf16.msra.mxu0 0
        %4543 = vmatprep.mubr.bf16.mxu0 0
        %4544 = vmatmul.mubr.bf16.gmra.mxu0 %v4497
        %v4545 = vpop.f32.mrf.mxu0
        %v4546 = vadd.f32 0.0, %v4545
        %v4547 = vpop.f32.mrf.mxu0
        %v4548 = vpop.f32.mrf.mxu0
        %v4549 = vadd.f32 0.0, %v4548
        %v4550 = vpop.f32.mrf.mxu0
        %4551 = vmatprep.mubr.bf16.mxu0 0
        %4552 = vmatmul.mubr.bf16.gmra.mxu0 %v4500
        %v4553 = vpop.f32.mrf.mxu0
        %v4554 = vadd.f32 0.0, %v4553
        %v4555 = vpop.f32.mrf.mxu0
        %v4556 = vpop.f32.mrf.mxu0
        %v4557 = vadd.f32 0.0, %v4556
        %v4558 = vpop.f32.mrf.mxu0
        %4559 = vmatprep.mubr.bf16.mxu0 0
        %4560 = vmatmul.mubr.bf16.gmra.mxu0 %v4503
        %v4561 = vpop.f32.mrf.mxu0
        %v4562 = vadd.f32 0.0, %v4561
        %v4563 = vpop.f32.mrf.mxu0
        %v4564 = vpop.f32.mrf.mxu0
        %v4565 = vadd.f32 0.0, %v4564
        %v4566 = vpop.f32.mrf.mxu0
        %4567 = vmatprep.mubr.bf16.mxu0 0
        %4568 = vmatmul.mubr.bf16.gmra.mxu0 %v4506
        %v4569 = vpop.f32.mrf.mxu0
        %v4570 = vadd.f32 0.0, %v4569
        %v4571 = vpop.f32.mrf.mxu0
        %v4572 = vpop.f32.mrf.mxu0
        %v4573 = vadd.f32 0.0, %v4572
        %v4574 = vpop.f32.mrf.mxu0
        %4575 = vdwg.mxu0
        %v4576 = vadd.f32 %v4463, %v4546
        %v4577 = vadd.f32 %v4464, %v4549
        %v4578 = vadd.f32 %v4465, %v4554
        %v4579 = vadd.f32 %v4466, %v4557
        %v4580 = vadd.f32 %v4467, %v4562
        %v4581 = vadd.f32 %v4468, %v4565
        %v4582 = vadd.f32 %v4469, %v4570
        %v4583 = vadd.f32 %v4470, %v4573
        %v4584 = vld [vmem:[%s4130 + $0x2] sm:$0xff]
        %v4585 = vld [vmem:[%s4130 + $0x12] sm:$0xff]
        %v4586 = vld [vmem:[%s4130 + $0x22] sm:$0xff]
        %v4587 = vld [vmem:[%s4130 + $0x32] sm:$0xff]
        %v4588 = vld [vmem:[%s4130 + $0x42] sm:$0xff]
        %v4589 = vld [vmem:[%s4130 + $0x52] sm:$0xff]
        %v4590 = vld [vmem:[%s4130 + $0x62] sm:$0xff]
        %v4591 = vld [vmem:[%s4130 + $0x72] sm:$0xff]
        %v4592 = vpack.c.bf16 %v4585, %v4584
        %v4593 = vpack.c.bf16 %v4587, %v4586
        %v4594 = vpack.c.bf16 %v4589, %v4588
        %v4595 = vpack.c.bf16 %v4591, %v4590
        %s4596 = scalar_lea.vmem %s1, 468
        %v4597 = vld [vmem:[%s4596] sm:$0xf]
        %v4598 = vld [vmem:[%s4596 + $0x4] sm:$0xf]
        %v4599 = vld [vmem:[%s4596 + $0x8] sm:$0x7]
        %v4603 = vunpack.c.l.b16 %v4597
        %v4604 = vunpack.c.l.b16 %v4598
        %v4605 = vunpack.c.l.b16 %v4599
        %v4606 = vpack.c.b16 %v4604, %v4603
        %v4607 = vpack.c.b16 %v4605, %v4605
        %v4610 = vsel %vm222, %v4592, 0
        %v4613 = vsel %vm222, %v4593, 0
        %v4616 = vsel %vm222, %v4594, 0
        %v4619 = vsel %vm222, %v4595, 0
        %v4622 = vsel %vm235, %v4607, 0
        %4624 = vmatprep.subr.bf16.mxu0 0
        %4625 = vmatpush1.bf16.msra.mxu0 0
        %4626 = vmatprep.subr.bf16.mxu0 0
        %4627 = vmatpush1.bf16.msra.mxu0 0
        %4628 = vmatprep.subr.bf16.mxu0 0
        %4629 = vmatpush1.bf16.msra.mxu0 0
        %4630 = vmatprep.subr.bf16.mxu0 0
        %4631 = vmatpush1.bf16.msra.mxu0 0
        %4632 = vmatprep.subr.bf16.mxu0 0
        %4633 = vmatpush1.bf16.msra.mxu0 0
        %4634 = vmatprep.subr.bf16.mxu0 0
        %4635 = vmatpush1.bf16.msra.mxu0 0
        %4636 = vmatprep.subr.bf16.mxu0 0
        %4637 = vmatpush1.bf16.msra.mxu0 %v4622
        %4638 = vmatprep.subr.bf16.mxu0 0
        %4639 = vmatpush1.bf16.msra.mxu0 %v4606
        %4640 = vmatprep.subr.bf16.mxu0 0
        %4641 = vmatpush2.bf16.msra.mxu0 0
        %4642 = vmatprep.subr.bf16.mxu0 0
        %4643 = vmatpush2.bf16.msra.mxu0 0
        %4644 = vmatprep.subr.bf16.mxu0 0
        %4645 = vmatpush2.bf16.msra.mxu0 0
        %4646 = vmatprep.subr.bf16.mxu0 0
        %4647 = vmatpush2.bf16.msra.mxu0 0
        %4648 = vmatprep.subr.bf16.mxu0 0
        %4649 = vmatpush2.bf16.msra.mxu0 0
        %4650 = vmatprep.subr.bf16.mxu0 0
        %4651 = vmatpush2.bf16.msra.mxu0 0
        %4652 = vmatprep.subr.bf16.mxu0 0
        %4653 = vmatpush2.bf16.msra.mxu0 0
        %4654 = vmatprep.subr.bf16.mxu0 0
        %4655 = vmatpush2.bf16.msra.mxu0 0
        %4656 = vmatprep.mubr.bf16.mxu0 0
        %4657 = vmatmul.mubr.bf16.gmra.mxu0 %v4610
        %v4658 = vpop.f32.mrf.mxu0
        %v4659 = vadd.f32 0.0, %v4658
        %v4660 = vpop.f32.mrf.mxu0
        %v4661 = vpop.f32.mrf.mxu0
        %v4662 = vadd.f32 0.0, %v4661
        %v4663 = vpop.f32.mrf.mxu0
        %4664 = vmatprep.mubr.bf16.mxu0 0
        %4665 = vmatmul.mubr.bf16.gmra.mxu0 %v4613
        %v4666 = vpop.f32.mrf.mxu0
        %v4667 = vadd.f32 0.0, %v4666
        %v4668 = vpop.f32.mrf.mxu0
        %v4669 = vpop.f32.mrf.mxu0
        %v4670 = vadd.f32 0.0, %v4669
        %v4671 = vpop.f32.mrf.mxu0
        %4672 = vmatprep.mubr.bf16.mxu0 0
        %4673 = vmatmul.mubr.bf16.gmra.mxu0 %v4616
        %v4674 = vpop.f32.mrf.mxu0
        %v4675 = vadd.f32 0.0, %v4674
        %v4676 = vpop.f32.mrf.mxu0
        %v4677 = vpop.f32.mrf.mxu0
        %v4678 = vadd.f32 0.0, %v4677
        %v4679 = vpop.f32.mrf.mxu0
        %4680 = vmatprep.mubr.bf16.mxu0 0
        %4681 = vmatmul.mubr.bf16.gmra.mxu0 %v4619
        %v4682 = vpop.f32.mrf.mxu0
        %v4683 = vadd.f32 0.0, %v4682
        %v4684 = vpop.f32.mrf.mxu0
        %v4685 = vpop.f32.mrf.mxu0
        %v4686 = vadd.f32 0.0, %v4685
        %v4687 = vpop.f32.mrf.mxu0
        %4688 = vdwg.mxu0
        %v4689 = vadd.f32 %v4576, %v4659
        %v4690 = vadd.f32 %v4577, %v4662
        %v4691 = vadd.f32 %v4578, %v4667
        %v4692 = vadd.f32 %v4579, %v4670
        %v4693 = vadd.f32 %v4580, %v4675
        %v4694 = vadd.f32 %v4581, %v4678
        %v4695 = vadd.f32 %v4582, %v4683
        %v4696 = vadd.f32 %v4583, %v4686
        %v4697 = vld [vmem:[%s4244 + $0x2] sm:$0xff]
        %v4698 = vld [vmem:[%s4244 + $0x12] sm:$0xff]
        %v4699 = vld [vmem:[%s4244 + $0x22] sm:$0xff]
        %v4700 = vld [vmem:[%s4244 + $0x32] sm:$0xff]
        %v4701 = vld [vmem:[%s4244 + $0x42] sm:$0xff]
        %v4702 = vld [vmem:[%s4244 + $0x52] sm:$0xff]
        %v4703 = vld [vmem:[%s4244 + $0x62] sm:$0xff]
        %v4704 = vld [vmem:[%s4244 + $0x72] sm:$0xff]
        %v4705 = vpack.c.bf16 %v4698, %v4697
        %v4706 = vpack.c.bf16 %v4700, %v4699
        %v4707 = vpack.c.bf16 %v4702, %v4701
        %v4708 = vpack.c.bf16 %v4704, %v4703
        %s4709 = scalar_lea.vmem %s1, 480
        %v4710 = vld [vmem:[%s4709] sm:$0xf]
        %v4711 = vld [vmem:[%s4709 + $0x4] sm:$0xf]
        %v4712 = vld [vmem:[%s4709 + $0x8] sm:$0x7]
        %v4716 = vunpack.c.l.b16 %v4710
        %v4717 = vunpack.c.l.b16 %v4711
        %v4718 = vunpack.c.l.b16 %v4712
        %v4719 = vpack.c.b16 %v4717, %v4716
        %v4720 = vpack.c.b16 %v4718, %v4718
        %v4723 = vsel %vm222, %v4705, 0
        %v4726 = vsel %vm222, %v4706, 0
        %v4729 = vsel %vm222, %v4707, 0
        %v4732 = vsel %vm222, %v4708, 0
        %v4735 = vsel %vm235, %v4720, 0
        %4737 = vmatprep.subr.bf16.mxu0 0
        %4738 = vmatpush1.bf16.msra.mxu0 0
        %4739 = vmatprep.subr.bf16.mxu0 0
        %4740 = vmatpush1.bf16.msra.mxu0 0
        %4741 = vmatprep.subr.bf16.mxu0 0
        %4742 = vmatpush1.bf16.msra.mxu0 0
        %4743 = vmatprep.subr.bf16.mxu0 0
        %4744 = vmatpush1.bf16.msra.mxu0 0
        %4745 = vmatprep.subr.bf16.mxu0 0
        %4746 = vmatpush1.bf16.msra.mxu0 0
        %4747 = vmatprep.subr.bf16.mxu0 0
        %4748 = vmatpush1.bf16.msra.mxu0 0
        %4749 = vmatprep.subr.bf16.mxu0 0
        %4750 = vmatpush1.bf16.msra.mxu0 %v4735
        %4751 = vmatprep.subr.bf16.mxu0 0
        %4752 = vmatpush1.bf16.msra.mxu0 %v4719
        %4753 = vmatprep.subr.bf16.mxu0 0
        %4754 = vmatpush2.bf16.msra.mxu0 0
        %4755 = vmatprep.subr.bf16.mxu0 0
        %4756 = vmatpush2.bf16.msra.mxu0 0
        %4757 = vmatprep.subr.bf16.mxu0 0
        %4758 = vmatpush2.bf16.msra.mxu0 0
        %4759 = vmatprep.subr.bf16.mxu0 0
        %4760 = vmatpush2.bf16.msra.mxu0 0
        %4761 = vmatprep.subr.bf16.mxu0 0
        %4762 = vmatpush2.bf16.msra.mxu0 0
        %4763 = vmatprep.subr.bf16.mxu0 0
        %4764 = vmatpush2.bf16.msra.mxu0 0
        %4765 = vmatprep.subr.bf16.mxu0 0
        %4766 = vmatpush2.bf16.msra.mxu0 0
        %4767 = vmatprep.subr.bf16.mxu0 0
        %4768 = vmatpush2.bf16.msra.mxu0 0
        %4769 = vmatprep.mubr.bf16.mxu0 0
        %4770 = vmatmul.mubr.bf16.gmra.mxu0 %v4723
        %v4771 = vpop.f32.mrf.mxu0
        %v4772 = vadd.f32 0.0, %v4771
        %v4773 = vpop.f32.mrf.mxu0
        %v4774 = vpop.f32.mrf.mxu0
        %v4775 = vadd.f32 0.0, %v4774
        %v4776 = vpop.f32.mrf.mxu0
        %4777 = vmatprep.mubr.bf16.mxu0 0
        %4778 = vmatmul.mubr.bf16.gmra.mxu0 %v4726
        %v4779 = vpop.f32.mrf.mxu0
        %v4780 = vadd.f32 0.0, %v4779
        %v4781 = vpop.f32.mrf.mxu0
        %v4782 = vpop.f32.mrf.mxu0
        %v4783 = vadd.f32 0.0, %v4782
        %v4784 = vpop.f32.mrf.mxu0
        %4785 = vmatprep.mubr.bf16.mxu0 0
        %4786 = vmatmul.mubr.bf16.gmra.mxu0 %v4729
        %v4787 = vpop.f32.mrf.mxu0
        %v4788 = vadd.f32 0.0, %v4787
        %v4789 = vpop.f32.mrf.mxu0
        %v4790 = vpop.f32.mrf.mxu0
        %v4791 = vadd.f32 0.0, %v4790
        %v4792 = vpop.f32.mrf.mxu0
        %4793 = vmatprep.mubr.bf16.mxu0 0
        %4794 = vmatmul.mubr.bf16.gmra.mxu0 %v4732
        %v4795 = vpop.f32.mrf.mxu0
        %v4796 = vadd.f32 0.0, %v4795
        %v4797 = vpop.f32.mrf.mxu0
        %v4798 = vpop.f32.mrf.mxu0
        %v4799 = vadd.f32 0.0, %v4798
        %v4800 = vpop.f32.mrf.mxu0
        %4801 = vdwg.mxu0
        %v4802 = vadd.f32 %v4689, %v4772
        %v4803 = vadd.f32 %v4690, %v4775
        %v4804 = vadd.f32 %v4691, %v4780
        %v4805 = vadd.f32 %v4692, %v4783
        %v4806 = vadd.f32 %v4693, %v4788
        %v4807 = vadd.f32 %v4694, %v4791
        %v4808 = vadd.f32 %v4695, %v4796
        %v4809 = vadd.f32 %v4696, %v4799
        %v4810 = vld [vmem:[%s4130 + $0x3] sm:$0xff]
        %v4811 = vld [vmem:[%s4130 + $0x13] sm:$0xff]
        %v4812 = vld [vmem:[%s4130 + $0x23] sm:$0xff]
        %v4813 = vld [vmem:[%s4130 + $0x33] sm:$0xff]
        %v4814 = vld [vmem:[%s4130 + $0x43] sm:$0xff]
        %v4815 = vld [vmem:[%s4130 + $0x53] sm:$0xff]
        %v4816 = vld [vmem:[%s4130 + $0x63] sm:$0xff]
        %v4817 = vld [vmem:[%s4130 + $0x73] sm:$0xff]
        %v4818 = vpack.c.bf16 %v4811, %v4810
        %v4819 = vpack.c.bf16 %v4813, %v4812
        %v4820 = vpack.c.bf16 %v4815, %v4814
        %v4821 = vpack.c.bf16 %v4817, %v4816
        %s4822 = scalar_lea.vmem %s1, 492
        %v4823 = vld [vmem:[%s4822] sm:$0xf]
        %v4824 = vld [vmem:[%s4822 + $0x4] sm:$0xf]
        %v4825 = vld [vmem:[%s4822 + $0x8] sm:$0x7]
        %v4829 = vunpack.c.l.b16 %v4823
        %v4830 = vunpack.c.l.b16 %v4824
        %v4831 = vunpack.c.l.b16 %v4825
        %v4832 = vpack.c.b16 %v4830, %v4829
        %v4833 = vpack.c.b16 %v4831, %v4831
        %v4836 = vsel %vm222, %v4818, 0
        %v4839 = vsel %vm222, %v4819, 0
        %v4842 = vsel %vm222, %v4820, 0
        %v4845 = vsel %vm222, %v4821, 0
        %v4848 = vsel %vm235, %v4833, 0
        %4850 = vmatprep.subr.bf16.mxu0 0
        %4851 = vmatpush1.bf16.msra.mxu0 0
        %4852 = vmatprep.subr.bf16.mxu0 0
        %4853 = vmatpush1.bf16.msra.mxu0 0
        %4854 = vmatprep.subr.bf16.mxu0 0
        %4855 = vmatpush1.bf16.msra.mxu0 0
        %4856 = vmatprep.subr.bf16.mxu0 0
        %4857 = vmatpush1.bf16.msra.mxu0 0
        %4858 = vmatprep.subr.bf16.mxu0 0
        %4859 = vmatpush1.bf16.msra.mxu0 0
        %4860 = vmatprep.subr.bf16.mxu0 0
        %4861 = vmatpush1.bf16.msra.mxu0 0
        %4862 = vmatprep.subr.bf16.mxu0 0
        %4863 = vmatpush1.bf16.msra.mxu0 %v4848
        %4864 = vmatprep.subr.bf16.mxu0 0
        %4865 = vmatpush1.bf16.msra.mxu0 %v4832
        %4866 = vmatprep.subr.bf16.mxu0 0
        %4867 = vmatpush2.bf16.msra.mxu0 0
        %4868 = vmatprep.subr.bf16.mxu0 0
        %4869 = vmatpush2.bf16.msra.mxu0 0
        %4870 = vmatprep.subr.bf16.mxu0 0
        %4871 = vmatpush2.bf16.msra.mxu0 0
        %4872 = vmatprep.subr.bf16.mxu0 0
        %4873 = vmatpush2.bf16.msra.mxu0 0
        %4874 = vmatprep.subr.bf16.mxu0 0
        %4875 = vmatpush2.bf16.msra.mxu0 0
        %4876 = vmatprep.subr.bf16.mxu0 0
        %4877 = vmatpush2.bf16.msra.mxu0 0
        %4878 = vmatprep.subr.bf16.mxu0 0
        %4879 = vmatpush2.bf16.msra.mxu0 0
        %4880 = vmatprep.subr.bf16.mxu0 0
        %4881 = vmatpush2.bf16.msra.mxu0 0
        %4882 = vmatprep.mubr.bf16.mxu0 0
        %4883 = vmatmul.mubr.bf16.gmra.mxu0 %v4836
        %v4884 = vpop.f32.mrf.mxu0
        %v4885 = vadd.f32 0.0, %v4884
        %v4886 = vpop.f32.mrf.mxu0
        %v4887 = vpop.f32.mrf.mxu0
        %v4888 = vadd.f32 0.0, %v4887
        %v4889 = vpop.f32.mrf.mxu0
        %4890 = vmatprep.mubr.bf16.mxu0 0
        %4891 = vmatmul.mubr.bf16.gmra.mxu0 %v4839
        %v4892 = vpop.f32.mrf.mxu0
        %v4893 = vadd.f32 0.0, %v4892
        %v4894 = vpop.f32.mrf.mxu0
        %v4895 = vpop.f32.mrf.mxu0
        %v4896 = vadd.f32 0.0, %v4895
        %v4897 = vpop.f32.mrf.mxu0
        %4898 = vmatprep.mubr.bf16.mxu0 0
        %4899 = vmatmul.mubr.bf16.gmra.mxu0 %v4842
        %v4900 = vpop.f32.mrf.mxu0
        %v4901 = vadd.f32 0.0, %v4900
        %v4902 = vpop.f32.mrf.mxu0
        %v4903 = vpop.f32.mrf.mxu0
        %v4904 = vadd.f32 0.0, %v4903
        %v4905 = vpop.f32.mrf.mxu0
        %4906 = vmatprep.mubr.bf16.mxu0 0
        %4907 = vmatmul.mubr.bf16.gmra.mxu0 %v4845
        %v4908 = vpop.f32.mrf.mxu0
        %v4909 = vadd.f32 0.0, %v4908
        %v4910 = vpop.f32.mrf.mxu0
        %v4911 = vpop.f32.mrf.mxu0
        %v4912 = vadd.f32 0.0, %v4911
        %v4913 = vpop.f32.mrf.mxu0
        %4914 = vdwg.mxu0
        %v4915 = vadd.f32 %v4802, %v4885
        %v4916 = vadd.f32 %v4803, %v4888
        %v4917 = vadd.f32 %v4804, %v4893
        %v4918 = vadd.f32 %v4805, %v4896
        %v4919 = vadd.f32 %v4806, %v4901
        %v4920 = vadd.f32 %v4807, %v4904
        %v4921 = vadd.f32 %v4808, %v4909
        %v4922 = vadd.f32 %v4809, %v4912
        %s4923 = scalar_lea.vmem %s179, 48
        %v4924 = vld [vmem:[%s4923] sm:$0xff]
        %v4925 = vld [vmem:[%s4923 + $0x10] sm:$0xff]
        %v4926 = vld [vmem:[%s4923 + $0x20] sm:$0xff]
        %v4927 = vld [vmem:[%s4923 + $0x30] sm:$0xff]
        %v4928 = vld [vmem:[%s4923 + $0x40] sm:$0xff]
        %v4929 = vld [vmem:[%s4923 + $0x50] sm:$0xff]
        %v4930 = vld [vmem:[%s4923 + $0x60] sm:$0xff]
        %v4931 = vld [vmem:[%s4923 + $0x70] sm:$0xff]
        %v4932 = vpack.c.bf16 %v4925, %v4924
        %v4933 = vpack.c.bf16 %v4927, %v4926
        %v4934 = vpack.c.bf16 %v4929, %v4928
        %v4935 = vpack.c.bf16 %v4931, %v4930
        %s4936 = scalar_lea.vmem %s1, 504
        %v4937 = vld [vmem:[%s4936] sm:$0xf]
        %v4938 = vld [vmem:[%s4936 + $0x4] sm:$0xf]
        %v4939 = vld [vmem:[%s4936 + $0x8] sm:$0x7]
        %v4943 = vunpack.c.l.b16 %v4937
        %v4944 = vunpack.c.l.b16 %v4938
        %v4945 = vunpack.c.l.b16 %v4939
        %v4946 = vpack.c.b16 %v4944, %v4943
        %v4947 = vpack.c.b16 %v4945, %v4945
        %v4950 = vsel %vm222, %v4932, 0
        %v4953 = vsel %vm222, %v4933, 0
        %v4956 = vsel %vm222, %v4934, 0
        %v4959 = vsel %vm222, %v4935, 0
        %v4962 = vsel %vm235, %v4947, 0
        %4964 = vmatprep.subr.bf16.mxu0 0
        %4965 = vmatpush1.bf16.msra.mxu0 0
        %4966 = vmatprep.subr.bf16.mxu0 0
        %4967 = vmatpush1.bf16.msra.mxu0 0
        %4968 = vmatprep.subr.bf16.mxu0 0
        %4969 = vmatpush1.bf16.msra.mxu0 0
        %4970 = vmatprep.subr.bf16.mxu0 0
        %4971 = vmatpush1.bf16.msra.mxu0 0
        %4972 = vmatprep.subr.bf16.mxu0 0
        %4973 = vmatpush1.bf16.msra.mxu0 0
        %4974 = vmatprep.subr.bf16.mxu0 0
        %4975 = vmatpush1.bf16.msra.mxu0 0
        %4976 = vmatprep.subr.bf16.mxu0 0
        %4977 = vmatpush1.bf16.msra.mxu0 %v4962
        %4978 = vmatprep.subr.bf16.mxu0 0
        %4979 = vmatpush1.bf16.msra.mxu0 %v4946
        %4980 = vmatprep.subr.bf16.mxu0 0
        %4981 = vmatpush2.bf16.msra.mxu0 0
        %4982 = vmatprep.subr.bf16.mxu0 0
        %4983 = vmatpush2.bf16.msra.mxu0 0
        %4984 = vmatprep.subr.bf16.mxu0 0
        %4985 = vmatpush2.bf16.msra.mxu0 0
        %4986 = vmatprep.subr.bf16.mxu0 0
        %4987 = vmatpush2.bf16.msra.mxu0 0
        %4988 = vmatprep.subr.bf16.mxu0 0
        %4989 = vmatpush2.bf16.msra.mxu0 0
        %4990 = vmatprep.subr.bf16.mxu0 0
        %4991 = vmatpush2.bf16.msra.mxu0 0
        %4992 = vmatprep.subr.bf16.mxu0 0
        %4993 = vmatpush2.bf16.msra.mxu0 0
        %4994 = vmatprep.subr.bf16.mxu0 0
        %4995 = vmatpush2.bf16.msra.mxu0 0
        %4996 = vmatprep.mubr.bf16.mxu0 0
        %4997 = vmatmul.mubr.bf16.gmra.mxu0 %v4950
        %v4998 = vpop.f32.mrf.mxu0
        %v4999 = vadd.f32 0.0, %v4998
        %v5000 = vpop.f32.mrf.mxu0
        %v5001 = vpop.f32.mrf.mxu0
        %v5002 = vadd.f32 0.0, %v5001
        %v5003 = vpop.f32.mrf.mxu0
        %5004 = vmatprep.mubr.bf16.mxu0 0
        %5005 = vmatmul.mubr.bf16.gmra.mxu0 %v4953
        %v5006 = vpop.f32.mrf.mxu0
        %v5007 = vadd.f32 0.0, %v5006
        %v5008 = vpop.f32.mrf.mxu0
        %v5009 = vpop.f32.mrf.mxu0
        %v5010 = vadd.f32 0.0, %v5009
        %v5011 = vpop.f32.mrf.mxu0
        %5012 = vmatprep.mubr.bf16.mxu0 0
        %5013 = vmatmul.mubr.bf16.gmra.mxu0 %v4956
        %v5014 = vpop.f32.mrf.mxu0
        %v5015 = vadd.f32 0.0, %v5014
        %v5016 = vpop.f32.mrf.mxu0
        %v5017 = vpop.f32.mrf.mxu0
        %v5018 = vadd.f32 0.0, %v5017
        %v5019 = vpop.f32.mrf.mxu0
        %5020 = vmatprep.mubr.bf16.mxu0 0
        %5021 = vmatmul.mubr.bf16.gmra.mxu0 %v4959
        %v5022 = vpop.f32.mrf.mxu0
        %v5023 = vadd.f32 0.0, %v5022
        %v5024 = vpop.f32.mrf.mxu0
        %v5025 = vpop.f32.mrf.mxu0
        %v5026 = vadd.f32 0.0, %v5025
        %v5027 = vpop.f32.mrf.mxu0
        %5028 = vdwg.mxu0
        %v5029 = vadd.f32 %v4915, %v4999
        %v5030 = vadd.f32 %v4916, %v5002
        %v5031 = vadd.f32 %v4917, %v5007
        %v5032 = vadd.f32 %v4918, %v5010
        %v5033 = vadd.f32 %v4919, %v5015
        %v5034 = vadd.f32 %v4920, %v5018
        %v5035 = vadd.f32 %v4921, %v5023
        %v5036 = vadd.f32 %v4922, %v5026
        %s5037 = scalar_lea.vmem %s179, 224
        %v5038 = vld [vmem:[%s5037] sm:$0xff]
        %v5039 = vld [vmem:[%s5037 + $0x10] sm:$0xff]
        %v5040 = vld [vmem:[%s5037 + $0x20] sm:$0xff]
        %v5041 = vld [vmem:[%s5037 + $0x30] sm:$0xff]
        %v5042 = vld [vmem:[%s5037 + $0x40] sm:$0xff]
        %v5043 = vld [vmem:[%s5037 + $0x50] sm:$0xff]
        %v5044 = vld [vmem:[%s5037 + $0x60] sm:$0xff]
        %v5045 = vld [vmem:[%s5037 + $0x70] sm:$0xff]
        %v5046 = vpack.c.bf16 %v5039, %v5038
        %v5047 = vpack.c.bf16 %v5041, %v5040
        %v5048 = vpack.c.bf16 %v5043, %v5042
        %v5049 = vpack.c.bf16 %v5045, %v5044
        %s5050 = scalar_lea.vmem %s1, 516
        %v5051 = vld [vmem:[%s5050] sm:$0xf]
        %v5052 = vld [vmem:[%s5050 + $0x4] sm:$0xf]
        %v5053 = vld [vmem:[%s5050 + $0x8] sm:$0x7]
        %v5057 = vunpack.c.l.b16 %v5051
        %v5058 = vunpack.c.l.b16 %v5052
        %v5059 = vunpack.c.l.b16 %v5053
        %v5060 = vpack.c.b16 %v5058, %v5057
        %v5061 = vpack.c.b16 %v5059, %v5059
        %v5064 = vsel %vm222, %v5046, 0
        %v5067 = vsel %vm222, %v5047, 0
        %v5070 = vsel %vm222, %v5048, 0
        %v5073 = vsel %vm222, %v5049, 0
        %v5076 = vsel %vm235, %v5061, 0
        %5078 = vmatprep.subr.bf16.mxu0 0
        %5079 = vmatpush1.bf16.msra.mxu0 0
        %5080 = vmatprep.subr.bf16.mxu0 0
        %5081 = vmatpush1.bf16.msra.mxu0 0
        %5082 = vmatprep.subr.bf16.mxu0 0
        %5083 = vmatpush1.bf16.msra.mxu0 0
        %5084 = vmatprep.subr.bf16.mxu0 0
        %5085 = vmatpush1.bf16.msra.mxu0 0
        %5086 = vmatprep.subr.bf16.mxu0 0
        %5087 = vmatpush1.bf16.msra.mxu0 0
        %5088 = vmatprep.subr.bf16.mxu0 0
        %5089 = vmatpush1.bf16.msra.mxu0 0
        %5090 = vmatprep.subr.bf16.mxu0 0
        %5091 = vmatpush1.bf16.msra.mxu0 %v5076
        %5092 = vmatprep.subr.bf16.mxu0 0
        %5093 = vmatpush1.bf16.msra.mxu0 %v5060
        %5094 = vmatprep.subr.bf16.mxu0 0
        %5095 = vmatpush2.bf16.msra.mxu0 0
        %5096 = vmatprep.subr.bf16.mxu0 0
        %5097 = vmatpush2.bf16.msra.mxu0 0
        %5098 = vmatprep.subr.bf16.mxu0 0
        %5099 = vmatpush2.bf16.msra.mxu0 0
        %5100 = vmatprep.subr.bf16.mxu0 0
        %5101 = vmatpush2.bf16.msra.mxu0 0
        %5102 = vmatprep.subr.bf16.mxu0 0
        %5103 = vmatpush2.bf16.msra.mxu0 0
        %5104 = vmatprep.subr.bf16.mxu0 0
        %5105 = vmatpush2.bf16.msra.mxu0 0
        %5106 = vmatprep.subr.bf16.mxu0 0
        %5107 = vmatpush2.bf16.msra.mxu0 0
        %5108 = vmatprep.subr.bf16.mxu0 0
        %5109 = vmatpush2.bf16.msra.mxu0 0
        %5110 = vmatprep.mubr.bf16.mxu0 0
        %5111 = vmatmul.mubr.bf16.gmra.mxu0 %v5064
        %v5112 = vpop.f32.mrf.mxu0
        %v5113 = vadd.f32 0.0, %v5112
        %v5114 = vpop.f32.mrf.mxu0
        %v5115 = vpop.f32.mrf.mxu0
        %v5116 = vadd.f32 0.0, %v5115
        %v5117 = vpop.f32.mrf.mxu0
        %5118 = vmatprep.mubr.bf16.mxu0 0
        %5119 = vmatmul.mubr.bf16.gmra.mxu0 %v5067
        %v5120 = vpop.f32.mrf.mxu0
        %v5121 = vadd.f32 0.0, %v5120
        %v5122 = vpop.f32.mrf.mxu0
        %v5123 = vpop.f32.mrf.mxu0
        %v5124 = vadd.f32 0.0, %v5123
        %v5125 = vpop.f32.mrf.mxu0
        %5126 = vmatprep.mubr.bf16.mxu0 0
        %5127 = vmatmul.mubr.bf16.gmra.mxu0 %v5070
        %v5128 = vpop.f32.mrf.mxu0
        %v5129 = vadd.f32 0.0, %v5128
        %v5130 = vpop.f32.mrf.mxu0
        %v5131 = vpop.f32.mrf.mxu0
        %v5132 = vadd.f32 0.0, %v5131
        %v5133 = vpop.f32.mrf.mxu0
        %5134 = vmatprep.mubr.bf16.mxu0 0
        %5135 = vmatmul.mubr.bf16.gmra.mxu0 %v5073
        %v5136 = vpop.f32.mrf.mxu0
        %v5137 = vadd.f32 0.0, %v5136
        %v5138 = vpop.f32.mrf.mxu0
        %v5139 = vpop.f32.mrf.mxu0
        %v5140 = vadd.f32 0.0, %v5139
        %v5141 = vpop.f32.mrf.mxu0
        %5142 = vdwg.mxu0
        %v5143 = vadd.f32 %v5029, %v5113
        %v5144 = vadd.f32 %v5030, %v5116
        %v5145 = vadd.f32 %v5031, %v5121
        %v5146 = vadd.f32 %v5032, %v5124
        %v5147 = vadd.f32 %v5033, %v5129
        %v5148 = vadd.f32 %v5034, %v5132
        %v5149 = vadd.f32 %v5035, %v5137
        %v5150 = vadd.f32 %v5036, %v5140
        %v5151 = vld [vmem:[%s4923 + $0x1] sm:$0xff]
        %v5152 = vld [vmem:[%s4923 + $0x11] sm:$0xff]
        %v5153 = vld [vmem:[%s4923 + $0x21] sm:$0xff]
        %v5154 = vld [vmem:[%s4923 + $0x31] sm:$0xff]
        %v5155 = vld [vmem:[%s4923 + $0x41] sm:$0xff]
        %v5156 = vld [vmem:[%s4923 + $0x51] sm:$0xff]
        %v5157 = vld [vmem:[%s4923 + $0x61] sm:$0xff]
        %v5158 = vld [vmem:[%s4923 + $0x71] sm:$0xff]
        %v5159 = vpack.c.bf16 %v5152, %v5151
        %v5160 = vpack.c.bf16 %v5154, %v5153
        %v5161 = vpack.c.bf16 %v5156, %v5155
        %v5162 = vpack.c.bf16 %v5158, %v5157
        %s5163 = scalar_lea.vmem %s1, 528
        %v5164 = vld [vmem:[%s5163] sm:$0xf]
        %v5165 = vld [vmem:[%s5163 + $0x4] sm:$0xf]
        %v5166 = vld [vmem:[%s5163 + $0x8] sm:$0x7]
        %v5170 = vunpack.c.l.b16 %v5164
        %v5171 = vunpack.c.l.b16 %v5165
        %v5172 = vunpack.c.l.b16 %v5166
        %v5173 = vpack.c.b16 %v5171, %v5170
        %v5174 = vpack.c.b16 %v5172, %v5172
        %v5177 = vsel %vm222, %v5159, 0
        %v5180 = vsel %vm222, %v5160, 0
        %v5183 = vsel %vm222, %v5161, 0
        %v5186 = vsel %vm222, %v5162, 0
        %v5189 = vsel %vm235, %v5174, 0
        %5191 = vmatprep.subr.bf16.mxu0 0
        %5192 = vmatpush1.bf16.msra.mxu0 0
        %5193 = vmatprep.subr.bf16.mxu0 0
        %5194 = vmatpush1.bf16.msra.mxu0 0
        %5195 = vmatprep.subr.bf16.mxu0 0
        %5196 = vmatpush1.bf16.msra.mxu0 0
        %5197 = vmatprep.subr.bf16.mxu0 0
        %5198 = vmatpush1.bf16.msra.mxu0 0
        %5199 = vmatprep.subr.bf16.mxu0 0
        %5200 = vmatpush1.bf16.msra.mxu0 0
        %5201 = vmatprep.subr.bf16.mxu0 0
        %5202 = vmatpush1.bf16.msra.mxu0 0
        %5203 = vmatprep.subr.bf16.mxu0 0
        %5204 = vmatpush1.bf16.msra.mxu0 %v5189
        %5205 = vmatprep.subr.bf16.mxu0 0
        %5206 = vmatpush1.bf16.msra.mxu0 %v5173
        %5207 = vmatprep.subr.bf16.mxu0 0
        %5208 = vmatpush2.bf16.msra.mxu0 0
        %5209 = vmatprep.subr.bf16.mxu0 0
        %5210 = vmatpush2.bf16.msra.mxu0 0
        %5211 = vmatprep.subr.bf16.mxu0 0
        %5212 = vmatpush2.bf16.msra.mxu0 0
        %5213 = vmatprep.subr.bf16.mxu0 0
        %5214 = vmatpush2.bf16.msra.mxu0 0
        %5215 = vmatprep.subr.bf16.mxu0 0
        %5216 = vmatpush2.bf16.msra.mxu0 0
        %5217 = vmatprep.subr.bf16.mxu0 0
        %5218 = vmatpush2.bf16.msra.mxu0 0
        %5219 = vmatprep.subr.bf16.mxu0 0
        %5220 = vmatpush2.bf16.msra.mxu0 0
        %5221 = vmatprep.subr.bf16.mxu0 0
        %5222 = vmatpush2.bf16.msra.mxu0 0
        %5223 = vmatprep.mubr.bf16.mxu0 0
        %5224 = vmatmul.mubr.bf16.gmra.mxu0 %v5177
        %v5225 = vpop.f32.mrf.mxu0
        %v5226 = vadd.f32 0.0, %v5225
        %v5227 = vpop.f32.mrf.mxu0
        %v5228 = vpop.f32.mrf.mxu0
        %v5229 = vadd.f32 0.0, %v5228
        %v5230 = vpop.f32.mrf.mxu0
        %5231 = vmatprep.mubr.bf16.mxu0 0
        %5232 = vmatmul.mubr.bf16.gmra.mxu0 %v5180
        %v5233 = vpop.f32.mrf.mxu0
        %v5234 = vadd.f32 0.0, %v5233
        %v5235 = vpop.f32.mrf.mxu0
        %v5236 = vpop.f32.mrf.mxu0
        %v5237 = vadd.f32 0.0, %v5236
        %v5238 = vpop.f32.mrf.mxu0
        %5239 = vmatprep.mubr.bf16.mxu0 0
        %5240 = vmatmul.mubr.bf16.gmra.mxu0 %v5183
        %v5241 = vpop.f32.mrf.mxu0
        %v5242 = vadd.f32 0.0, %v5241
        %v5243 = vpop.f32.mrf.mxu0
        %v5244 = vpop.f32.mrf.mxu0
        %v5245 = vadd.f32 0.0, %v5244
        %v5246 = vpop.f32.mrf.mxu0
        %5247 = vmatprep.mubr.bf16.mxu0 0
        %5248 = vmatmul.mubr.bf16.gmra.mxu0 %v5186
        %v5249 = vpop.f32.mrf.mxu0
        %v5250 = vadd.f32 0.0, %v5249
        %v5251 = vpop.f32.mrf.mxu0
        %v5252 = vpop.f32.mrf.mxu0
        %v5253 = vadd.f32 0.0, %v5252
        %v5254 = vpop.f32.mrf.mxu0
        %5255 = vdwg.mxu0
        %v5256 = vadd.f32 %v5143, %v5226
        %v5257 = vadd.f32 %v5144, %v5229
        %v5258 = vadd.f32 %v5145, %v5234
        %v5259 = vadd.f32 %v5146, %v5237
        %v5260 = vadd.f32 %v5147, %v5242
        %v5261 = vadd.f32 %v5148, %v5245
        %v5262 = vadd.f32 %v5149, %v5250
        %v5263 = vadd.f32 %v5150, %v5253
        %v5264 = vld [vmem:[%s5037 + $0x1] sm:$0xff]
        %v5265 = vld [vmem:[%s5037 + $0x11] sm:$0xff]
        %v5266 = vld [vmem:[%s5037 + $0x21] sm:$0xff]
        %v5267 = vld [vmem:[%s5037 + $0x31] sm:$0xff]
        %v5268 = vld [vmem:[%s5037 + $0x41] sm:$0xff]
        %v5269 = vld [vmem:[%s5037 + $0x51] sm:$0xff]
        %v5270 = vld [vmem:[%s5037 + $0x61] sm:$0xff]
        %v5271 = vld [vmem:[%s5037 + $0x71] sm:$0xff]
        %v5272 = vpack.c.bf16 %v5265, %v5264
        %v5273 = vpack.c.bf16 %v5267, %v5266
        %v5274 = vpack.c.bf16 %v5269, %v5268
        %v5275 = vpack.c.bf16 %v5271, %v5270
        %s5276 = scalar_lea.vmem %s1, 540
        %v5277 = vld [vmem:[%s5276] sm:$0xf]
        %v5278 = vld [vmem:[%s5276 + $0x4] sm:$0xf]
        %v5279 = vld [vmem:[%s5276 + $0x8] sm:$0x7]
        %v5283 = vunpack.c.l.b16 %v5277
        %v5284 = vunpack.c.l.b16 %v5278
        %v5285 = vunpack.c.l.b16 %v5279
        %v5286 = vpack.c.b16 %v5284, %v5283
        %v5287 = vpack.c.b16 %v5285, %v5285
        %v5290 = vsel %vm222, %v5272, 0
        %v5293 = vsel %vm222, %v5273, 0
        %v5296 = vsel %vm222, %v5274, 0
        %v5299 = vsel %vm222, %v5275, 0
        %v5302 = vsel %vm235, %v5287, 0
        %5304 = vmatprep.subr.bf16.mxu0 0
        %5305 = vmatpush1.bf16.msra.mxu0 0
        %5306 = vmatprep.subr.bf16.mxu0 0
        %5307 = vmatpush1.bf16.msra.mxu0 0
        %5308 = vmatprep.subr.bf16.mxu0 0
        %5309 = vmatpush1.bf16.msra.mxu0 0
        %5310 = vmatprep.subr.bf16.mxu0 0
        %5311 = vmatpush1.bf16.msra.mxu0 0
        %5312 = vmatprep.subr.bf16.mxu0 0
        %5313 = vmatpush1.bf16.msra.mxu0 0
        %5314 = vmatprep.subr.bf16.mxu0 0
        %5315 = vmatpush1.bf16.msra.mxu0 0
        %5316 = vmatprep.subr.bf16.mxu0 0
        %5317 = vmatpush1.bf16.msra.mxu0 %v5302
        %5318 = vmatprep.subr.bf16.mxu0 0
        %5319 = vmatpush1.bf16.msra.mxu0 %v5286
        %5320 = vmatprep.subr.bf16.mxu0 0
        %5321 = vmatpush2.bf16.msra.mxu0 0
        %5322 = vmatprep.subr.bf16.mxu0 0
        %5323 = vmatpush2.bf16.msra.mxu0 0
        %5324 = vmatprep.subr.bf16.mxu0 0
        %5325 = vmatpush2.bf16.msra.mxu0 0
        %5326 = vmatprep.subr.bf16.mxu0 0
        %5327 = vmatpush2.bf16.msra.mxu0 0
        %5328 = vmatprep.subr.bf16.mxu0 0
        %5329 = vmatpush2.bf16.msra.mxu0 0
        %5330 = vmatprep.subr.bf16.mxu0 0
        %5331 = vmatpush2.bf16.msra.mxu0 0
        %5332 = vmatprep.subr.bf16.mxu0 0
        %5333 = vmatpush2.bf16.msra.mxu0 0
        %5334 = vmatprep.subr.bf16.mxu0 0
        %5335 = vmatpush2.bf16.msra.mxu0 0
        %5336 = vmatprep.mubr.bf16.mxu0 0
        %5337 = vmatmul.mubr.bf16.gmra.mxu0 %v5290
        %v5338 = vpop.f32.mrf.mxu0
        %v5339 = vadd.f32 0.0, %v5338
        %v5340 = vpop.f32.mrf.mxu0
        %v5341 = vpop.f32.mrf.mxu0
        %v5342 = vadd.f32 0.0, %v5341
        %v5343 = vpop.f32.mrf.mxu0
        %5344 = vmatprep.mubr.bf16.mxu0 0
        %5345 = vmatmul.mubr.bf16.gmra.mxu0 %v5293
        %v5346 = vpop.f32.mrf.mxu0
        %v5347 = vadd.f32 0.0, %v5346
        %v5348 = vpop.f32.mrf.mxu0
        %v5349 = vpop.f32.mrf.mxu0
        %v5350 = vadd.f32 0.0, %v5349
        %v5351 = vpop.f32.mrf.mxu0
        %5352 = vmatprep.mubr.bf16.mxu0 0
        %5353 = vmatmul.mubr.bf16.gmra.mxu0 %v5296
        %v5354 = vpop.f32.mrf.mxu0
        %v5355 = vadd.f32 0.0, %v5354
        %v5356 = vpop.f32.mrf.mxu0
        %v5357 = vpop.f32.mrf.mxu0
        %v5358 = vadd.f32 0.0, %v5357
        %v5359 = vpop.f32.mrf.mxu0
        %5360 = vmatprep.mubr.bf16.mxu0 0
        %5361 = vmatmul.mubr.bf16.gmra.mxu0 %v5299
        %v5362 = vpop.f32.mrf.mxu0
        %v5363 = vadd.f32 0.0, %v5362
        %v5364 = vpop.f32.mrf.mxu0
        %v5365 = vpop.f32.mrf.mxu0
        %v5366 = vadd.f32 0.0, %v5365
        %v5367 = vpop.f32.mrf.mxu0
        %5368 = vdwg.mxu0
        %v5369 = vadd.f32 %v5256, %v5339
        %v5370 = vadd.f32 %v5257, %v5342
        %v5371 = vadd.f32 %v5258, %v5347
        %v5372 = vadd.f32 %v5259, %v5350
        %v5373 = vadd.f32 %v5260, %v5355
        %v5374 = vadd.f32 %v5261, %v5358
        %v5375 = vadd.f32 %v5262, %v5363
        %v5376 = vadd.f32 %v5263, %v5366
        %v5377 = vld [vmem:[%s4923 + $0x2] sm:$0xff]
        %v5378 = vld [vmem:[%s4923 + $0x12] sm:$0xff]
        %v5379 = vld [vmem:[%s4923 + $0x22] sm:$0xff]
        %v5380 = vld [vmem:[%s4923 + $0x32] sm:$0xff]
        %v5381 = vld [vmem:[%s4923 + $0x42] sm:$0xff]
        %v5382 = vld [vmem:[%s4923 + $0x52] sm:$0xff]
        %v5383 = vld [vmem:[%s4923 + $0x62] sm:$0xff]
        %v5384 = vld [vmem:[%s4923 + $0x72] sm:$0xff]
        %v5385 = vpack.c.bf16 %v5378, %v5377
        %v5386 = vpack.c.bf16 %v5380, %v5379
        %v5387 = vpack.c.bf16 %v5382, %v5381
        %v5388 = vpack.c.bf16 %v5384, %v5383
        %s5389 = scalar_lea.vmem %s1, 552
        %v5390 = vld [vmem:[%s5389] sm:$0xf]
        %v5391 = vld [vmem:[%s5389 + $0x4] sm:$0xf]
        %v5392 = vld [vmem:[%s5389 + $0x8] sm:$0x7]
        %v5396 = vunpack.c.l.b16 %v5390
        %v5397 = vunpack.c.l.b16 %v5391
        %v5398 = vunpack.c.l.b16 %v5392
        %v5399 = vpack.c.b16 %v5397, %v5396
        %v5400 = vpack.c.b16 %v5398, %v5398
        %v5403 = vsel %vm222, %v5385, 0
        %v5406 = vsel %vm222, %v5386, 0
        %v5409 = vsel %vm222, %v5387, 0
        %v5412 = vsel %vm222, %v5388, 0
        %v5415 = vsel %vm235, %v5400, 0
        %5417 = vmatprep.subr.bf16.mxu0 0
        %5418 = vmatpush1.bf16.msra.mxu0 0
        %5419 = vmatprep.subr.bf16.mxu0 0
        %5420 = vmatpush1.bf16.msra.mxu0 0
        %5421 = vmatprep.subr.bf16.mxu0 0
        %5422 = vmatpush1.bf16.msra.mxu0 0
        %5423 = vmatprep.subr.bf16.mxu0 0
        %5424 = vmatpush1.bf16.msra.mxu0 0
        %5425 = vmatprep.subr.bf16.mxu0 0
        %5426 = vmatpush1.bf16.msra.mxu0 0
        %5427 = vmatprep.subr.bf16.mxu0 0
        %5428 = vmatpush1.bf16.msra.mxu0 0
        %5429 = vmatprep.subr.bf16.mxu0 0
        %5430 = vmatpush1.bf16.msra.mxu0 %v5415
        %5431 = vmatprep.subr.bf16.mxu0 0
        %5432 = vmatpush1.bf16.msra.mxu0 %v5399
        %5433 = vmatprep.subr.bf16.mxu0 0
        %5434 = vmatpush2.bf16.msra.mxu0 0
        %5435 = vmatprep.subr.bf16.mxu0 0
        %5436 = vmatpush2.bf16.msra.mxu0 0
        %5437 = vmatprep.subr.bf16.mxu0 0
        %5438 = vmatpush2.bf16.msra.mxu0 0
        %5439 = vmatprep.subr.bf16.mxu0 0
        %5440 = vmatpush2.bf16.msra.mxu0 0
        %5441 = vmatprep.subr.bf16.mxu0 0
        %5442 = vmatpush2.bf16.msra.mxu0 0
        %5443 = vmatprep.subr.bf16.mxu0 0
        %5444 = vmatpush2.bf16.msra.mxu0 0
        %5445 = vmatprep.subr.bf16.mxu0 0
        %5446 = vmatpush2.bf16.msra.mxu0 0
        %5447 = vmatprep.subr.bf16.mxu0 0
        %5448 = vmatpush2.bf16.msra.mxu0 0
        %5449 = vmatprep.mubr.bf16.mxu0 0
        %5450 = vmatmul.mubr.bf16.gmra.mxu0 %v5403
        %v5451 = vpop.f32.mrf.mxu0
        %v5452 = vadd.f32 0.0, %v5451
        %v5453 = vpop.f32.mrf.mxu0
        %v5454 = vpop.f32.mrf.mxu0
        %v5455 = vadd.f32 0.0, %v5454
        %v5456 = vpop.f32.mrf.mxu0
        %5457 = vmatprep.mubr.bf16.mxu0 0
        %5458 = vmatmul.mubr.bf16.gmra.mxu0 %v5406
        %v5459 = vpop.f32.mrf.mxu0
        %v5460 = vadd.f32 0.0, %v5459
        %v5461 = vpop.f32.mrf.mxu0
        %v5462 = vpop.f32.mrf.mxu0
        %v5463 = vadd.f32 0.0, %v5462
        %v5464 = vpop.f32.mrf.mxu0
        %5465 = vmatprep.mubr.bf16.mxu0 0
        %5466 = vmatmul.mubr.bf16.gmra.mxu0 %v5409
        %v5467 = vpop.f32.mrf.mxu0
        %v5468 = vadd.f32 0.0, %v5467
        %v5469 = vpop.f32.mrf.mxu0
        %v5470 = vpop.f32.mrf.mxu0
        %v5471 = vadd.f32 0.0, %v5470
        %v5472 = vpop.f32.mrf.mxu0
        %5473 = vmatprep.mubr.bf16.mxu0 0
        %5474 = vmatmul.mubr.bf16.gmra.mxu0 %v5412
        %v5475 = vpop.f32.mrf.mxu0
        %v5476 = vadd.f32 0.0, %v5475
        %v5477 = vpop.f32.mrf.mxu0
        %v5478 = vpop.f32.mrf.mxu0
        %v5479 = vadd.f32 0.0, %v5478
        %v5480 = vpop.f32.mrf.mxu0
        %5481 = vdwg.mxu0
        %v5482 = vadd.f32 %v5369, %v5452
        %v5483 = vadd.f32 %v5370, %v5455
        %v5484 = vadd.f32 %v5371, %v5460
        %v5485 = vadd.f32 %v5372, %v5463
        %v5486 = vadd.f32 %v5373, %v5468
        %v5487 = vadd.f32 %v5374, %v5471
        %v5488 = vadd.f32 %v5375, %v5476
        %v5489 = vadd.f32 %v5376, %v5479
        %v5490 = vld [vmem:[%s5037 + $0x2] sm:$0xff]
        %v5491 = vld [vmem:[%s5037 + $0x12] sm:$0xff]
        %v5492 = vld [vmem:[%s5037 + $0x22] sm:$0xff]
        %v5493 = vld [vmem:[%s5037 + $0x32] sm:$0xff]
        %v5494 = vld [vmem:[%s5037 + $0x42] sm:$0xff]
        %v5495 = vld [vmem:[%s5037 + $0x52] sm:$0xff]
        %v5496 = vld [vmem:[%s5037 + $0x62] sm:$0xff]
        %v5497 = vld [vmem:[%s5037 + $0x72] sm:$0xff]
        %v5498 = vpack.c.bf16 %v5491, %v5490
        %v5499 = vpack.c.bf16 %v5493, %v5492
        %v5500 = vpack.c.bf16 %v5495, %v5494
        %v5501 = vpack.c.bf16 %v5497, %v5496
        %s5502 = scalar_lea.vmem %s1, 564
        %v5503 = vld [vmem:[%s5502] sm:$0xf]
        %v5504 = vld [vmem:[%s5502 + $0x4] sm:$0xf]
        %v5505 = vld [vmem:[%s5502 + $0x8] sm:$0x7]
        %v5509 = vunpack.c.l.b16 %v5503
        %v5510 = vunpack.c.l.b16 %v5504
        %v5511 = vunpack.c.l.b16 %v5505
        %v5512 = vpack.c.b16 %v5510, %v5509
        %v5513 = vpack.c.b16 %v5511, %v5511
        %v5516 = vsel %vm222, %v5498, 0
        %v5519 = vsel %vm222, %v5499, 0
        %v5522 = vsel %vm222, %v5500, 0
        %v5525 = vsel %vm222, %v5501, 0
        %v5528 = vsel %vm235, %v5513, 0
        %5530 = vmatprep.subr.bf16.mxu0 0
        %5531 = vmatpush1.bf16.msra.mxu0 0
        %5532 = vmatprep.subr.bf16.mxu0 0
        %5533 = vmatpush1.bf16.msra.mxu0 0
        %5534 = vmatprep.subr.bf16.mxu0 0
        %5535 = vmatpush1.bf16.msra.mxu0 0
        %5536 = vmatprep.subr.bf16.mxu0 0
        %5537 = vmatpush1.bf16.msra.mxu0 0
        %5538 = vmatprep.subr.bf16.mxu0 0
        %5539 = vmatpush1.bf16.msra.mxu0 0
        %5540 = vmatprep.subr.bf16.mxu0 0
        %5541 = vmatpush1.bf16.msra.mxu0 0
        %5542 = vmatprep.subr.bf16.mxu0 0
        %5543 = vmatpush1.bf16.msra.mxu0 %v5528
        %5544 = vmatprep.subr.bf16.mxu0 0
        %5545 = vmatpush1.bf16.msra.mxu0 %v5512
        %5546 = vmatprep.subr.bf16.mxu0 0
        %5547 = vmatpush2.bf16.msra.mxu0 0
        %5548 = vmatprep.subr.bf16.mxu0 0
        %5549 = vmatpush2.bf16.msra.mxu0 0
        %5550 = vmatprep.subr.bf16.mxu0 0
        %5551 = vmatpush2.bf16.msra.mxu0 0
        %5552 = vmatprep.subr.bf16.mxu0 0
        %5553 = vmatpush2.bf16.msra.mxu0 0
        %5554 = vmatprep.subr.bf16.mxu0 0
        %5555 = vmatpush2.bf16.msra.mxu0 0
        %5556 = vmatprep.subr.bf16.mxu0 0
        %5557 = vmatpush2.bf16.msra.mxu0 0
        %5558 = vmatprep.subr.bf16.mxu0 0
        %5559 = vmatpush2.bf16.msra.mxu0 0
        %5560 = vmatprep.subr.bf16.mxu0 0
        %5561 = vmatpush2.bf16.msra.mxu0 0
        %5562 = vmatprep.mubr.bf16.mxu0 0
        %5563 = vmatmul.mubr.bf16.gmra.mxu0 %v5516
        %v5564 = vpop.f32.mrf.mxu0
        %v5565 = vadd.f32 0.0, %v5564
        %v5566 = vpop.f32.mrf.mxu0
        %v5567 = vpop.f32.mrf.mxu0
        %v5568 = vadd.f32 0.0, %v5567
        %v5569 = vpop.f32.mrf.mxu0
        %5570 = vmatprep.mubr.bf16.mxu0 0
        %5571 = vmatmul.mubr.bf16.gmra.mxu0 %v5519
        %v5572 = vpop.f32.mrf.mxu0
        %v5573 = vadd.f32 0.0, %v5572
        %v5574 = vpop.f32.mrf.mxu0
        %v5575 = vpop.f32.mrf.mxu0
        %v5576 = vadd.f32 0.0, %v5575
        %v5577 = vpop.f32.mrf.mxu0
        %5578 = vmatprep.mubr.bf16.mxu0 0
        %5579 = vmatmul.mubr.bf16.gmra.mxu0 %v5522
        %v5580 = vpop.f32.mrf.mxu0
        %v5581 = vadd.f32 0.0, %v5580
        %v5582 = vpop.f32.mrf.mxu0
        %v5583 = vpop.f32.mrf.mxu0
        %v5584 = vadd.f32 0.0, %v5583
        %v5585 = vpop.f32.mrf.mxu0
        %5586 = vmatprep.mubr.bf16.mxu0 0
        %5587 = vmatmul.mubr.bf16.gmra.mxu0 %v5525
        %v5588 = vpop.f32.mrf.mxu0
        %v5589 = vadd.f32 0.0, %v5588
        %v5590 = vpop.f32.mrf.mxu0
        %v5591 = vpop.f32.mrf.mxu0
        %v5592 = vadd.f32 0.0, %v5591
        %v5593 = vpop.f32.mrf.mxu0
        %5594 = vdwg.mxu0
        %v5595 = vadd.f32 %v5482, %v5565
        %v5596 = vadd.f32 %v5483, %v5568
        %v5597 = vadd.f32 %v5484, %v5573
        %v5598 = vadd.f32 %v5485, %v5576
        %v5599 = vadd.f32 %v5486, %v5581
        %v5600 = vadd.f32 %v5487, %v5584
        %v5601 = vadd.f32 %v5488, %v5589
        %v5602 = vadd.f32 %v5489, %v5592
        %v5603 = vld [vmem:[%s4923 + $0x3] sm:$0xff]
        %v5604 = vld [vmem:[%s4923 + $0x13] sm:$0xff]
        %v5605 = vld [vmem:[%s4923 + $0x23] sm:$0xff]
        %v5606 = vld [vmem:[%s4923 + $0x33] sm:$0xff]
        %v5607 = vld [vmem:[%s4923 + $0x43] sm:$0xff]
        %v5608 = vld [vmem:[%s4923 + $0x53] sm:$0xff]
        %v5609 = vld [vmem:[%s4923 + $0x63] sm:$0xff]
        %v5610 = vld [vmem:[%s4923 + $0x73] sm:$0xff]
        %v5611 = vpack.c.bf16 %v5604, %v5603
        %v5612 = vpack.c.bf16 %v5606, %v5605
        %v5613 = vpack.c.bf16 %v5608, %v5607
        %v5614 = vpack.c.bf16 %v5610, %v5609
        %s5615 = scalar_lea.vmem %s1, 576
        %v5616 = vld [vmem:[%s5615] sm:$0xf]
        %v5617 = vld [vmem:[%s5615 + $0x4] sm:$0xf]
        %v5618 = vld [vmem:[%s5615 + $0x8] sm:$0x7]
        %v5622 = vunpack.c.l.b16 %v5616
        %v5623 = vunpack.c.l.b16 %v5617
        %v5624 = vunpack.c.l.b16 %v5618
        %v5625 = vpack.c.b16 %v5623, %v5622
        %v5626 = vpack.c.b16 %v5624, %v5624
        %v5629 = vsel %vm222, %v5611, 0
        %v5632 = vsel %vm222, %v5612, 0
        %v5635 = vsel %vm222, %v5613, 0
        %v5638 = vsel %vm222, %v5614, 0
        %v5641 = vsel %vm235, %v5626, 0
        %5643 = vmatprep.subr.bf16.mxu0 0
        %5644 = vmatpush1.bf16.msra.mxu0 0
        %5645 = vmatprep.subr.bf16.mxu0 0
        %5646 = vmatpush1.bf16.msra.mxu0 0
        %5647 = vmatprep.subr.bf16.mxu0 0
        %5648 = vmatpush1.bf16.msra.mxu0 0
        %5649 = vmatprep.subr.bf16.mxu0 0
        %5650 = vmatpush1.bf16.msra.mxu0 0
        %5651 = vmatprep.subr.bf16.mxu0 0
        %5652 = vmatpush1.bf16.msra.mxu0 0
        %5653 = vmatprep.subr.bf16.mxu0 0
        %5654 = vmatpush1.bf16.msra.mxu0 0
        %5655 = vmatprep.subr.bf16.mxu0 0
        %5656 = vmatpush1.bf16.msra.mxu0 %v5641
        %5657 = vmatprep.subr.bf16.mxu0 0
        %5658 = vmatpush1.bf16.msra.mxu0 %v5625
        %5659 = vmatprep.subr.bf16.mxu0 0
        %5660 = vmatpush2.bf16.msra.mxu0 0
        %5661 = vmatprep.subr.bf16.mxu0 0
        %5662 = vmatpush2.bf16.msra.mxu0 0
        %5663 = vmatprep.subr.bf16.mxu0 0
        %5664 = vmatpush2.bf16.msra.mxu0 0
        %5665 = vmatprep.subr.bf16.mxu0 0
        %5666 = vmatpush2.bf16.msra.mxu0 0
        %5667 = vmatprep.subr.bf16.mxu0 0
        %5668 = vmatpush2.bf16.msra.mxu0 0
        %5669 = vmatprep.subr.bf16.mxu0 0
        %5670 = vmatpush2.bf16.msra.mxu0 0
        %5671 = vmatprep.subr.bf16.mxu0 0
        %5672 = vmatpush2.bf16.msra.mxu0 0
        %5673 = vmatprep.subr.bf16.mxu0 0
        %5674 = vmatpush2.bf16.msra.mxu0 0
        %5675 = vmatprep.mubr.bf16.mxu0 0
        %5676 = vmatmul.mubr.bf16.gmra.mxu0 %v5629
        %v5677 = vpop.f32.mrf.mxu0
        %v5678 = vadd.f32 0.0, %v5677
        %v5679 = vpop.f32.mrf.mxu0
        %v5680 = vpop.f32.mrf.mxu0
        %v5681 = vadd.f32 0.0, %v5680
        %v5682 = vpop.f32.mrf.mxu0
        %5683 = vmatprep.mubr.bf16.mxu0 0
        %5684 = vmatmul.mubr.bf16.gmra.mxu0 %v5632
        %v5685 = vpop.f32.mrf.mxu0
        %v5686 = vadd.f32 0.0, %v5685
        %v5687 = vpop.f32.mrf.mxu0
        %v5688 = vpop.f32.mrf.mxu0
        %v5689 = vadd.f32 0.0, %v5688
        %v5690 = vpop.f32.mrf.mxu0
        %5691 = vmatprep.mubr.bf16.mxu0 0
        %5692 = vmatmul.mubr.bf16.gmra.mxu0 %v5635
        %v5693 = vpop.f32.mrf.mxu0
        %v5694 = vadd.f32 0.0, %v5693
        %v5695 = vpop.f32.mrf.mxu0
        %v5696 = vpop.f32.mrf.mxu0
        %v5697 = vadd.f32 0.0, %v5696
        %v5698 = vpop.f32.mrf.mxu0
        %5699 = vmatprep.mubr.bf16.mxu0 0
        %5700 = vmatmul.mubr.bf16.gmra.mxu0 %v5638
        %v5701 = vpop.f32.mrf.mxu0
        %v5702 = vadd.f32 0.0, %v5701
        %v5703 = vpop.f32.mrf.mxu0
        %v5704 = vpop.f32.mrf.mxu0
        %v5705 = vadd.f32 0.0, %v5704
        %v5706 = vpop.f32.mrf.mxu0
        %5707 = vdwg.mxu0
        %v5708 = vadd.f32 %v5595, %v5678
        %v5709 = vadd.f32 %v5596, %v5681
        %v5710 = vadd.f32 %v5597, %v5686
        %v5711 = vadd.f32 %v5598, %v5689
        %v5712 = vadd.f32 %v5599, %v5694
        %v5713 = vadd.f32 %v5600, %v5697
        %v5714 = vadd.f32 %v5601, %v5702
        %v5715 = vadd.f32 %v5602, %v5705
        %5716 = vst [vmem:[%s167] sm:$0xff] %v5708
        %5717 = vst [vmem:[%s167 + $0x8] sm:$0xff] %v5709
        %5718 = vst [vmem:[%s167 + $0x10] sm:$0xff] %v5710
        %5719 = vst [vmem:[%s167 + $0x18] sm:$0xff] %v5711
        %5720 = vst [vmem:[%s167 + $0x20] sm:$0xff] %v5712
        %5721 = vst [vmem:[%s167 + $0x28] sm:$0xff] %v5713
        %5722 = vst [vmem:[%s167 + $0x30] sm:$0xff] %v5714
        %5723 = vst [vmem:[%s167 + $0x38] sm:$0xff] %v5715
        %v5724 = vadd.f32 %v5708, %v5709
        %v5725 = vadd.f32 %v5724, %v5710
        %v5726 = vadd.f32 %v5725, %v5711
        %v5727 = vadd.f32 %v5726, %v5712
        %v5728 = vadd.f32 %v5727, %v5713
        %v5729 = vadd.f32 %v5728, %v5714
        %v5730 = vadd.f32 %v5729, %v5715
        %v5731 = vrot.slane %v5730, 4
        %v5732 = vadd.f32 %v5730, %v5731
        %v5733 = vrot.slane %v5732, 2
        %v5734 = vadd.f32 %v5732, %v5733
        %v5735 = vrot.slane %v5734, 1
        %v5736 = vadd.f32 %v5734, %v5735
        %v5737 = vmul.f32 %v5708, %v5708
        %v5738 = vmul.f32 %v5709, %v5709
        %v5739 = vmul.f32 %v5710, %v5710
        %v5740 = vmul.f32 %v5711, %v5711
        %v5741 = vmul.f32 %v5712, %v5712
        %v5742 = vmul.f32 %v5713, %v5713
        %v5743 = vmul.f32 %v5714, %v5714
        %v5744 = vmul.f32 %v5715, %v5715
        %v5745 = vadd.f32 %v5737, %v5738
        %v5746 = vadd.f32 %v5745, %v5739
        %v5747 = vadd.f32 %v5746, %v5740
        %v5748 = vadd.f32 %v5747, %v5741
        %v5749 = vadd.f32 %v5748, %v5742
        %v5750 = vadd.f32 %v5749, %v5743
        %v5751 = vadd.f32 %v5750, %v5744
        %v5752 = vrot.slane %v5751, 4
        %v5753 = vadd.f32 %v5751, %v5752
        %v5754 = vrot.slane %v5753, 2
        %v5755 = vadd.f32 %v5753, %v5754
        %v5756 = vrot.slane %v5755, 1
        %v5757 = vadd.f32 %v5755, %v5756
        %vm5758 = vcmask 1040384
        %v5759 = vsel %vm5758, %v5736, %v5757
        %5760 = vst [vmem:[%s174] sm:$0x3] %v5759
        %s5761 = sand.u32 %s76, 1
        %s5762 = scalar_lea.sflag [#allocation3], %s5761
        %s5763 = sand.u32 %s76, 1
        %s5764 = smul.addr %s5763, 64
        %s5765 = scalar_lea.vmem [#allocation2], %s5764
        %s5766 = sand.u32 %s102, 1
        %s5767 = scalar_lea.sflag [#allocation5], %s5766
        %s5768 = sand.u32 %s102, 1
        %s5769 = smul.addr %s5768, 2
        %s5770 = scalar_lea.vmem [#allocation4], %s5769
        // Predicated region
        $region29: #{tpu_custom_call.1} parent=27 // pred_check
          %p5771 = pneg %p86
        $region30: #{tpu_custom_call.1} parent=27 // pred_check_branch
          %5773 = sbr.rel (%p5771) target = $region32
        $region31: #{tpu_custom_call.1} parent=27 // pred_region
          %s5775 = ssub.s32 1024, 1024
          %5776 = vsyncadd %s5762, %s5775
          %s5777 = smul.addr %s21, 8
          %s5778 = smul.addr %s5777, 128
          %s5779 = scalar_lea.hbm %s2, %s5778
          %s5780 = sshll.u32 %s5765, 4
          %s5781 = int_to_ptr.vmem [resolvable:$true] %s5780
          %5786 = dma.vmem_to_hbm [thread:$0]  %s5781, 1024, %s5779, %s5762, 128, 128, 8
        $region32: #{tpu_custom_call.1} parent=27 // pred_fallthru
          _
        // Predicated region
        $region33: #{tpu_custom_call.1} parent=27 // pred_check
          %p5787 = pneg %p112
        $region34: #{tpu_custom_call.1} parent=27 // pred_check_branch
          %5789 = sbr.rel (%p5787) target = $region36
        $region35: #{tpu_custom_call.1} parent=27 // pred_region
          %s5791 = ssub.s32 32, 32
          %5792 = vsyncadd %s5767, %s5791
          %s5793 = smul.addr %s21, 32
          %s5794 = scalar_lea.hbm %s3, %s5793
          %s5796 = sshll.u32 %s5770, 4
          %s5797 = int_to_ptr.vmem [resolvable:$true] %s5796
          %5799 = dma.vmem_to_hbm [thread:$0]  %s5797, 32, %s5794, %s5767
        $region36: #{tpu_custom_call.1} parent=27 // pred_fallthru
          _
      $region28: #{tpu_custom_call.1} parent=5 // pred_fallthru
        _
      %p5800 = scmp.le.s32.totalorder 2, %s16
      // Predicated region
      $region37: #{tpu_custom_call.1} parent=5 // pred_check
        %p5801 = pneg %p5800
      $region38: #{tpu_custom_call.1} parent=5 // pred_check_branch
        %5803 = sbr.rel (%p5801) target = $region40
      $region39: #{tpu_custom_call.1} parent=5 // pred_region
        %s5804 = ssub.s32 %s16, 2
        // Predicated region
        $region41: #{tpu_custom_call.1} parent=39 // pred_check
          %p5805 = pneg %p92
        $region42: #{tpu_custom_call.1} parent=39 // pred_check_branch
          %5807 = sbr.rel (%p5805) target = $region44
        $region43: #{tpu_custom_call.1} parent=39 // pred_region
          %s5808 = sand.u32 %s77, 1
          %s5809 = scalar_lea.sflag [#allocation3], %s5808
          %s5810 = sand.u32 %s77, 1
          %s5811 = smul.addr %s5810, 64
          %s5812 = scalar_lea.vmem [#allocation2], %s5811
          %5813 = dma.done %s5809, 1024
        $region44: #{tpu_custom_call.1} parent=39 // pred_fallthru
          _
        // Predicated region
        $region45: #{tpu_custom_call.1} parent=39 // pred_check
          %p5814 = pneg %p118
        $region46: #{tpu_custom_call.1} parent=39 // pred_check_branch
          %5816 = sbr.rel (%p5814) target = $region48
        $region47: #{tpu_custom_call.1} parent=39 // pred_region
          %s5817 = sand.u32 %s103, 1
          %s5818 = scalar_lea.sflag [#allocation5], %s5817
          %s5819 = sand.u32 %s103, 1
          %s5820 = smul.addr %s5819, 2
          %s5821 = scalar_lea.vmem [#allocation4], %s5820
          %5822 = dma.done %s5818, 32
        $region48: #{tpu_custom_call.1} parent=39 // pred_fallthru
          _
      $region40: #{tpu_custom_call.1} parent=5 // pred_fallthru
        _
    $region6: #{tpu_custom_call.1} parent=1 // loop_footer
      %s20 = sadd.s32 1, %s16
    $region7: #{tpu_custom_call.1} parent=1 // loop_footer_branch
      %15 = sbr.rel target = $region3
    $region8: #{tpu_custom_call.1} parent=1 // loop_exit
      _
    %5823 = vsyncpa [#allocation3], 1
    %s5824 = scalar_lea.sflag [#allocation3], 1
    %5825 = vsyncpa %s5824, 1
    %5826 = vsyncpa [#allocation5], 1
    %s5827 = scalar_lea.sflag [#allocation5], 1
    %5828 = vsyncpa %s5827, 1

</llo_original>
